<compile_context>
chip_gen: v6e
topology: v6e:2x2x1
jax: 0.10.0
libtpu: 0.0.40
codegen_flags: <defaults>
</compile_context>

<pallas_src>
import jax
import jax.numpy as jnp
import numpy as np
from jax import lax
from jax.experimental import pallas as pl
from jax.experimental.pallas import tpu as pltpu

INPUT_SIZE = 34
HIDDEN = 64
NUM_LAYERS = 3
NUM_CLASSES = 20

# PyTorch LSTM gate order is (i, f, g, o); the kernel packs columns as (i, f, o, g)
# so sigmoid gates are contiguous.  _GATE_PERM[new_pos] = pytorch_gate_index.
_GATE_PERM = (0, 1, 3, 2)


# ----------------------------- fused Pallas kernel ----------------------------

def _make_fused_rnn_kernel(T, B):
    H = HIDDEN
    G = 4 * H          # 256 gate columns per direction
    W = 2 * H          # 128 = [h_fwd | h_bwd]

    def kernel(x_ref,
               wih0_ref, whh0_ref, b0_ref,
               wih1_ref, whh1_ref, b1_ref,
               wih2_ref, whh2_ref, b2_ref,
               wout_ref, bout_ref,
               out_ref,
               hseq_ref):
        wih = (wih0_ref, wih1_ref, wih2_ref)
        whh = (whh0_ref, whh1_ref, whh2_ref)
        bias = (b0_ref, b1_ref, b2_ref)

        layer_in = x_ref[...]                                  # (T*B, Din) layer-0 input
        for layer in range(NUM_LAYERS):
            # One big input projection for every timestep and both directions.
            xg = (jnp.dot(layer_in, wih[layer][...],
                          preferred_element_type=jnp.float32)
                  + bias[layer][...])                          # (T*B, 2G)
            whh_l = whh[layer][...]                            # (W, 2G) block-diagonal

            h = jnp.zeros((B, W), jnp.float32)                 # [h_fwd | h_bwd]
            c_f = jnp.zeros((B, H), jnp.float32)
            c_b = jnp.zeros((B, H), jnp.float32)

            # Fully-unrolled fused fwd+bwd recurrence (static T => static indices).
            for s in range(T):
                rf = s * B                                     # fwd consumes time s
                rb = (T - 1 - s) * B                           # bwd consumes time T-1-s
                rec = jnp.dot(h, whh_l,
                              preferred_element_type=jnp.float32)   # (B, 2G)
                gf = rec[:, 0:G] + xg[rf:rf + B, 0:G]
                gb = rec[:, G:2 * G] + xg[rb:rb + B, G:2 * G]

                # gate layout per direction: [i | f | o | g]
                sf = jax.nn.sigmoid(gf[:, 0:3 * H])
                sb = jax.nn.sigmoid(gb[:, 0:3 * H])
                gcf = jnp.tanh(gf[:, 3 * H:4 * H])
                gcb = jnp.tanh(gb[:, 3 * H:4 * H])

                c_f = sf[:, H:2 * H] * c_f + sf[:, 0:H] * gcf
                c_b = sb[:, H:2 * H] * c_b + sb[:, 0:H] * gcb
                h_f = sf[:, 2 * H:3 * H] * jnp.tanh(c_f)
                h_b = sb[:, 2 * H:3 * H] * jnp.tanh(c_b)

                # r_out layout: fwd half at time s, bwd half at time T-1-s.
                hseq_ref[rf:rf + B, 0:H] = h_f
                hseq_ref[rb:rb + B, H:W] = h_b

                h = jnp.concatenate([h_f, h_b], axis=-1)

            layer_in = hseq_ref[...]                           # (T*B, 128) next input

        # r_out[:, -1, :]  ==  rows (T-1)*B : T*B of the final layer's sequence.
        last = hseq_ref[(T - 1) * B:T * B, :]                  # (B, 128)
        out_ref[...] = (jnp.dot(last, wout_ref[...],
                                preferred_element_type=jnp.float32)
                        + bout_ref[...])

    return kernel


def rnn_forward(x, kp):
    """Equivalent of RNN.forward: r_out, _ = LSTM(x); out = Linear(r_out[:, -1, :])."""
    B, T, _ = x.shape
    # batch-first -> time-major, flattened to 2-D so the kernel never reshapes.
    x2d = jnp.transpose(x, (1, 0, 2)).astype(jnp.float32).reshape(T * B, INPUT_SIZE)

    args = [x2d]
    for layer in range(NUM_LAYERS):
        args += [kp["wih"][layer], kp["whh"][layer], kp["b"][layer]]
    args += [kp["wout"], kp["bout"]]

    return pl.pallas_call(
        _make_fused_rnn_kernel(T, B),
        out_shape=jax.ShapeDtypeStruct((B, NUM_CLASSES), jnp.float32),
        in_specs=[pl.BlockSpec(memory_space=pltpu.MemorySpace.VMEM) for _ in args],
        out_specs=pl.BlockSpec(memory_space=pltpu.MemorySpace.VMEM),
        scratch_shapes=[pltpu.VMEM((T * B, 2 * HIDDEN), jnp.float32)],  # layer output seq
    )(*args)


# ------------------------- parameters (PyTorch layout) -------------------------

def init_raw_params(key):
    """Raw weights in PyTorch nn.LSTM / nn.Linear layout (gate order i,f,g,o)."""
    k = 1.0 / np.sqrt(HIDDEN)
    raw = {"lstm": []}
    for layer in range(NUM_LAYERS):
        din = INPUT_SIZE if layer == 0 else 2 * HIDDEN
        lp = {}
        for dname in ("fwd", "bwd"):
            key, k1, k2, k3, k4 = jax.random.split(key, 5)
            w_ih = jax.random.uniform(k1, (4 * HIDDEN, din), jnp.float32, -k, k)
            w_hh = jax.random.uniform(k2, (4 * HIDDEN, HIDDEN), jnp.float32, -k, k)
            b_ih = jax.random.uniform(k3, (4 * HIDDEN,), jnp.float32, -k, k)
            b_hh = jax.random.uniform(k4, (4 * HIDDEN,), jnp.float32, -k, k)
            lp[dname] = (w_ih, w_hh, b_ih, b_hh)
        raw["lstm"].append(lp)
    ko = 1.0 / np.sqrt(2 * HIDDEN)
    key, k1, k2 = jax.random.split(key, 3)
    raw["out_w"] = jax.random.uniform(k1, (NUM_CLASSES, 2 * HIDDEN), jnp.float32, -ko, ko)
    raw["out_b"] = jax.random.uniform(k2, (NUM_CLASSES,), jnp.float32, -ko, ko)
    return raw


def pack_params(raw):
    """Pack to the fused-kernel layout:
       W_ih: (Din, 512)  columns = [fwd: i|f|o|g , bwd: i|f|o|g]
       W_hh: (128, 512)  block-diagonal (rows 0:64 -> fwd cols, rows 64:128 -> bwd cols)
       b   : (1, 512)    fused b_ih + b_hh
       wout: (128, 20), bout: (1, 20)
    """
    H = HIDDEN
    kp = {"wih": [], "whh": [], "b": []}
    for layer in range(NUM_LAYERS):
        din = INPUT_SIZE if layer == 0 else 2 * H
        wih = np.zeros((din, 8 * H), np.float32)
        whh = np.zeros((2 * H, 8 * H), np.float32)
        b = np.zeros((1, 8 * H), np.float32)
        for d, dname in enumerate(("fwd", "bwd")):
            w_ih, w_hh, b_ih, b_hh = (np.asarray(a) for a in raw["lstm"][layer][dname])
            for gi, pg in enumerate(_GATE_PERM):
                col = d * 4 * H + gi * H
                wih[:, col:col + H] = w_ih[pg * H:(pg + 1) * H, :].T
                whh[d * H:(d + 1) * H, col:col + H] = w_hh[pg * H:(pg + 1) * H, :].T
                b[0, col:col + H] = b_ih[pg * H:(pg + 1) * H] + b_hh[pg * H:(pg + 1) * H]
        kp["wih"].append(jnp.asarray(wih))
        kp["whh"].append(jnp.asarray(whh))
        kp["b"].append(jnp.asarray(b))
    kp["wout"] = jnp.asarray(np.asarray(raw["out_w"]).T)
    kp["bout"] = jnp.asarray(np.asarray(raw["out_b"])[None, :])
    return kp


# ------------------------------ pure-JAX reference -----------------------------

def _lstm_cell_ref(carry, x_t, w_ih, w_hh, b):
    h, c = carry
    gates = x_t @ w_ih.T + h @ w_hh.T + b
    i, f, g, o = jnp.split(gates, 4, axis=-1)
    c = jax.nn.sigmoid(f) * c + jax.nn.sigmoid(i) * jnp.tanh(g)
    h = jax.nn.sigmoid(o) * jnp.tanh(c)
    return (h, c), h


def rnn_forward_ref(x, raw):
    h = jnp.transpose(x, (1, 0, 2)).astype(jnp.float32)   # (T, B, Din)
    B = x.shape[0]
    for layer in range(NUM_LAYERS):
        outs = []
        for dname, seq in (("fwd", h), ("bwd", h[::-1])):
            w_ih, w_hh, b_ih, b_hh = raw["lstm"][layer][dname]
            b = (b_ih + b_hh)[None, :]
            init = (jnp.zeros((B, HIDDEN), jnp.float32),
                    jnp.zeros((B, HIDDEN), jnp.float32))
            _, hs = lax.scan(
                lambda carry, xt: _lstm_cell_ref(carry, xt, w_ih, w_hh, b), init, seq)
            outs.append(hs if dname == "fwd" else hs[::-1])
        h = jnp.concatenate(outs, axis=-1)
    return h[-1] @ raw["out_w"].T + raw["out_b"][None, :]


# ----------------------------------- main --------------------------------------

if __name__ == "__main__":
    key = jax.random.PRNGKey(0)
    kp_key, kx = jax.random.split(key)
    raw = init_raw_params(kp_key)
    kparams = pack_params(raw)

    B, T = 2, 8
    x = jax.random.normal(kx, (B, T, INPUT_SIZE), dtype=jnp.float32)

    out = jax.jit(rnn_forward)(x, kparams)
    out = jax.block_until_ready(out)

    ref = rnn_forward_ref(x, raw)
    assert out.shape == (B, NUM_CLASSES)
    np.testing.assert_allclose(np.asarray(out), np.asarray(ref), atol=2e-2, rtol=2e-2)
    print("KERNEL_OK")
</pallas_src>

<mosaic_0001>
module attributes {stable_mosaic.version = 11 : i64} {
  func.func @kernel(%arg0: memref<16x34xf32, #tpu.memory_space<vmem>>, %arg1: memref<34x512xf32, #tpu.memory_space<vmem>>, %arg2: memref<128x512xf32, #tpu.memory_space<vmem>>, %arg3: memref<1x512xf32, #tpu.memory_space<vmem>>, %arg4: memref<128x512xf32, #tpu.memory_space<vmem>>, %arg5: memref<128x512xf32, #tpu.memory_space<vmem>>, %arg6: memref<1x512xf32, #tpu.memory_space<vmem>>, %arg7: memref<128x512xf32, #tpu.memory_space<vmem>>, %arg8: memref<128x512xf32, #tpu.memory_space<vmem>>, %arg9: memref<1x512xf32, #tpu.memory_space<vmem>>, %arg10: memref<128x20xf32, #tpu.memory_space<vmem>>, %arg11: memref<1x20xf32, #tpu.memory_space<vmem>>, %arg12: memref<2x20xf32, #tpu.memory_space<vmem>>, %arg13: memref<16x128xf32, #tpu.memory_space<vmem>>) attributes {dimension_semantics = [], scalar_prefetch = 0 : i64, scratch_operands = 1 : i64, tpu.core_type = #tpu.core_type<tc>} {
    %c0 = arith.constant 0 : index
    %c0_0 = arith.constant 0 : index
    %0 = vector.load %arg0[%c0, %c0_0] : memref<16x34xf32, #tpu.memory_space<vmem>>, vector<16x34xf32>
    %c0_1 = arith.constant 0 : index
    %c0_2 = arith.constant 0 : index
    %1 = vector.load %arg1[%c0_1, %c0_2] : memref<34x512xf32, #tpu.memory_space<vmem>>, vector<34x512xf32>
    %cst = arith.constant dense<0.000000e+00> : vector<16x512xf32>
    %2 = tpu.matmul %0, %1, %cst {dimension_numbers = #tpu.dot_dimension_numbers<[1], [0], [0], [1], [0, 0, 1, 1], [], []>} : vector<16x34xf32>, vector<34x512xf32>, vector<16x512xf32> -> vector<16x512xf32>
    %c0_3 = arith.constant 0 : index
    %c0_4 = arith.constant 0 : index
    %3 = vector.load %arg3[%c0_3, %c0_4] : memref<1x512xf32, #tpu.memory_space<vmem>>, vector<1x512xf32>
    %4 = vector.broadcast %3 : vector<1x512xf32> to vector<16x512xf32>
    %5 = arith.addf %2, %4 : vector<16x512xf32>
    %c0_5 = arith.constant 0 : index
    %c0_6 = arith.constant 0 : index
    %6 = vector.load %arg2[%c0_5, %c0_6] : memref<128x512xf32, #tpu.memory_space<vmem>>, vector<128x512xf32>
    %cst_7 = arith.constant 0.000000e+00 : f32
    %7 = vector.broadcast %cst_7 : f32 to vector<2x128xf32>
    %cst_8 = arith.constant 0.000000e+00 : f32
    %8 = vector.broadcast %cst_8 : f32 to vector<2x64xf32>
    %cst_9 = arith.constant 0.000000e+00 : f32
    %9 = vector.broadcast %cst_9 : f32 to vector<2x64xf32>
    %cst_10 = arith.constant dense<0.000000e+00> : vector<2x512xf32>
    %10 = tpu.matmul %7, %6, %cst_10 {dimension_numbers = #tpu.dot_dimension_numbers<[1], [0], [0], [1], [0, 0, 1, 1], [], []>} : vector<2x128xf32>, vector<128x512xf32>, vector<2x512xf32> -> vector<2x512xf32>
    %11 = vector.extract_strided_slice %10 {offsets = [0, 0], sizes = [2, 256], strides = [1, 1]} : vector<2x512xf32> to vector<2x256xf32>
    %12 = vector.extract_strided_slice %5 {offsets = [0, 0], sizes = [2, 256], strides = [1, 1]} : vector<16x512xf32> to vector<2x256xf32>
    %13 = arith.addf %11, %12 : vector<2x256xf32>
    %14 = vector.extract_strided_slice %10 {offsets = [0, 256], sizes = [2, 256], strides = [1, 1]} : vector<2x512xf32> to vector<2x256xf32>
    %15 = vector.extract_strided_slice %5 {offsets = [14, 256], sizes = [2, 256], strides = [1, 1]} : vector<16x512xf32> to vector<2x256xf32>
    %16 = arith.addf %14, %15 : vector<2x256xf32>
    %17 = vector.extract_strided_slice %13 {offsets = [0, 0], sizes = [2, 192], strides = [1, 1]} : vector<2x256xf32> to vector<2x192xf32>
    %18 = arith.negf %17 : vector<2x192xf32>
    %19 = math.exp %18 : vector<2x192xf32>
    %cst_11 = arith.constant 1.000000e+00 : f32
    %20 = vector.broadcast %cst_11 : f32 to vector<2x192xf32>
    %21 = arith.addf %20, %19 : vector<2x192xf32>
    %22 = arith.divf %20, %21 : vector<2x192xf32>
    %23 = vector.extract_strided_slice %16 {offsets = [0, 0], sizes = [2, 192], strides = [1, 1]} : vector<2x256xf32> to vector<2x192xf32>
    %24 = arith.negf %23 : vector<2x192xf32>
    %25 = math.exp %24 : vector<2x192xf32>
    %cst_12 = arith.constant 1.000000e+00 : f32
    %26 = vector.broadcast %cst_12 : f32 to vector<2x192xf32>
    %27 = arith.addf %26, %25 : vector<2x192xf32>
    %28 = arith.divf %26, %27 : vector<2x192xf32>
    %29 = vector.extract_strided_slice %13 {offsets = [0, 192], sizes = [2, 64], strides = [1, 1]} : vector<2x256xf32> to vector<2x64xf32>
    %30 = math.tanh %29 : vector<2x64xf32>
    %31 = vector.extract_strided_slice %16 {offsets = [0, 192], sizes = [2, 64], strides = [1, 1]} : vector<2x256xf32> to vector<2x64xf32>
    %32 = math.tanh %31 : vector<2x64xf32>
    %33 = vector.extract_strided_slice %22 {offsets = [0, 64], sizes = [2, 64], strides = [1, 1]} : vector<2x192xf32> to vector<2x64xf32>
    %34 = arith.mulf %33, %8 : vector<2x64xf32>
    %35 = vector.extract_strided_slice %22 {offsets = [0, 0], sizes = [2, 64], strides = [1, 1]} : vector<2x192xf32> to vector<2x64xf32>
    %36 = arith.mulf %35, %30 : vector<2x64xf32>
    %37 = arith.addf %34, %36 : vector<2x64xf32>
    %38 = vector.extract_strided_slice %28 {offsets = [0, 64], sizes = [2, 64], strides = [1, 1]} : vector<2x192xf32> to vector<2x64xf32>
    %39 = arith.mulf %38, %9 : vector<2x64xf32>
    %40 = vector.extract_strided_slice %28 {offsets = [0, 0], sizes = [2, 64], strides = [1, 1]} : vector<2x192xf32> to vector<2x64xf32>
    %41 = arith.mulf %40, %32 : vector<2x64xf32>
    %42 = arith.addf %39, %41 : vector<2x64xf32>
    %43 = vector.extract_strided_slice %22 {offsets = [0, 128], sizes = [2, 64], strides = [1, 1]} : vector<2x192xf32> to vector<2x64xf32>
    %44 = math.tanh %37 : vector<2x64xf32>
    %45 = arith.mulf %43, %44 : vector<2x64xf32>
    %46 = vector.extract_strided_slice %28 {offsets = [0, 128], sizes = [2, 64], strides = [1, 1]} : vector<2x192xf32> to vector<2x64xf32>
    %47 = math.tanh %42 : vector<2x64xf32>
    %48 = arith.mulf %46, %47 : vector<2x64xf32>
    %c0_13 = arith.constant 0 : index
    %c0_14 = arith.constant 0 : index
    %49 = vector.load %arg13[%c0_13, %c0_14] : memref<16x128xf32, #tpu.memory_space<vmem>>, vector<2x64xf32>
    tpu.vector_store %arg13[%c0_13, %c0_14], %45 {strides = array<i32>} : memref<16x128xf32, #tpu.memory_space<vmem>>, vector<2x64xf32>,
    %c14 = arith.constant 14 : index
    %c64 = arith.constant 64 : index
    %50 = vector.load %arg13[%c14, %c64] : memref<16x128xf32, #tpu.memory_space<vmem>>, vector<2x64xf32>
    tpu.vector_store %arg13[%c14, %c64], %48 {strides = array<i32>} : memref<16x128xf32, #tpu.memory_space<vmem>>, vector<2x64xf32>,
    %51 = tpu.concatenate %45, %48 in 1 : vector<2x64xf32>, vector<2x64xf32> -> vector<2x128xf32>
    %cst_15 = arith.constant dense<0.000000e+00> : vector<2x512xf32>
    %52 = tpu.matmul %51, %6, %cst_15 {dimension_numbers = #tpu.dot_dimension_numbers<[1], [0], [0], [1], [0, 0, 1, 1], [], []>} : vector<2x128xf32>, vector<128x512xf32>, vector<2x512xf32> -> vector<2x512xf32>
    %53 = vector.extract_strided_slice %52 {offsets = [0, 0], sizes = [2, 256], strides = [1, 1]} : vector<2x512xf32> to vector<2x256xf32>
    %54 = vector.extract_strided_slice %5 {offsets = [2, 0], sizes = [2, 256], strides = [1, 1]} : vector<16x512xf32> to vector<2x256xf32>
    %55 = arith.addf %53, %54 : vector<2x256xf32>
    %56 = vector.extract_strided_slice %52 {offsets = [0, 256], sizes = [2, 256], strides = [1, 1]} : vector<2x512xf32> to vector<2x256xf32>
    %57 = vector.extract_strided_slice %5 {offsets = [12, 256], sizes = [2, 256], strides = [1, 1]} : vector<16x512xf32> to vector<2x256xf32>
    %58 = arith.addf %56, %57 : vector<2x256xf32>
    %59 = vector.extract_strided_slice %55 {offsets = [0, 0], sizes = [2, 192], strides = [1, 1]} : vector<2x256xf32> to vector<2x192xf32>
    %60 = arith.negf %59 : vector<2x192xf32>
    %61 = math.exp %60 : vector<2x192xf32>
    %cst_16 = arith.constant 1.000000e+00 : f32
    %62 = vector.broadcast %cst_16 : f32 to vector<2x192xf32>
    %63 = arith.addf %62, %61 : vector<2x192xf32>
    %64 = arith.divf %62, %63 : vector<2x192xf32>
    %65 = vector.extract_strided_slice %58 {offsets = [0, 0], sizes = [2, 192], strides = [1, 1]} : vector<2x256xf32> to vector<2x192xf32>
    %66 = arith.negf %65 : vector<2x192xf32>
    %67 = math.exp %66 : vector<2x192xf32>
    %cst_17 = arith.constant 1.000000e+00 : f32
    %68 = vector.broadcast %cst_17 : f32 to vector<2x192xf32>
    %69 = arith.addf %68, %67 : vector<2x192xf32>
    %70 = arith.divf %68, %69 : vector<2x192xf32>
    %71 = vector.extract_strided_slice %55 {offsets = [0, 192], sizes = [2, 64], strides = [1, 1]} : vector<2x256xf32> to vector<2x64xf32>
    %72 = math.tanh %71 : vector<2x64xf32>
    %73 = vector.extract_strided_slice %58 {offsets = [0, 192], sizes = [2, 64], strides = [1, 1]} : vector<2x256xf32> to vector<2x64xf32>
    %74 = math.tanh %73 : vector<2x64xf32>
    %75 = vector.extract_strided_slice %64 {offsets = [0, 64], sizes = [2, 64], strides = [1, 1]} : vector<2x192xf32> to vector<2x64xf32>
    %76 = arith.mulf %75, %37 : vector<2x64xf32>
    %77 = vector.extract_strided_slice %64 {offsets = [0, 0], sizes = [2, 64], strides = [1, 1]} : vector<2x192xf32> to vector<2x64xf32>
    %78 = arith.mulf %77, %72 : vector<2x64xf32>
    %79 = arith.addf %76, %78 : vector<2x64xf32>
    %80 = vector.extract_strided_slice %70 {offsets = [0, 64], sizes = [2, 64], strides = [1, 1]} : vector<2x192xf32> to vector<2x64xf32>
    %81 = arith.mulf %80, %42 : vector<2x64xf32>
    %82 = vector.extract_strided_slice %70 {offsets = [0, 0], sizes = [2, 64], strides = [1, 1]} : vector<2x192xf32> to vector<2x64xf32>
    %83 = arith.mulf %82, %74 : vector<2x64xf32>
    %84 = arith.addf %81, %83 : vector<2x64xf32>
    %85 = vector.extract_strided_slice %64 {offsets = [0, 128], sizes = [2, 64], strides = [1, 1]} : vector<2x192xf32> to vector<2x64xf32>
    %86 = math.tanh %79 : vector<2x64xf32>
    %87 = arith.mulf %85, %86 : vector<2x64xf32>
    %88 = vector.extract_strided_slice %70 {offsets = [0, 128], sizes = [2, 64], strides = [1, 1]} : vector<2x192xf32> to vector<2x64xf32>
    %89 = math.tanh %84 : vector<2x64xf32>
    %90 = arith.mulf %88, %89 : vector<2x64xf32>
    %c2 = arith.constant 2 : index
    %c0_18 = arith.constant 0 : index
    %91 = vector.load %arg13[%c2, %c0_18] : memref<16x128xf32, #tpu.memory_space<vmem>>, vector<2x64xf32>
    tpu.vector_store %arg13[%c2, %c0_18], %87 {strides = array<i32>} : memref<16x128xf32, #tpu.memory_space<vmem>>, vector<2x64xf32>,
    %c12 = arith.constant 12 : index
    %c64_19 = arith.constant 64 : index
    %92 = vector.load %arg13[%c12, %c64_19] : memref<16x128xf32, #tpu.memory_space<vmem>>, vector<2x64xf32>
    tpu.vector_store %arg13[%c12, %c64_19], %90 {strides = array<i32>} : memref<16x128xf32, #tpu.memory_space<vmem>>, vector<2x64xf32>,
    %93 = tpu.concatenate %87, %90 in 1 : vector<2x64xf32>, vector<2x64xf32> -> vector<2x128xf32>
    %cst_20 = arith.constant dense<0.000000e+00> : vector<2x512xf32>
    %94 = tpu.matmul %93, %6, %cst_20 {dimension_numbers = #tpu.dot_dimension_numbers<[1], [0], [0], [1], [0, 0, 1, 1], [], []>} : vector<2x128xf32>, vector<128x512xf32>, vector<2x512xf32> -> vector<2x512xf32>
    %95 = vector.extract_strided_slice %94 {offsets = [0, 0], sizes = [2, 256], strides = [1, 1]} : vector<2x512xf32> to vector<2x256xf32>
    %96 = vector.extract_strided_slice %5 {offsets = [4, 0], sizes = [2, 256], strides = [1, 1]} : vector<16x512xf32> to vector<2x256xf32>
    %97 = arith.addf %95, %96 : vector<2x256xf32>
    %98 = vector.extract_strided_slice %94 {offsets = [0, 256], sizes = [2, 256], strides = [1, 1]} : vector<2x512xf32> to vector<2x256xf32>
    %99 = vector.extract_strided_slice %5 {offsets = [10, 256], sizes = [2, 256], strides = [1, 1]} : vector<16x512xf32> to vector<2x256xf32>
    %100 = arith.addf %98, %99 : vector<2x256xf32>
    %101 = vector.extract_strided_slice %97 {offsets = [0, 0], sizes = [2, 192], strides = [1, 1]} : vector<2x256xf32> to vector<2x192xf32>
    %102 = arith.negf %101 : vector<2x192xf32>
    %103 = math.exp %102 : vector<2x192xf32>
    %cst_21 = arith.constant 1.000000e+00 : f32
    %104 = vector.broadcast %cst_21 : f32 to vector<2x192xf32>
    %105 = arith.addf %104, %103 : vector<2x192xf32>
    %106 = arith.divf %104, %105 : vector<2x192xf32>
    %107 = vector.extract_strided_slice %100 {offsets = [0, 0], sizes = [2, 192], strides = [1, 1]} : vector<2x256xf32> to vector<2x192xf32>
    %108 = arith.negf %107 : vector<2x192xf32>
    %109 = math.exp %108 : vector<2x192xf32>
    %cst_22 = arith.constant 1.000000e+00 : f32
    %110 = vector.broadcast %cst_22 : f32 to vector<2x192xf32>
    %111 = arith.addf %110, %109 : vector<2x192xf32>
    %112 = arith.divf %110, %111 : vector<2x192xf32>
    %113 = vector.extract_strided_slice %97 {offsets = [0, 192], sizes = [2, 64], strides = [1, 1]} : vector<2x256xf32> to vector<2x64xf32>
    %114 = math.tanh %113 : vector<2x64xf32>
    %115 = vector.extract_strided_slice %100 {offsets = [0, 192], sizes = [2, 64], strides = [1, 1]} : vector<2x256xf32> to vector<2x64xf32>
    %116 = math.tanh %115 : vector<2x64xf32>
    %117 = vector.extract_strided_slice %106 {offsets = [0, 64], sizes = [2, 64], strides = [1, 1]} : vector<2x192xf32> to vector<2x64xf32>
    %118 = arith.mulf %117, %79 : vector<2x64xf32>
    %119 = vector.extract_strided_slice %106 {offsets = [0, 0], sizes = [2, 64], strides = [1, 1]} : vector<2x192xf32> to vector<2x64xf32>
    %120 = arith.mulf %119, %114 : vector<2x64xf32>
    %121 = arith.addf %118, %120 : vector<2x64xf32>
    %122 = vector.extract_strided_slice %112 {offsets = [0, 64], sizes = [2, 64], strides = [1, 1]} : vector<2x192xf32> to vector<2x64xf32>
    %123 = arith.mulf %122, %84 : vector<2x64xf32>
    %124 = vector.extract_strided_slice %112 {offsets = [0, 0], sizes = [2, 64], strides = [1, 1]} : vector<2x192xf32> to vector<2x64xf32>
    %125 = arith.mulf %124, %116 : vector<2x64xf32>
    %126 = arith.addf %123, %125 : vector<2x64xf32>
    %127 = vector.extract_strided_slice %106 {offsets = [0, 128], sizes = [2, 64], strides = [1, 1]} : vector<2x192xf32> to vector<2x64xf32>
    %128 = math.tanh %121 : vector<2x64xf32>
    %129 = arith.mulf %127, %128 : vector<2x64xf32>
    %130 = vector.extract_strided_slice %112 {offsets = [0, 128], sizes = [2, 64], strides = [1, 1]} : vector<2x192xf32> to vector<2x64xf32>
    %131 = math.tanh %126 : vector<2x64xf32>
    %132 = arith.mulf %130, %131 : vector<2x64xf32>
    %c4 = arith.constant 4 : index
    %c0_23 = arith.constant 0 : index
    %133 = vector.load %arg13[%c4, %c0_23] : memref<16x128xf32, #tpu.memory_space<vmem>>, vector<2x64xf32>
    tpu.vector_store %arg13[%c4, %c0_23], %129 {strides = array<i32>} : memref<16x128xf32, #tpu.memory_space<vmem>>, vector<2x64xf32>,
    %c10 = arith.constant 10 : index
    %c64_24 = arith.constant 64 : index
    %134 = vector.load %arg13[%c10, %c64_24] : memref<16x128xf32, #tpu.memory_space<vmem>>, vector<2x64xf32>
    tpu.vector_store %arg13[%c10, %c64_24], %132 {strides = array<i32>} : memref<16x128xf32, #tpu.memory_space<vmem>>, vector<2x64xf32>,
    %135 = tpu.concatenate %129, %132 in 1 : vector<2x64xf32>, vector<2x64xf32> -> vector<2x128xf32>
    %cst_25 = arith.constant dense<0.000000e+00> : vector<2x512xf32>
    %136 = tpu.matmul %135, %6, %cst_25 {dimension_numbers = #tpu.dot_dimension_numbers<[1], [0], [0], [1], [0, 0, 1, 1], [], []>} : vector<2x128xf32>, vector<128x512xf32>, vector<2x512xf32> -> vector<2x512xf32>
    %137 = vector.extract_strided_slice %136 {offsets = [0, 0], sizes = [2, 256], strides = [1, 1]} : vector<2x512xf32> to vector<2x256xf32>
    %138 = vector.extract_strided_slice %5 {offsets = [6, 0], sizes = [2, 256], strides = [1, 1]} : vector<16x512xf32> to vector<2x256xf32>
    %139 = arith.addf %137, %138 : vector<2x256xf32>
    %140 = vector.extract_strided_slice %136 {offsets = [0, 256], sizes = [2, 256], strides = [1, 1]} : vector<2x512xf32> to vector<2x256xf32>
    %141 = vector.extract_strided_slice %5 {offsets = [8, 256], sizes = [2, 256], strides = [1, 1]} : vector<16x512xf32> to vector<2x256xf32>
    %142 = arith.addf %140, %141 : vector<2x256xf32>
    %143 = vector.extract_strided_slice %139 {offsets = [0, 0], sizes = [2, 192], strides = [1, 1]} : vector<2x256xf32> to vector<2x192xf32>
    %144 = arith.negf %143 : vector<2x192xf32>
    %145 = math.exp %144 : vector<2x192xf32>
    %cst_26 = arith.constant 1.000000e+00 : f32
    %146 = vector.broadcast %cst_26 : f32 to vector<2x192xf32>
    %147 = arith.addf %146, %145 : vector<2x192xf32>
    %148 = arith.divf %146, %147 : vector<2x192xf32>
    %149 = vector.extract_strided_slice %142 {offsets = [0, 0], sizes = [2, 192], strides = [1, 1]} : vector<2x256xf32> to vector<2x192xf32>
    %150 = arith.negf %149 : vector<2x192xf32>
    %151 = math.exp %150 : vector<2x192xf32>
    %cst_27 = arith.constant 1.000000e+00 : f32
    %152 = vector.broadcast %cst_27 : f32 to vector<2x192xf32>
    %153 = arith.addf %152, %151 : vector<2x192xf32>
    %154 = arith.divf %152, %153 : vector<2x192xf32>
    %155 = vector.extract_strided_slice %139 {offsets = [0, 192], sizes = [2, 64], strides = [1, 1]} : vector<2x256xf32> to vector<2x64xf32>
    %156 = math.tanh %155 : vector<2x64xf32>
    %157 = vector.extract_strided_slice %142 {offsets = [0, 192], sizes = [2, 64], strides = [1, 1]} : vector<2x256xf32> to vector<2x64xf32>
    %158 = math.tanh %157 : vector<2x64xf32>
    %159 = vector.extract_strided_slice %148 {offsets = [0, 64], sizes = [2, 64], strides = [1, 1]} : vector<2x192xf32> to vector<2x64xf32>
    %160 = arith.mulf %159, %121 : vector<2x64xf32>
    %161 = vector.extract_strided_slice %148 {offsets = [0, 0], sizes = [2, 64], strides = [1, 1]} : vector<2x192xf32> to vector<2x64xf32>
    %162 = arith.mulf %161, %156 : vector<2x64xf32>
    %163 = arith.addf %160, %162 : vector<2x64xf32>
    %164 = vector.extract_strided_slice %154 {offsets = [0, 64], sizes = [2, 64], strides = [1, 1]} : vector<2x192xf32> to vector<2x64xf32>
    %165 = arith.mulf %164, %126 : vector<2x64xf32>
    %166 = vector.extract_strided_slice %154 {offsets = [0, 0], sizes = [2, 64], strides = [1, 1]} : vector<2x192xf32> to vector<2x64xf32>
    %167 = arith.mulf %166, %158 : vector<2x64xf32>
    %168 = arith.addf %165, %167 : vector<2x64xf32>
    %169 = vector.extract_strided_slice %148 {offsets = [0, 128], sizes = [2, 64], strides = [1, 1]} : vector<2x192xf32> to vector<2x64xf32>
    %170 = math.tanh %163 : vector<2x64xf32>
    %171 = arith.mulf %169, %170 : vector<2x64xf32>
    %172 = vector.extract_strided_slice %154 {offsets = [0, 128], sizes = [2, 64], strides = [1, 1]} : vector<2x192xf32> to vector<2x64xf32>
    %173 = math.tanh %168 : vector<2x64xf32>
    %174 = arith.mulf %172, %173 : vector<2x64xf32>
    %c6 = arith.constant 6 : index
    %c0_28 = arith.constant 0 : index
    %175 = vector.load %arg13[%c6, %c0_28] : memref<16x128xf32, #tpu.memory_space<vmem>>, vector<2x64xf32>
    tpu.vector_store %arg13[%c6, %c0_28], %171 {strides = array<i32>} : memref<16x128xf32, #tpu.memory_space<vmem>>, vector<2x64xf32>,
    %c8 = arith.constant 8 : index
    %c64_29 = arith.constant 64 : index
    %176 = vector.load %arg13[%c8, %c64_29] : memref<16x128xf32, #tpu.memory_space<vmem>>, vector<2x64xf32>
    tpu.vector_store %arg13[%c8, %c64_29], %174 {strides = array<i32>} : memref<16x128xf32, #tpu.memory_space<vmem>>, vector<2x64xf32>,
    %177 = tpu.concatenate %171, %174 in 1 : vector<2x64xf32>, vector<2x64xf32> -> vector<2x128xf32>
    %cst_30 = arith.constant dense<0.000000e+00> : vector<2x512xf32>
    %178 = tpu.matmul %177, %6, %cst_30 {dimension_numbers = #tpu.dot_dimension_numbers<[1], [0], [0], [1], [0, 0, 1, 1], [], []>} : vector<2x128xf32>, vector<128x512xf32>, vector<2x512xf32> -> vector<2x512xf32>
    %179 = vector.extract_strided_slice %178 {offsets = [0, 0], sizes = [2, 256], strides = [1, 1]} : vector<2x512xf32> to vector<2x256xf32>
    %180 = vector.extract_strided_slice %5 {offsets = [8, 0], sizes = [2, 256], strides = [1, 1]} : vector<16x512xf32> to vector<2x256xf32>
    %181 = arith.addf %179, %180 : vector<2x256xf32>
    %182 = vector.extract_strided_slice %178 {offsets = [0, 256], sizes = [2, 256], strides = [1, 1]} : vector<2x512xf32> to vector<2x256xf32>
    %183 = vector.extract_strided_slice %5 {offsets = [6, 256], sizes = [2, 256], strides = [1, 1]} : vector<16x512xf32> to vector<2x256xf32>
    %184 = arith.addf %182, %183 : vector<2x256xf32>
    %185 = vector.extract_strided_slice %181 {offsets = [0, 0], sizes = [2, 192], strides = [1, 1]} : vector<2x256xf32> to vector<2x192xf32>
    %186 = arith.negf %185 : vector<2x192xf32>
    %187 = math.exp %186 : vector<2x192xf32>
    %cst_31 = arith.constant 1.000000e+00 : f32
    %188 = vector.broadcast %cst_31 : f32 to vector<2x192xf32>
    %189 = arith.addf %188, %187 : vector<2x192xf32>
    %190 = arith.divf %188, %189 : vector<2x192xf32>
    %191 = vector.extract_strided_slice %184 {offsets = [0, 0], sizes = [2, 192], strides = [1, 1]} : vector<2x256xf32> to vector<2x192xf32>
    %192 = arith.negf %191 : vector<2x192xf32>
    %193 = math.exp %192 : vector<2x192xf32>
    %cst_32 = arith.constant 1.000000e+00 : f32
    %194 = vector.broadcast %cst_32 : f32 to vector<2x192xf32>
    %195 = arith.addf %194, %193 : vector<2x192xf32>
    %196 = arith.divf %194, %195 : vector<2x192xf32>
    %197 = vector.extract_strided_slice %181 {offsets = [0, 192], sizes = [2, 64], strides = [1, 1]} : vector<2x256xf32> to vector<2x64xf32>
    %198 = math.tanh %197 : vector<2x64xf32>
    %199 = vector.extract_strided_slice %184 {offsets = [0, 192], sizes = [2, 64], strides = [1, 1]} : vector<2x256xf32> to vector<2x64xf32>
    %200 = math.tanh %199 : vector<2x64xf32>
    %201 = vector.extract_strided_slice %190 {offsets = [0, 64], sizes = [2, 64], strides = [1, 1]} : vector<2x192xf32> to vector<2x64xf32>
    %202 = arith.mulf %201, %163 : vector<2x64xf32>
    %203 = vector.extract_strided_slice %190 {offsets = [0, 0], sizes = [2, 64], strides = [1, 1]} : vector<2x192xf32> to vector<2x64xf32>
    %204 = arith.mulf %203, %198 : vector<2x64xf32>
    %205 = arith.addf %202, %204 : vector<2x64xf32>
    %206 = vector.extract_strided_slice %196 {offsets = [0, 64], sizes = [2, 64], strides = [1, 1]} : vector<2x192xf32> to vector<2x64xf32>
    %207 = arith.mulf %206, %168 : vector<2x64xf32>
    %208 = vector.extract_strided_slice %196 {offsets = [0, 0], sizes = [2, 64], strides = [1, 1]} : vector<2x192xf32> to vector<2x64xf32>
    %209 = arith.mulf %208, %200 : vector<2x64xf32>
    %210 = arith.addf %207, %209 : vector<2x64xf32>
    %211 = vector.extract_strided_slice %190 {offsets = [0, 128], sizes = [2, 64], strides = [1, 1]} : vector<2x192xf32> to vector<2x64xf32>
    %212 = math.tanh %205 : vector<2x64xf32>
    %213 = arith.mulf %211, %212 : vector<2x64xf32>
    %214 = vector.extract_strided_slice %196 {offsets = [0, 128], sizes = [2, 64], strides = [1, 1]} : vector<2x192xf32> to vector<2x64xf32>
    %215 = math.tanh %210 : vector<2x64xf32>
    %216 = arith.mulf %214, %215 : vector<2x64xf32>
    %c8_33 = arith.constant 8 : index
    %c0_34 = arith.constant 0 : index
    %217 = vector.load %arg13[%c8_33, %c0_34] : memref<16x128xf32, #tpu.memory_space<vmem>>, vector<2x64xf32>
    tpu.vector_store %arg13[%c8_33, %c0_34], %213 {strides = array<i32>} : memref<16x128xf32, #tpu.memory_space<vmem>>, vector<2x64xf32>,
    %c6_35 = arith.constant 6 : index
    %c64_36 = arith.constant 64 : index
    %218 = vector.load %arg13[%c6_35, %c64_36] : memref<16x128xf32, #tpu.memory_space<vmem>>, vector<2x64xf32>
    tpu.vector_store %arg13[%c6_35, %c64_36], %216 {strides = array<i32>} : memref<16x128xf32, #tpu.memory_space<vmem>>, vector<2x64xf32>,
    %219 = tpu.concatenate %213, %216 in 1 : vector<2x64xf32>, vector<2x64xf32> -> vector<2x128xf32>
    %cst_37 = arith.constant dense<0.000000e+00> : vector<2x512xf32>
    %220 = tpu.matmul %219, %6, %cst_37 {dimension_numbers = #tpu.dot_dimension_numbers<[1], [0], [0], [1], [0, 0, 1, 1], [], []>} : vector<2x128xf32>, vector<128x512xf32>, vector<2x512xf32> -> vector<2x512xf32>
    %221 = vector.extract_strided_slice %220 {offsets = [0, 0], sizes = [2, 256], strides = [1, 1]} : vector<2x512xf32> to vector<2x256xf32>
    %222 = vector.extract_strided_slice %5 {offsets = [10, 0], sizes = [2, 256], strides = [1, 1]} : vector<16x512xf32> to vector<2x256xf32>
    %223 = arith.addf %221, %222 : vector<2x256xf32>
    %224 = vector.extract_strided_slice %220 {offsets = [0, 256], sizes = [2, 256], strides = [1, 1]} : vector<2x512xf32> to vector<2x256xf32>
    %225 = vector.extract_strided_slice %5 {offsets = [4, 256], sizes = [2, 256], strides = [1, 1]} : vector<16x512xf32> to vector<2x256xf32>
    %226 = arith.addf %224, %225 : vector<2x256xf32>
    %227 = vector.extract_strided_slice %223 {offsets = [0, 0], sizes = [2, 192], strides = [1, 1]} : vector<2x256xf32> to vector<2x192xf32>
    %228 = arith.negf %227 : vector<2x192xf32>
    %229 = math.exp %228 : vector<2x192xf32>
    %cst_38 = arith.constant 1.000000e+00 : f32
    %230 = vector.broadcast %cst_38 : f32 to vector<2x192xf32>
    %231 = arith.addf %230, %229 : vector<2x192xf32>
    %232 = arith.divf %230, %231 : vector<2x192xf32>
    %233 = vector.extract_strided_slice %226 {offsets = [0, 0], sizes = [2, 192], strides = [1, 1]} : vector<2x256xf32> to vector<2x192xf32>
    %234 = arith.negf %233 : vector<2x192xf32>
    %235 = math.exp %234 : vector<2x192xf32>
    %cst_39 = arith.constant 1.000000e+00 : f32
    %236 = vector.broadcast %cst_39 : f32 to vector<2x192xf32>
    %237 = arith.addf %236, %235 : vector<2x192xf32>
    %238 = arith.divf %236, %237 : vector<2x192xf32>
    %239 = vector.extract_strided_slice %223 {offsets = [0, 192], sizes = [2, 64], strides = [1, 1]} : vector<2x256xf32> to vector<2x64xf32>
    %240 = math.tanh %239 : vector<2x64xf32>
    %241 = vector.extract_strided_slice %226 {offsets = [0, 192], sizes = [2, 64], strides = [1, 1]} : vector<2x256xf32> to vector<2x64xf32>
    %242 = math.tanh %241 : vector<2x64xf32>
    %243 = vector.extract_strided_slice %232 {offsets = [0, 64], sizes = [2, 64], strides = [1, 1]} : vector<2x192xf32> to vector<2x64xf32>
    %244 = arith.mulf %243, %205 : vector<2x64xf32>
    %245 = vector.extract_strided_slice %232 {offsets = [0, 0], sizes = [2, 64], strides = [1, 1]} : vector<2x192xf32> to vector<2x64xf32>
    %246 = arith.mulf %245, %240 : vector<2x64xf32>
    %247 = arith.addf %244, %246 : vector<2x64xf32>
    %248 = vector.extract_strided_slice %238 {offsets = [0, 64], sizes = [2, 64], strides = [1, 1]} : vector<2x192xf32> to vector<2x64xf32>
    %249 = arith.mulf %248, %210 : vector<2x64xf32>
    %250 = vector.extract_strided_slice %238 {offsets = [0, 0], sizes = [2, 64], strides = [1, 1]} : vector<2x192xf32> to vector<2x64xf32>
    %251 = arith.mulf %250, %242 : vector<2x64xf32>
    %252 = arith.addf %249, %251 : vector<2x64xf32>
    %253 = vector.extract_strided_slice %232 {offsets = [0, 128], sizes = [2, 64], strides = [1, 1]} : vector<2x192xf32> to vector<2x64xf32>
    %254 = math.tanh %247 : vector<2x64xf32>
    %255 = arith.mulf %253, %254 : vector<2x64xf32>
    %256 = vector.extract_strided_slice %238 {offsets = [0, 128], sizes = [2, 64], strides = [1, 1]} : vector<2x192xf32> to vector<2x64xf32>
    %257 = math.tanh %252 : vector<2x64xf32>
    %258 = arith.mulf %256, %257 : vector<2x64xf32>
    %c10_40 = arith.constant 10 : index
    %c0_41 = arith.constant 0 : index
    %259 = vector.load %arg13[%c10_40, %c0_41] : memref<16x128xf32, #tpu.memory_space<vmem>>, vector<2x64xf32>
    tpu.vector_store %arg13[%c10_40, %c0_41], %255 {strides = array<i32>} : memref<16x128xf32, #tpu.memory_space<vmem>>, vector<2x64xf32>,
    %c4_42 = arith.constant 4 : index
    %c64_43 = arith.constant 64 : index
    %260 = vector.load %arg13[%c4_42, %c64_43] : memref<16x128xf32, #tpu.memory_space<vmem>>, vector<2x64xf32>
    tpu.vector_store %arg13[%c4_42, %c64_43], %258 {strides = array<i32>} : memref<16x128xf32, #tpu.memory_space<vmem>>, vector<2x64xf32>,
    %261 = tpu.concatenate %255, %258 in 1 : vector<2x64xf32>, vector<2x64xf32> -> vector<2x128xf32>
    %cst_44 = arith.constant dense<0.000000e+00> : vector<2x512xf32>
    %262 = tpu.matmul %261, %6, %cst_44 {dimension_numbers = #tpu.dot_dimension_numbers<[1], [0], [0], [1], [0, 0, 1, 1], [], []>} : vector<2x128xf32>, vector<128x512xf32>, vector<2x512xf32> -> vector<2x512xf32>
    %263 = vector.extract_strided_slice %262 {offsets = [0, 0], sizes = [2, 256], strides = [1, 1]} : vector<2x512xf32> to vector<2x256xf32>
    %264 = vector.extract_strided_slice %5 {offsets = [12, 0], sizes = [2, 256], strides = [1, 1]} : vector<16x512xf32> to vector<2x256xf32>
    %265 = arith.addf %263, %264 : vector<2x256xf32>
    %266 = vector.extract_strided_slice %262 {offsets = [0, 256], sizes = [2, 256], strides = [1, 1]} : vector<2x512xf32> to vector<2x256xf32>
    %267 = vector.extract_strided_slice %5 {offsets = [2, 256], sizes = [2, 256], strides = [1, 1]} : vector<16x512xf32> to vector<2x256xf32>
    %268 = arith.addf %266, %267 : vector<2x256xf32>
    %269 = vector.extract_strided_slice %265 {offsets = [0, 0], sizes = [2, 192], strides = [1, 1]} : vector<2x256xf32> to vector<2x192xf32>
    %270 = arith.negf %269 : vector<2x192xf32>
    %271 = math.exp %270 : vector<2x192xf32>
    %cst_45 = arith.constant 1.000000e+00 : f32
    %272 = vector.broadcast %cst_45 : f32 to vector<2x192xf32>
    %273 = arith.addf %272, %271 : vector<2x192xf32>
    %274 = arith.divf %272, %273 : vector<2x192xf32>
    %275 = vector.extract_strided_slice %268 {offsets = [0, 0], sizes = [2, 192], strides = [1, 1]} : vector<2x256xf32> to vector<2x192xf32>
    %276 = arith.negf %275 : vector<2x192xf32>
    %277 = math.exp %276 : vector<2x192xf32>
    %cst_46 = arith.constant 1.000000e+00 : f32
    %278 = vector.broadcast %cst_46 : f32 to vector<2x192xf32>
    %279 = arith.addf %278, %277 : vector<2x192xf32>
    %280 = arith.divf %278, %279 : vector<2x192xf32>
    %281 = vector.extract_strided_slice %265 {offsets = [0, 192], sizes = [2, 64], strides = [1, 1]} : vector<2x256xf32> to vector<2x64xf32>
    %282 = math.tanh %281 : vector<2x64xf32>
    %283 = vector.extract_strided_slice %268 {offsets = [0, 192], sizes = [2, 64], strides = [1, 1]} : vector<2x256xf32> to vector<2x64xf32>
    %284 = math.tanh %283 : vector<2x64xf32>
    %285 = vector.extract_strided_slice %274 {offsets = [0, 64], sizes = [2, 64], strides = [1, 1]} : vector<2x192xf32> to vector<2x64xf32>
    %286 = arith.mulf %285, %247 : vector<2x64xf32>
    %287 = vector.extract_strided_slice %274 {offsets = [0, 0], sizes = [2, 64], strides = [1, 1]} : vector<2x192xf32> to vector<2x64xf32>
    %288 = arith.mulf %287, %282 : vector<2x64xf32>
    %289 = arith.addf %286, %288 : vector<2x64xf32>
    %290 = vector.extract_strided_slice %280 {offsets = [0, 64], sizes = [2, 64], strides = [1, 1]} : vector<2x192xf32> to vector<2x64xf32>
    %291 = arith.mulf %290, %252 : vector<2x64xf32>
    %292 = vector.extract_strided_slice %280 {offsets = [0, 0], sizes = [2, 64], strides = [1, 1]} : vector<2x192xf32> to vector<2x64xf32>
    %293 = arith.mulf %292, %284 : vector<2x64xf32>
    %294 = arith.addf %291, %293 : vector<2x64xf32>
    %295 = vector.extract_strided_slice %274 {offsets = [0, 128], sizes = [2, 64], strides = [1, 1]} : vector<2x192xf32> to vector<2x64xf32>
    %296 = math.tanh %289 : vector<2x64xf32>
    %297 = arith.mulf %295, %296 : vector<2x64xf32>
    %298 = vector.extract_strided_slice %280 {offsets = [0, 128], sizes = [2, 64], strides = [1, 1]} : vector<2x192xf32> to vector<2x64xf32>
    %299 = math.tanh %294 : vector<2x64xf32>
    %300 = arith.mulf %298, %299 : vector<2x64xf32>
    %c12_47 = arith.constant 12 : index
    %c0_48 = arith.constant 0 : index
    %301 = vector.load %arg13[%c12_47, %c0_48] : memref<16x128xf32, #tpu.memory_space<vmem>>, vector<2x64xf32>
    tpu.vector_store %arg13[%c12_47, %c0_48], %297 {strides = array<i32>} : memref<16x128xf32, #tpu.memory_space<vmem>>, vector<2x64xf32>,
    %c2_49 = arith.constant 2 : index
    %c64_50 = arith.constant 64 : index
    %302 = vector.load %arg13[%c2_49, %c64_50] : memref<16x128xf32, #tpu.memory_space<vmem>>, vector<2x64xf32>
    tpu.vector_store %arg13[%c2_49, %c64_50], %300 {strides = array<i32>} : memref<16x128xf32, #tpu.memory_space<vmem>>, vector<2x64xf32>,
    %303 = tpu.concatenate %297, %300 in 1 : vector<2x64xf32>, vector<2x64xf32> -> vector<2x128xf32>
    %cst_51 = arith.constant dense<0.000000e+00> : vector<2x512xf32>
    %304 = tpu.matmul %303, %6, %cst_51 {dimension_numbers = #tpu.dot_dimension_numbers<[1], [0], [0], [1], [0, 0, 1, 1], [], []>} : vector<2x128xf32>, vector<128x512xf32>, vector<2x512xf32> -> vector<2x512xf32>
    %305 = vector.extract_strided_slice %304 {offsets = [0, 0], sizes = [2, 256], strides = [1, 1]} : vector<2x512xf32> to vector<2x256xf32>
    %306 = vector.extract_strided_slice %5 {offsets = [14, 0], sizes = [2, 256], strides = [1, 1]} : vector<16x512xf32> to vector<2x256xf32>
    %307 = arith.addf %305, %306 : vector<2x256xf32>
    %308 = vector.extract_strided_slice %304 {offsets = [0, 256], sizes = [2, 256], strides = [1, 1]} : vector<2x512xf32> to vector<2x256xf32>
    %309 = vector.extract_strided_slice %5 {offsets = [0, 256], sizes = [2, 256], strides = [1, 1]} : vector<16x512xf32> to vector<2x256xf32>
    %310 = arith.addf %308, %309 : vector<2x256xf32>
    %311 = vector.extract_strided_slice %307 {offsets = [0, 0], sizes = [2, 192], strides = [1, 1]} : vector<2x256xf32> to vector<2x192xf32>
    %312 = arith.negf %311 : vector<2x192xf32>
    %313 = math.exp %312 : vector<2x192xf32>
    %cst_52 = arith.constant 1.000000e+00 : f32
    %314 = vector.broadcast %cst_52 : f32 to vector<2x192xf32>
    %315 = arith.addf %314, %313 : vector<2x192xf32>
    %316 = arith.divf %314, %315 : vector<2x192xf32>
    %317 = vector.extract_strided_slice %310 {offsets = [0, 0], sizes = [2, 192], strides = [1, 1]} : vector<2x256xf32> to vector<2x192xf32>
    %318 = arith.negf %317 : vector<2x192xf32>
    %319 = math.exp %318 : vector<2x192xf32>
    %cst_53 = arith.constant 1.000000e+00 : f32
    %320 = vector.broadcast %cst_53 : f32 to vector<2x192xf32>
    %321 = arith.addf %320, %319 : vector<2x192xf32>
    %322 = arith.divf %320, %321 : vector<2x192xf32>
    %323 = vector.extract_strided_slice %307 {offsets = [0, 192], sizes = [2, 64], strides = [1, 1]} : vector<2x256xf32> to vector<2x64xf32>
    %324 = math.tanh %323 : vector<2x64xf32>
    %325 = vector.extract_strided_slice %310 {offsets = [0, 192], sizes = [2, 64], strides = [1, 1]} : vector<2x256xf32> to vector<2x64xf32>
    %326 = math.tanh %325 : vector<2x64xf32>
    %327 = vector.extract_strided_slice %316 {offsets = [0, 64], sizes = [2, 64], strides = [1, 1]} : vector<2x192xf32> to vector<2x64xf32>
    %328 = arith.mulf %327, %289 : vector<2x64xf32>
    %329 = vector.extract_strided_slice %316 {offsets = [0, 0], sizes = [2, 64], strides = [1, 1]} : vector<2x192xf32> to vector<2x64xf32>
    %330 = arith.mulf %329, %324 : vector<2x64xf32>
    %331 = arith.addf %328, %330 : vector<2x64xf32>
    %332 = vector.extract_strided_slice %322 {offsets = [0, 64], sizes = [2, 64], strides = [1, 1]} : vector<2x192xf32> to vector<2x64xf32>
    %333 = arith.mulf %332, %294 : vector<2x64xf32>
    %334 = vector.extract_strided_slice %322 {offsets = [0, 0], sizes = [2, 64], strides = [1, 1]} : vector<2x192xf32> to vector<2x64xf32>
    %335 = arith.mulf %334, %326 : vector<2x64xf32>
    %336 = arith.addf %333, %335 : vector<2x64xf32>
    %337 = vector.extract_strided_slice %316 {offsets = [0, 128], sizes = [2, 64], strides = [1, 1]} : vector<2x192xf32> to vector<2x64xf32>
    %338 = math.tanh %331 : vector<2x64xf32>
    %339 = arith.mulf %337, %338 : vector<2x64xf32>
    %340 = vector.extract_strided_slice %322 {offsets = [0, 128], sizes = [2, 64], strides = [1, 1]} : vector<2x192xf32> to vector<2x64xf32>
    %341 = math.tanh %336 : vector<2x64xf32>
    %342 = arith.mulf %340, %341 : vector<2x64xf32>
    %c14_54 = arith.constant 14 : index
    %c0_55 = arith.constant 0 : index
    %343 = vector.load %arg13[%c14_54, %c0_55] : memref<16x128xf32, #tpu.memory_space<vmem>>, vector<2x64xf32>
    tpu.vector_store %arg13[%c14_54, %c0_55], %339 {strides = array<i32>} : memref<16x128xf32, #tpu.memory_space<vmem>>, vector<2x64xf32>,
    %c0_56 = arith.constant 0 : index
    %c64_57 = arith.constant 64 : index
    %344 = vector.load %arg13[%c0_56, %c64_57] : memref<16x128xf32, #tpu.memory_space<vmem>>, vector<2x64xf32>
    tpu.vector_store %arg13[%c0_56, %c64_57], %342 {strides = array<i32>} : memref<16x128xf32, #tpu.memory_space<vmem>>, vector<2x64xf32>,
    %c0_58 = arith.constant 0 : index
    %c0_59 = arith.constant 0 : index
    %345 = vector.load %arg13[%c0_58, %c0_59] : memref<16x128xf32, #tpu.memory_space<vmem>>, vector<16x128xf32>
    %c0_60 = arith.constant 0 : index
    %c0_61 = arith.constant 0 : index
    %346 = vector.load %arg4[%c0_60, %c0_61] : memref<128x512xf32, #tpu.memory_space<vmem>>, vector<128x512xf32>
    %cst_62 = arith.constant dense<0.000000e+00> : vector<16x512xf32>
    %347 = tpu.matmul %345, %346, %cst_62 {dimension_numbers = #tpu.dot_dimension_numbers<[1], [0], [0], [1], [0, 0, 1, 1], [], []>} : vector<16x128xf32>, vector<128x512xf32>, vector<16x512xf32> -> vector<16x512xf32>
    %c0_63 = arith.constant 0 : index
    %c0_64 = arith.constant 0 : index
    %348 = vector.load %arg6[%c0_63, %c0_64] : memref<1x512xf32, #tpu.memory_space<vmem>>, vector<1x512xf32>
    %349 = vector.broadcast %348 : vector<1x512xf32> to vector<16x512xf32>
    %350 = arith.addf %347, %349 : vector<16x512xf32>
    %c0_65 = arith.constant 0 : index
    %c0_66 = arith.constant 0 : index
    %351 = vector.load %arg5[%c0_65, %c0_66] : memref<128x512xf32, #tpu.memory_space<vmem>>, vector<128x512xf32>
    %cst_67 = arith.constant 0.000000e+00 : f32
    %352 = vector.broadcast %cst_67 : f32 to vector<2x128xf32>
    %cst_68 = arith.constant 0.000000e+00 : f32
    %353 = vector.broadcast %cst_68 : f32 to vector<2x64xf32>
    %cst_69 = arith.constant 0.000000e+00 : f32
    %354 = vector.broadcast %cst_69 : f32 to vector<2x64xf32>
    %cst_70 = arith.constant dense<0.000000e+00> : vector<2x512xf32>
    %355 = tpu.matmul %352, %351, %cst_70 {dimension_numbers = #tpu.dot_dimension_numbers<[1], [0], [0], [1], [0, 0, 1, 1], [], []>} : vector<2x128xf32>, vector<128x512xf32>, vector<2x512xf32> -> vector<2x512xf32>
    %356 = vector.extract_strided_slice %355 {offsets = [0, 0], sizes = [2, 256], strides = [1, 1]} : vector<2x512xf32> to vector<2x256xf32>
    %357 = vector.extract_strided_slice %350 {offsets = [0, 0], sizes = [2, 256], strides = [1, 1]} : vector<16x512xf32> to vector<2x256xf32>
    %358 = arith.addf %356, %357 : vector<2x256xf32>
    %359 = vector.extract_strided_slice %355 {offsets = [0, 256], sizes = [2, 256], strides = [1, 1]} : vector<2x512xf32> to vector<2x256xf32>
    %360 = vector.extract_strided_slice %350 {offsets = [14, 256], sizes = [2, 256], strides = [1, 1]} : vector<16x512xf32> to vector<2x256xf32>
    %361 = arith.addf %359, %360 : vector<2x256xf32>
    %362 = vector.extract_strided_slice %358 {offsets = [0, 0], sizes = [2, 192], strides = [1, 1]} : vector<2x256xf32> to vector<2x192xf32>
    %363 = arith.negf %362 : vector<2x192xf32>
    %364 = math.exp %363 : vector<2x192xf32>
    %cst_71 = arith.constant 1.000000e+00 : f32
    %365 = vector.broadcast %cst_71 : f32 to vector<2x192xf32>
    %366 = arith.addf %365, %364 : vector<2x192xf32>
    %367 = arith.divf %365, %366 : vector<2x192xf32>
    %368 = vector.extract_strided_slice %361 {offsets = [0, 0], sizes = [2, 192], strides = [1, 1]} : vector<2x256xf32> to vector<2x192xf32>
    %369 = arith.negf %368 : vector<2x192xf32>
    %370 = math.exp %369 : vector<2x192xf32>
    %cst_72 = arith.constant 1.000000e+00 : f32
    %371 = vector.broadcast %cst_72 : f32 to vector<2x192xf32>
    %372 = arith.addf %371, %370 : vector<2x192xf32>
    %373 = arith.divf %371, %372 : vector<2x192xf32>
    %374 = vector.extract_strided_slice %358 {offsets = [0, 192], sizes = [2, 64], strides = [1, 1]} : vector<2x256xf32> to vector<2x64xf32>
    %375 = math.tanh %374 : vector<2x64xf32>
    %376 = vector.extract_strided_slice %361 {offsets = [0, 192], sizes = [2, 64], strides = [1, 1]} : vector<2x256xf32> to vector<2x64xf32>
    %377 = math.tanh %376 : vector<2x64xf32>
    %378 = vector.extract_strided_slice %367 {offsets = [0, 64], sizes = [2, 64], strides = [1, 1]} : vector<2x192xf32> to vector<2x64xf32>
    %379 = arith.mulf %378, %353 : vector<2x64xf32>
    %380 = vector.extract_strided_slice %367 {offsets = [0, 0], sizes = [2, 64], strides = [1, 1]} : vector<2x192xf32> to vector<2x64xf32>
    %381 = arith.mulf %380, %375 : vector<2x64xf32>
    %382 = arith.addf %379, %381 : vector<2x64xf32>
    %383 = vector.extract_strided_slice %373 {offsets = [0, 64], sizes = [2, 64], strides = [1, 1]} : vector<2x192xf32> to vector<2x64xf32>
    %384 = arith.mulf %383, %354 : vector<2x64xf32>
    %385 = vector.extract_strided_slice %373 {offsets = [0, 0], sizes = [2, 64], strides = [1, 1]} : vector<2x192xf32> to vector<2x64xf32>
    %386 = arith.mulf %385, %377 : vector<2x64xf32>
    %387 = arith.addf %384, %386 : vector<2x64xf32>
    %388 = vector.extract_strided_slice %367 {offsets = [0, 128], sizes = [2, 64], strides = [1, 1]} : vector<2x192xf32> to vector<2x64xf32>
    %389 = math.tanh %382 : vector<2x64xf32>
    %390 = arith.mulf %388, %389 : vector<2x64xf32>
    %391 = vector.extract_strided_slice %373 {offsets = [0, 128], sizes = [2, 64], strides = [1, 1]} : vector<2x192xf32> to vector<2x64xf32>
    %392 = math.tanh %387 : vector<2x64xf32>
    %393 = arith.mulf %391, %392 : vector<2x64xf32>
    %c0_73 = arith.constant 0 : index
    %c0_74 = arith.constant 0 : index
    %394 = vector.load %arg13[%c0_73, %c0_74] : memref<16x128xf32, #tpu.memory_space<vmem>>, vector<2x64xf32>
    tpu.vector_store %arg13[%c0_73, %c0_74], %390 {strides = array<i32>} : memref<16x128xf32, #tpu.memory_space<vmem>>, vector<2x64xf32>,
    %c14_75 = arith.constant 14 : index
    %c64_76 = arith.constant 64 : index
    %395 = vector.load %arg13[%c14_75, %c64_76] : memref<16x128xf32, #tpu.memory_space<vmem>>, vector<2x64xf32>
    tpu.vector_store %arg13[%c14_75, %c64_76], %393 {strides = array<i32>} : memref<16x128xf32, #tpu.memory_space<vmem>>, vector<2x64xf32>,
    %396 = tpu.concatenate %390, %393 in 1 : vector<2x64xf32>, vector<2x64xf32> -> vector<2x128xf32>
    %cst_77 = arith.constant dense<0.000000e+00> : vector<2x512xf32>
    %397 = tpu.matmul %396, %351, %cst_77 {dimension_numbers = #tpu.dot_dimension_numbers<[1], [0], [0], [1], [0, 0, 1, 1], [], []>} : vector<2x128xf32>, vector<128x512xf32>, vector<2x512xf32> -> vector<2x512xf32>
    %398 = vector.extract_strided_slice %397 {offsets = [0, 0], sizes = [2, 256], strides = [1, 1]} : vector<2x512xf32> to vector<2x256xf32>
    %399 = vector.extract_strided_slice %350 {offsets = [2, 0], sizes = [2, 256], strides = [1, 1]} : vector<16x512xf32> to vector<2x256xf32>
    %400 = arith.addf %398, %399 : vector<2x256xf32>
    %401 = vector.extract_strided_slice %397 {offsets = [0, 256], sizes = [2, 256], strides = [1, 1]} : vector<2x512xf32> to vector<2x256xf32>
    %402 = vector.extract_strided_slice %350 {offsets = [12, 256], sizes = [2, 256], strides = [1, 1]} : vector<16x512xf32> to vector<2x256xf32>
    %403 = arith.addf %401, %402 : vector<2x256xf32>
    %404 = vector.extract_strided_slice %400 {offsets = [0, 0], sizes = [2, 192], strides = [1, 1]} : vector<2x256xf32> to vector<2x192xf32>
    %405 = arith.negf %404 : vector<2x192xf32>
    %406 = math.exp %405 : vector<2x192xf32>
    %cst_78 = arith.constant 1.000000e+00 : f32
    %407 = vector.broadcast %cst_78 : f32 to vector<2x192xf32>
    %408 = arith.addf %407, %406 : vector<2x192xf32>
    %409 = arith.divf %407, %408 : vector<2x192xf32>
    %410 = vector.extract_strided_slice %403 {offsets = [0, 0], sizes = [2, 192], strides = [1, 1]} : vector<2x256xf32> to vector<2x192xf32>
    %411 = arith.negf %410 : vector<2x192xf32>
    %412 = math.exp %411 : vector<2x192xf32>
    %cst_79 = arith.constant 1.000000e+00 : f32
    %413 = vector.broadcast %cst_79 : f32 to vector<2x192xf32>
    %414 = arith.addf %413, %412 : vector<2x192xf32>
    %415 = arith.divf %413, %414 : vector<2x192xf32>
    %416 = vector.extract_strided_slice %400 {offsets = [0, 192], sizes = [2, 64], strides = [1, 1]} : vector<2x256xf32> to vector<2x64xf32>
    %417 = math.tanh %416 : vector<2x64xf32>
    %418 = vector.extract_strided_slice %403 {offsets = [0, 192], sizes = [2, 64], strides = [1, 1]} : vector<2x256xf32> to vector<2x64xf32>
    %419 = math.tanh %418 : vector<2x64xf32>
    %420 = vector.extract_strided_slice %409 {offsets = [0, 64], sizes = [2, 64], strides = [1, 1]} : vector<2x192xf32> to vector<2x64xf32>
    %421 = arith.mulf %420, %382 : vector<2x64xf32>
    %422 = vector.extract_strided_slice %409 {offsets = [0, 0], sizes = [2, 64], strides = [1, 1]} : vector<2x192xf32> to vector<2x64xf32>
    %423 = arith.mulf %422, %417 : vector<2x64xf32>
    %424 = arith.addf %421, %423 : vector<2x64xf32>
    %425 = vector.extract_strided_slice %415 {offsets = [0, 64], sizes = [2, 64], strides = [1, 1]} : vector<2x192xf32> to vector<2x64xf32>
    %426 = arith.mulf %425, %387 : vector<2x64xf32>
    %427 = vector.extract_strided_slice %415 {offsets = [0, 0], sizes = [2, 64], strides = [1, 1]} : vector<2x192xf32> to vector<2x64xf32>
    %428 = arith.mulf %427, %419 : vector<2x64xf32>
    %429 = arith.addf %426, %428 : vector<2x64xf32>
    %430 = vector.extract_strided_slice %409 {offsets = [0, 128], sizes = [2, 64], strides = [1, 1]} : vector<2x192xf32> to vector<2x64xf32>
    %431 = math.tanh %424 : vector<2x64xf32>
    %432 = arith.mulf %430, %431 : vector<2x64xf32>
    %433 = vector.extract_strided_slice %415 {offsets = [0, 128], sizes = [2, 64], strides = [1, 1]} : vector<2x192xf32> to vector<2x64xf32>
    %434 = math.tanh %429 : vector<2x64xf32>
    %435 = arith.mulf %433, %434 : vector<2x64xf32>
    %c2_80 = arith.constant 2 : index
    %c0_81 = arith.constant 0 : index
    %436 = vector.load %arg13[%c2_80, %c0_81] : memref<16x128xf32, #tpu.memory_space<vmem>>, vector<2x64xf32>
    tpu.vector_store %arg13[%c2_80, %c0_81], %432 {strides = array<i32>} : memref<16x128xf32, #tpu.memory_space<vmem>>, vector<2x64xf32>,
    %c12_82 = arith.constant 12 : index
    %c64_83 = arith.constant 64 : index
    %437 = vector.load %arg13[%c12_82, %c64_83] : memref<16x128xf32, #tpu.memory_space<vmem>>, vector<2x64xf32>
    tpu.vector_store %arg13[%c12_82, %c64_83], %435 {strides = array<i32>} : memref<16x128xf32, #tpu.memory_space<vmem>>, vector<2x64xf32>,
    %438 = tpu.concatenate %432, %435 in 1 : vector<2x64xf32>, vector<2x64xf32> -> vector<2x128xf32>
    %cst_84 = arith.constant dense<0.000000e+00> : vector<2x512xf32>
    %439 = tpu.matmul %438, %351, %cst_84 {dimension_numbers = #tpu.dot_dimension_numbers<[1], [0], [0], [1], [0, 0, 1, 1], [], []>} : vector<2x128xf32>, vector<128x512xf32>, vector<2x512xf32> -> vector<2x512xf32>
    %440 = vector.extract_strided_slice %439 {offsets = [0, 0], sizes = [2, 256], strides = [1, 1]} : vector<2x512xf32> to vector<2x256xf32>
    %441 = vector.extract_strided_slice %350 {offsets = [4, 0], sizes = [2, 256], strides = [1, 1]} : vector<16x512xf32> to vector<2x256xf32>
    %442 = arith.addf %440, %441 : vector<2x256xf32>
    %443 = vector.extract_strided_slice %439 {offsets = [0, 256], sizes = [2, 256], strides = [1, 1]} : vector<2x512xf32> to vector<2x256xf32>
    %444 = vector.extract_strided_slice %350 {offsets = [10, 256], sizes = [2, 256], strides = [1, 1]} : vector<16x512xf32> to vector<2x256xf32>
    %445 = arith.addf %443, %444 : vector<2x256xf32>
    %446 = vector.extract_strided_slice %442 {offsets = [0, 0], sizes = [2, 192], strides = [1, 1]} : vector<2x256xf32> to vector<2x192xf32>
    %447 = arith.negf %446 : vector<2x192xf32>
    %448 = math.exp %447 : vector<2x192xf32>
    %cst_85 = arith.constant 1.000000e+00 : f32
    %449 = vector.broadcast %cst_85 : f32 to vector<2x192xf32>
    %450 = arith.addf %449, %448 : vector<2x192xf32>
    %451 = arith.divf %449, %450 : vector<2x192xf32>
    %452 = vector.extract_strided_slice %445 {offsets = [0, 0], sizes = [2, 192], strides = [1, 1]} : vector<2x256xf32> to vector<2x192xf32>
    %453 = arith.negf %452 : vector<2x192xf32>
    %454 = math.exp %453 : vector<2x192xf32>
    %cst_86 = arith.constant 1.000000e+00 : f32
    %455 = vector.broadcast %cst_86 : f32 to vector<2x192xf32>
    %456 = arith.addf %455, %454 : vector<2x192xf32>
    %457 = arith.divf %455, %456 : vector<2x192xf32>
    %458 = vector.extract_strided_slice %442 {offsets = [0, 192], sizes = [2, 64], strides = [1, 1]} : vector<2x256xf32> to vector<2x64xf32>
    %459 = math.tanh %458 : vector<2x64xf32>
    %460 = vector.extract_strided_slice %445 {offsets = [0, 192], sizes = [2, 64], strides = [1, 1]} : vector<2x256xf32> to vector<2x64xf32>
    %461 = math.tanh %460 : vector<2x64xf32>
    %462 = vector.extract_strided_slice %451 {offsets = [0, 64], sizes = [2, 64], strides = [1, 1]} : vector<2x192xf32> to vector<2x64xf32>
    %463 = arith.mulf %462, %424 : vector<2x64xf32>
    %464 = vector.extract_strided_slice %451 {offsets = [0, 0], sizes = [2, 64], strides = [1, 1]} : vector<2x192xf32> to vector<2x64xf32>
    %465 = arith.mulf %464, %459 : vector<2x64xf32>
    %466 = arith.addf %463, %465 : vector<2x64xf32>
    %467 = vector.extract_strided_slice %457 {offsets = [0, 64], sizes = [2, 64], strides = [1, 1]} : vector<2x192xf32> to vector<2x64xf32>
    %468 = arith.mulf %467, %429 : vector<2x64xf32>
    %469 = vector.extract_strided_slice %457 {offsets = [0, 0], sizes = [2, 64], strides = [1, 1]} : vector<2x192xf32> to vector<2x64xf32>
    %470 = arith.mulf %469, %461 : vector<2x64xf32>
    %471 = arith.addf %468, %470 : vector<2x64xf32>
    %472 = vector.extract_strided_slice %451 {offsets = [0, 128], sizes = [2, 64], strides = [1, 1]} : vector<2x192xf32> to vector<2x64xf32>
    %473 = math.tanh %466 : vector<2x64xf32>
    %474 = arith.mulf %472, %473 : vector<2x64xf32>
    %475 = vector.extract_strided_slice %457 {offsets = [0, 128], sizes = [2, 64], strides = [1, 1]} : vector<2x192xf32> to vector<2x64xf32>
    %476 = math.tanh %471 : vector<2x64xf32>
    %477 = arith.mulf %475, %476 : vector<2x64xf32>
    %c4_87 = arith.constant 4 : index
    %c0_88 = arith.constant 0 : index
    %478 = vector.load %arg13[%c4_87, %c0_88] : memref<16x128xf32, #tpu.memory_space<vmem>>, vector<2x64xf32>
    tpu.vector_store %arg13[%c4_87, %c0_88], %474 {strides = array<i32>} : memref<16x128xf32, #tpu.memory_space<vmem>>, vector<2x64xf32>,
    %c10_89 = arith.constant 10 : index
    %c64_90 = arith.constant 64 : index
    %479 = vector.load %arg13[%c10_89, %c64_90] : memref<16x128xf32, #tpu.memory_space<vmem>>, vector<2x64xf32>
    tpu.vector_store %arg13[%c10_89, %c64_90], %477 {strides = array<i32>} : memref<16x128xf32, #tpu.memory_space<vmem>>, vector<2x64xf32>,
    %480 = tpu.concatenate %474, %477 in 1 : vector<2x64xf32>, vector<2x64xf32> -> vector<2x128xf32>
    %cst_91 = arith.constant dense<0.000000e+00> : vector<2x512xf32>
    %481 = tpu.matmul %480, %351, %cst_91 {dimension_numbers = #tpu.dot_dimension_numbers<[1], [0], [0], [1], [0, 0, 1, 1], [], []>} : vector<2x128xf32>, vector<128x512xf32>, vector<2x512xf32> -> vector<2x512xf32>
    %482 = vector.extract_strided_slice %481 {offsets = [0, 0], sizes = [2, 256], strides = [1, 1]} : vector<2x512xf32> to vector<2x256xf32>
    %483 = vector.extract_strided_slice %350 {offsets = [6, 0], sizes = [2, 256], strides = [1, 1]} : vector<16x512xf32> to vector<2x256xf32>
    %484 = arith.addf %482, %483 : vector<2x256xf32>
    %485 = vector.extract_strided_slice %481 {offsets = [0, 256], sizes = [2, 256], strides = [1, 1]} : vector<2x512xf32> to vector<2x256xf32>
    %486 = vector.extract_strided_slice %350 {offsets = [8, 256], sizes = [2, 256], strides = [1, 1]} : vector<16x512xf32> to vector<2x256xf32>
    %487 = arith.addf %485, %486 : vector<2x256xf32>
    %488 = vector.extract_strided_slice %484 {offsets = [0, 0], sizes = [2, 192], strides = [1, 1]} : vector<2x256xf32> to vector<2x192xf32>
    %489 = arith.negf %488 : vector<2x192xf32>
    %490 = math.exp %489 : vector<2x192xf32>
    %cst_92 = arith.constant 1.000000e+00 : f32
    %491 = vector.broadcast %cst_92 : f32 to vector<2x192xf32>
    %492 = arith.addf %491, %490 : vector<2x192xf32>
    %493 = arith.divf %491, %492 : vector<2x192xf32>
    %494 = vector.extract_strided_slice %487 {offsets = [0, 0], sizes = [2, 192], strides = [1, 1]} : vector<2x256xf32> to vector<2x192xf32>
    %495 = arith.negf %494 : vector<2x192xf32>
    %496 = math.exp %495 : vector<2x192xf32>
    %cst_93 = arith.constant 1.000000e+00 : f32
    %497 = vector.broadcast %cst_93 : f32 to vector<2x192xf32>
    %498 = arith.addf %497, %496 : vector<2x192xf32>
    %499 = arith.divf %497, %498 : vector<2x192xf32>
    %500 = vector.extract_strided_slice %484 {offsets = [0, 192], sizes = [2, 64], strides = [1, 1]} : vector<2x256xf32> to vector<2x64xf32>
    %501 = math.tanh %500 : vector<2x64xf32>
    %502 = vector.extract_strided_slice %487 {offsets = [0, 192], sizes = [2, 64], strides = [1, 1]} : vector<2x256xf32> to vector<2x64xf32>
    %503 = math.tanh %502 : vector<2x64xf32>
    %504 = vector.extract_strided_slice %493 {offsets = [0, 64], sizes = [2, 64], strides = [1, 1]} : vector<2x192xf32> to vector<2x64xf32>
    %505 = arith.mulf %504, %466 : vector<2x64xf32>
    %506 = vector.extract_strided_slice %493 {offsets = [0, 0], sizes = [2, 64], strides = [1, 1]} : vector<2x192xf32> to vector<2x64xf32>
    %507 = arith.mulf %506, %501 : vector<2x64xf32>
    %508 = arith.addf %505, %507 : vector<2x64xf32>
    %509 = vector.extract_strided_slice %499 {offsets = [0, 64], sizes = [2, 64], strides = [1, 1]} : vector<2x192xf32> to vector<2x64xf32>
    %510 = arith.mulf %509, %471 : vector<2x64xf32>
    %511 = vector.extract_strided_slice %499 {offsets = [0, 0], sizes = [2, 64], strides = [1, 1]} : vector<2x192xf32> to vector<2x64xf32>
    %512 = arith.mulf %511, %503 : vector<2x64xf32>
    %513 = arith.addf %510, %512 : vector<2x64xf32>
    %514 = vector.extract_strided_slice %493 {offsets = [0, 128], sizes = [2, 64], strides = [1, 1]} : vector<2x192xf32> to vector<2x64xf32>
    %515 = math.tanh %508 : vector<2x64xf32>
    %516 = arith.mulf %514, %515 : vector<2x64xf32>
    %517 = vector.extract_strided_slice %499 {offsets = [0, 128], sizes = [2, 64], strides = [1, 1]} : vector<2x192xf32> to vector<2x64xf32>
    %518 = math.tanh %513 : vector<2x64xf32>
    %519 = arith.mulf %517, %518 : vector<2x64xf32>
    %c6_94 = arith.constant 6 : index
    %c0_95 = arith.constant 0 : index
    %520 = vector.load %arg13[%c6_94, %c0_95] : memref<16x128xf32, #tpu.memory_space<vmem>>, vector<2x64xf32>
    tpu.vector_store %arg13[%c6_94, %c0_95], %516 {strides = array<i32>} : memref<16x128xf32, #tpu.memory_space<vmem>>, vector<2x64xf32>,
    %c8_96 = arith.constant 8 : index
    %c64_97 = arith.constant 64 : index
    %521 = vector.load %arg13[%c8_96, %c64_97] : memref<16x128xf32, #tpu.memory_space<vmem>>, vector<2x64xf32>
    tpu.vector_store %arg13[%c8_96, %c64_97], %519 {strides = array<i32>} : memref<16x128xf32, #tpu.memory_space<vmem>>, vector<2x64xf32>,
    %522 = tpu.concatenate %516, %519 in 1 : vector<2x64xf32>, vector<2x64xf32> -> vector<2x128xf32>
    %cst_98 = arith.constant dense<0.000000e+00> : vector<2x512xf32>
    %523 = tpu.matmul %522, %351, %cst_98 {dimension_numbers = #tpu.dot_dimension_numbers<[1], [0], [0], [1], [0, 0, 1, 1], [], []>} : vector<2x128xf32>, vector<128x512xf32>, vector<2x512xf32> -> vector<2x512xf32>
    %524 = vector.extract_strided_slice %523 {offsets = [0, 0], sizes = [2, 256], strides = [1, 1]} : vector<2x512xf32> to vector<2x256xf32>
    %525 = vector.extract_strided_slice %350 {offsets = [8, 0], sizes = [2, 256], strides = [1, 1]} : vector<16x512xf32> to vector<2x256xf32>
    %526 = arith.addf %524, %525 : vector<2x256xf32>
    %527 = vector.extract_strided_slice %523 {offsets = [0, 256], sizes = [2, 256], strides = [1, 1]} : vector<2x512xf32> to vector<2x256xf32>
    %528 = vector.extract_strided_slice %350 {offsets = [6, 256], sizes = [2, 256], strides = [1, 1]} : vector<16x512xf32> to vector<2x256xf32>
    %529 = arith.addf %527, %528 : vector<2x256xf32>
    %530 = vector.extract_strided_slice %526 {offsets = [0, 0], sizes = [2, 192], strides = [1, 1]} : vector<2x256xf32> to vector<2x192xf32>
    %531 = arith.negf %530 : vector<2x192xf32>
    %532 = math.exp %531 : vector<2x192xf32>
    %cst_99 = arith.constant 1.000000e+00 : f32
    %533 = vector.broadcast %cst_99 : f32 to vector<2x192xf32>
    %534 = arith.addf %533, %532 : vector<2x192xf32>
    %535 = arith.divf %533, %534 : vector<2x192xf32>
    %536 = vector.extract_strided_slice %529 {offsets = [0, 0], sizes = [2, 192], strides = [1, 1]} : vector<2x256xf32> to vector<2x192xf32>
    %537 = arith.negf %536 : vector<2x192xf32>
    %538 = math.exp %537 : vector<2x192xf32>
    %cst_100 = arith.constant 1.000000e+00 : f32
    %539 = vector.broadcast %cst_100 : f32 to vector<2x192xf32>
    %540 = arith.addf %539, %538 : vector<2x192xf32>
    %541 = arith.divf %539, %540 : vector<2x192xf32>
    %542 = vector.extract_strided_slice %526 {offsets = [0, 192], sizes = [2, 64], strides = [1, 1]} : vector<2x256xf32> to vector<2x64xf32>
    %543 = math.tanh %542 : vector<2x64xf32>
    %544 = vector.extract_strided_slice %529 {offsets = [0, 192], sizes = [2, 64], strides = [1, 1]} : vector<2x256xf32> to vector<2x64xf32>
    %545 = math.tanh %544 : vector<2x64xf32>
    %546 = vector.extract_strided_slice %535 {offsets = [0, 64], sizes = [2, 64], strides = [1, 1]} : vector<2x192xf32> to vector<2x64xf32>
    %547 = arith.mulf %546, %508 : vector<2x64xf32>
    %548 = vector.extract_strided_slice %535 {offsets = [0, 0], sizes = [2, 64], strides = [1, 1]} : vector<2x192xf32> to vector<2x64xf32>
    %549 = arith.mulf %548, %543 : vector<2x64xf32>
    %550 = arith.addf %547, %549 : vector<2x64xf32>
    %551 = vector.extract_strided_slice %541 {offsets = [0, 64], sizes = [2, 64], strides = [1, 1]} : vector<2x192xf32> to vector<2x64xf32>
    %552 = arith.mulf %551, %513 : vector<2x64xf32>
    %553 = vector.extract_strided_slice %541 {offsets = [0, 0], sizes = [2, 64], strides = [1, 1]} : vector<2x192xf32> to vector<2x64xf32>
    %554 = arith.mulf %553, %545 : vector<2x64xf32>
    %555 = arith.addf %552, %554 : vector<2x64xf32>
    %556 = vector.extract_strided_slice %535 {offsets = [0, 128], sizes = [2, 64], strides = [1, 1]} : vector<2x192xf32> to vector<2x64xf32>
    %557 = math.tanh %550 : vector<2x64xf32>
    %558 = arith.mulf %556, %557 : vector<2x64xf32>
    %559 = vector.extract_strided_slice %541 {offsets = [0, 128], sizes = [2, 64], strides = [1, 1]} : vector<2x192xf32> to vector<2x64xf32>
    %560 = math.tanh %555 : vector<2x64xf32>
    %561 = arith.mulf %559, %560 : vector<2x64xf32>
    %c8_101 = arith.constant 8 : index
    %c0_102 = arith.constant 0 : index
    %562 = vector.load %arg13[%c8_101, %c0_102] : memref<16x128xf32, #tpu.memory_space<vmem>>, vector<2x64xf32>
    tpu.vector_store %arg13[%c8_101, %c0_102], %558 {strides = array<i32>} : memref<16x128xf32, #tpu.memory_space<vmem>>, vector<2x64xf32>,
    %c6_103 = arith.constant 6 : index
    %c64_104 = arith.constant 64 : index
    %563 = vector.load %arg13[%c6_103, %c64_104] : memref<16x128xf32, #tpu.memory_space<vmem>>, vector<2x64xf32>
    tpu.vector_store %arg13[%c6_103, %c64_104], %561 {strides = array<i32>} : memref<16x128xf32, #tpu.memory_space<vmem>>, vector<2x64xf32>,
    %564 = tpu.concatenate %558, %561 in 1 : vector<2x64xf32>, vector<2x64xf32> -> vector<2x128xf32>
    %cst_105 = arith.constant dense<0.000000e+00> : vector<2x512xf32>
    %565 = tpu.matmul %564, %351, %cst_105 {dimension_numbers = #tpu.dot_dimension_numbers<[1], [0], [0], [1], [0, 0, 1, 1], [], []>} : vector<2x128xf32>, vector<128x512xf32>, vector<2x512xf32> -> vector<2x512xf32>
    %566 = vector.extract_strided_slice %565 {offsets = [0, 0], sizes = [2, 256], strides = [1, 1]} : vector<2x512xf32> to vector<2x256xf32>
    %567 = vector.extract_strided_slice %350 {offsets = [10, 0], sizes = [2, 256], strides = [1, 1]} : vector<16x512xf32> to vector<2x256xf32>
    %568 = arith.addf %566, %567 : vector<2x256xf32>
    %569 = vector.extract_strided_slice %565 {offsets = [0, 256], sizes = [2, 256], strides = [1, 1]} : vector<2x512xf32> to vector<2x256xf32>
    %570 = vector.extract_strided_slice %350 {offsets = [4, 256], sizes = [2, 256], strides = [1, 1]} : vector<16x512xf32> to vector<2x256xf32>
    %571 = arith.addf %569, %570 : vector<2x256xf32>
    %572 = vector.extract_strided_slice %568 {offsets = [0, 0], sizes = [2, 192], strides = [1, 1]} : vector<2x256xf32> to vector<2x192xf32>
    %573 = arith.negf %572 : vector<2x192xf32>
    %574 = math.exp %573 : vector<2x192xf32>
    %cst_106 = arith.constant 1.000000e+00 : f32
    %575 = vector.broadcast %cst_106 : f32 to vector<2x192xf32>
    %576 = arith.addf %575, %574 : vector<2x192xf32>
    %577 = arith.divf %575, %576 : vector<2x192xf32>
    %578 = vector.extract_strided_slice %571 {offsets = [0, 0], sizes = [2, 192], strides = [1, 1]} : vector<2x256xf32> to vector<2x192xf32>
    %579 = arith.negf %578 : vector<2x192xf32>
    %580 = math.exp %579 : vector<2x192xf32>
    %cst_107 = arith.constant 1.000000e+00 : f32
    %581 = vector.broadcast %cst_107 : f32 to vector<2x192xf32>
    %582 = arith.addf %581, %580 : vector<2x192xf32>
    %583 = arith.divf %581, %582 : vector<2x192xf32>
    %584 = vector.extract_strided_slice %568 {offsets = [0, 192], sizes = [2, 64], strides = [1, 1]} : vector<2x256xf32> to vector<2x64xf32>
    %585 = math.tanh %584 : vector<2x64xf32>
    %586 = vector.extract_strided_slice %571 {offsets = [0, 192], sizes = [2, 64], strides = [1, 1]} : vector<2x256xf32> to vector<2x64xf32>
    %587 = math.tanh %586 : vector<2x64xf32>
    %588 = vector.extract_strided_slice %577 {offsets = [0, 64], sizes = [2, 64], strides = [1, 1]} : vector<2x192xf32> to vector<2x64xf32>
    %589 = arith.mulf %588, %550 : vector<2x64xf32>
    %590 = vector.extract_strided_slice %577 {offsets = [0, 0], sizes = [2, 64], strides = [1, 1]} : vector<2x192xf32> to vector<2x64xf32>
    %591 = arith.mulf %590, %585 : vector<2x64xf32>
    %592 = arith.addf %589, %591 : vector<2x64xf32>
    %593 = vector.extract_strided_slice %583 {offsets = [0, 64], sizes = [2, 64], strides = [1, 1]} : vector<2x192xf32> to vector<2x64xf32>
    %594 = arith.mulf %593, %555 : vector<2x64xf32>
    %595 = vector.extract_strided_slice %583 {offsets = [0, 0], sizes = [2, 64], strides = [1, 1]} : vector<2x192xf32> to vector<2x64xf32>
    %596 = arith.mulf %595, %587 : vector<2x64xf32>
    %597 = arith.addf %594, %596 : vector<2x64xf32>
    %598 = vector.extract_strided_slice %577 {offsets = [0, 128], sizes = [2, 64], strides = [1, 1]} : vector<2x192xf32> to vector<2x64xf32>
    %599 = math.tanh %592 : vector<2x64xf32>
    %600 = arith.mulf %598, %599 : vector<2x64xf32>
    %601 = vector.extract_strided_slice %583 {offsets = [0, 128], sizes = [2, 64], strides = [1, 1]} : vector<2x192xf32> to vector<2x64xf32>
    %602 = math.tanh %597 : vector<2x64xf32>
    %603 = arith.mulf %601, %602 : vector<2x64xf32>
    %c10_108 = arith.constant 10 : index
    %c0_109 = arith.constant 0 : index
    %604 = vector.load %arg13[%c10_108, %c0_109] : memref<16x128xf32, #tpu.memory_space<vmem>>, vector<2x64xf32>
    tpu.vector_store %arg13[%c10_108, %c0_109], %600 {strides = array<i32>} : memref<16x128xf32, #tpu.memory_space<vmem>>, vector<2x64xf32>,
    %c4_110 = arith.constant 4 : index
    %c64_111 = arith.constant 64 : index
    %605 = vector.load %arg13[%c4_110, %c64_111] : memref<16x128xf32, #tpu.memory_space<vmem>>, vector<2x64xf32>
    tpu.vector_store %arg13[%c4_110, %c64_111], %603 {strides = array<i32>} : memref<16x128xf32, #tpu.memory_space<vmem>>, vector<2x64xf32>,
    %606 = tpu.concatenate %600, %603 in 1 : vector<2x64xf32>, vector<2x64xf32> -> vector<2x128xf32>
    %cst_112 = arith.constant dense<0.000000e+00> : vector<2x512xf32>
    %607 = tpu.matmul %606, %351, %cst_112 {dimension_numbers = #tpu.dot_dimension_numbers<[1], [0], [0], [1], [0, 0, 1, 1], [], []>} : vector<2x128xf32>, vector<128x512xf32>, vector<2x512xf32> -> vector<2x512xf32>
    %608 = vector.extract_strided_slice %607 {offsets = [0, 0], sizes = [2, 256], strides = [1, 1]} : vector<2x512xf32> to vector<2x256xf32>
    %609 = vector.extract_strided_slice %350 {offsets = [12, 0], sizes = [2, 256], strides = [1, 1]} : vector<16x512xf32> to vector<2x256xf32>
    %610 = arith.addf %608, %609 : vector<2x256xf32>
    %611 = vector.extract_strided_slice %607 {offsets = [0, 256], sizes = [2, 256], strides = [1, 1]} : vector<2x512xf32> to vector<2x256xf32>
    %612 = vector.extract_strided_slice %350 {offsets = [2, 256], sizes = [2, 256], strides = [1, 1]} : vector<16x512xf32> to vector<2x256xf32>
    %613 = arith.addf %611, %612 : vector<2x256xf32>
    %614 = vector.extract_strided_slice %610 {offsets = [0, 0], sizes = [2, 192], strides = [1, 1]} : vector<2x256xf32> to vector<2x192xf32>
    %615 = arith.negf %614 : vector<2x192xf32>
    %616 = math.exp %615 : vector<2x192xf32>
    %cst_113 = arith.constant 1.000000e+00 : f32
    %617 = vector.broadcast %cst_113 : f32 to vector<2x192xf32>
    %618 = arith.addf %617, %616 : vector<2x192xf32>
    %619 = arith.divf %617, %618 : vector<2x192xf32>
    %620 = vector.extract_strided_slice %613 {offsets = [0, 0], sizes = [2, 192], strides = [1, 1]} : vector<2x256xf32> to vector<2x192xf32>
    %621 = arith.negf %620 : vector<2x192xf32>
    %622 = math.exp %621 : vector<2x192xf32>
    %cst_114 = arith.constant 1.000000e+00 : f32
    %623 = vector.broadcast %cst_114 : f32 to vector<2x192xf32>
    %624 = arith.addf %623, %622 : vector<2x192xf32>
    %625 = arith.divf %623, %624 : vector<2x192xf32>
    %626 = vector.extract_strided_slice %610 {offsets = [0, 192], sizes = [2, 64], strides = [1, 1]} : vector<2x256xf32> to vector<2x64xf32>
    %627 = math.tanh %626 : vector<2x64xf32>
    %628 = vector.extract_strided_slice %613 {offsets = [0, 192], sizes = [2, 64], strides = [1, 1]} : vector<2x256xf32> to vector<2x64xf32>
    %629 = math.tanh %628 : vector<2x64xf32>
    %630 = vector.extract_strided_slice %619 {offsets = [0, 64], sizes = [2, 64], strides = [1, 1]} : vector<2x192xf32> to vector<2x64xf32>
    %631 = arith.mulf %630, %592 : vector<2x64xf32>
    %632 = vector.extract_strided_slice %619 {offsets = [0, 0], sizes = [2, 64], strides = [1, 1]} : vector<2x192xf32> to vector<2x64xf32>
    %633 = arith.mulf %632, %627 : vector<2x64xf32>
    %634 = arith.addf %631, %633 : vector<2x64xf32>
    %635 = vector.extract_strided_slice %625 {offsets = [0, 64], sizes = [2, 64], strides = [1, 1]} : vector<2x192xf32> to vector<2x64xf32>
    %636 = arith.mulf %635, %597 : vector<2x64xf32>
    %637 = vector.extract_strided_slice %625 {offsets = [0, 0], sizes = [2, 64], strides = [1, 1]} : vector<2x192xf32> to vector<2x64xf32>
    %638 = arith.mulf %637, %629 : vector<2x64xf32>
    %639 = arith.addf %636, %638 : vector<2x64xf32>
    %640 = vector.extract_strided_slice %619 {offsets = [0, 128], sizes = [2, 64], strides = [1, 1]} : vector<2x192xf32> to vector<2x64xf32>
    %641 = math.tanh %634 : vector<2x64xf32>
    %642 = arith.mulf %640, %641 : vector<2x64xf32>
    %643 = vector.extract_strided_slice %625 {offsets = [0, 128], sizes = [2, 64], strides = [1, 1]} : vector<2x192xf32> to vector<2x64xf32>
    %644 = math.tanh %639 : vector<2x64xf32>
    %645 = arith.mulf %643, %644 : vector<2x64xf32>
    %c12_115 = arith.constant 12 : index
    %c0_116 = arith.constant 0 : index
    %646 = vector.load %arg13[%c12_115, %c0_116] : memref<16x128xf32, #tpu.memory_space<vmem>>, vector<2x64xf32>
    tpu.vector_store %arg13[%c12_115, %c0_116], %642 {strides = array<i32>} : memref<16x128xf32, #tpu.memory_space<vmem>>, vector<2x64xf32>,
    %c2_117 = arith.constant 2 : index
    %c64_118 = arith.constant 64 : index
    %647 = vector.load %arg13[%c2_117, %c64_118] : memref<16x128xf32, #tpu.memory_space<vmem>>, vector<2x64xf32>
    tpu.vector_store %arg13[%c2_117, %c64_118], %645 {strides = array<i32>} : memref<16x128xf32, #tpu.memory_space<vmem>>, vector<2x64xf32>,
    %648 = tpu.concatenate %642, %645 in 1 : vector<2x64xf32>, vector<2x64xf32> -> vector<2x128xf32>
    %cst_119 = arith.constant dense<0.000000e+00> : vector<2x512xf32>
    %649 = tpu.matmul %648, %351, %cst_119 {dimension_numbers = #tpu.dot_dimension_numbers<[1], [0], [0], [1], [0, 0, 1, 1], [], []>} : vector<2x128xf32>, vector<128x512xf32>, vector<2x512xf32> -> vector<2x512xf32>
    %650 = vector.extract_strided_slice %649 {offsets = [0, 0], sizes = [2, 256], strides = [1, 1]} : vector<2x512xf32> to vector<2x256xf32>
    %651 = vector.extract_strided_slice %350 {offsets = [14, 0], sizes = [2, 256], strides = [1, 1]} : vector<16x512xf32> to vector<2x256xf32>
    %652 = arith.addf %650, %651 : vector<2x256xf32>
    %653 = vector.extract_strided_slice %649 {offsets = [0, 256], sizes = [2, 256], strides = [1, 1]} : vector<2x512xf32> to vector<2x256xf32>
    %654 = vector.extract_strided_slice %350 {offsets = [0, 256], sizes = [2, 256], strides = [1, 1]} : vector<16x512xf32> to vector<2x256xf32>
    %655 = arith.addf %653, %654 : vector<2x256xf32>
    %656 = vector.extract_strided_slice %652 {offsets = [0, 0], sizes = [2, 192], strides = [1, 1]} : vector<2x256xf32> to vector<2x192xf32>
    %657 = arith.negf %656 : vector<2x192xf32>
    %658 = math.exp %657 : vector<2x192xf32>
    %cst_120 = arith.constant 1.000000e+00 : f32
    %659 = vector.broadcast %cst_120 : f32 to vector<2x192xf32>
    %660 = arith.addf %659, %658 : vector<2x192xf32>
    %661 = arith.divf %659, %660 : vector<2x192xf32>
    %662 = vector.extract_strided_slice %655 {offsets = [0, 0], sizes = [2, 192], strides = [1, 1]} : vector<2x256xf32> to vector<2x192xf32>
    %663 = arith.negf %662 : vector<2x192xf32>
    %664 = math.exp %663 : vector<2x192xf32>
    %cst_121 = arith.constant 1.000000e+00 : f32
    %665 = vector.broadcast %cst_121 : f32 to vector<2x192xf32>
    %666 = arith.addf %665, %664 : vector<2x192xf32>
    %667 = arith.divf %665, %666 : vector<2x192xf32>
    %668 = vector.extract_strided_slice %652 {offsets = [0, 192], sizes = [2, 64], strides = [1, 1]} : vector<2x256xf32> to vector<2x64xf32>
    %669 = math.tanh %668 : vector<2x64xf32>
    %670 = vector.extract_strided_slice %655 {offsets = [0, 192], sizes = [2, 64], strides = [1, 1]} : vector<2x256xf32> to vector<2x64xf32>
    %671 = math.tanh %670 : vector<2x64xf32>
    %672 = vector.extract_strided_slice %661 {offsets = [0, 64], sizes = [2, 64], strides = [1, 1]} : vector<2x192xf32> to vector<2x64xf32>
    %673 = arith.mulf %672, %634 : vector<2x64xf32>
    %674 = vector.extract_strided_slice %661 {offsets = [0, 0], sizes = [2, 64], strides = [1, 1]} : vector<2x192xf32> to vector<2x64xf32>
    %675 = arith.mulf %674, %669 : vector<2x64xf32>
    %676 = arith.addf %673, %675 : vector<2x64xf32>
    %677 = vector.extract_strided_slice %667 {offsets = [0, 64], sizes = [2, 64], strides = [1, 1]} : vector<2x192xf32> to vector<2x64xf32>
    %678 = arith.mulf %677, %639 : vector<2x64xf32>
    %679 = vector.extract_strided_slice %667 {offsets = [0, 0], sizes = [2, 64], strides = [1, 1]} : vector<2x192xf32> to vector<2x64xf32>
    %680 = arith.mulf %679, %671 : vector<2x64xf32>
    %681 = arith.addf %678, %680 : vector<2x64xf32>
    %682 = vector.extract_strided_slice %661 {offsets = [0, 128], sizes = [2, 64], strides = [1, 1]} : vector<2x192xf32> to vector<2x64xf32>
    %683 = math.tanh %676 : vector<2x64xf32>
    %684 = arith.mulf %682, %683 : vector<2x64xf32>
    %685 = vector.extract_strided_slice %667 {offsets = [0, 128], sizes = [2, 64], strides = [1, 1]} : vector<2x192xf32> to vector<2x64xf32>
    %686 = math.tanh %681 : vector<2x64xf32>
    %687 = arith.mulf %685, %686 : vector<2x64xf32>
    %c14_122 = arith.constant 14 : index
    %c0_123 = arith.constant 0 : index
    %688 = vector.load %arg13[%c14_122, %c0_123] : memref<16x128xf32, #tpu.memory_space<vmem>>, vector<2x64xf32>
    tpu.vector_store %arg13[%c14_122, %c0_123], %684 {strides = array<i32>} : memref<16x128xf32, #tpu.memory_space<vmem>>, vector<2x64xf32>,
    %c0_124 = arith.constant 0 : index
    %c64_125 = arith.constant 64 : index
    %689 = vector.load %arg13[%c0_124, %c64_125] : memref<16x128xf32, #tpu.memory_space<vmem>>, vector<2x64xf32>
    tpu.vector_store %arg13[%c0_124, %c64_125], %687 {strides = array<i32>} : memref<16x128xf32, #tpu.memory_space<vmem>>, vector<2x64xf32>,
    %c0_126 = arith.constant 0 : index
    %c0_127 = arith.constant 0 : index
    %690 = vector.load %arg13[%c0_126, %c0_127] : memref<16x128xf32, #tpu.memory_space<vmem>>, vector<16x128xf32>
    %c0_128 = arith.constant 0 : index
    %c0_129 = arith.constant 0 : index
    %691 = vector.load %arg7[%c0_128, %c0_129] : memref<128x512xf32, #tpu.memory_space<vmem>>, vector<128x512xf32>
    %cst_130 = arith.constant dense<0.000000e+00> : vector<16x512xf32>
    %692 = tpu.matmul %690, %691, %cst_130 {dimension_numbers = #tpu.dot_dimension_numbers<[1], [0], [0], [1], [0, 0, 1, 1], [], []>} : vector<16x128xf32>, vector<128x512xf32>, vector<16x512xf32> -> vector<16x512xf32>
    %c0_131 = arith.constant 0 : index
    %c0_132 = arith.constant 0 : index
    %693 = vector.load %arg9[%c0_131, %c0_132] : memref<1x512xf32, #tpu.memory_space<vmem>>, vector<1x512xf32>
    %694 = vector.broadcast %693 : vector<1x512xf32> to vector<16x512xf32>
    %695 = arith.addf %692, %694 : vector<16x512xf32>
    %c0_133 = arith.constant 0 : index
    %c0_134 = arith.constant 0 : index
    %696 = vector.load %arg8[%c0_133, %c0_134] : memref<128x512xf32, #tpu.memory_space<vmem>>, vector<128x512xf32>
    %cst_135 = arith.constant 0.000000e+00 : f32
    %697 = vector.broadcast %cst_135 : f32 to vector<2x128xf32>
    %cst_136 = arith.constant 0.000000e+00 : f32
    %698 = vector.broadcast %cst_136 : f32 to vector<2x64xf32>
    %cst_137 = arith.constant 0.000000e+00 : f32
    %699 = vector.broadcast %cst_137 : f32 to vector<2x64xf32>
    %cst_138 = arith.constant dense<0.000000e+00> : vector<2x512xf32>
    %700 = tpu.matmul %697, %696, %cst_138 {dimension_numbers = #tpu.dot_dimension_numbers<[1], [0], [0], [1], [0, 0, 1, 1], [], []>} : vector<2x128xf32>, vector<128x512xf32>, vector<2x512xf32> -> vector<2x512xf32>
    %701 = vector.extract_strided_slice %700 {offsets = [0, 0], sizes = [2, 256], strides = [1, 1]} : vector<2x512xf32> to vector<2x256xf32>
    %702 = vector.extract_strided_slice %695 {offsets = [0, 0], sizes = [2, 256], strides = [1, 1]} : vector<16x512xf32> to vector<2x256xf32>
    %703 = arith.addf %701, %702 : vector<2x256xf32>
    %704 = vector.extract_strided_slice %700 {offsets = [0, 256], sizes = [2, 256], strides = [1, 1]} : vector<2x512xf32> to vector<2x256xf32>
    %705 = vector.extract_strided_slice %695 {offsets = [14, 256], sizes = [2, 256], strides = [1, 1]} : vector<16x512xf32> to vector<2x256xf32>
    %706 = arith.addf %704, %705 : vector<2x256xf32>
    %707 = vector.extract_strided_slice %703 {offsets = [0, 0], sizes = [2, 192], strides = [1, 1]} : vector<2x256xf32> to vector<2x192xf32>
    %708 = arith.negf %707 : vector<2x192xf32>
    %709 = math.exp %708 : vector<2x192xf32>
    %cst_139 = arith.constant 1.000000e+00 : f32
    %710 = vector.broadcast %cst_139 : f32 to vector<2x192xf32>
    %711 = arith.addf %710, %709 : vector<2x192xf32>
    %712 = arith.divf %710, %711 : vector<2x192xf32>
    %713 = vector.extract_strided_slice %706 {offsets = [0, 0], sizes = [2, 192], strides = [1, 1]} : vector<2x256xf32> to vector<2x192xf32>
    %714 = arith.negf %713 : vector<2x192xf32>
    %715 = math.exp %714 : vector<2x192xf32>
    %cst_140 = arith.constant 1.000000e+00 : f32
    %716 = vector.broadcast %cst_140 : f32 to vector<2x192xf32>
    %717 = arith.addf %716, %715 : vector<2x192xf32>
    %718 = arith.divf %716, %717 : vector<2x192xf32>
    %719 = vector.extract_strided_slice %703 {offsets = [0, 192], sizes = [2, 64], strides = [1, 1]} : vector<2x256xf32> to vector<2x64xf32>
    %720 = math.tanh %719 : vector<2x64xf32>
    %721 = vector.extract_strided_slice %706 {offsets = [0, 192], sizes = [2, 64], strides = [1, 1]} : vector<2x256xf32> to vector<2x64xf32>
    %722 = math.tanh %721 : vector<2x64xf32>
    %723 = vector.extract_strided_slice %712 {offsets = [0, 64], sizes = [2, 64], strides = [1, 1]} : vector<2x192xf32> to vector<2x64xf32>
    %724 = arith.mulf %723, %698 : vector<2x64xf32>
    %725 = vector.extract_strided_slice %712 {offsets = [0, 0], sizes = [2, 64], strides = [1, 1]} : vector<2x192xf32> to vector<2x64xf32>
    %726 = arith.mulf %725, %720 : vector<2x64xf32>
    %727 = arith.addf %724, %726 : vector<2x64xf32>
    %728 = vector.extract_strided_slice %718 {offsets = [0, 64], sizes = [2, 64], strides = [1, 1]} : vector<2x192xf32> to vector<2x64xf32>
    %729 = arith.mulf %728, %699 : vector<2x64xf32>
    %730 = vector.extract_strided_slice %718 {offsets = [0, 0], sizes = [2, 64], strides = [1, 1]} : vector<2x192xf32> to vector<2x64xf32>
    %731 = arith.mulf %730, %722 : vector<2x64xf32>
    %732 = arith.addf %729, %731 : vector<2x64xf32>
    %733 = vector.extract_strided_slice %712 {offsets = [0, 128], sizes = [2, 64], strides = [1, 1]} : vector<2x192xf32> to vector<2x64xf32>
    %734 = math.tanh %727 : vector<2x64xf32>
    %735 = arith.mulf %733, %734 : vector<2x64xf32>
    %736 = vector.extract_strided_slice %718 {offsets = [0, 128], sizes = [2, 64], strides = [1, 1]} : vector<2x192xf32> to vector<2x64xf32>
    %737 = math.tanh %732 : vector<2x64xf32>
    %738 = arith.mulf %736, %737 : vector<2x64xf32>
    %c0_141 = arith.constant 0 : index
    %c0_142 = arith.constant 0 : index
    %739 = vector.load %arg13[%c0_141, %c0_142] : memref<16x128xf32, #tpu.memory_space<vmem>>, vector<2x64xf32>
    tpu.vector_store %arg13[%c0_141, %c0_142], %735 {strides = array<i32>} : memref<16x128xf32, #tpu.memory_space<vmem>>, vector<2x64xf32>,
    %c14_143 = arith.constant 14 : index
    %c64_144 = arith.constant 64 : index
    %740 = vector.load %arg13[%c14_143, %c64_144] : memref<16x128xf32, #tpu.memory_space<vmem>>, vector<2x64xf32>
    tpu.vector_store %arg13[%c14_143, %c64_144], %738 {strides = array<i32>} : memref<16x128xf32, #tpu.memory_space<vmem>>, vector<2x64xf32>,
    %741 = tpu.concatenate %735, %738 in 1 : vector<2x64xf32>, vector<2x64xf32> -> vector<2x128xf32>
    %cst_145 = arith.constant dense<0.000000e+00> : vector<2x512xf32>
    %742 = tpu.matmul %741, %696, %cst_145 {dimension_numbers = #tpu.dot_dimension_numbers<[1], [0], [0], [1], [0, 0, 1, 1], [], []>} : vector<2x128xf32>, vector<128x512xf32>, vector<2x512xf32> -> vector<2x512xf32>
    %743 = vector.extract_strided_slice %742 {offsets = [0, 0], sizes = [2, 256], strides = [1, 1]} : vector<2x512xf32> to vector<2x256xf32>
    %744 = vector.extract_strided_slice %695 {offsets = [2, 0], sizes = [2, 256], strides = [1, 1]} : vector<16x512xf32> to vector<2x256xf32>
    %745 = arith.addf %743, %744 : vector<2x256xf32>
    %746 = vector.extract_strided_slice %742 {offsets = [0, 256], sizes = [2, 256], strides = [1, 1]} : vector<2x512xf32> to vector<2x256xf32>
    %747 = vector.extract_strided_slice %695 {offsets = [12, 256], sizes = [2, 256], strides = [1, 1]} : vector<16x512xf32> to vector<2x256xf32>
    %748 = arith.addf %746, %747 : vector<2x256xf32>
    %749 = vector.extract_strided_slice %745 {offsets = [0, 0], sizes = [2, 192], strides = [1, 1]} : vector<2x256xf32> to vector<2x192xf32>
    %750 = arith.negf %749 : vector<2x192xf32>
    %751 = math.exp %750 : vector<2x192xf32>
    %cst_146 = arith.constant 1.000000e+00 : f32
    %752 = vector.broadcast %cst_146 : f32 to vector<2x192xf32>
    %753 = arith.addf %752, %751 : vector<2x192xf32>
    %754 = arith.divf %752, %753 : vector<2x192xf32>
    %755 = vector.extract_strided_slice %748 {offsets = [0, 0], sizes = [2, 192], strides = [1, 1]} : vector<2x256xf32> to vector<2x192xf32>
    %756 = arith.negf %755 : vector<2x192xf32>
    %757 = math.exp %756 : vector<2x192xf32>
    %cst_147 = arith.constant 1.000000e+00 : f32
    %758 = vector.broadcast %cst_147 : f32 to vector<2x192xf32>
    %759 = arith.addf %758, %757 : vector<2x192xf32>
    %760 = arith.divf %758, %759 : vector<2x192xf32>
    %761 = vector.extract_strided_slice %745 {offsets = [0, 192], sizes = [2, 64], strides = [1, 1]} : vector<2x256xf32> to vector<2x64xf32>
    %762 = math.tanh %761 : vector<2x64xf32>
    %763 = vector.extract_strided_slice %748 {offsets = [0, 192], sizes = [2, 64], strides = [1, 1]} : vector<2x256xf32> to vector<2x64xf32>
    %764 = math.tanh %763 : vector<2x64xf32>
    %765 = vector.extract_strided_slice %754 {offsets = [0, 64], sizes = [2, 64], strides = [1, 1]} : vector<2x192xf32> to vector<2x64xf32>
    %766 = arith.mulf %765, %727 : vector<2x64xf32>
    %767 = vector.extract_strided_slice %754 {offsets = [0, 0], sizes = [2, 64], strides = [1, 1]} : vector<2x192xf32> to vector<2x64xf32>
    %768 = arith.mulf %767, %762 : vector<2x64xf32>
    %769 = arith.addf %766, %768 : vector<2x64xf32>
    %770 = vector.extract_strided_slice %760 {offsets = [0, 64], sizes = [2, 64], strides = [1, 1]} : vector<2x192xf32> to vector<2x64xf32>
    %771 = arith.mulf %770, %732 : vector<2x64xf32>
    %772 = vector.extract_strided_slice %760 {offsets = [0, 0], sizes = [2, 64], strides = [1, 1]} : vector<2x192xf32> to vector<2x64xf32>
    %773 = arith.mulf %772, %764 : vector<2x64xf32>
    %774 = arith.addf %771, %773 : vector<2x64xf32>
    %775 = vector.extract_strided_slice %754 {offsets = [0, 128], sizes = [2, 64], strides = [1, 1]} : vector<2x192xf32> to vector<2x64xf32>
    %776 = math.tanh %769 : vector<2x64xf32>
    %777 = arith.mulf %775, %776 : vector<2x64xf32>
    %778 = vector.extract_strided_slice %760 {offsets = [0, 128], sizes = [2, 64], strides = [1, 1]} : vector<2x192xf32> to vector<2x64xf32>
    %779 = math.tanh %774 : vector<2x64xf32>
    %780 = arith.mulf %778, %779 : vector<2x64xf32>
    %c2_148 = arith.constant 2 : index
    %c0_149 = arith.constant 0 : index
    %781 = vector.load %arg13[%c2_148, %c0_149] : memref<16x128xf32, #tpu.memory_space<vmem>>, vector<2x64xf32>
    tpu.vector_store %arg13[%c2_148, %c0_149], %777 {strides = array<i32>} : memref<16x128xf32, #tpu.memory_space<vmem>>, vector<2x64xf32>,
    %c12_150 = arith.constant 12 : index
    %c64_151 = arith.constant 64 : index
    %782 = vector.load %arg13[%c12_150, %c64_151] : memref<16x128xf32, #tpu.memory_space<vmem>>, vector<2x64xf32>
    tpu.vector_store %arg13[%c12_150, %c64_151], %780 {strides = array<i32>} : memref<16x128xf32, #tpu.memory_space<vmem>>, vector<2x64xf32>,
    %783 = tpu.concatenate %777, %780 in 1 : vector<2x64xf32>, vector<2x64xf32> -> vector<2x128xf32>
    %cst_152 = arith.constant dense<0.000000e+00> : vector<2x512xf32>
    %784 = tpu.matmul %783, %696, %cst_152 {dimension_numbers = #tpu.dot_dimension_numbers<[1], [0], [0], [1], [0, 0, 1, 1], [], []>} : vector<2x128xf32>, vector<128x512xf32>, vector<2x512xf32> -> vector<2x512xf32>
    %785 = vector.extract_strided_slice %784 {offsets = [0, 0], sizes = [2, 256], strides = [1, 1]} : vector<2x512xf32> to vector<2x256xf32>
    %786 = vector.extract_strided_slice %695 {offsets = [4, 0], sizes = [2, 256], strides = [1, 1]} : vector<16x512xf32> to vector<2x256xf32>
    %787 = arith.addf %785, %786 : vector<2x256xf32>
    %788 = vector.extract_strided_slice %784 {offsets = [0, 256], sizes = [2, 256], strides = [1, 1]} : vector<2x512xf32> to vector<2x256xf32>
    %789 = vector.extract_strided_slice %695 {offsets = [10, 256], sizes = [2, 256], strides = [1, 1]} : vector<16x512xf32> to vector<2x256xf32>
    %790 = arith.addf %788, %789 : vector<2x256xf32>
    %791 = vector.extract_strided_slice %787 {offsets = [0, 0], sizes = [2, 192], strides = [1, 1]} : vector<2x256xf32> to vector<2x192xf32>
    %792 = arith.negf %791 : vector<2x192xf32>
    %793 = math.exp %792 : vector<2x192xf32>
    %cst_153 = arith.constant 1.000000e+00 : f32
    %794 = vector.broadcast %cst_153 : f32 to vector<2x192xf32>
    %795 = arith.addf %794, %793 : vector<2x192xf32>
    %796 = arith.divf %794, %795 : vector<2x192xf32>
    %797 = vector.extract_strided_slice %790 {offsets = [0, 0], sizes = [2, 192], strides = [1, 1]} : vector<2x256xf32> to vector<2x192xf32>
    %798 = arith.negf %797 : vector<2x192xf32>
    %799 = math.exp %798 : vector<2x192xf32>
    %cst_154 = arith.constant 1.000000e+00 : f32
    %800 = vector.broadcast %cst_154 : f32 to vector<2x192xf32>
    %801 = arith.addf %800, %799 : vector<2x192xf32>
    %802 = arith.divf %800, %801 : vector<2x192xf32>
    %803 = vector.extract_strided_slice %787 {offsets = [0, 192], sizes = [2, 64], strides = [1, 1]} : vector<2x256xf32> to vector<2x64xf32>
    %804 = math.tanh %803 : vector<2x64xf32>
    %805 = vector.extract_strided_slice %790 {offsets = [0, 192], sizes = [2, 64], strides = [1, 1]} : vector<2x256xf32> to vector<2x64xf32>
    %806 = math.tanh %805 : vector<2x64xf32>
    %807 = vector.extract_strided_slice %796 {offsets = [0, 64], sizes = [2, 64], strides = [1, 1]} : vector<2x192xf32> to vector<2x64xf32>
    %808 = arith.mulf %807, %769 : vector<2x64xf32>
    %809 = vector.extract_strided_slice %796 {offsets = [0, 0], sizes = [2, 64], strides = [1, 1]} : vector<2x192xf32> to vector<2x64xf32>
    %810 = arith.mulf %809, %804 : vector<2x64xf32>
    %811 = arith.addf %808, %810 : vector<2x64xf32>
    %812 = vector.extract_strided_slice %802 {offsets = [0, 64], sizes = [2, 64], strides = [1, 1]} : vector<2x192xf32> to vector<2x64xf32>
    %813 = arith.mulf %812, %774 : vector<2x64xf32>
    %814 = vector.extract_strided_slice %802 {offsets = [0, 0], sizes = [2, 64], strides = [1, 1]} : vector<2x192xf32> to vector<2x64xf32>
    %815 = arith.mulf %814, %806 : vector<2x64xf32>
    %816 = arith.addf %813, %815 : vector<2x64xf32>
    %817 = vector.extract_strided_slice %796 {offsets = [0, 128], sizes = [2, 64], strides = [1, 1]} : vector<2x192xf32> to vector<2x64xf32>
    %818 = math.tanh %811 : vector<2x64xf32>
    %819 = arith.mulf %817, %818 : vector<2x64xf32>
    %820 = vector.extract_strided_slice %802 {offsets = [0, 128], sizes = [2, 64], strides = [1, 1]} : vector<2x192xf32> to vector<2x64xf32>
    %821 = math.tanh %816 : vector<2x64xf32>
    %822 = arith.mulf %820, %821 : vector<2x64xf32>
    %c4_155 = arith.constant 4 : index
    %c0_156 = arith.constant 0 : index
    %823 = vector.load %arg13[%c4_155, %c0_156] : memref<16x128xf32, #tpu.memory_space<vmem>>, vector<2x64xf32>
    tpu.vector_store %arg13[%c4_155, %c0_156], %819 {strides = array<i32>} : memref<16x128xf32, #tpu.memory_space<vmem>>, vector<2x64xf32>,
    %c10_157 = arith.constant 10 : index
    %c64_158 = arith.constant 64 : index
    %824 = vector.load %arg13[%c10_157, %c64_158] : memref<16x128xf32, #tpu.memory_space<vmem>>, vector<2x64xf32>
    tpu.vector_store %arg13[%c10_157, %c64_158], %822 {strides = array<i32>} : memref<16x128xf32, #tpu.memory_space<vmem>>, vector<2x64xf32>,
    %825 = tpu.concatenate %819, %822 in 1 : vector<2x64xf32>, vector<2x64xf32> -> vector<2x128xf32>
    %cst_159 = arith.constant dense<0.000000e+00> : vector<2x512xf32>
    %826 = tpu.matmul %825, %696, %cst_159 {dimension_numbers = #tpu.dot_dimension_numbers<[1], [0], [0], [1], [0, 0, 1, 1], [], []>} : vector<2x128xf32>, vector<128x512xf32>, vector<2x512xf32> -> vector<2x512xf32>
    %827 = vector.extract_strided_slice %826 {offsets = [0, 0], sizes = [2, 256], strides = [1, 1]} : vector<2x512xf32> to vector<2x256xf32>
    %828 = vector.extract_strided_slice %695 {offsets = [6, 0], sizes = [2, 256], strides = [1, 1]} : vector<16x512xf32> to vector<2x256xf32>
    %829 = arith.addf %827, %828 : vector<2x256xf32>
    %830 = vector.extract_strided_slice %826 {offsets = [0, 256], sizes = [2, 256], strides = [1, 1]} : vector<2x512xf32> to vector<2x256xf32>
    %831 = vector.extract_strided_slice %695 {offsets = [8, 256], sizes = [2, 256], strides = [1, 1]} : vector<16x512xf32> to vector<2x256xf32>
    %832 = arith.addf %830, %831 : vector<2x256xf32>
    %833 = vector.extract_strided_slice %829 {offsets = [0, 0], sizes = [2, 192], strides = [1, 1]} : vector<2x256xf32> to vector<2x192xf32>
    %834 = arith.negf %833 : vector<2x192xf32>
    %835 = math.exp %834 : vector<2x192xf32>
    %cst_160 = arith.constant 1.000000e+00 : f32
    %836 = vector.broadcast %cst_160 : f32 to vector<2x192xf32>
    %837 = arith.addf %836, %835 : vector<2x192xf32>
    %838 = arith.divf %836, %837 : vector<2x192xf32>
    %839 = vector.extract_strided_slice %832 {offsets = [0, 0], sizes = [2, 192], strides = [1, 1]} : vector<2x256xf32> to vector<2x192xf32>
    %840 = arith.negf %839 : vector<2x192xf32>
    %841 = math.exp %840 : vector<2x192xf32>
    %cst_161 = arith.constant 1.000000e+00 : f32
    %842 = vector.broadcast %cst_161 : f32 to vector<2x192xf32>
    %843 = arith.addf %842, %841 : vector<2x192xf32>
    %844 = arith.divf %842, %843 : vector<2x192xf32>
    %845 = vector.extract_strided_slice %829 {offsets = [0, 192], sizes = [2, 64], strides = [1, 1]} : vector<2x256xf32> to vector<2x64xf32>
    %846 = math.tanh %845 : vector<2x64xf32>
    %847 = vector.extract_strided_slice %832 {offsets = [0, 192], sizes = [2, 64], strides = [1, 1]} : vector<2x256xf32> to vector<2x64xf32>
    %848 = math.tanh %847 : vector<2x64xf32>
    %849 = vector.extract_strided_slice %838 {offsets = [0, 64], sizes = [2, 64], strides = [1, 1]} : vector<2x192xf32> to vector<2x64xf32>
    %850 = arith.mulf %849, %811 : vector<2x64xf32>
    %851 = vector.extract_strided_slice %838 {offsets = [0, 0], sizes = [2, 64], strides = [1, 1]} : vector<2x192xf32> to vector<2x64xf32>
    %852 = arith.mulf %851, %846 : vector<2x64xf32>
    %853 = arith.addf %850, %852 : vector<2x64xf32>
    %854 = vector.extract_strided_slice %844 {offsets = [0, 64], sizes = [2, 64], strides = [1, 1]} : vector<2x192xf32> to vector<2x64xf32>
    %855 = arith.mulf %854, %816 : vector<2x64xf32>
    %856 = vector.extract_strided_slice %844 {offsets = [0, 0], sizes = [2, 64], strides = [1, 1]} : vector<2x192xf32> to vector<2x64xf32>
    %857 = arith.mulf %856, %848 : vector<2x64xf32>
    %858 = arith.addf %855, %857 : vector<2x64xf32>
    %859 = vector.extract_strided_slice %838 {offsets = [0, 128], sizes = [2, 64], strides = [1, 1]} : vector<2x192xf32> to vector<2x64xf32>
    %860 = math.tanh %853 : vector<2x64xf32>
    %861 = arith.mulf %859, %860 : vector<2x64xf32>
    %862 = vector.extract_strided_slice %844 {offsets = [0, 128], sizes = [2, 64], strides = [1, 1]} : vector<2x192xf32> to vector<2x64xf32>
    %863 = math.tanh %858 : vector<2x64xf32>
    %864 = arith.mulf %862, %863 : vector<2x64xf32>
    %c6_162 = arith.constant 6 : index
    %c0_163 = arith.constant 0 : index
    %865 = vector.load %arg13[%c6_162, %c0_163] : memref<16x128xf32, #tpu.memory_space<vmem>>, vector<2x64xf32>
    tpu.vector_store %arg13[%c6_162, %c0_163], %861 {strides = array<i32>} : memref<16x128xf32, #tpu.memory_space<vmem>>, vector<2x64xf32>,
    %c8_164 = arith.constant 8 : index
    %c64_165 = arith.constant 64 : index
    %866 = vector.load %arg13[%c8_164, %c64_165] : memref<16x128xf32, #tpu.memory_space<vmem>>, vector<2x64xf32>
    tpu.vector_store %arg13[%c8_164, %c64_165], %864 {strides = array<i32>} : memref<16x128xf32, #tpu.memory_space<vmem>>, vector<2x64xf32>,
    %867 = tpu.concatenate %861, %864 in 1 : vector<2x64xf32>, vector<2x64xf32> -> vector<2x128xf32>
    %cst_166 = arith.constant dense<0.000000e+00> : vector<2x512xf32>
    %868 = tpu.matmul %867, %696, %cst_166 {dimension_numbers = #tpu.dot_dimension_numbers<[1], [0], [0], [1], [0, 0, 1, 1], [], []>} : vector<2x128xf32>, vector<128x512xf32>, vector<2x512xf32> -> vector<2x512xf32>
    %869 = vector.extract_strided_slice %868 {offsets = [0, 0], sizes = [2, 256], strides = [1, 1]} : vector<2x512xf32> to vector<2x256xf32>
    %870 = vector.extract_strided_slice %695 {offsets = [8, 0], sizes = [2, 256], strides = [1, 1]} : vector<16x512xf32> to vector<2x256xf32>
    %871 = arith.addf %869, %870 : vector<2x256xf32>
    %872 = vector.extract_strided_slice %868 {offsets = [0, 256], sizes = [2, 256], strides = [1, 1]} : vector<2x512xf32> to vector<2x256xf32>
    %873 = vector.extract_strided_slice %695 {offsets = [6, 256], sizes = [2, 256], strides = [1, 1]} : vector<16x512xf32> to vector<2x256xf32>
    %874 = arith.addf %872, %873 : vector<2x256xf32>
    %875 = vector.extract_strided_slice %871 {offsets = [0, 0], sizes = [2, 192], strides = [1, 1]} : vector<2x256xf32> to vector<2x192xf32>
    %876 = arith.negf %875 : vector<2x192xf32>
    %877 = math.exp %876 : vector<2x192xf32>
    %cst_167 = arith.constant 1.000000e+00 : f32
    %878 = vector.broadcast %cst_167 : f32 to vector<2x192xf32>
    %879 = arith.addf %878, %877 : vector<2x192xf32>
    %880 = arith.divf %878, %879 : vector<2x192xf32>
    %881 = vector.extract_strided_slice %874 {offsets = [0, 0], sizes = [2, 192], strides = [1, 1]} : vector<2x256xf32> to vector<2x192xf32>
    %882 = arith.negf %881 : vector<2x192xf32>
    %883 = math.exp %882 : vector<2x192xf32>
    %cst_168 = arith.constant 1.000000e+00 : f32
    %884 = vector.broadcast %cst_168 : f32 to vector<2x192xf32>
    %885 = arith.addf %884, %883 : vector<2x192xf32>
    %886 = arith.divf %884, %885 : vector<2x192xf32>
    %887 = vector.extract_strided_slice %871 {offsets = [0, 192], sizes = [2, 64], strides = [1, 1]} : vector<2x256xf32> to vector<2x64xf32>
    %888 = math.tanh %887 : vector<2x64xf32>
    %889 = vector.extract_strided_slice %874 {offsets = [0, 192], sizes = [2, 64], strides = [1, 1]} : vector<2x256xf32> to vector<2x64xf32>
    %890 = math.tanh %889 : vector<2x64xf32>
    %891 = vector.extract_strided_slice %880 {offsets = [0, 64], sizes = [2, 64], strides = [1, 1]} : vector<2x192xf32> to vector<2x64xf32>
    %892 = arith.mulf %891, %853 : vector<2x64xf32>
    %893 = vector.extract_strided_slice %880 {offsets = [0, 0], sizes = [2, 64], strides = [1, 1]} : vector<2x192xf32> to vector<2x64xf32>
    %894 = arith.mulf %893, %888 : vector<2x64xf32>
    %895 = arith.addf %892, %894 : vector<2x64xf32>
    %896 = vector.extract_strided_slice %886 {offsets = [0, 64], sizes = [2, 64], strides = [1, 1]} : vector<2x192xf32> to vector<2x64xf32>
    %897 = arith.mulf %896, %858 : vector<2x64xf32>
    %898 = vector.extract_strided_slice %886 {offsets = [0, 0], sizes = [2, 64], strides = [1, 1]} : vector<2x192xf32> to vector<2x64xf32>
    %899 = arith.mulf %898, %890 : vector<2x64xf32>
    %900 = arith.addf %897, %899 : vector<2x64xf32>
    %901 = vector.extract_strided_slice %880 {offsets = [0, 128], sizes = [2, 64], strides = [1, 1]} : vector<2x192xf32> to vector<2x64xf32>
    %902 = math.tanh %895 : vector<2x64xf32>
    %903 = arith.mulf %901, %902 : vector<2x64xf32>
    %904 = vector.extract_strided_slice %886 {offsets = [0, 128], sizes = [2, 64], strides = [1, 1]} : vector<2x192xf32> to vector<2x64xf32>
    %905 = math.tanh %900 : vector<2x64xf32>
    %906 = arith.mulf %904, %905 : vector<2x64xf32>
    %c8_169 = arith.constant 8 : index
    %c0_170 = arith.constant 0 : index
    %907 = vector.load %arg13[%c8_169, %c0_170] : memref<16x128xf32, #tpu.memory_space<vmem>>, vector<2x64xf32>
    tpu.vector_store %arg13[%c8_169, %c0_170], %903 {strides = array<i32>} : memref<16x128xf32, #tpu.memory_space<vmem>>, vector<2x64xf32>,
    %c6_171 = arith.constant 6 : index
    %c64_172 = arith.constant 64 : index
    %908 = vector.load %arg13[%c6_171, %c64_172] : memref<16x128xf32, #tpu.memory_space<vmem>>, vector<2x64xf32>
    tpu.vector_store %arg13[%c6_171, %c64_172], %906 {strides = array<i32>} : memref<16x128xf32, #tpu.memory_space<vmem>>, vector<2x64xf32>,
    %909 = tpu.concatenate %903, %906 in 1 : vector<2x64xf32>, vector<2x64xf32> -> vector<2x128xf32>
    %cst_173 = arith.constant dense<0.000000e+00> : vector<2x512xf32>
    %910 = tpu.matmul %909, %696, %cst_173 {dimension_numbers = #tpu.dot_dimension_numbers<[1], [0], [0], [1], [0, 0, 1, 1], [], []>} : vector<2x128xf32>, vector<128x512xf32>, vector<2x512xf32> -> vector<2x512xf32>
    %911 = vector.extract_strided_slice %910 {offsets = [0, 0], sizes = [2, 256], strides = [1, 1]} : vector<2x512xf32> to vector<2x256xf32>
    %912 = vector.extract_strided_slice %695 {offsets = [10, 0], sizes = [2, 256], strides = [1, 1]} : vector<16x512xf32> to vector<2x256xf32>
    %913 = arith.addf %911, %912 : vector<2x256xf32>
    %914 = vector.extract_strided_slice %910 {offsets = [0, 256], sizes = [2, 256], strides = [1, 1]} : vector<2x512xf32> to vector<2x256xf32>
    %915 = vector.extract_strided_slice %695 {offsets = [4, 256], sizes = [2, 256], strides = [1, 1]} : vector<16x512xf32> to vector<2x256xf32>
    %916 = arith.addf %914, %915 : vector<2x256xf32>
    %917 = vector.extract_strided_slice %913 {offsets = [0, 0], sizes = [2, 192], strides = [1, 1]} : vector<2x256xf32> to vector<2x192xf32>
    %918 = arith.negf %917 : vector<2x192xf32>
    %919 = math.exp %918 : vector<2x192xf32>
    %cst_174 = arith.constant 1.000000e+00 : f32
    %920 = vector.broadcast %cst_174 : f32 to vector<2x192xf32>
    %921 = arith.addf %920, %919 : vector<2x192xf32>
    %922 = arith.divf %920, %921 : vector<2x192xf32>
    %923 = vector.extract_strided_slice %916 {offsets = [0, 0], sizes = [2, 192], strides = [1, 1]} : vector<2x256xf32> to vector<2x192xf32>
    %924 = arith.negf %923 : vector<2x192xf32>
    %925 = math.exp %924 : vector<2x192xf32>
    %cst_175 = arith.constant 1.000000e+00 : f32
    %926 = vector.broadcast %cst_175 : f32 to vector<2x192xf32>
    %927 = arith.addf %926, %925 : vector<2x192xf32>
    %928 = arith.divf %926, %927 : vector<2x192xf32>
    %929 = vector.extract_strided_slice %913 {offsets = [0, 192], sizes = [2, 64], strides = [1, 1]} : vector<2x256xf32> to vector<2x64xf32>
    %930 = math.tanh %929 : vector<2x64xf32>
    %931 = vector.extract_strided_slice %916 {offsets = [0, 192], sizes = [2, 64], strides = [1, 1]} : vector<2x256xf32> to vector<2x64xf32>
    %932 = math.tanh %931 : vector<2x64xf32>
    %933 = vector.extract_strided_slice %922 {offsets = [0, 64], sizes = [2, 64], strides = [1, 1]} : vector<2x192xf32> to vector<2x64xf32>
    %934 = arith.mulf %933, %895 : vector<2x64xf32>
    %935 = vector.extract_strided_slice %922 {offsets = [0, 0], sizes = [2, 64], strides = [1, 1]} : vector<2x192xf32> to vector<2x64xf32>
    %936 = arith.mulf %935, %930 : vector<2x64xf32>
    %937 = arith.addf %934, %936 : vector<2x64xf32>
    %938 = vector.extract_strided_slice %928 {offsets = [0, 64], sizes = [2, 64], strides = [1, 1]} : vector<2x192xf32> to vector<2x64xf32>
    %939 = arith.mulf %938, %900 : vector<2x64xf32>
    %940 = vector.extract_strided_slice %928 {offsets = [0, 0], sizes = [2, 64], strides = [1, 1]} : vector<2x192xf32> to vector<2x64xf32>
    %941 = arith.mulf %940, %932 : vector<2x64xf32>
    %942 = arith.addf %939, %941 : vector<2x64xf32>
    %943 = vector.extract_strided_slice %922 {offsets = [0, 128], sizes = [2, 64], strides = [1, 1]} : vector<2x192xf32> to vector<2x64xf32>
    %944 = math.tanh %937 : vector<2x64xf32>
    %945 = arith.mulf %943, %944 : vector<2x64xf32>
    %946 = vector.extract_strided_slice %928 {offsets = [0, 128], sizes = [2, 64], strides = [1, 1]} : vector<2x192xf32> to vector<2x64xf32>
    %947 = math.tanh %942 : vector<2x64xf32>
    %948 = arith.mulf %946, %947 : vector<2x64xf32>
    %c10_176 = arith.constant 10 : index
    %c0_177 = arith.constant 0 : index
    %949 = vector.load %arg13[%c10_176, %c0_177] : memref<16x128xf32, #tpu.memory_space<vmem>>, vector<2x64xf32>
    tpu.vector_store %arg13[%c10_176, %c0_177], %945 {strides = array<i32>} : memref<16x128xf32, #tpu.memory_space<vmem>>, vector<2x64xf32>,
    %c4_178 = arith.constant 4 : index
    %c64_179 = arith.constant 64 : index
    %950 = vector.load %arg13[%c4_178, %c64_179] : memref<16x128xf32, #tpu.memory_space<vmem>>, vector<2x64xf32>
    tpu.vector_store %arg13[%c4_178, %c64_179], %948 {strides = array<i32>} : memref<16x128xf32, #tpu.memory_space<vmem>>, vector<2x64xf32>,
    %951 = tpu.concatenate %945, %948 in 1 : vector<2x64xf32>, vector<2x64xf32> -> vector<2x128xf32>
    %cst_180 = arith.constant dense<0.000000e+00> : vector<2x512xf32>
    %952 = tpu.matmul %951, %696, %cst_180 {dimension_numbers = #tpu.dot_dimension_numbers<[1], [0], [0], [1], [0, 0, 1, 1], [], []>} : vector<2x128xf32>, vector<128x512xf32>, vector<2x512xf32> -> vector<2x512xf32>
    %953 = vector.extract_strided_slice %952 {offsets = [0, 0], sizes = [2, 256], strides = [1, 1]} : vector<2x512xf32> to vector<2x256xf32>
    %954 = vector.extract_strided_slice %695 {offsets = [12, 0], sizes = [2, 256], strides = [1, 1]} : vector<16x512xf32> to vector<2x256xf32>
    %955 = arith.addf %953, %954 : vector<2x256xf32>
    %956 = vector.extract_strided_slice %952 {offsets = [0, 256], sizes = [2, 256], strides = [1, 1]} : vector<2x512xf32> to vector<2x256xf32>
    %957 = vector.extract_strided_slice %695 {offsets = [2, 256], sizes = [2, 256], strides = [1, 1]} : vector<16x512xf32> to vector<2x256xf32>
    %958 = arith.addf %956, %957 : vector<2x256xf32>
    %959 = vector.extract_strided_slice %955 {offsets = [0, 0], sizes = [2, 192], strides = [1, 1]} : vector<2x256xf32> to vector<2x192xf32>
    %960 = arith.negf %959 : vector<2x192xf32>
    %961 = math.exp %960 : vector<2x192xf32>
    %cst_181 = arith.constant 1.000000e+00 : f32
    %962 = vector.broadcast %cst_181 : f32 to vector<2x192xf32>
    %963 = arith.addf %962, %961 : vector<2x192xf32>
    %964 = arith.divf %962, %963 : vector<2x192xf32>
    %965 = vector.extract_strided_slice %958 {offsets = [0, 0], sizes = [2, 192], strides = [1, 1]} : vector<2x256xf32> to vector<2x192xf32>
    %966 = arith.negf %965 : vector<2x192xf32>
    %967 = math.exp %966 : vector<2x192xf32>
    %cst_182 = arith.constant 1.000000e+00 : f32
    %968 = vector.broadcast %cst_182 : f32 to vector<2x192xf32>
    %969 = arith.addf %968, %967 : vector<2x192xf32>
    %970 = arith.divf %968, %969 : vector<2x192xf32>
    %971 = vector.extract_strided_slice %955 {offsets = [0, 192], sizes = [2, 64], strides = [1, 1]} : vector<2x256xf32> to vector<2x64xf32>
    %972 = math.tanh %971 : vector<2x64xf32>
    %973 = vector.extract_strided_slice %958 {offsets = [0, 192], sizes = [2, 64], strides = [1, 1]} : vector<2x256xf32> to vector<2x64xf32>
    %974 = math.tanh %973 : vector<2x64xf32>
    %975 = vector.extract_strided_slice %964 {offsets = [0, 64], sizes = [2, 64], strides = [1, 1]} : vector<2x192xf32> to vector<2x64xf32>
    %976 = arith.mulf %975, %937 : vector<2x64xf32>
    %977 = vector.extract_strided_slice %964 {offsets = [0, 0], sizes = [2, 64], strides = [1, 1]} : vector<2x192xf32> to vector<2x64xf32>
    %978 = arith.mulf %977, %972 : vector<2x64xf32>
    %979 = arith.addf %976, %978 : vector<2x64xf32>
    %980 = vector.extract_strided_slice %970 {offsets = [0, 64], sizes = [2, 64], strides = [1, 1]} : vector<2x192xf32> to vector<2x64xf32>
    %981 = arith.mulf %980, %942 : vector<2x64xf32>
    %982 = vector.extract_strided_slice %970 {offsets = [0, 0], sizes = [2, 64], strides = [1, 1]} : vector<2x192xf32> to vector<2x64xf32>
    %983 = arith.mulf %982, %974 : vector<2x64xf32>
    %984 = arith.addf %981, %983 : vector<2x64xf32>
    %985 = vector.extract_strided_slice %964 {offsets = [0, 128], sizes = [2, 64], strides = [1, 1]} : vector<2x192xf32> to vector<2x64xf32>
    %986 = math.tanh %979 : vector<2x64xf32>
    %987 = arith.mulf %985, %986 : vector<2x64xf32>
    %988 = vector.extract_strided_slice %970 {offsets = [0, 128], sizes = [2, 64], strides = [1, 1]} : vector<2x192xf32> to vector<2x64xf32>
    %989 = math.tanh %984 : vector<2x64xf32>
    %990 = arith.mulf %988, %989 : vector<2x64xf32>
    %c12_183 = arith.constant 12 : index
    %c0_184 = arith.constant 0 : index
    %991 = vector.load %arg13[%c12_183, %c0_184] : memref<16x128xf32, #tpu.memory_space<vmem>>, vector<2x64xf32>
    tpu.vector_store %arg13[%c12_183, %c0_184], %987 {strides = array<i32>} : memref<16x128xf32, #tpu.memory_space<vmem>>, vector<2x64xf32>,
    %c2_185 = arith.constant 2 : index
    %c64_186 = arith.constant 64 : index
    %992 = vector.load %arg13[%c2_185, %c64_186] : memref<16x128xf32, #tpu.memory_space<vmem>>, vector<2x64xf32>
    tpu.vector_store %arg13[%c2_185, %c64_186], %990 {strides = array<i32>} : memref<16x128xf32, #tpu.memory_space<vmem>>, vector<2x64xf32>,
    %993 = tpu.concatenate %987, %990 in 1 : vector<2x64xf32>, vector<2x64xf32> -> vector<2x128xf32>
    %cst_187 = arith.constant dense<0.000000e+00> : vector<2x512xf32>
    %994 = tpu.matmul %993, %696, %cst_187 {dimension_numbers = #tpu.dot_dimension_numbers<[1], [0], [0], [1], [0, 0, 1, 1], [], []>} : vector<2x128xf32>, vector<128x512xf32>, vector<2x512xf32> -> vector<2x512xf32>
    %995 = vector.extract_strided_slice %994 {offsets = [0, 0], sizes = [2, 256], strides = [1, 1]} : vector<2x512xf32> to vector<2x256xf32>
    %996 = vector.extract_strided_slice %695 {offsets = [14, 0], sizes = [2, 256], strides = [1, 1]} : vector<16x512xf32> to vector<2x256xf32>
    %997 = arith.addf %995, %996 : vector<2x256xf32>
    %998 = vector.extract_strided_slice %994 {offsets = [0, 256], sizes = [2, 256], strides = [1, 1]} : vector<2x512xf32> to vector<2x256xf32>
    %999 = vector.extract_strided_slice %695 {offsets = [0, 256], sizes = [2, 256], strides = [1, 1]} : vector<16x512xf32> to vector<2x256xf32>
    %1000 = arith.addf %998, %999 : vector<2x256xf32>
    %1001 = vector.extract_strided_slice %997 {offsets = [0, 0], sizes = [2, 192], strides = [1, 1]} : vector<2x256xf32> to vector<2x192xf32>
    %1002 = arith.negf %1001 : vector<2x192xf32>
    %1003 = math.exp %1002 : vector<2x192xf32>
    %cst_188 = arith.constant 1.000000e+00 : f32
    %1004 = vector.broadcast %cst_188 : f32 to vector<2x192xf32>
    %1005 = arith.addf %1004, %1003 : vector<2x192xf32>
    %1006 = arith.divf %1004, %1005 : vector<2x192xf32>
    %1007 = vector.extract_strided_slice %1000 {offsets = [0, 0], sizes = [2, 192], strides = [1, 1]} : vector<2x256xf32> to vector<2x192xf32>
    %1008 = arith.negf %1007 : vector<2x192xf32>
    %1009 = math.exp %1008 : vector<2x192xf32>
    %cst_189 = arith.constant 1.000000e+00 : f32
    %1010 = vector.broadcast %cst_189 : f32 to vector<2x192xf32>
    %1011 = arith.addf %1010, %1009 : vector<2x192xf32>
    %1012 = arith.divf %1010, %1011 : vector<2x192xf32>
    %1013 = vector.extract_strided_slice %997 {offsets = [0, 192], sizes = [2, 64], strides = [1, 1]} : vector<2x256xf32> to vector<2x64xf32>
    %1014 = math.tanh %1013 : vector<2x64xf32>
    %1015 = vector.extract_strided_slice %1000 {offsets = [0, 192], sizes = [2, 64], strides = [1, 1]} : vector<2x256xf32> to vector<2x64xf32>
    %1016 = math.tanh %1015 : vector<2x64xf32>
    %1017 = vector.extract_strided_slice %1006 {offsets = [0, 64], sizes = [2, 64], strides = [1, 1]} : vector<2x192xf32> to vector<2x64xf32>
    %1018 = arith.mulf %1017, %979 : vector<2x64xf32>
    %1019 = vector.extract_strided_slice %1006 {offsets = [0, 0], sizes = [2, 64], strides = [1, 1]} : vector<2x192xf32> to vector<2x64xf32>
    %1020 = arith.mulf %1019, %1014 : vector<2x64xf32>
    %1021 = arith.addf %1018, %1020 : vector<2x64xf32>
    %1022 = vector.extract_strided_slice %1012 {offsets = [0, 64], sizes = [2, 64], strides = [1, 1]} : vector<2x192xf32> to vector<2x64xf32>
    %1023 = arith.mulf %1022, %984 : vector<2x64xf32>
    %1024 = vector.extract_strided_slice %1012 {offsets = [0, 0], sizes = [2, 64], strides = [1, 1]} : vector<2x192xf32> to vector<2x64xf32>
    %1025 = arith.mulf %1024, %1016 : vector<2x64xf32>
    %1026 = arith.addf %1023, %1025 : vector<2x64xf32>
    %1027 = vector.extract_strided_slice %1006 {offsets = [0, 128], sizes = [2, 64], strides = [1, 1]} : vector<2x192xf32> to vector<2x64xf32>
    %1028 = math.tanh %1021 : vector<2x64xf32>
    %1029 = arith.mulf %1027, %1028 : vector<2x64xf32>
    %1030 = vector.extract_strided_slice %1012 {offsets = [0, 128], sizes = [2, 64], strides = [1, 1]} : vector<2x192xf32> to vector<2x64xf32>
    %1031 = math.tanh %1026 : vector<2x64xf32>
    %1032 = arith.mulf %1030, %1031 : vector<2x64xf32>
    %c14_190 = arith.constant 14 : index
    %c0_191 = arith.constant 0 : index
    %1033 = vector.load %arg13[%c14_190, %c0_191] : memref<16x128xf32, #tpu.memory_space<vmem>>, vector<2x64xf32>
    tpu.vector_store %arg13[%c14_190, %c0_191], %1029 {strides = array<i32>} : memref<16x128xf32, #tpu.memory_space<vmem>>, vector<2x64xf32>,
    %c0_192 = arith.constant 0 : index
    %c64_193 = arith.constant 64 : index
    %1034 = vector.load %arg13[%c0_192, %c64_193] : memref<16x128xf32, #tpu.memory_space<vmem>>, vector<2x64xf32>
    tpu.vector_store %arg13[%c0_192, %c64_193], %1032 {strides = array<i32>} : memref<16x128xf32, #tpu.memory_space<vmem>>, vector<2x64xf32>,
    %c14_194 = arith.constant 14 : index
    %c0_195 = arith.constant 0 : index
    %1035 = vector.load %arg13[%c14_194, %c0_195] : memref<16x128xf32, #tpu.memory_space<vmem>>, vector<2x128xf32>
    %c0_196 = arith.constant 0 : index
    %c0_197 = arith.constant 0 : index
    %1036 = vector.load %arg10[%c0_196, %c0_197] : memref<128x20xf32, #tpu.memory_space<vmem>>, vector<128x20xf32>
    %cst_198 = arith.constant dense<0.000000e+00> : vector<2x20xf32>
    %1037 = tpu.matmul %1035, %1036, %cst_198 {dimension_numbers = #tpu.dot_dimension_numbers<[1], [0], [0], [1], [0, 0, 1, 1], [], []>} : vector<2x128xf32>, vector<128x20xf32>, vector<2x20xf32> -> vector<2x20xf32>
    %c0_199 = arith.constant 0 : index
    %c0_200 = arith.constant 0 : index
    %1038 = vector.load %arg11[%c0_199, %c0_200] : memref<1x20xf32, #tpu.memory_space<vmem>>, vector<1x20xf32>
    %1039 = vector.broadcast %1038 : vector<1x20xf32> to vector<2x20xf32>
    %1040 = arith.addf %1037, %1039 : vector<2x20xf32>
    %c0_201 = arith.constant 0 : index
    %c0_202 = arith.constant 0 : index
    %1041 = vector.load %arg12[%c0_201, %c0_202] : memref<2x20xf32, #tpu.memory_space<vmem>>, vector<2x20xf32>
    tpu.vector_store %arg12[%c0_201, %c0_202], %1040 {strides = array<i32>} : memref<2x20xf32, #tpu.memory_space<vmem>>, vector<2x20xf32>,
    return
  }
}

</mosaic_0001>

<llo_original>
// kernel: rnn_forward.1
$region0: #{rnn_forward.1}
  #allocation0 [shape = 'u32[]', space=smem, size = 0x4, offset = 0x4, fixed_abs, tag = 'smem constant byte address 0x4 - core index']
  #allocation1 [shape = 'u32[144,128]{1,0:T(1,128)}', space=vmem, size = 0x12000, scoped, tag = 'internal scratch']
  #allocation2 [shape = 'f32[16,128]{1,0:T(8,128)}', space=vmem, size = 0x2000, scoped, tag = 'scratch operand']
  %s0 = inlined_call_operand.vmem [shape: f32[16,34], index: 0, kind: input, shape index: {}]
  %s1 = inlined_call_operand.vmem [shape: f32[34,512], index: 1, kind: input, shape index: {}]
  %s2 = inlined_call_operand.hbm [shape: f32[128,512], index: 2, kind: input, shape index: {}]
  %s3 = inlined_call_operand.vmem [shape: f32[1,512], index: 3, kind: input, shape index: {}]
  %s4 = inlined_call_operand.hbm [shape: f32[128,512], index: 4, kind: input, shape index: {}]
  %s5 = inlined_call_operand.hbm [shape: f32[128,512], index: 5, kind: input, shape index: {}]
  %s6 = inlined_call_operand.vmem [shape: f32[1,512], index: 6, kind: input, shape index: {}]
  %s7 = inlined_call_operand.hbm [shape: f32[128,512], index: 7, kind: input, shape index: {}]
  %s8 = inlined_call_operand.hbm [shape: f32[128,512], index: 8, kind: input, shape index: {}]
  %s9 = inlined_call_operand.vmem [shape: f32[1,512], index: 9, kind: input, shape index: {}]
  %s10 = inlined_call_operand.vmem [shape: f32[128,20], index: 10, kind: input, shape index: {}]
  %s11 = inlined_call_operand.vmem [shape: f32[1,20], index: 11, kind: input, shape index: {}]
  %s12 = inlined_call_operand.hbm [shape: f32[2,20], index: 12, kind: output, shape index: {}]
  %s13 = sld [smem:[#allocation0]]
  $region78: #{rnn_forward.1} parent=0
    _
  %s15 = ssub.s32 1, %s13
  %s16 = scalar_select 0, %s15, %s13
  $region1: #{rnn_forward.1} parent=0
    #allocation3 [shape = 'u8[262144]{0}', space=vmem, size = 0x40000, scoped, tag = 'input window, operand 2, single buffered']
    #allocation4 [shape = 's32[1]{0}', space=sflag, size = 0x4, scoped, tag = 'scoped memory for rnn_forward.1']
    #allocation5 [shape = 's32[1]{0}', space=sflag, size = 0x4, scoped, tag = 'scoped memory for rnn_forward.1']
    #allocation6 [shape = 'u8[262144]{0}', space=vmem, size = 0x40000, scoped, tag = 'input window, operand 4, single buffered']
    #allocation7 [shape = 's32[1]{0}', space=sflag, size = 0x4, scoped, tag = 'scoped memory for rnn_forward.1']
    #allocation8 [shape = 'u8[262144]{0}', space=vmem, size = 0x40000, scoped, tag = 'input window, operand 5, single buffered']
    #allocation9 [shape = 'u8[262144]{0}', space=vmem, size = 0x40000, scoped, tag = 'input window, operand 7, single buffered']
    #allocation10 [shape = 's32[1]{0}', space=sflag, size = 0x4, scoped, tag = 'scoped memory for rnn_forward.1']
    #allocation11 [shape = 'u8[262144]{0}', space=vmem, size = 0x40000, scoped, tag = 'input window, operand 8, single buffered']
    #allocation12 [shape = 'u8[1024]{0}', space=vmem, size = 0x400, scoped, tag = 'output window, operand 0, single buffered']
    %17 = vsyncpa [#allocation4], 0
    %18 = vsyncpa [#allocation7], 0
    %19 = vsyncpa [#allocation10], 0
    %20 = vsyncpa [#allocation5], 0
    // Predicated region
    $region2: #{rnn_forward.1} parent=1 // pred_check
      _
    $region3: #{rnn_forward.1} parent=1 // pred_check_branch
      %22 = sbr.rel (0) target = $region5
    $region4: #{rnn_forward.1} parent=1 // pred_region
      _
    $region5: #{rnn_forward.1} parent=1 // pred_fallthru
      _
    // Predicated region
    $region6: #{rnn_forward.1} parent=1 // pred_check
      _
    $region7: #{rnn_forward.1} parent=1 // pred_check_branch
      %24 = sbr.rel (0) target = $region9
    $region8: #{rnn_forward.1} parent=1 // pred_region
      _
    $region9: #{rnn_forward.1} parent=1 // pred_fallthru
      _
    // Predicated region
    $region10: #{rnn_forward.1} parent=1 // pred_check
      _
    $region11: #{rnn_forward.1} parent=1 // pred_check_branch
      %26 = sbr.rel (0) target = $region13
    $region12: #{rnn_forward.1} parent=1 // pred_region
      %s28 = ssub.s32 8192, 8192
      %29 = vsyncadd [#allocation4], %s28
      %s30 = sshll.u32 [#allocation3], 4
      %s31 = int_to_ptr.vmem [resolvable:$true] %s30
      %36 = dma.hbm_to_vmem [thread:$0]  %s2, 8192, %s31, [#allocation4], 512, 512, 32
    $region13: #{rnn_forward.1} parent=1 // pred_fallthru
      _
    // Predicated region
    $region14: #{rnn_forward.1} parent=1 // pred_check
      _
    $region15: #{rnn_forward.1} parent=1 // pred_check_branch
      %38 = sbr.rel (0) target = $region17
    $region16: #{rnn_forward.1} parent=1 // pred_region
      _
    $region17: #{rnn_forward.1} parent=1 // pred_fallthru
      _
    // Predicated region
    $region18: #{rnn_forward.1} parent=1 // pred_check
      _
    $region19: #{rnn_forward.1} parent=1 // pred_check_branch
      %40 = sbr.rel (0) target = $region21
    $region20: #{rnn_forward.1} parent=1 // pred_region
      %s42 = ssub.s32 8192, 8192
      %43 = vsyncadd [#allocation7], %s42
      %s44 = sshll.u32 [#allocation6], 4
      %s45 = int_to_ptr.vmem [resolvable:$true] %s44
      %50 = dma.hbm_to_vmem [thread:$0]  %s4, 8192, %s45, [#allocation7], 512, 512, 32
    $region21: #{rnn_forward.1} parent=1 // pred_fallthru
      _
    // Predicated region
    $region22: #{rnn_forward.1} parent=1 // pred_check
      _
    $region23: #{rnn_forward.1} parent=1 // pred_check_branch
      %52 = sbr.rel (0) target = $region25
    $region24: #{rnn_forward.1} parent=1 // pred_region
      %s54 = ssub.s32 8192, 8192
      %55 = vsyncadd [#allocation7], %s54
      %s56 = sshll.u32 [#allocation8], 4
      %s57 = int_to_ptr.vmem [resolvable:$true] %s56
      %62 = dma.hbm_to_vmem [thread:$0]  %s5, 8192, %s57, [#allocation7], 512, 512, 32
    $region25: #{rnn_forward.1} parent=1 // pred_fallthru
      _
    // Predicated region
    $region26: #{rnn_forward.1} parent=1 // pred_check
      _
    $region27: #{rnn_forward.1} parent=1 // pred_check_branch
      %64 = sbr.rel (0) target = $region29
    $region28: #{rnn_forward.1} parent=1 // pred_region
      _
    $region29: #{rnn_forward.1} parent=1 // pred_fallthru
      _
    // Predicated region
    $region30: #{rnn_forward.1} parent=1 // pred_check
      _
    $region31: #{rnn_forward.1} parent=1 // pred_check_branch
      %66 = sbr.rel (0) target = $region33
    $region32: #{rnn_forward.1} parent=1 // pred_region
      %s68 = ssub.s32 8192, 8192
      %69 = vsyncadd [#allocation10], %s68
      %s70 = sshll.u32 [#allocation9], 4
      %s71 = int_to_ptr.vmem [resolvable:$true] %s70
      %76 = dma.hbm_to_vmem [thread:$0]  %s7, 8192, %s71, [#allocation10], 512, 512, 32
    $region33: #{rnn_forward.1} parent=1 // pred_fallthru
      _
    // Predicated region
    $region34: #{rnn_forward.1} parent=1 // pred_check
      _
    $region35: #{rnn_forward.1} parent=1 // pred_check_branch
      %78 = sbr.rel (0) target = $region37
    $region36: #{rnn_forward.1} parent=1 // pred_region
      %s80 = ssub.s32 8192, 8192
      %81 = vsyncadd [#allocation10], %s80
      %s82 = sshll.u32 [#allocation11], 4
      %s83 = int_to_ptr.vmem [resolvable:$true] %s82
      %88 = dma.hbm_to_vmem [thread:$0]  %s8, 8192, %s83, [#allocation10], 512, 512, 32
    $region37: #{rnn_forward.1} parent=1 // pred_fallthru
      _
    // Predicated region
    $region38: #{rnn_forward.1} parent=1 // pred_check
      _
    $region39: #{rnn_forward.1} parent=1 // pred_check_branch
      %90 = sbr.rel (0) target = $region41
    $region40: #{rnn_forward.1} parent=1 // pred_region
      _
    $region41: #{rnn_forward.1} parent=1 // pred_fallthru
      _
    // Predicated region
    $region42: #{rnn_forward.1} parent=1 // pred_check
      _
    $region43: #{rnn_forward.1} parent=1 // pred_check_branch
      %92 = sbr.rel (0) target = $region45
    $region44: #{rnn_forward.1} parent=1 // pred_region
      _
    $region45: #{rnn_forward.1} parent=1 // pred_fallthru
      _
    // Predicated region
    $region46: #{rnn_forward.1} parent=1 // pred_check
      _
    $region47: #{rnn_forward.1} parent=1 // pred_check_branch
      %94 = sbr.rel (0) target = $region49
    $region48: #{rnn_forward.1} parent=1 // pred_region
      _
    $region49: #{rnn_forward.1} parent=1 // pred_fallthru
      _
    // Predicated region
    $region50: #{rnn_forward.1} parent=1 // pred_check
      _
    $region51: #{rnn_forward.1} parent=1 // pred_check_branch
      %96 = sbr.rel (0) target = $region53
    $region52: #{rnn_forward.1} parent=1 // pred_region
      %97 = dma.done [#allocation4], 8192
    $region53: #{rnn_forward.1} parent=1 // pred_fallthru
      _
    // Predicated region
    $region54: #{rnn_forward.1} parent=1 // pred_check
      _
    $region55: #{rnn_forward.1} parent=1 // pred_check_branch
      %99 = sbr.rel (0) target = $region57
    $region56: #{rnn_forward.1} parent=1 // pred_region
      %100 = dma.done [#allocation7], 8192
    $region57: #{rnn_forward.1} parent=1 // pred_fallthru
      _
    // Predicated region
    $region58: #{rnn_forward.1} parent=1 // pred_check
      _
    $region59: #{rnn_forward.1} parent=1 // pred_check_branch
      %102 = sbr.rel (0) target = $region61
    $region60: #{rnn_forward.1} parent=1 // pred_region
      %103 = dma.done [#allocation7], 8192
    $region61: #{rnn_forward.1} parent=1 // pred_fallthru
      _
    // Predicated region
    $region62: #{rnn_forward.1} parent=1 // pred_check
      _
    $region63: #{rnn_forward.1} parent=1 // pred_check_branch
      %105 = sbr.rel (0) target = $region65
    $region64: #{rnn_forward.1} parent=1 // pred_region
      %106 = dma.done [#allocation10], 8192
    $region65: #{rnn_forward.1} parent=1 // pred_fallthru
      _
    // Predicated region
    $region66: #{rnn_forward.1} parent=1 // pred_check
      _
    $region67: #{rnn_forward.1} parent=1 // pred_check_branch
      %108 = sbr.rel (0) target = $region69
    $region68: #{rnn_forward.1} parent=1 // pred_region
      %109 = dma.done [#allocation10], 8192
    $region69: #{rnn_forward.1} parent=1 // pred_fallthru
      _
    %v110 = vld [vmem:[%s0] sm:$0xff]
    %v111 = vld [vmem:[%s0 + $0x8] sm:$0xff]
    %v112 = vld [vmem:[%s1] sm:$0xff]
    %v113 = vld [vmem:[%s1 + $0x8] sm:$0xff]
    %v114 = vld [vmem:[%s1 + $0x10] sm:$0xff]
    %v115 = vld [vmem:[%s1 + $0x18] sm:$0xff]
    %v116 = vld [vmem:[%s1 + $0x20] sm:$0xff]
    %v117 = vld [vmem:[%s1 + $0x28] sm:$0xff]
    %v118 = vld [vmem:[%s1 + $0x30] sm:$0xff]
    %v119 = vld [vmem:[%s1 + $0x38] sm:$0xff]
    %v120 = vld [vmem:[%s1 + $0x40] sm:$0xff]
    %v121 = vld [vmem:[%s1 + $0x48] sm:$0xff]
    %v122 = vld [vmem:[%s1 + $0x50] sm:$0xff]
    %v123 = vld [vmem:[%s1 + $0x58] sm:$0xff]
    %v124 = vld [vmem:[%s1 + $0x60] sm:$0xff]
    %v125 = vld [vmem:[%s1 + $0x68] sm:$0xff]
    %v126 = vld [vmem:[%s1 + $0x70] sm:$0xff]
    %v127 = vld [vmem:[%s1 + $0x78] sm:$0xff]
    %v128 = vld [vmem:[%s1 + $0x80] sm:$0x3]
    %v129 = vld [vmem:[%s1 + $0x88] sm:$0x3]
    %v130 = vld [vmem:[%s1 + $0x90] sm:$0x3]
    %v131 = vld [vmem:[%s1 + $0x98] sm:$0x3]
    %v132 = vld [vmem:[%s3] sm:$0xf]
    %v134 = vlaneseq
    %v135 = vshrl.u32 %v134, 7
    %v136 = vsub.s32 0, %v135
    %v137 = vrot.slane %v132, %v136
    %v138 = vlaneseq
    %v139 = vshrl.u32 %v138, 7
    %v140 = vsub.s32 1, %v139
    %v141 = vrot.slane %v132, %v140
    %v142 = vlaneseq
    %v143 = vshrl.u32 %v142, 7
    %v144 = vsub.s32 2, %v143
    %v145 = vrot.slane %v132, %v144
    %v146 = vlaneseq
    %v147 = vshrl.u32 %v146, 7
    %v148 = vsub.s32 3, %v147
    %v149 = vrot.slane %v132, %v148
    %vm154 = vcmask 277504
    %v156 = vsel %vm154, %v110, 0
    %v159 = vsel %vm154, %v111, 0
    %vm161 = vcmask 1041408
    %v163 = vsel %vm161, %v128, 0
    %v166 = vsel %vm161, %v129, 0
    %v169 = vsel %vm161, %v130, 0
    %v172 = vsel %vm161, %v131, 0
    %174 = vmatprep.subr.mxu0 0.0
    %175 = vmatpush1.msra.mxu0 0.0
    %176 = vmatprep.subr.mxu0 0.0
    %177 = vmatpush1.msra.mxu0 0.0
    %178 = vmatprep.subr.mxu0 0.0
    %179 = vmatpush1.msra.mxu0 0.0
    %180 = vmatprep.subr.mxu0 0.0
    %181 = vmatpush1.msra.mxu0 0.0
    %182 = vmatprep.subr.mxu0 0.0
    %183 = vmatpush1.msra.mxu0 0.0
    %184 = vmatprep.subr.mxu0 0.0
    %185 = vmatpush1.msra.mxu0 0.0
    %186 = vmatprep.subr.mxu0 0.0
    %187 = vmatpush1.msra.mxu0 0.0
    %188 = vmatprep.subr.mxu0 0.0
    %189 = vmatpush1.msra.mxu0 0.0
    %190 = vmatprep.subr.mxu0 0.0
    %191 = vmatpush1.msra.mxu0 0.0
    %192 = vmatprep.subr.mxu0 0.0
    %193 = vmatpush1.msra.mxu0 0.0
    %194 = vmatprep.subr.mxu0 0.0
    %195 = vmatpush1.msra.mxu0 0.0
    %196 = vmatprep.subr.mxu0 %v166
    %197 = vmatpush1.msra.mxu0 %v163
    %198 = vmatprep.subr.mxu0 %v125
    %199 = vmatpush1.msra.mxu0 %v124
    %200 = vmatprep.subr.mxu0 %v121
    %201 = vmatpush1.msra.mxu0 %v120
    %202 = vmatprep.subr.mxu0 %v117
    %203 = vmatpush1.msra.mxu0 %v116
    %204 = vmatprep.subr.mxu0 %v113
    %205 = vmatpush1.msra.mxu0 %v112
    %206 = vmatprep.subr.mxu0 0.0
    %207 = vmatpush2.msra.mxu0 0.0
    %208 = vmatprep.subr.mxu0 0.0
    %209 = vmatpush2.msra.mxu0 0.0
    %210 = vmatprep.subr.mxu0 0.0
    %211 = vmatpush2.msra.mxu0 0.0
    %212 = vmatprep.subr.mxu0 0.0
    %213 = vmatpush2.msra.mxu0 0.0
    %214 = vmatprep.subr.mxu0 0.0
    %215 = vmatpush2.msra.mxu0 0.0
    %216 = vmatprep.subr.mxu0 0.0
    %217 = vmatpush2.msra.mxu0 0.0
    %218 = vmatprep.subr.mxu0 0.0
    %219 = vmatpush2.msra.mxu0 0.0
    %220 = vmatprep.subr.mxu0 0.0
    %221 = vmatpush2.msra.mxu0 0.0
    %222 = vmatprep.subr.mxu0 0.0
    %223 = vmatpush2.msra.mxu0 0.0
    %224 = vmatprep.subr.mxu0 0.0
    %225 = vmatpush2.msra.mxu0 0.0
    %226 = vmatprep.subr.mxu0 0.0
    %227 = vmatpush2.msra.mxu0 0.0
    %228 = vmatprep.subr.mxu0 0.0
    %229 = vmatpush2.msra.mxu0 0.0
    %230 = vmatprep.subr.mxu0 0.0
    %231 = vmatpush2.msra.mxu0 0.0
    %232 = vmatprep.subr.mxu0 0.0
    %233 = vmatpush2.msra.mxu0 0.0
    %234 = vmatprep.subr.mxu0 0.0
    %235 = vmatpush2.msra.mxu0 0.0
    %236 = vmatprep.subr.mxu0 0.0
    %237 = vmatpush2.msra.mxu0 0.0
    %238 = vmatprep.mubr.f32.mxu0 0.0
    %239 = vmatmul.mubr.f32.gmra.mxu0 %v156
    %v240 = vpop.f32.mrf.mxu0
    %v241 = vadd.f32 %v137, %v240
    %v242 = vpop.f32.mrf.mxu0
    %v243 = vadd.f32 %v141, %v242
    %244 = vmatprep.mubr.f32.mxu0 0.0
    %245 = vmatmul.mubr.f32.gmra.mxu0 %v159
    %v246 = vpop.f32.mrf.mxu0
    %v247 = vadd.f32 %v137, %v246
    %v248 = vpop.f32.mrf.mxu0
    %v249 = vadd.f32 %v141, %v248
    %250 = vdwg.mxu0
    %251 = vmatprep.subr.mxu0 0.0
    %252 = vmatpush1.msra.mxu0 0.0
    %253 = vmatprep.subr.mxu0 0.0
    %254 = vmatpush1.msra.mxu0 0.0
    %255 = vmatprep.subr.mxu0 0.0
    %256 = vmatpush1.msra.mxu0 0.0
    %257 = vmatprep.subr.mxu0 0.0
    %258 = vmatpush1.msra.mxu0 0.0
    %259 = vmatprep.subr.mxu0 0.0
    %260 = vmatpush1.msra.mxu0 0.0
    %261 = vmatprep.subr.mxu0 0.0
    %262 = vmatpush1.msra.mxu0 0.0
    %263 = vmatprep.subr.mxu0 0.0
    %264 = vmatpush1.msra.mxu0 0.0
    %265 = vmatprep.subr.mxu0 0.0
    %266 = vmatpush1.msra.mxu0 0.0
    %267 = vmatprep.subr.mxu0 0.0
    %268 = vmatpush1.msra.mxu0 0.0
    %269 = vmatprep.subr.mxu0 0.0
    %270 = vmatpush1.msra.mxu0 0.0
    %271 = vmatprep.subr.mxu0 0.0
    %272 = vmatpush1.msra.mxu0 0.0
    %273 = vmatprep.subr.mxu0 %v172
    %274 = vmatpush1.msra.mxu0 %v169
    %275 = vmatprep.subr.mxu0 %v127
    %276 = vmatpush1.msra.mxu0 %v126
    %277 = vmatprep.subr.mxu0 %v123
    %278 = vmatpush1.msra.mxu0 %v122
    %279 = vmatprep.subr.mxu0 %v119
    %280 = vmatpush1.msra.mxu0 %v118
    %281 = vmatprep.subr.mxu0 %v115
    %282 = vmatpush1.msra.mxu0 %v114
    %283 = vmatprep.subr.mxu0 0.0
    %284 = vmatpush2.msra.mxu0 0.0
    %285 = vmatprep.subr.mxu0 0.0
    %286 = vmatpush2.msra.mxu0 0.0
    %287 = vmatprep.subr.mxu0 0.0
    %288 = vmatpush2.msra.mxu0 0.0
    %289 = vmatprep.subr.mxu0 0.0
    %290 = vmatpush2.msra.mxu0 0.0
    %291 = vmatprep.subr.mxu0 0.0
    %292 = vmatpush2.msra.mxu0 0.0
    %293 = vmatprep.subr.mxu0 0.0
    %294 = vmatpush2.msra.mxu0 0.0
    %295 = vmatprep.subr.mxu0 0.0
    %296 = vmatpush2.msra.mxu0 0.0
    %297 = vmatprep.subr.mxu0 0.0
    %298 = vmatpush2.msra.mxu0 0.0
    %299 = vmatprep.subr.mxu0 0.0
    %300 = vmatpush2.msra.mxu0 0.0
    %301 = vmatprep.subr.mxu0 0.0
    %302 = vmatpush2.msra.mxu0 0.0
    %303 = vmatprep.subr.mxu0 0.0
    %304 = vmatpush2.msra.mxu0 0.0
    %305 = vmatprep.subr.mxu0 0.0
    %306 = vmatpush2.msra.mxu0 0.0
    %307 = vmatprep.subr.mxu0 0.0
    %308 = vmatpush2.msra.mxu0 0.0
    %309 = vmatprep.subr.mxu0 0.0
    %310 = vmatpush2.msra.mxu0 0.0
    %311 = vmatprep.subr.mxu0 0.0
    %312 = vmatpush2.msra.mxu0 0.0
    %313 = vmatprep.subr.mxu0 0.0
    %314 = vmatpush2.msra.mxu0 0.0
    %315 = vmatprep.mubr.f32.mxu0 0.0
    %316 = vmatmul.mubr.f32.gmra.mxu0 %v156
    %v317 = vpop.f32.mrf.mxu0
    %v318 = vadd.f32 %v145, %v317
    %v319 = vpop.f32.mrf.mxu0
    %v320 = vadd.f32 %v149, %v319
    %321 = vmatprep.mubr.f32.mxu0 0.0
    %322 = vmatmul.mubr.f32.gmra.mxu0 %v159
    %v323 = vpop.f32.mrf.mxu0
    %v324 = vadd.f32 %v145, %v323
    %v325 = vpop.f32.mrf.mxu0
    %v326 = vadd.f32 %v149, %v325
    %327 = vdwg.mxu0
    %v328 = vld [vmem:[#allocation3] sm:$0xff]
    %v329 = vld [vmem:[#allocation3 + $0x8] sm:$0xff]
    %v330 = vld [vmem:[#allocation3 + $0x10] sm:$0xff]
    %v331 = vld [vmem:[#allocation3 + $0x18] sm:$0xff]
    %v332 = vld [vmem:[#allocation3 + $0x20] sm:$0xff]
    %v333 = vld [vmem:[#allocation3 + $0x28] sm:$0xff]
    %v334 = vld [vmem:[#allocation3 + $0x30] sm:$0xff]
    %v335 = vld [vmem:[#allocation3 + $0x38] sm:$0xff]
    %v336 = vld [vmem:[#allocation3 + $0x40] sm:$0xff]
    %v337 = vld [vmem:[#allocation3 + $0x48] sm:$0xff]
    %v338 = vld [vmem:[#allocation3 + $0x50] sm:$0xff]
    %v339 = vld [vmem:[#allocation3 + $0x58] sm:$0xff]
    %v340 = vld [vmem:[#allocation3 + $0x60] sm:$0xff]
    %v341 = vld [vmem:[#allocation3 + $0x68] sm:$0xff]
    %v342 = vld [vmem:[#allocation3 + $0x70] sm:$0xff]
    %v343 = vld [vmem:[#allocation3 + $0x78] sm:$0xff]
    %v344 = vld [vmem:[#allocation3 + $0x80] sm:$0xff]
    %v345 = vld [vmem:[#allocation3 + $0x88] sm:$0xff]
    %v346 = vld [vmem:[#allocation3 + $0x90] sm:$0xff]
    %v347 = vld [vmem:[#allocation3 + $0x98] sm:$0xff]
    %v348 = vld [vmem:[#allocation3 + $0xa0] sm:$0xff]
    %v349 = vld [vmem:[#allocation3 + $0xa8] sm:$0xff]
    %v350 = vld [vmem:[#allocation3 + $0xb0] sm:$0xff]
    %v351 = vld [vmem:[#allocation3 + $0xb8] sm:$0xff]
    %v352 = vld [vmem:[#allocation3 + $0xc0] sm:$0xff]
    %v353 = vld [vmem:[#allocation3 + $0xc8] sm:$0xff]
    %v354 = vld [vmem:[#allocation3 + $0xd0] sm:$0xff]
    %v355 = vld [vmem:[#allocation3 + $0xd8] sm:$0xff]
    %v356 = vld [vmem:[#allocation3 + $0xe0] sm:$0xff]
    %v357 = vld [vmem:[#allocation3 + $0xe8] sm:$0xff]
    %v358 = vld [vmem:[#allocation3 + $0xf0] sm:$0xff]
    %v359 = vld [vmem:[#allocation3 + $0xf8] sm:$0xff]
    %v360 = vld [vmem:[#allocation3 + $0x100] sm:$0xff]
    %v361 = vld [vmem:[#allocation3 + $0x108] sm:$0xff]
    %v362 = vld [vmem:[#allocation3 + $0x110] sm:$0xff]
    %v363 = vld [vmem:[#allocation3 + $0x118] sm:$0xff]
    %v364 = vld [vmem:[#allocation3 + $0x120] sm:$0xff]
    %v365 = vld [vmem:[#allocation3 + $0x128] sm:$0xff]
    %v366 = vld [vmem:[#allocation3 + $0x130] sm:$0xff]
    %v367 = vld [vmem:[#allocation3 + $0x138] sm:$0xff]
    %v368 = vld [vmem:[#allocation3 + $0x140] sm:$0xff]
    %v369 = vld [vmem:[#allocation3 + $0x148] sm:$0xff]
    %v370 = vld [vmem:[#allocation3 + $0x150] sm:$0xff]
    %v371 = vld [vmem:[#allocation3 + $0x158] sm:$0xff]
    %v372 = vld [vmem:[#allocation3 + $0x160] sm:$0xff]
    %v373 = vld [vmem:[#allocation3 + $0x168] sm:$0xff]
    %v374 = vld [vmem:[#allocation3 + $0x170] sm:$0xff]
    %v375 = vld [vmem:[#allocation3 + $0x178] sm:$0xff]
    %v376 = vld [vmem:[#allocation3 + $0x180] sm:$0xff]
    %v377 = vld [vmem:[#allocation3 + $0x188] sm:$0xff]
    %v378 = vld [vmem:[#allocation3 + $0x190] sm:$0xff]
    %v379 = vld [vmem:[#allocation3 + $0x198] sm:$0xff]
    %v380 = vld [vmem:[#allocation3 + $0x1a0] sm:$0xff]
    %v381 = vld [vmem:[#allocation3 + $0x1a8] sm:$0xff]
    %v382 = vld [vmem:[#allocation3 + $0x1b0] sm:$0xff]
    %v383 = vld [vmem:[#allocation3 + $0x1b8] sm:$0xff]
    %v384 = vld [vmem:[#allocation3 + $0x1c0] sm:$0xff]
    %v385 = vld [vmem:[#allocation3 + $0x1c8] sm:$0xff]
    %v386 = vld [vmem:[#allocation3 + $0x1d0] sm:$0xff]
    %v387 = vld [vmem:[#allocation3 + $0x1d8] sm:$0xff]
    %v388 = vld [vmem:[#allocation3 + $0x1e0] sm:$0xff]
    %v389 = vld [vmem:[#allocation3 + $0x1e8] sm:$0xff]
    %v390 = vld [vmem:[#allocation3 + $0x1f0] sm:$0xff]
    %v391 = vld [vmem:[#allocation3 + $0x1f8] sm:$0xff]
    %392 = vmatprep.subr.mxu0 %v389
    %393 = vmatpush1.msra.mxu0 %v388
    %394 = vmatprep.subr.mxu0 %v385
    %395 = vmatpush1.msra.mxu0 %v384
    %396 = vmatprep.subr.mxu0 %v381
    %397 = vmatpush1.msra.mxu0 %v380
    %398 = vmatprep.subr.mxu0 %v377
    %399 = vmatpush1.msra.mxu0 %v376
    %400 = vmatprep.subr.mxu0 %v373
    %401 = vmatpush1.msra.mxu0 %v372
    %402 = vmatprep.subr.mxu0 %v369
    %403 = vmatpush1.msra.mxu0 %v368
    %404 = vmatprep.subr.mxu0 %v365
    %405 = vmatpush1.msra.mxu0 %v364
    %406 = vmatprep.subr.mxu0 %v361
    %407 = vmatpush1.msra.mxu0 %v360
    %408 = vmatprep.subr.mxu0 %v357
    %409 = vmatpush1.msra.mxu0 %v356
    %410 = vmatprep.subr.mxu0 %v353
    %411 = vmatpush1.msra.mxu0 %v352
    %412 = vmatprep.subr.mxu0 %v349
    %413 = vmatpush1.msra.mxu0 %v348
    %414 = vmatprep.subr.mxu0 %v345
    %415 = vmatpush1.msra.mxu0 %v344
    %416 = vmatprep.subr.mxu0 %v341
    %417 = vmatpush1.msra.mxu0 %v340
    %418 = vmatprep.subr.mxu0 %v337
    %419 = vmatpush1.msra.mxu0 %v336
    %420 = vmatprep.subr.mxu0 %v333
    %421 = vmatpush1.msra.mxu0 %v332
    %422 = vmatprep.subr.mxu0 %v329
    %423 = vmatpush1.msra.mxu0 %v328
    %424 = vmatprep.subr.mxu0 0.0
    %425 = vmatpush2.msra.mxu0 0.0
    %426 = vmatprep.subr.mxu0 0.0
    %427 = vmatpush2.msra.mxu0 0.0
    %428 = vmatprep.subr.mxu0 0.0
    %429 = vmatpush2.msra.mxu0 0.0
    %430 = vmatprep.subr.mxu0 0.0
    %431 = vmatpush2.msra.mxu0 0.0
    %432 = vmatprep.subr.mxu0 0.0
    %433 = vmatpush2.msra.mxu0 0.0
    %434 = vmatprep.subr.mxu0 0.0
    %435 = vmatpush2.msra.mxu0 0.0
    %436 = vmatprep.subr.mxu0 0.0
    %437 = vmatpush2.msra.mxu0 0.0
    %438 = vmatprep.subr.mxu0 0.0
    %439 = vmatpush2.msra.mxu0 0.0
    %440 = vmatprep.subr.mxu0 0.0
    %441 = vmatpush2.msra.mxu0 0.0
    %442 = vmatprep.subr.mxu0 0.0
    %443 = vmatpush2.msra.mxu0 0.0
    %444 = vmatprep.subr.mxu0 0.0
    %445 = vmatpush2.msra.mxu0 0.0
    %446 = vmatprep.subr.mxu0 0.0
    %447 = vmatpush2.msra.mxu0 0.0
    %448 = vmatprep.subr.mxu0 0.0
    %449 = vmatpush2.msra.mxu0 0.0
    %450 = vmatprep.subr.mxu0 0.0
    %451 = vmatpush2.msra.mxu0 0.0
    %452 = vmatprep.subr.mxu0 0.0
    %453 = vmatpush2.msra.mxu0 0.0
    %454 = vmatprep.subr.mxu0 0.0
    %455 = vmatpush2.msra.mxu0 0.0
    %456 = vmatprep.mubr.f32.mxu0 0.0
    %457 = vmatmul.mubr.f32.gmra.mxu0 0.0
    %v458 = vpop.f32.mrf.mxu0
    %v459 = vadd.f32 0.0, %v458
    %v460 = vpop.f32.mrf.mxu0
    %v461 = vadd.f32 0.0, %v460
    %462 = vdwg.mxu0
    %463 = vmatprep.subr.mxu0 %v391
    %464 = vmatpush1.msra.mxu0 %v390
    %465 = vmatprep.subr.mxu0 %v387
    %466 = vmatpush1.msra.mxu0 %v386
    %467 = vmatprep.subr.mxu0 %v383
    %468 = vmatpush1.msra.mxu0 %v382
    %469 = vmatprep.subr.mxu0 %v379
    %470 = vmatpush1.msra.mxu0 %v378
    %471 = vmatprep.subr.mxu0 %v375
    %472 = vmatpush1.msra.mxu0 %v374
    %473 = vmatprep.subr.mxu0 %v371
    %474 = vmatpush1.msra.mxu0 %v370
    %475 = vmatprep.subr.mxu0 %v367
    %476 = vmatpush1.msra.mxu0 %v366
    %477 = vmatprep.subr.mxu0 %v363
    %478 = vmatpush1.msra.mxu0 %v362
    %479 = vmatprep.subr.mxu0 %v359
    %480 = vmatpush1.msra.mxu0 %v358
    %481 = vmatprep.subr.mxu0 %v355
    %482 = vmatpush1.msra.mxu0 %v354
    %483 = vmatprep.subr.mxu0 %v351
    %484 = vmatpush1.msra.mxu0 %v350
    %485 = vmatprep.subr.mxu0 %v347
    %486 = vmatpush1.msra.mxu0 %v346
    %487 = vmatprep.subr.mxu0 %v343
    %488 = vmatpush1.msra.mxu0 %v342
    %489 = vmatprep.subr.mxu0 %v339
    %490 = vmatpush1.msra.mxu0 %v338
    %491 = vmatprep.subr.mxu0 %v335
    %492 = vmatpush1.msra.mxu0 %v334
    %493 = vmatprep.subr.mxu0 %v331
    %494 = vmatpush1.msra.mxu0 %v330
    %495 = vmatprep.subr.mxu0 0.0
    %496 = vmatpush2.msra.mxu0 0.0
    %497 = vmatprep.subr.mxu0 0.0
    %498 = vmatpush2.msra.mxu0 0.0
    %499 = vmatprep.subr.mxu0 0.0
    %500 = vmatpush2.msra.mxu0 0.0
    %501 = vmatprep.subr.mxu0 0.0
    %502 = vmatpush2.msra.mxu0 0.0
    %503 = vmatprep.subr.mxu0 0.0
    %504 = vmatpush2.msra.mxu0 0.0
    %505 = vmatprep.subr.mxu0 0.0
    %506 = vmatpush2.msra.mxu0 0.0
    %507 = vmatprep.subr.mxu0 0.0
    %508 = vmatpush2.msra.mxu0 0.0
    %509 = vmatprep.subr.mxu0 0.0
    %510 = vmatpush2.msra.mxu0 0.0
    %511 = vmatprep.subr.mxu0 0.0
    %512 = vmatpush2.msra.mxu0 0.0
    %513 = vmatprep.subr.mxu0 0.0
    %514 = vmatpush2.msra.mxu0 0.0
    %515 = vmatprep.subr.mxu0 0.0
    %516 = vmatpush2.msra.mxu0 0.0
    %517 = vmatprep.subr.mxu0 0.0
    %518 = vmatpush2.msra.mxu0 0.0
    %519 = vmatprep.subr.mxu0 0.0
    %520 = vmatpush2.msra.mxu0 0.0
    %521 = vmatprep.subr.mxu0 0.0
    %522 = vmatpush2.msra.mxu0 0.0
    %523 = vmatprep.subr.mxu0 0.0
    %524 = vmatpush2.msra.mxu0 0.0
    %525 = vmatprep.subr.mxu0 0.0
    %526 = vmatpush2.msra.mxu0 0.0
    %527 = vmatprep.mubr.f32.mxu0 0.0
    %528 = vmatmul.mubr.f32.gmra.mxu0 0.0
    %v529 = vpop.f32.mrf.mxu0
    %v530 = vadd.f32 0.0, %v529
    %v531 = vpop.f32.mrf.mxu0
    %v532 = vadd.f32 0.0, %v531
    %533 = vdwg.mxu0
    %v534 = vadd.f32 %v459, %v241
    %v535 = vadd.f32 %v461, %v243
    %v538 = vrot.slane %v324, 6
    %v539 = vrot.slane %v326, 6
    %v542 = vadd.f32 %v530, %v538
    %v543 = vadd.f32 %v532, %v539
    %v544 = vxor.u32 %v534, 2147483648
    %v545 = vxor.u32 %v535, 2147483648
    %v546 = vmul.f32 %v544, 1.442695
    %v547 = vpow.pop %v546
    %v548 = vmul.f32 %v545, 1.442695
    %v549 = vpow.pop %v548
    %v550 = vadd.f32 %v547, 1.0
    %v551 = vadd.f32 %v549, 1.0
    %v552 = vrcp.pop %v550
    %v553 = vmul.f32 1.0, %v552
    %v554 = vrcp.pop %v551
    %v555 = vmul.f32 1.0, %v554
    %v556 = vxor.u32 %v542, 2147483648
    %v557 = vxor.u32 %v543, 2147483648
    %v558 = vmul.f32 %v556, 1.442695
    %v559 = vpow.pop %v558
    %v560 = vmul.f32 %v557, 1.442695
    %v561 = vpow.pop %v560
    %v562 = vadd.f32 %v559, 1.0
    %v563 = vadd.f32 %v561, 1.0
    %v564 = vrcp.pop %v562
    %v565 = vmul.f32 1.0, %v564
    %v566 = vrcp.pop %v563
    %v567 = vmul.f32 1.0, %v566
    %v568 = vtanh.pop %v535
    %v569 = vtanh.pop %v543
    %v570 = vmul.f32 %v553, 0.0
    %572 = vrot.lane.b32.xlu0 %v568, 64
    %v573 = vpop.permute.xlu0 %572
    %v575 = vmul.f32 %v553, %v573
    %577 = vrot.lane.b32.xlu0 %v575, 64
    %v578 = vpop.permute.xlu0 %577
    %v580 = vadd.f32 %v570, %v578
    %v581 = vmul.f32 %v565, 0.0
    %583 = vrot.lane.b32.xlu0 %v569, 64
    %v584 = vpop.permute.xlu0 %583
    %v586 = vmul.f32 %v565, %v584
    %588 = vrot.lane.b32.xlu0 %v586, 64
    %v589 = vpop.permute.xlu0 %588
    %v591 = vadd.f32 %v581, %v589
    %v592 = vtanh.pop %v580
    %594 = vrot.lane.b32.xlu0 %v592, 64
    %v595 = vpop.permute.xlu0 %594
    %v597 = vmul.f32 %v555, %v595
    %v598 = vtanh.pop %v591
    %600 = vrot.lane.b32.xlu0 %v598, 64
    %v601 = vpop.permute.xlu0 %600
    %v603 = vmul.f32 %v567, %v601
    %vm604 = vcmask 517120
    %605 = vst.msk [vmem:[#allocation2] sm:$0x3] %vm604, %v597
    %607 = vrot.lane.b32.xlu0 %v603, 64
    %v608 = vpop.permute.xlu0 %607
    %vm610 = vcmask 1041920
    %611 = vst.msk [vmem:[#allocation2 + $0xe] sm:$0x3] %vm610, %v608
    %vm612 = vcmask 523264
    %v613 = vsel %vm612, %v597, %v608
    %614 = vmatprep.subr.mxu0 %v389
    %615 = vmatpush1.msra.mxu0 %v388
    %616 = vmatprep.subr.mxu0 %v385
    %617 = vmatpush1.msra.mxu0 %v384
    %618 = vmatprep.subr.mxu0 %v381
    %619 = vmatpush1.msra.mxu0 %v380
    %620 = vmatprep.subr.mxu0 %v377
    %621 = vmatpush1.msra.mxu0 %v376
    %622 = vmatprep.subr.mxu0 %v373
    %623 = vmatpush1.msra.mxu0 %v372
    %624 = vmatprep.subr.mxu0 %v369
    %625 = vmatpush1.msra.mxu0 %v368
    %626 = vmatprep.subr.mxu0 %v365
    %627 = vmatpush1.msra.mxu0 %v364
    %628 = vmatprep.subr.mxu0 %v361
    %629 = vmatpush1.msra.mxu0 %v360
    %630 = vmatprep.subr.mxu0 %v357
    %631 = vmatpush1.msra.mxu0 %v356
    %632 = vmatprep.subr.mxu0 %v353
    %633 = vmatpush1.msra.mxu0 %v352
    %634 = vmatprep.subr.mxu0 %v349
    %635 = vmatpush1.msra.mxu0 %v348
    %636 = vmatprep.subr.mxu0 %v345
    %637 = vmatpush1.msra.mxu0 %v344
    %638 = vmatprep.subr.mxu0 %v341
    %639 = vmatpush1.msra.mxu0 %v340
    %640 = vmatprep.subr.mxu0 %v337
    %641 = vmatpush1.msra.mxu0 %v336
    %642 = vmatprep.subr.mxu0 %v333
    %643 = vmatpush1.msra.mxu0 %v332
    %644 = vmatprep.subr.mxu0 %v329
    %645 = vmatpush1.msra.mxu0 %v328
    %646 = vmatprep.subr.mxu0 0.0
    %647 = vmatpush2.msra.mxu0 0.0
    %648 = vmatprep.subr.mxu0 0.0
    %649 = vmatpush2.msra.mxu0 0.0
    %650 = vmatprep.subr.mxu0 0.0
    %651 = vmatpush2.msra.mxu0 0.0
    %652 = vmatprep.subr.mxu0 0.0
    %653 = vmatpush2.msra.mxu0 0.0
    %654 = vmatprep.subr.mxu0 0.0
    %655 = vmatpush2.msra.mxu0 0.0
    %656 = vmatprep.subr.mxu0 0.0
    %657 = vmatpush2.msra.mxu0 0.0
    %658 = vmatprep.subr.mxu0 0.0
    %659 = vmatpush2.msra.mxu0 0.0
    %660 = vmatprep.subr.mxu0 0.0
    %661 = vmatpush2.msra.mxu0 0.0
    %662 = vmatprep.subr.mxu0 0.0
    %663 = vmatpush2.msra.mxu0 0.0
    %664 = vmatprep.subr.mxu0 0.0
    %665 = vmatpush2.msra.mxu0 0.0
    %666 = vmatprep.subr.mxu0 0.0
    %667 = vmatpush2.msra.mxu0 0.0
    %668 = vmatprep.subr.mxu0 0.0
    %669 = vmatpush2.msra.mxu0 0.0
    %670 = vmatprep.subr.mxu0 0.0
    %671 = vmatpush2.msra.mxu0 0.0
    %672 = vmatprep.subr.mxu0 0.0
    %673 = vmatpush2.msra.mxu0 0.0
    %674 = vmatprep.subr.mxu0 0.0
    %675 = vmatpush2.msra.mxu0 0.0
    %676 = vmatprep.subr.mxu0 0.0
    %677 = vmatpush2.msra.mxu0 0.0
    %678 = vmatprep.mubr.f32.mxu0 0.0
    %679 = vmatmul.mubr.f32.gmra.mxu0 %v613
    %v680 = vpop.f32.mrf.mxu0
    %v681 = vadd.f32 0.0, %v680
    %v682 = vpop.f32.mrf.mxu0
    %v683 = vadd.f32 0.0, %v682
    %684 = vdwg.mxu0
    %685 = vmatprep.subr.mxu0 %v391
    %686 = vmatpush1.msra.mxu0 %v390
    %687 = vmatprep.subr.mxu0 %v387
    %688 = vmatpush1.msra.mxu0 %v386
    %689 = vmatprep.subr.mxu0 %v383
    %690 = vmatpush1.msra.mxu0 %v382
    %691 = vmatprep.subr.mxu0 %v379
    %692 = vmatpush1.msra.mxu0 %v378
    %693 = vmatprep.subr.mxu0 %v375
    %694 = vmatpush1.msra.mxu0 %v374
    %695 = vmatprep.subr.mxu0 %v371
    %696 = vmatpush1.msra.mxu0 %v370
    %697 = vmatprep.subr.mxu0 %v367
    %698 = vmatpush1.msra.mxu0 %v366
    %699 = vmatprep.subr.mxu0 %v363
    %700 = vmatpush1.msra.mxu0 %v362
    %701 = vmatprep.subr.mxu0 %v359
    %702 = vmatpush1.msra.mxu0 %v358
    %703 = vmatprep.subr.mxu0 %v355
    %704 = vmatpush1.msra.mxu0 %v354
    %705 = vmatprep.subr.mxu0 %v351
    %706 = vmatpush1.msra.mxu0 %v350
    %707 = vmatprep.subr.mxu0 %v347
    %708 = vmatpush1.msra.mxu0 %v346
    %709 = vmatprep.subr.mxu0 %v343
    %710 = vmatpush1.msra.mxu0 %v342
    %711 = vmatprep.subr.mxu0 %v339
    %712 = vmatpush1.msra.mxu0 %v338
    %713 = vmatprep.subr.mxu0 %v335
    %714 = vmatpush1.msra.mxu0 %v334
    %715 = vmatprep.subr.mxu0 %v331
    %716 = vmatpush1.msra.mxu0 %v330
    %717 = vmatprep.subr.mxu0 0.0
    %718 = vmatpush2.msra.mxu0 0.0
    %719 = vmatprep.subr.mxu0 0.0
    %720 = vmatpush2.msra.mxu0 0.0
    %721 = vmatprep.subr.mxu0 0.0
    %722 = vmatpush2.msra.mxu0 0.0
    %723 = vmatprep.subr.mxu0 0.0
    %724 = vmatpush2.msra.mxu0 0.0
    %725 = vmatprep.subr.mxu0 0.0
    %726 = vmatpush2.msra.mxu0 0.0
    %727 = vmatprep.subr.mxu0 0.0
    %728 = vmatpush2.msra.mxu0 0.0
    %729 = vmatprep.subr.mxu0 0.0
    %730 = vmatpush2.msra.mxu0 0.0
    %731 = vmatprep.subr.mxu0 0.0
    %732 = vmatpush2.msra.mxu0 0.0
    %733 = vmatprep.subr.mxu0 0.0
    %734 = vmatpush2.msra.mxu0 0.0
    %735 = vmatprep.subr.mxu0 0.0
    %736 = vmatpush2.msra.mxu0 0.0
    %737 = vmatprep.subr.mxu0 0.0
    %738 = vmatpush2.msra.mxu0 0.0
    %739 = vmatprep.subr.mxu0 0.0
    %740 = vmatpush2.msra.mxu0 0.0
    %741 = vmatprep.subr.mxu0 0.0
    %742 = vmatpush2.msra.mxu0 0.0
    %743 = vmatprep.subr.mxu0 0.0
    %744 = vmatpush2.msra.mxu0 0.0
    %745 = vmatprep.subr.mxu0 0.0
    %746 = vmatpush2.msra.mxu0 0.0
    %747 = vmatprep.subr.mxu0 0.0
    %748 = vmatpush2.msra.mxu0 0.0
    %749 = vmatprep.mubr.f32.mxu0 0.0
    %750 = vmatmul.mubr.f32.gmra.mxu0 %v613
    %v751 = vpop.f32.mrf.mxu0
    %v752 = vadd.f32 0.0, %v751
    %v753 = vpop.f32.mrf.mxu0
    %v754 = vadd.f32 0.0, %v753
    %755 = vdwg.mxu0
    %v758 = vrot.slane %v241, 2
    %v759 = vrot.slane %v243, 2
    %v762 = vadd.f32 %v681, %v758
    %v763 = vadd.f32 %v683, %v759
    %v764 = vrot.slane %v324, 4
    %v765 = vrot.slane %v326, 4
    %v768 = vadd.f32 %v752, %v764
    %v769 = vadd.f32 %v754, %v765
    %v770 = vxor.u32 %v762, 2147483648
    %v771 = vxor.u32 %v763, 2147483648
    %v772 = vmul.f32 %v770, 1.442695
    %v773 = vpow.pop %v772
    %v774 = vmul.f32 %v771, 1.442695
    %v775 = vpow.pop %v774
    %v776 = vadd.f32 %v773, 1.0
    %v777 = vadd.f32 %v775, 1.0
    %v778 = vrcp.pop %v776
    %v779 = vmul.f32 1.0, %v778
    %v780 = vrcp.pop %v777
    %v781 = vmul.f32 1.0, %v780
    %v782 = vxor.u32 %v768, 2147483648
    %v783 = vxor.u32 %v769, 2147483648
    %v784 = vmul.f32 %v782, 1.442695
    %v785 = vpow.pop %v784
    %v786 = vmul.f32 %v783, 1.442695
    %v787 = vpow.pop %v786
    %v788 = vadd.f32 %v785, 1.0
    %v789 = vadd.f32 %v787, 1.0
    %v790 = vrcp.pop %v788
    %v791 = vmul.f32 1.0, %v790
    %v792 = vrcp.pop %v789
    %v793 = vmul.f32 1.0, %v792
    %v794 = vtanh.pop %v763
    %v795 = vtanh.pop %v769
    %v796 = vmul.f32 %v779, %v580
    %798 = vrot.lane.b32.xlu0 %v794, 64
    %v799 = vpop.permute.xlu0 %798
    %v801 = vmul.f32 %v779, %v799
    %803 = vrot.lane.b32.xlu0 %v801, 64
    %v804 = vpop.permute.xlu0 %803
    %v806 = vadd.f32 %v796, %v804
    %v807 = vmul.f32 %v791, %v591
    %809 = vrot.lane.b32.xlu0 %v795, 64
    %v810 = vpop.permute.xlu0 %809
    %v812 = vmul.f32 %v791, %v810
    %814 = vrot.lane.b32.xlu0 %v812, 64
    %v815 = vpop.permute.xlu0 %814
    %v817 = vadd.f32 %v807, %v815
    %v818 = vtanh.pop %v806
    %820 = vrot.lane.b32.xlu0 %v818, 64
    %v821 = vpop.permute.xlu0 %820
    %v823 = vmul.f32 %v781, %v821
    %v824 = vtanh.pop %v817
    %826 = vrot.lane.b32.xlu0 %v824, 64
    %v827 = vpop.permute.xlu0 %826
    %v829 = vmul.f32 %v793, %v827
    %830 = vst.msk [vmem:[#allocation2 + $0x2] sm:$0x3] %vm604, %v823
    %832 = vrot.lane.b32.xlu0 %v829, 64
    %v833 = vpop.permute.xlu0 %832
    %835 = vst.msk [vmem:[#allocation2 + $0xc] sm:$0x3] %vm610, %v833
    %v836 = vsel %vm612, %v823, %v833
    %837 = vmatprep.subr.mxu0 %v389
    %838 = vmatpush1.msra.mxu0 %v388
    %839 = vmatprep.subr.mxu0 %v385
    %840 = vmatpush1.msra.mxu0 %v384
    %841 = vmatprep.subr.mxu0 %v381
    %842 = vmatpush1.msra.mxu0 %v380
    %843 = vmatprep.subr.mxu0 %v377
    %844 = vmatpush1.msra.mxu0 %v376
    %845 = vmatprep.subr.mxu0 %v373
    %846 = vmatpush1.msra.mxu0 %v372
    %847 = vmatprep.subr.mxu0 %v369
    %848 = vmatpush1.msra.mxu0 %v368
    %849 = vmatprep.subr.mxu0 %v365
    %850 = vmatpush1.msra.mxu0 %v364
    %851 = vmatprep.subr.mxu0 %v361
    %852 = vmatpush1.msra.mxu0 %v360
    %853 = vmatprep.subr.mxu0 %v357
    %854 = vmatpush1.msra.mxu0 %v356
    %855 = vmatprep.subr.mxu0 %v353
    %856 = vmatpush1.msra.mxu0 %v352
    %857 = vmatprep.subr.mxu0 %v349
    %858 = vmatpush1.msra.mxu0 %v348
    %859 = vmatprep.subr.mxu0 %v345
    %860 = vmatpush1.msra.mxu0 %v344
    %861 = vmatprep.subr.mxu0 %v341
    %862 = vmatpush1.msra.mxu0 %v340
    %863 = vmatprep.subr.mxu0 %v337
    %864 = vmatpush1.msra.mxu0 %v336
    %865 = vmatprep.subr.mxu0 %v333
    %866 = vmatpush1.msra.mxu0 %v332
    %867 = vmatprep.subr.mxu0 %v329
    %868 = vmatpush1.msra.mxu0 %v328
    %869 = vmatprep.subr.mxu0 0.0
    %870 = vmatpush2.msra.mxu0 0.0
    %871 = vmatprep.subr.mxu0 0.0
    %872 = vmatpush2.msra.mxu0 0.0
    %873 = vmatprep.subr.mxu0 0.0
    %874 = vmatpush2.msra.mxu0 0.0
    %875 = vmatprep.subr.mxu0 0.0
    %876 = vmatpush2.msra.mxu0 0.0
    %877 = vmatprep.subr.mxu0 0.0
    %878 = vmatpush2.msra.mxu0 0.0
    %879 = vmatprep.subr.mxu0 0.0
    %880 = vmatpush2.msra.mxu0 0.0
    %881 = vmatprep.subr.mxu0 0.0
    %882 = vmatpush2.msra.mxu0 0.0
    %883 = vmatprep.subr.mxu0 0.0
    %884 = vmatpush2.msra.mxu0 0.0
    %885 = vmatprep.subr.mxu0 0.0
    %886 = vmatpush2.msra.mxu0 0.0
    %887 = vmatprep.subr.mxu0 0.0
    %888 = vmatpush2.msra.mxu0 0.0
    %889 = vmatprep.subr.mxu0 0.0
    %890 = vmatpush2.msra.mxu0 0.0
    %891 = vmatprep.subr.mxu0 0.0
    %892 = vmatpush2.msra.mxu0 0.0
    %893 = vmatprep.subr.mxu0 0.0
    %894 = vmatpush2.msra.mxu0 0.0
    %895 = vmatprep.subr.mxu0 0.0
    %896 = vmatpush2.msra.mxu0 0.0
    %897 = vmatprep.subr.mxu0 0.0
    %898 = vmatpush2.msra.mxu0 0.0
    %899 = vmatprep.subr.mxu0 0.0
    %900 = vmatpush2.msra.mxu0 0.0
    %901 = vmatprep.mubr.f32.mxu0 0.0
    %902 = vmatmul.mubr.f32.gmra.mxu0 %v836
    %v903 = vpop.f32.mrf.mxu0
    %v904 = vadd.f32 0.0, %v903
    %v905 = vpop.f32.mrf.mxu0
    %v906 = vadd.f32 0.0, %v905
    %907 = vdwg.mxu0
    %908 = vmatprep.subr.mxu0 %v391
    %909 = vmatpush1.msra.mxu0 %v390
    %910 = vmatprep.subr.mxu0 %v387
    %911 = vmatpush1.msra.mxu0 %v386
    %912 = vmatprep.subr.mxu0 %v383
    %913 = vmatpush1.msra.mxu0 %v382
    %914 = vmatprep.subr.mxu0 %v379
    %915 = vmatpush1.msra.mxu0 %v378
    %916 = vmatprep.subr.mxu0 %v375
    %917 = vmatpush1.msra.mxu0 %v374
    %918 = vmatprep.subr.mxu0 %v371
    %919 = vmatpush1.msra.mxu0 %v370
    %920 = vmatprep.subr.mxu0 %v367
    %921 = vmatpush1.msra.mxu0 %v366
    %922 = vmatprep.subr.mxu0 %v363
    %923 = vmatpush1.msra.mxu0 %v362
    %924 = vmatprep.subr.mxu0 %v359
    %925 = vmatpush1.msra.mxu0 %v358
    %926 = vmatprep.subr.mxu0 %v355
    %927 = vmatpush1.msra.mxu0 %v354
    %928 = vmatprep.subr.mxu0 %v351
    %929 = vmatpush1.msra.mxu0 %v350
    %930 = vmatprep.subr.mxu0 %v347
    %931 = vmatpush1.msra.mxu0 %v346
    %932 = vmatprep.subr.mxu0 %v343
    %933 = vmatpush1.msra.mxu0 %v342
    %934 = vmatprep.subr.mxu0 %v339
    %935 = vmatpush1.msra.mxu0 %v338
    %936 = vmatprep.subr.mxu0 %v335
    %937 = vmatpush1.msra.mxu0 %v334
    %938 = vmatprep.subr.mxu0 %v331
    %939 = vmatpush1.msra.mxu0 %v330
    %940 = vmatprep.subr.mxu0 0.0
    %941 = vmatpush2.msra.mxu0 0.0
    %942 = vmatprep.subr.mxu0 0.0
    %943 = vmatpush2.msra.mxu0 0.0
    %944 = vmatprep.subr.mxu0 0.0
    %945 = vmatpush2.msra.mxu0 0.0
    %946 = vmatprep.subr.mxu0 0.0
    %947 = vmatpush2.msra.mxu0 0.0
    %948 = vmatprep.subr.mxu0 0.0
    %949 = vmatpush2.msra.mxu0 0.0
    %950 = vmatprep.subr.mxu0 0.0
    %951 = vmatpush2.msra.mxu0 0.0
    %952 = vmatprep.subr.mxu0 0.0
    %953 = vmatpush2.msra.mxu0 0.0
    %954 = vmatprep.subr.mxu0 0.0
    %955 = vmatpush2.msra.mxu0 0.0
    %956 = vmatprep.subr.mxu0 0.0
    %957 = vmatpush2.msra.mxu0 0.0
    %958 = vmatprep.subr.mxu0 0.0
    %959 = vmatpush2.msra.mxu0 0.0
    %960 = vmatprep.subr.mxu0 0.0
    %961 = vmatpush2.msra.mxu0 0.0
    %962 = vmatprep.subr.mxu0 0.0
    %963 = vmatpush2.msra.mxu0 0.0
    %964 = vmatprep.subr.mxu0 0.0
    %965 = vmatpush2.msra.mxu0 0.0
    %966 = vmatprep.subr.mxu0 0.0
    %967 = vmatpush2.msra.mxu0 0.0
    %968 = vmatprep.subr.mxu0 0.0
    %969 = vmatpush2.msra.mxu0 0.0
    %970 = vmatprep.subr.mxu0 0.0
    %971 = vmatpush2.msra.mxu0 0.0
    %972 = vmatprep.mubr.f32.mxu0 0.0
    %973 = vmatmul.mubr.f32.gmra.mxu0 %v836
    %v974 = vpop.f32.mrf.mxu0
    %v975 = vadd.f32 0.0, %v974
    %v976 = vpop.f32.mrf.mxu0
    %v977 = vadd.f32 0.0, %v976
    %978 = vdwg.mxu0
    %v979 = vrot.slane %v241, 4
    %v980 = vrot.slane %v243, 4
    %v983 = vadd.f32 %v904, %v979
    %v984 = vadd.f32 %v906, %v980
    %v985 = vrot.slane %v324, 2
    %v986 = vrot.slane %v326, 2
    %v989 = vadd.f32 %v975, %v985
    %v990 = vadd.f32 %v977, %v986
    %v991 = vxor.u32 %v983, 2147483648
    %v992 = vxor.u32 %v984, 2147483648
    %v993 = vmul.f32 %v991, 1.442695
    %v994 = vpow.pop %v993
    %v995 = vmul.f32 %v992, 1.442695
    %v996 = vpow.pop %v995
    %v997 = vadd.f32 %v994, 1.0
    %v998 = vadd.f32 %v996, 1.0
    %v999 = vrcp.pop %v997
    %v1000 = vmul.f32 1.0, %v999
    %v1001 = vrcp.pop %v998
    %v1002 = vmul.f32 1.0, %v1001
    %v1003 = vxor.u32 %v989, 2147483648
    %v1004 = vxor.u32 %v990, 2147483648
    %v1005 = vmul.f32 %v1003, 1.442695
    %v1006 = vpow.pop %v1005
    %v1007 = vmul.f32 %v1004, 1.442695
    %v1008 = vpow.pop %v1007
    %v1009 = vadd.f32 %v1006, 1.0
    %v1010 = vadd.f32 %v1008, 1.0
    %v1011 = vrcp.pop %v1009
    %v1012 = vmul.f32 1.0, %v1011
    %v1013 = vrcp.pop %v1010
    %v1014 = vmul.f32 1.0, %v1013
    %v1015 = vtanh.pop %v984
    %v1016 = vtanh.pop %v990
    %v1017 = vmul.f32 %v1000, %v806
    %1019 = vrot.lane.b32.xlu0 %v1015, 64
    %v1020 = vpop.permute.xlu0 %1019
    %v1022 = vmul.f32 %v1000, %v1020
    %1024 = vrot.lane.b32.xlu0 %v1022, 64
    %v1025 = vpop.permute.xlu0 %1024
    %v1027 = vadd.f32 %v1017, %v1025
    %v1028 = vmul.f32 %v1012, %v817
    %1030 = vrot.lane.b32.xlu0 %v1016, 64
    %v1031 = vpop.permute.xlu0 %1030
    %v1033 = vmul.f32 %v1012, %v1031
    %1035 = vrot.lane.b32.xlu0 %v1033, 64
    %v1036 = vpop.permute.xlu0 %1035
    %v1038 = vadd.f32 %v1028, %v1036
    %v1039 = vtanh.pop %v1027
    %1041 = vrot.lane.b32.xlu0 %v1039, 64
    %v1042 = vpop.permute.xlu0 %1041
    %v1044 = vmul.f32 %v1002, %v1042
    %v1045 = vtanh.pop %v1038
    %1047 = vrot.lane.b32.xlu0 %v1045, 64
    %v1048 = vpop.permute.xlu0 %1047
    %v1050 = vmul.f32 %v1014, %v1048
    %1051 = vst.msk [vmem:[#allocation2 + $0x4] sm:$0x3] %vm604, %v1044
    %1053 = vrot.lane.b32.xlu0 %v1050, 64
    %v1054 = vpop.permute.xlu0 %1053
    %1056 = vst.msk [vmem:[#allocation2 + $0xa] sm:$0x3] %vm610, %v1054
    %v1057 = vsel %vm612, %v1044, %v1054
    %1058 = vmatprep.subr.mxu0 %v389
    %1059 = vmatpush1.msra.mxu0 %v388
    %1060 = vmatprep.subr.mxu0 %v385
    %1061 = vmatpush1.msra.mxu0 %v384
    %1062 = vmatprep.subr.mxu0 %v381
    %1063 = vmatpush1.msra.mxu0 %v380
    %1064 = vmatprep.subr.mxu0 %v377
    %1065 = vmatpush1.msra.mxu0 %v376
    %1066 = vmatprep.subr.mxu0 %v373
    %1067 = vmatpush1.msra.mxu0 %v372
    %1068 = vmatprep.subr.mxu0 %v369
    %1069 = vmatpush1.msra.mxu0 %v368
    %1070 = vmatprep.subr.mxu0 %v365
    %1071 = vmatpush1.msra.mxu0 %v364
    %1072 = vmatprep.subr.mxu0 %v361
    %1073 = vmatpush1.msra.mxu0 %v360
    %1074 = vmatprep.subr.mxu0 %v357
    %1075 = vmatpush1.msra.mxu0 %v356
    %1076 = vmatprep.subr.mxu0 %v353
    %1077 = vmatpush1.msra.mxu0 %v352
    %1078 = vmatprep.subr.mxu0 %v349
    %1079 = vmatpush1.msra.mxu0 %v348
    %1080 = vmatprep.subr.mxu0 %v345
    %1081 = vmatpush1.msra.mxu0 %v344
    %1082 = vmatprep.subr.mxu0 %v341
    %1083 = vmatpush1.msra.mxu0 %v340
    %1084 = vmatprep.subr.mxu0 %v337
    %1085 = vmatpush1.msra.mxu0 %v336
    %1086 = vmatprep.subr.mxu0 %v333
    %1087 = vmatpush1.msra.mxu0 %v332
    %1088 = vmatprep.subr.mxu0 %v329
    %1089 = vmatpush1.msra.mxu0 %v328
    %1090 = vmatprep.subr.mxu0 0.0
    %1091 = vmatpush2.msra.mxu0 0.0
    %1092 = vmatprep.subr.mxu0 0.0
    %1093 = vmatpush2.msra.mxu0 0.0
    %1094 = vmatprep.subr.mxu0 0.0
    %1095 = vmatpush2.msra.mxu0 0.0
    %1096 = vmatprep.subr.mxu0 0.0
    %1097 = vmatpush2.msra.mxu0 0.0
    %1098 = vmatprep.subr.mxu0 0.0
    %1099 = vmatpush2.msra.mxu0 0.0
    %1100 = vmatprep.subr.mxu0 0.0
    %1101 = vmatpush2.msra.mxu0 0.0
    %1102 = vmatprep.subr.mxu0 0.0
    %1103 = vmatpush2.msra.mxu0 0.0
    %1104 = vmatprep.subr.mxu0 0.0
    %1105 = vmatpush2.msra.mxu0 0.0
    %1106 = vmatprep.subr.mxu0 0.0
    %1107 = vmatpush2.msra.mxu0 0.0
    %1108 = vmatprep.subr.mxu0 0.0
    %1109 = vmatpush2.msra.mxu0 0.0
    %1110 = vmatprep.subr.mxu0 0.0
    %1111 = vmatpush2.msra.mxu0 0.0
    %1112 = vmatprep.subr.mxu0 0.0
    %1113 = vmatpush2.msra.mxu0 0.0
    %1114 = vmatprep.subr.mxu0 0.0
    %1115 = vmatpush2.msra.mxu0 0.0
    %1116 = vmatprep.subr.mxu0 0.0
    %1117 = vmatpush2.msra.mxu0 0.0
    %1118 = vmatprep.subr.mxu0 0.0
    %1119 = vmatpush2.msra.mxu0 0.0
    %1120 = vmatprep.subr.mxu0 0.0
    %1121 = vmatpush2.msra.mxu0 0.0
    %1122 = vmatprep.mubr.f32.mxu0 0.0
    %1123 = vmatmul.mubr.f32.gmra.mxu0 %v1057
    %v1124 = vpop.f32.mrf.mxu0
    %v1125 = vadd.f32 0.0, %v1124
    %v1126 = vpop.f32.mrf.mxu0
    %v1127 = vadd.f32 0.0, %v1126
    %1128 = vdwg.mxu0
    %1129 = vmatprep.subr.mxu0 %v391
    %1130 = vmatpush1.msra.mxu0 %v390
    %1131 = vmatprep.subr.mxu0 %v387
    %1132 = vmatpush1.msra.mxu0 %v386
    %1133 = vmatprep.subr.mxu0 %v383
    %1134 = vmatpush1.msra.mxu0 %v382
    %1135 = vmatprep.subr.mxu0 %v379
    %1136 = vmatpush1.msra.mxu0 %v378
    %1137 = vmatprep.subr.mxu0 %v375
    %1138 = vmatpush1.msra.mxu0 %v374
    %1139 = vmatprep.subr.mxu0 %v371
    %1140 = vmatpush1.msra.mxu0 %v370
    %1141 = vmatprep.subr.mxu0 %v367
    %1142 = vmatpush1.msra.mxu0 %v366
    %1143 = vmatprep.subr.mxu0 %v363
    %1144 = vmatpush1.msra.mxu0 %v362
    %1145 = vmatprep.subr.mxu0 %v359
    %1146 = vmatpush1.msra.mxu0 %v358
    %1147 = vmatprep.subr.mxu0 %v355
    %1148 = vmatpush1.msra.mxu0 %v354
    %1149 = vmatprep.subr.mxu0 %v351
    %1150 = vmatpush1.msra.mxu0 %v350
    %1151 = vmatprep.subr.mxu0 %v347
    %1152 = vmatpush1.msra.mxu0 %v346
    %1153 = vmatprep.subr.mxu0 %v343
    %1154 = vmatpush1.msra.mxu0 %v342
    %1155 = vmatprep.subr.mxu0 %v339
    %1156 = vmatpush1.msra.mxu0 %v338
    %1157 = vmatprep.subr.mxu0 %v335
    %1158 = vmatpush1.msra.mxu0 %v334
    %1159 = vmatprep.subr.mxu0 %v331
    %1160 = vmatpush1.msra.mxu0 %v330
    %1161 = vmatprep.subr.mxu0 0.0
    %1162 = vmatpush2.msra.mxu0 0.0
    %1163 = vmatprep.subr.mxu0 0.0
    %1164 = vmatpush2.msra.mxu0 0.0
    %1165 = vmatprep.subr.mxu0 0.0
    %1166 = vmatpush2.msra.mxu0 0.0
    %1167 = vmatprep.subr.mxu0 0.0
    %1168 = vmatpush2.msra.mxu0 0.0
    %1169 = vmatprep.subr.mxu0 0.0
    %1170 = vmatpush2.msra.mxu0 0.0
    %1171 = vmatprep.subr.mxu0 0.0
    %1172 = vmatpush2.msra.mxu0 0.0
    %1173 = vmatprep.subr.mxu0 0.0
    %1174 = vmatpush2.msra.mxu0 0.0
    %1175 = vmatprep.subr.mxu0 0.0
    %1176 = vmatpush2.msra.mxu0 0.0
    %1177 = vmatprep.subr.mxu0 0.0
    %1178 = vmatpush2.msra.mxu0 0.0
    %1179 = vmatprep.subr.mxu0 0.0
    %1180 = vmatpush2.msra.mxu0 0.0
    %1181 = vmatprep.subr.mxu0 0.0
    %1182 = vmatpush2.msra.mxu0 0.0
    %1183 = vmatprep.subr.mxu0 0.0
    %1184 = vmatpush2.msra.mxu0 0.0
    %1185 = vmatprep.subr.mxu0 0.0
    %1186 = vmatpush2.msra.mxu0 0.0
    %1187 = vmatprep.subr.mxu0 0.0
    %1188 = vmatpush2.msra.mxu0 0.0
    %1189 = vmatprep.subr.mxu0 0.0
    %1190 = vmatpush2.msra.mxu0 0.0
    %1191 = vmatprep.subr.mxu0 0.0
    %1192 = vmatpush2.msra.mxu0 0.0
    %1193 = vmatprep.mubr.f32.mxu0 0.0
    %1194 = vmatmul.mubr.f32.gmra.mxu0 %v1057
    %v1195 = vpop.f32.mrf.mxu0
    %v1196 = vadd.f32 0.0, %v1195
    %v1197 = vpop.f32.mrf.mxu0
    %v1198 = vadd.f32 0.0, %v1197
    %1199 = vdwg.mxu0
    %v1200 = vrot.slane %v241, 6
    %v1201 = vrot.slane %v243, 6
    %v1204 = vadd.f32 %v1125, %v1200
    %v1205 = vadd.f32 %v1127, %v1201
    %v1206 = vadd.f32 %v1196, %v324
    %v1207 = vadd.f32 %v1198, %v326
    %v1208 = vxor.u32 %v1204, 2147483648
    %v1209 = vxor.u32 %v1205, 2147483648
    %v1210 = vmul.f32 %v1208, 1.442695
    %v1211 = vpow.pop %v1210
    %v1212 = vmul.f32 %v1209, 1.442695
    %v1213 = vpow.pop %v1212
    %v1214 = vadd.f32 %v1211, 1.0
    %v1215 = vadd.f32 %v1213, 1.0
    %v1216 = vrcp.pop %v1214
    %v1217 = vmul.f32 1.0, %v1216
    %v1218 = vrcp.pop %v1215
    %v1219 = vmul.f32 1.0, %v1218
    %v1220 = vxor.u32 %v1206, 2147483648
    %v1221 = vxor.u32 %v1207, 2147483648
    %v1222 = vmul.f32 %v1220, 1.442695
    %v1223 = vpow.pop %v1222
    %v1224 = vmul.f32 %v1221, 1.442695
    %v1225 = vpow.pop %v1224
    %v1226 = vadd.f32 %v1223, 1.0
    %v1227 = vadd.f32 %v1225, 1.0
    %v1228 = vrcp.pop %v1226
    %v1229 = vmul.f32 1.0, %v1228
    %v1230 = vrcp.pop %v1227
    %v1231 = vmul.f32 1.0, %v1230
    %v1232 = vtanh.pop %v1205
    %v1233 = vtanh.pop %v1207
    %v1234 = vmul.f32 %v1217, %v1027
    %1236 = vrot.lane.b32.xlu0 %v1232, 64
    %v1237 = vpop.permute.xlu0 %1236
    %v1239 = vmul.f32 %v1217, %v1237
    %1241 = vrot.lane.b32.xlu0 %v1239, 64
    %v1242 = vpop.permute.xlu0 %1241
    %v1244 = vadd.f32 %v1234, %v1242
    %v1245 = vmul.f32 %v1229, %v1038
    %1247 = vrot.lane.b32.xlu0 %v1233, 64
    %v1248 = vpop.permute.xlu0 %1247
    %v1250 = vmul.f32 %v1229, %v1248
    %1252 = vrot.lane.b32.xlu0 %v1250, 64
    %v1253 = vpop.permute.xlu0 %1252
    %v1255 = vadd.f32 %v1245, %v1253
    %v1256 = vtanh.pop %v1244
    %1258 = vrot.lane.b32.xlu0 %v1256, 64
    %v1259 = vpop.permute.xlu0 %1258
    %v1261 = vmul.f32 %v1219, %v1259
    %v1262 = vtanh.pop %v1255
    %1264 = vrot.lane.b32.xlu0 %v1262, 64
    %v1265 = vpop.permute.xlu0 %1264
    %v1267 = vmul.f32 %v1231, %v1265
    %1268 = vst.msk [vmem:[#allocation2 + $0x6] sm:$0x3] %vm604, %v1261
    %1270 = vrot.lane.b32.xlu0 %v1267, 64
    %v1271 = vpop.permute.xlu0 %1270
    %1273 = vst.msk [vmem:[#allocation2 + $0x8] sm:$0x3] %vm610, %v1271
    %v1274 = vsel %vm612, %v1261, %v1271
    %1275 = vmatprep.subr.mxu0 %v389
    %1276 = vmatpush1.msra.mxu0 %v388
    %1277 = vmatprep.subr.mxu0 %v385
    %1278 = vmatpush1.msra.mxu0 %v384
    %1279 = vmatprep.subr.mxu0 %v381
    %1280 = vmatpush1.msra.mxu0 %v380
    %1281 = vmatprep.subr.mxu0 %v377
    %1282 = vmatpush1.msra.mxu0 %v376
    %1283 = vmatprep.subr.mxu0 %v373
    %1284 = vmatpush1.msra.mxu0 %v372
    %1285 = vmatprep.subr.mxu0 %v369
    %1286 = vmatpush1.msra.mxu0 %v368
    %1287 = vmatprep.subr.mxu0 %v365
    %1288 = vmatpush1.msra.mxu0 %v364
    %1289 = vmatprep.subr.mxu0 %v361
    %1290 = vmatpush1.msra.mxu0 %v360
    %1291 = vmatprep.subr.mxu0 %v357
    %1292 = vmatpush1.msra.mxu0 %v356
    %1293 = vmatprep.subr.mxu0 %v353
    %1294 = vmatpush1.msra.mxu0 %v352
    %1295 = vmatprep.subr.mxu0 %v349
    %1296 = vmatpush1.msra.mxu0 %v348
    %1297 = vmatprep.subr.mxu0 %v345
    %1298 = vmatpush1.msra.mxu0 %v344
    %1299 = vmatprep.subr.mxu0 %v341
    %1300 = vmatpush1.msra.mxu0 %v340
    %1301 = vmatprep.subr.mxu0 %v337
    %1302 = vmatpush1.msra.mxu0 %v336
    %1303 = vmatprep.subr.mxu0 %v333
    %1304 = vmatpush1.msra.mxu0 %v332
    %1305 = vmatprep.subr.mxu0 %v329
    %1306 = vmatpush1.msra.mxu0 %v328
    %1307 = vmatprep.subr.mxu0 0.0
    %1308 = vmatpush2.msra.mxu0 0.0
    %1309 = vmatprep.subr.mxu0 0.0
    %1310 = vmatpush2.msra.mxu0 0.0
    %1311 = vmatprep.subr.mxu0 0.0
    %1312 = vmatpush2.msra.mxu0 0.0
    %1313 = vmatprep.subr.mxu0 0.0
    %1314 = vmatpush2.msra.mxu0 0.0
    %1315 = vmatprep.subr.mxu0 0.0
    %1316 = vmatpush2.msra.mxu0 0.0
    %1317 = vmatprep.subr.mxu0 0.0
    %1318 = vmatpush2.msra.mxu0 0.0
    %1319 = vmatprep.subr.mxu0 0.0
    %1320 = vmatpush2.msra.mxu0 0.0
    %1321 = vmatprep.subr.mxu0 0.0
    %1322 = vmatpush2.msra.mxu0 0.0
    %1323 = vmatprep.subr.mxu0 0.0
    %1324 = vmatpush2.msra.mxu0 0.0
    %1325 = vmatprep.subr.mxu0 0.0
    %1326 = vmatpush2.msra.mxu0 0.0
    %1327 = vmatprep.subr.mxu0 0.0
    %1328 = vmatpush2.msra.mxu0 0.0
    %1329 = vmatprep.subr.mxu0 0.0
    %1330 = vmatpush2.msra.mxu0 0.0
    %1331 = vmatprep.subr.mxu0 0.0
    %1332 = vmatpush2.msra.mxu0 0.0
    %1333 = vmatprep.subr.mxu0 0.0
    %1334 = vmatpush2.msra.mxu0 0.0
    %1335 = vmatprep.subr.mxu0 0.0
    %1336 = vmatpush2.msra.mxu0 0.0
    %1337 = vmatprep.subr.mxu0 0.0
    %1338 = vmatpush2.msra.mxu0 0.0
    %1339 = vmatprep.mubr.f32.mxu0 0.0
    %1340 = vmatmul.mubr.f32.gmra.mxu0 %v1274
    %v1341 = vpop.f32.mrf.mxu0
    %v1342 = vadd.f32 0.0, %v1341
    %v1343 = vpop.f32.mrf.mxu0
    %v1344 = vadd.f32 0.0, %v1343
    %1345 = vdwg.mxu0
    %1346 = vmatprep.subr.mxu0 %v391
    %1347 = vmatpush1.msra.mxu0 %v390
    %1348 = vmatprep.subr.mxu0 %v387
    %1349 = vmatpush1.msra.mxu0 %v386
    %1350 = vmatprep.subr.mxu0 %v383
    %1351 = vmatpush1.msra.mxu0 %v382
    %1352 = vmatprep.subr.mxu0 %v379
    %1353 = vmatpush1.msra.mxu0 %v378
    %1354 = vmatprep.subr.mxu0 %v375
    %1355 = vmatpush1.msra.mxu0 %v374
    %1356 = vmatprep.subr.mxu0 %v371
    %1357 = vmatpush1.msra.mxu0 %v370
    %1358 = vmatprep.subr.mxu0 %v367
    %1359 = vmatpush1.msra.mxu0 %v366
    %1360 = vmatprep.subr.mxu0 %v363
    %1361 = vmatpush1.msra.mxu0 %v362
    %1362 = vmatprep.subr.mxu0 %v359
    %1363 = vmatpush1.msra.mxu0 %v358
    %1364 = vmatprep.subr.mxu0 %v355
    %1365 = vmatpush1.msra.mxu0 %v354
    %1366 = vmatprep.subr.mxu0 %v351
    %1367 = vmatpush1.msra.mxu0 %v350
    %1368 = vmatprep.subr.mxu0 %v347
    %1369 = vmatpush1.msra.mxu0 %v346
    %1370 = vmatprep.subr.mxu0 %v343
    %1371 = vmatpush1.msra.mxu0 %v342
    %1372 = vmatprep.subr.mxu0 %v339
    %1373 = vmatpush1.msra.mxu0 %v338
    %1374 = vmatprep.subr.mxu0 %v335
    %1375 = vmatpush1.msra.mxu0 %v334
    %1376 = vmatprep.subr.mxu0 %v331
    %1377 = vmatpush1.msra.mxu0 %v330
    %1378 = vmatprep.subr.mxu0 0.0
    %1379 = vmatpush2.msra.mxu0 0.0
    %1380 = vmatprep.subr.mxu0 0.0
    %1381 = vmatpush2.msra.mxu0 0.0
    %1382 = vmatprep.subr.mxu0 0.0
    %1383 = vmatpush2.msra.mxu0 0.0
    %1384 = vmatprep.subr.mxu0 0.0
    %1385 = vmatpush2.msra.mxu0 0.0
    %1386 = vmatprep.subr.mxu0 0.0
    %1387 = vmatpush2.msra.mxu0 0.0
    %1388 = vmatprep.subr.mxu0 0.0
    %1389 = vmatpush2.msra.mxu0 0.0
    %1390 = vmatprep.subr.mxu0 0.0
    %1391 = vmatpush2.msra.mxu0 0.0
    %1392 = vmatprep.subr.mxu0 0.0
    %1393 = vmatpush2.msra.mxu0 0.0
    %1394 = vmatprep.subr.mxu0 0.0
    %1395 = vmatpush2.msra.mxu0 0.0
    %1396 = vmatprep.subr.mxu0 0.0
    %1397 = vmatpush2.msra.mxu0 0.0
    %1398 = vmatprep.subr.mxu0 0.0
    %1399 = vmatpush2.msra.mxu0 0.0
    %1400 = vmatprep.subr.mxu0 0.0
    %1401 = vmatpush2.msra.mxu0 0.0
    %1402 = vmatprep.subr.mxu0 0.0
    %1403 = vmatpush2.msra.mxu0 0.0
    %1404 = vmatprep.subr.mxu0 0.0
    %1405 = vmatpush2.msra.mxu0 0.0
    %1406 = vmatprep.subr.mxu0 0.0
    %1407 = vmatpush2.msra.mxu0 0.0
    %1408 = vmatprep.subr.mxu0 0.0
    %1409 = vmatpush2.msra.mxu0 0.0
    %1410 = vmatprep.mubr.f32.mxu0 0.0
    %1411 = vmatmul.mubr.f32.gmra.mxu0 %v1274
    %v1412 = vpop.f32.mrf.mxu0
    %v1413 = vadd.f32 0.0, %v1412
    %v1414 = vpop.f32.mrf.mxu0
    %v1415 = vadd.f32 0.0, %v1414
    %1416 = vdwg.mxu0
    %v1417 = vadd.f32 %v1342, %v247
    %v1418 = vadd.f32 %v1344, %v249
    %v1421 = vrot.slane %v318, 6
    %v1422 = vrot.slane %v320, 6
    %v1425 = vadd.f32 %v1413, %v1421
    %v1426 = vadd.f32 %v1415, %v1422
    %v1427 = vxor.u32 %v1417, 2147483648
    %v1428 = vxor.u32 %v1418, 2147483648
    %v1429 = vmul.f32 %v1427, 1.442695
    %v1430 = vpow.pop %v1429
    %v1431 = vmul.f32 %v1428, 1.442695
    %v1432 = vpow.pop %v1431
    %v1433 = vadd.f32 %v1430, 1.0
    %v1434 = vadd.f32 %v1432, 1.0
    %v1435 = vrcp.pop %v1433
    %v1436 = vmul.f32 1.0, %v1435
    %v1437 = vrcp.pop %v1434
    %v1438 = vmul.f32 1.0, %v1437
    %v1439 = vxor.u32 %v1425, 2147483648
    %v1440 = vxor.u32 %v1426, 2147483648
    %v1441 = vmul.f32 %v1439, 1.442695
    %v1442 = vpow.pop %v1441
    %v1443 = vmul.f32 %v1440, 1.442695
    %v1444 = vpow.pop %v1443
    %v1445 = vadd.f32 %v1442, 1.0
    %v1446 = vadd.f32 %v1444, 1.0
    %v1447 = vrcp.pop %v1445
    %v1448 = vmul.f32 1.0, %v1447
    %v1449 = vrcp.pop %v1446
    %v1450 = vmul.f32 1.0, %v1449
    %v1451 = vtanh.pop %v1418
    %v1452 = vtanh.pop %v1426
    %v1453 = vmul.f32 %v1436, %v1244
    %1455 = vrot.lane.b32.xlu0 %v1451, 64
    %v1456 = vpop.permute.xlu0 %1455
    %v1458 = vmul.f32 %v1436, %v1456
    %1460 = vrot.lane.b32.xlu0 %v1458, 64
    %v1461 = vpop.permute.xlu0 %1460
    %v1463 = vadd.f32 %v1453, %v1461
    %v1464 = vmul.f32 %v1448, %v1255
    %1466 = vrot.lane.b32.xlu0 %v1452, 64
    %v1467 = vpop.permute.xlu0 %1466
    %v1469 = vmul.f32 %v1448, %v1467
    %1471 = vrot.lane.b32.xlu0 %v1469, 64
    %v1472 = vpop.permute.xlu0 %1471
    %v1474 = vadd.f32 %v1464, %v1472
    %v1475 = vtanh.pop %v1463
    %1477 = vrot.lane.b32.xlu0 %v1475, 64
    %v1478 = vpop.permute.xlu0 %1477
    %v1480 = vmul.f32 %v1438, %v1478
    %v1481 = vtanh.pop %v1474
    %1483 = vrot.lane.b32.xlu0 %v1481, 64
    %v1484 = vpop.permute.xlu0 %1483
    %v1486 = vmul.f32 %v1450, %v1484
    %1487 = vst.msk [vmem:[#allocation2 + $0x8] sm:$0x3] %vm604, %v1480
    %1489 = vrot.lane.b32.xlu0 %v1486, 64
    %v1490 = vpop.permute.xlu0 %1489
    %1492 = vst.msk [vmem:[#allocation2 + $0x6] sm:$0x3] %vm610, %v1490
    %v1493 = vsel %vm612, %v1480, %v1490
    %1494 = vmatprep.subr.mxu0 %v389
    %1495 = vmatpush1.msra.mxu0 %v388
    %1496 = vmatprep.subr.mxu0 %v385
    %1497 = vmatpush1.msra.mxu0 %v384
    %1498 = vmatprep.subr.mxu0 %v381
    %1499 = vmatpush1.msra.mxu0 %v380
    %1500 = vmatprep.subr.mxu0 %v377
    %1501 = vmatpush1.msra.mxu0 %v376
    %1502 = vmatprep.subr.mxu0 %v373
    %1503 = vmatpush1.msra.mxu0 %v372
    %1504 = vmatprep.subr.mxu0 %v369
    %1505 = vmatpush1.msra.mxu0 %v368
    %1506 = vmatprep.subr.mxu0 %v365
    %1507 = vmatpush1.msra.mxu0 %v364
    %1508 = vmatprep.subr.mxu0 %v361
    %1509 = vmatpush1.msra.mxu0 %v360
    %1510 = vmatprep.subr.mxu0 %v357
    %1511 = vmatpush1.msra.mxu0 %v356
    %1512 = vmatprep.subr.mxu0 %v353
    %1513 = vmatpush1.msra.mxu0 %v352
    %1514 = vmatprep.subr.mxu0 %v349
    %1515 = vmatpush1.msra.mxu0 %v348
    %1516 = vmatprep.subr.mxu0 %v345
    %1517 = vmatpush1.msra.mxu0 %v344
    %1518 = vmatprep.subr.mxu0 %v341
    %1519 = vmatpush1.msra.mxu0 %v340
    %1520 = vmatprep.subr.mxu0 %v337
    %1521 = vmatpush1.msra.mxu0 %v336
    %1522 = vmatprep.subr.mxu0 %v333
    %1523 = vmatpush1.msra.mxu0 %v332
    %1524 = vmatprep.subr.mxu0 %v329
    %1525 = vmatpush1.msra.mxu0 %v328
    %1526 = vmatprep.subr.mxu0 0.0
    %1527 = vmatpush2.msra.mxu0 0.0
    %1528 = vmatprep.subr.mxu0 0.0
    %1529 = vmatpush2.msra.mxu0 0.0
    %1530 = vmatprep.subr.mxu0 0.0
    %1531 = vmatpush2.msra.mxu0 0.0
    %1532 = vmatprep.subr.mxu0 0.0
    %1533 = vmatpush2.msra.mxu0 0.0
    %1534 = vmatprep.subr.mxu0 0.0
    %1535 = vmatpush2.msra.mxu0 0.0
    %1536 = vmatprep.subr.mxu0 0.0
    %1537 = vmatpush2.msra.mxu0 0.0
    %1538 = vmatprep.subr.mxu0 0.0
    %1539 = vmatpush2.msra.mxu0 0.0
    %1540 = vmatprep.subr.mxu0 0.0
    %1541 = vmatpush2.msra.mxu0 0.0
    %1542 = vmatprep.subr.mxu0 0.0
    %1543 = vmatpush2.msra.mxu0 0.0
    %1544 = vmatprep.subr.mxu0 0.0
    %1545 = vmatpush2.msra.mxu0 0.0
    %1546 = vmatprep.subr.mxu0 0.0
    %1547 = vmatpush2.msra.mxu0 0.0
    %1548 = vmatprep.subr.mxu0 0.0
    %1549 = vmatpush2.msra.mxu0 0.0
    %1550 = vmatprep.subr.mxu0 0.0
    %1551 = vmatpush2.msra.mxu0 0.0
    %1552 = vmatprep.subr.mxu0 0.0
    %1553 = vmatpush2.msra.mxu0 0.0
    %1554 = vmatprep.subr.mxu0 0.0
    %1555 = vmatpush2.msra.mxu0 0.0
    %1556 = vmatprep.subr.mxu0 0.0
    %1557 = vmatpush2.msra.mxu0 0.0
    %1558 = vmatprep.mubr.f32.mxu0 0.0
    %1559 = vmatmul.mubr.f32.gmra.mxu0 %v1493
    %v1560 = vpop.f32.mrf.mxu0
    %v1561 = vadd.f32 0.0, %v1560
    %v1562 = vpop.f32.mrf.mxu0
    %v1563 = vadd.f32 0.0, %v1562
    %1564 = vdwg.mxu0
    %1565 = vmatprep.subr.mxu0 %v391
    %1566 = vmatpush1.msra.mxu0 %v390
    %1567 = vmatprep.subr.mxu0 %v387
    %1568 = vmatpush1.msra.mxu0 %v386
    %1569 = vmatprep.subr.mxu0 %v383
    %1570 = vmatpush1.msra.mxu0 %v382
    %1571 = vmatprep.subr.mxu0 %v379
    %1572 = vmatpush1.msra.mxu0 %v378
    %1573 = vmatprep.subr.mxu0 %v375
    %1574 = vmatpush1.msra.mxu0 %v374
    %1575 = vmatprep.subr.mxu0 %v371
    %1576 = vmatpush1.msra.mxu0 %v370
    %1577 = vmatprep.subr.mxu0 %v367
    %1578 = vmatpush1.msra.mxu0 %v366
    %1579 = vmatprep.subr.mxu0 %v363
    %1580 = vmatpush1.msra.mxu0 %v362
    %1581 = vmatprep.subr.mxu0 %v359
    %1582 = vmatpush1.msra.mxu0 %v358
    %1583 = vmatprep.subr.mxu0 %v355
    %1584 = vmatpush1.msra.mxu0 %v354
    %1585 = vmatprep.subr.mxu0 %v351
    %1586 = vmatpush1.msra.mxu0 %v350
    %1587 = vmatprep.subr.mxu0 %v347
    %1588 = vmatpush1.msra.mxu0 %v346
    %1589 = vmatprep.subr.mxu0 %v343
    %1590 = vmatpush1.msra.mxu0 %v342
    %1591 = vmatprep.subr.mxu0 %v339
    %1592 = vmatpush1.msra.mxu0 %v338
    %1593 = vmatprep.subr.mxu0 %v335
    %1594 = vmatpush1.msra.mxu0 %v334
    %1595 = vmatprep.subr.mxu0 %v331
    %1596 = vmatpush1.msra.mxu0 %v330
    %1597 = vmatprep.subr.mxu0 0.0
    %1598 = vmatpush2.msra.mxu0 0.0
    %1599 = vmatprep.subr.mxu0 0.0
    %1600 = vmatpush2.msra.mxu0 0.0
    %1601 = vmatprep.subr.mxu0 0.0
    %1602 = vmatpush2.msra.mxu0 0.0
    %1603 = vmatprep.subr.mxu0 0.0
    %1604 = vmatpush2.msra.mxu0 0.0
    %1605 = vmatprep.subr.mxu0 0.0
    %1606 = vmatpush2.msra.mxu0 0.0
    %1607 = vmatprep.subr.mxu0 0.0
    %1608 = vmatpush2.msra.mxu0 0.0
    %1609 = vmatprep.subr.mxu0 0.0
    %1610 = vmatpush2.msra.mxu0 0.0
    %1611 = vmatprep.subr.mxu0 0.0
    %1612 = vmatpush2.msra.mxu0 0.0
    %1613 = vmatprep.subr.mxu0 0.0
    %1614 = vmatpush2.msra.mxu0 0.0
    %1615 = vmatprep.subr.mxu0 0.0
    %1616 = vmatpush2.msra.mxu0 0.0
    %1617 = vmatprep.subr.mxu0 0.0
    %1618 = vmatpush2.msra.mxu0 0.0
    %1619 = vmatprep.subr.mxu0 0.0
    %1620 = vmatpush2.msra.mxu0 0.0
    %1621 = vmatprep.subr.mxu0 0.0
    %1622 = vmatpush2.msra.mxu0 0.0
    %1623 = vmatprep.subr.mxu0 0.0
    %1624 = vmatpush2.msra.mxu0 0.0
    %1625 = vmatprep.subr.mxu0 0.0
    %1626 = vmatpush2.msra.mxu0 0.0
    %1627 = vmatprep.subr.mxu0 0.0
    %1628 = vmatpush2.msra.mxu0 0.0
    %1629 = vmatprep.mubr.f32.mxu0 0.0
    %1630 = vmatmul.mubr.f32.gmra.mxu0 %v1493
    %v1631 = vpop.f32.mrf.mxu0
    %v1632 = vadd.f32 0.0, %v1631
    %v1633 = vpop.f32.mrf.mxu0
    %v1634 = vadd.f32 0.0, %v1633
    %1635 = vdwg.mxu0
    %v1638 = vrot.slane %v247, 2
    %v1639 = vrot.slane %v249, 2
    %v1642 = vadd.f32 %v1561, %v1638
    %v1643 = vadd.f32 %v1563, %v1639
    %v1644 = vrot.slane %v318, 4
    %v1645 = vrot.slane %v320, 4
    %v1648 = vadd.f32 %v1632, %v1644
    %v1649 = vadd.f32 %v1634, %v1645
    %v1650 = vxor.u32 %v1642, 2147483648
    %v1651 = vxor.u32 %v1643, 2147483648
    %v1652 = vmul.f32 %v1650, 1.442695
    %v1653 = vpow.pop %v1652
    %v1654 = vmul.f32 %v1651, 1.442695
    %v1655 = vpow.pop %v1654
    %v1656 = vadd.f32 %v1653, 1.0
    %v1657 = vadd.f32 %v1655, 1.0
    %v1658 = vrcp.pop %v1656
    %v1659 = vmul.f32 1.0, %v1658
    %v1660 = vrcp.pop %v1657
    %v1661 = vmul.f32 1.0, %v1660
    %v1662 = vxor.u32 %v1648, 2147483648
    %v1663 = vxor.u32 %v1649, 2147483648
    %v1664 = vmul.f32 %v1662, 1.442695
    %v1665 = vpow.pop %v1664
    %v1666 = vmul.f32 %v1663, 1.442695
    %v1667 = vpow.pop %v1666
    %v1668 = vadd.f32 %v1665, 1.0
    %v1669 = vadd.f32 %v1667, 1.0
    %v1670 = vrcp.pop %v1668
    %v1671 = vmul.f32 1.0, %v1670
    %v1672 = vrcp.pop %v1669
    %v1673 = vmul.f32 1.0, %v1672
    %v1674 = vtanh.pop %v1643
    %v1675 = vtanh.pop %v1649
    %v1676 = vmul.f32 %v1659, %v1463
    %1678 = vrot.lane.b32.xlu0 %v1674, 64
    %v1679 = vpop.permute.xlu0 %1678
    %v1681 = vmul.f32 %v1659, %v1679
    %1683 = vrot.lane.b32.xlu0 %v1681, 64
    %v1684 = vpop.permute.xlu0 %1683
    %v1686 = vadd.f32 %v1676, %v1684
    %v1687 = vmul.f32 %v1671, %v1474
    %1689 = vrot.lane.b32.xlu0 %v1675, 64
    %v1690 = vpop.permute.xlu0 %1689
    %v1692 = vmul.f32 %v1671, %v1690
    %1694 = vrot.lane.b32.xlu0 %v1692, 64
    %v1695 = vpop.permute.xlu0 %1694
    %v1697 = vadd.f32 %v1687, %v1695
    %v1698 = vtanh.pop %v1686
    %1700 = vrot.lane.b32.xlu0 %v1698, 64
    %v1701 = vpop.permute.xlu0 %1700
    %v1703 = vmul.f32 %v1661, %v1701
    %v1704 = vtanh.pop %v1697
    %1706 = vrot.lane.b32.xlu0 %v1704, 64
    %v1707 = vpop.permute.xlu0 %1706
    %v1709 = vmul.f32 %v1673, %v1707
    %1710 = vst.msk [vmem:[#allocation2 + $0xa] sm:$0x3] %vm604, %v1703
    %1712 = vrot.lane.b32.xlu0 %v1709, 64
    %v1713 = vpop.permute.xlu0 %1712
    %1715 = vst.msk [vmem:[#allocation2 + $0x4] sm:$0x3] %vm610, %v1713
    %v1716 = vsel %vm612, %v1703, %v1713
    %1717 = vmatprep.subr.mxu0 %v389
    %1718 = vmatpush1.msra.mxu0 %v388
    %1719 = vmatprep.subr.mxu0 %v385
    %1720 = vmatpush1.msra.mxu0 %v384
    %1721 = vmatprep.subr.mxu0 %v381
    %1722 = vmatpush1.msra.mxu0 %v380
    %1723 = vmatprep.subr.mxu0 %v377
    %1724 = vmatpush1.msra.mxu0 %v376
    %1725 = vmatprep.subr.mxu0 %v373
    %1726 = vmatpush1.msra.mxu0 %v372
    %1727 = vmatprep.subr.mxu0 %v369
    %1728 = vmatpush1.msra.mxu0 %v368
    %1729 = vmatprep.subr.mxu0 %v365
    %1730 = vmatpush1.msra.mxu0 %v364
    %1731 = vmatprep.subr.mxu0 %v361
    %1732 = vmatpush1.msra.mxu0 %v360
    %1733 = vmatprep.subr.mxu0 %v357
    %1734 = vmatpush1.msra.mxu0 %v356
    %1735 = vmatprep.subr.mxu0 %v353
    %1736 = vmatpush1.msra.mxu0 %v352
    %1737 = vmatprep.subr.mxu0 %v349
    %1738 = vmatpush1.msra.mxu0 %v348
    %1739 = vmatprep.subr.mxu0 %v345
    %1740 = vmatpush1.msra.mxu0 %v344
    %1741 = vmatprep.subr.mxu0 %v341
    %1742 = vmatpush1.msra.mxu0 %v340
    %1743 = vmatprep.subr.mxu0 %v337
    %1744 = vmatpush1.msra.mxu0 %v336
    %1745 = vmatprep.subr.mxu0 %v333
    %1746 = vmatpush1.msra.mxu0 %v332
    %1747 = vmatprep.subr.mxu0 %v329
    %1748 = vmatpush1.msra.mxu0 %v328
    %1749 = vmatprep.subr.mxu0 0.0
    %1750 = vmatpush2.msra.mxu0 0.0
    %1751 = vmatprep.subr.mxu0 0.0
    %1752 = vmatpush2.msra.mxu0 0.0
    %1753 = vmatprep.subr.mxu0 0.0
    %1754 = vmatpush2.msra.mxu0 0.0
    %1755 = vmatprep.subr.mxu0 0.0
    %1756 = vmatpush2.msra.mxu0 0.0
    %1757 = vmatprep.subr.mxu0 0.0
    %1758 = vmatpush2.msra.mxu0 0.0
    %1759 = vmatprep.subr.mxu0 0.0
    %1760 = vmatpush2.msra.mxu0 0.0
    %1761 = vmatprep.subr.mxu0 0.0
    %1762 = vmatpush2.msra.mxu0 0.0
    %1763 = vmatprep.subr.mxu0 0.0
    %1764 = vmatpush2.msra.mxu0 0.0
    %1765 = vmatprep.subr.mxu0 0.0
    %1766 = vmatpush2.msra.mxu0 0.0
    %1767 = vmatprep.subr.mxu0 0.0
    %1768 = vmatpush2.msra.mxu0 0.0
    %1769 = vmatprep.subr.mxu0 0.0
    %1770 = vmatpush2.msra.mxu0 0.0
    %1771 = vmatprep.subr.mxu0 0.0
    %1772 = vmatpush2.msra.mxu0 0.0
    %1773 = vmatprep.subr.mxu0 0.0
    %1774 = vmatpush2.msra.mxu0 0.0
    %1775 = vmatprep.subr.mxu0 0.0
    %1776 = vmatpush2.msra.mxu0 0.0
    %1777 = vmatprep.subr.mxu0 0.0
    %1778 = vmatpush2.msra.mxu0 0.0
    %1779 = vmatprep.subr.mxu0 0.0
    %1780 = vmatpush2.msra.mxu0 0.0
    %1781 = vmatprep.mubr.f32.mxu0 0.0
    %1782 = vmatmul.mubr.f32.gmra.mxu0 %v1716
    %v1783 = vpop.f32.mrf.mxu0
    %v1784 = vadd.f32 0.0, %v1783
    %v1785 = vpop.f32.mrf.mxu0
    %v1786 = vadd.f32 0.0, %v1785
    %1787 = vdwg.mxu0
    %1788 = vmatprep.subr.mxu0 %v391
    %1789 = vmatpush1.msra.mxu0 %v390
    %1790 = vmatprep.subr.mxu0 %v387
    %1791 = vmatpush1.msra.mxu0 %v386
    %1792 = vmatprep.subr.mxu0 %v383
    %1793 = vmatpush1.msra.mxu0 %v382
    %1794 = vmatprep.subr.mxu0 %v379
    %1795 = vmatpush1.msra.mxu0 %v378
    %1796 = vmatprep.subr.mxu0 %v375
    %1797 = vmatpush1.msra.mxu0 %v374
    %1798 = vmatprep.subr.mxu0 %v371
    %1799 = vmatpush1.msra.mxu0 %v370
    %1800 = vmatprep.subr.mxu0 %v367
    %1801 = vmatpush1.msra.mxu0 %v366
    %1802 = vmatprep.subr.mxu0 %v363
    %1803 = vmatpush1.msra.mxu0 %v362
    %1804 = vmatprep.subr.mxu0 %v359
    %1805 = vmatpush1.msra.mxu0 %v358
    %1806 = vmatprep.subr.mxu0 %v355
    %1807 = vmatpush1.msra.mxu0 %v354
    %1808 = vmatprep.subr.mxu0 %v351
    %1809 = vmatpush1.msra.mxu0 %v350
    %1810 = vmatprep.subr.mxu0 %v347
    %1811 = vmatpush1.msra.mxu0 %v346
    %1812 = vmatprep.subr.mxu0 %v343
    %1813 = vmatpush1.msra.mxu0 %v342
    %1814 = vmatprep.subr.mxu0 %v339
    %1815 = vmatpush1.msra.mxu0 %v338
    %1816 = vmatprep.subr.mxu0 %v335
    %1817 = vmatpush1.msra.mxu0 %v334
    %1818 = vmatprep.subr.mxu0 %v331
    %1819 = vmatpush1.msra.mxu0 %v330
    %1820 = vmatprep.subr.mxu0 0.0
    %1821 = vmatpush2.msra.mxu0 0.0
    %1822 = vmatprep.subr.mxu0 0.0
    %1823 = vmatpush2.msra.mxu0 0.0
    %1824 = vmatprep.subr.mxu0 0.0
    %1825 = vmatpush2.msra.mxu0 0.0
    %1826 = vmatprep.subr.mxu0 0.0
    %1827 = vmatpush2.msra.mxu0 0.0
    %1828 = vmatprep.subr.mxu0 0.0
    %1829 = vmatpush2.msra.mxu0 0.0
    %1830 = vmatprep.subr.mxu0 0.0
    %1831 = vmatpush2.msra.mxu0 0.0
    %1832 = vmatprep.subr.mxu0 0.0
    %1833 = vmatpush2.msra.mxu0 0.0
    %1834 = vmatprep.subr.mxu0 0.0
    %1835 = vmatpush2.msra.mxu0 0.0
    %1836 = vmatprep.subr.mxu0 0.0
    %1837 = vmatpush2.msra.mxu0 0.0
    %1838 = vmatprep.subr.mxu0 0.0
    %1839 = vmatpush2.msra.mxu0 0.0
    %1840 = vmatprep.subr.mxu0 0.0
    %1841 = vmatpush2.msra.mxu0 0.0
    %1842 = vmatprep.subr.mxu0 0.0
    %1843 = vmatpush2.msra.mxu0 0.0
    %1844 = vmatprep.subr.mxu0 0.0
    %1845 = vmatpush2.msra.mxu0 0.0
    %1846 = vmatprep.subr.mxu0 0.0
    %1847 = vmatpush2.msra.mxu0 0.0
    %1848 = vmatprep.subr.mxu0 0.0
    %1849 = vmatpush2.msra.mxu0 0.0
    %1850 = vmatprep.subr.mxu0 0.0
    %1851 = vmatpush2.msra.mxu0 0.0
    %1852 = vmatprep.mubr.f32.mxu0 0.0
    %1853 = vmatmul.mubr.f32.gmra.mxu0 %v1716
    %v1854 = vpop.f32.mrf.mxu0
    %v1855 = vadd.f32 0.0, %v1854
    %v1856 = vpop.f32.mrf.mxu0
    %v1857 = vadd.f32 0.0, %v1856
    %1858 = vdwg.mxu0
    %v1859 = vrot.slane %v247, 4
    %v1860 = vrot.slane %v249, 4
    %v1863 = vadd.f32 %v1784, %v1859
    %v1864 = vadd.f32 %v1786, %v1860
    %v1865 = vrot.slane %v318, 2
    %v1866 = vrot.slane %v320, 2
    %v1869 = vadd.f32 %v1855, %v1865
    %v1870 = vadd.f32 %v1857, %v1866
    %v1871 = vxor.u32 %v1863, 2147483648
    %v1872 = vxor.u32 %v1864, 2147483648
    %v1873 = vmul.f32 %v1871, 1.442695
    %v1874 = vpow.pop %v1873
    %v1875 = vmul.f32 %v1872, 1.442695
    %v1876 = vpow.pop %v1875
    %v1877 = vadd.f32 %v1874, 1.0
    %v1878 = vadd.f32 %v1876, 1.0
    %v1879 = vrcp.pop %v1877
    %v1880 = vmul.f32 1.0, %v1879
    %v1881 = vrcp.pop %v1878
    %v1882 = vmul.f32 1.0, %v1881
    %v1883 = vxor.u32 %v1869, 2147483648
    %v1884 = vxor.u32 %v1870, 2147483648
    %v1885 = vmul.f32 %v1883, 1.442695
    %v1886 = vpow.pop %v1885
    %v1887 = vmul.f32 %v1884, 1.442695
    %v1888 = vpow.pop %v1887
    %v1889 = vadd.f32 %v1886, 1.0
    %v1890 = vadd.f32 %v1888, 1.0
    %v1891 = vrcp.pop %v1889
    %v1892 = vmul.f32 1.0, %v1891
    %v1893 = vrcp.pop %v1890
    %v1894 = vmul.f32 1.0, %v1893
    %v1895 = vtanh.pop %v1864
    %v1896 = vtanh.pop %v1870
    %v1897 = vmul.f32 %v1880, %v1686
    %1899 = vrot.lane.b32.xlu0 %v1895, 64
    %v1900 = vpop.permute.xlu0 %1899
    %v1902 = vmul.f32 %v1880, %v1900
    %1904 = vrot.lane.b32.xlu0 %v1902, 64
    %v1905 = vpop.permute.xlu0 %1904
    %v1907 = vadd.f32 %v1897, %v1905
    %v1908 = vmul.f32 %v1892, %v1697
    %1910 = vrot.lane.b32.xlu0 %v1896, 64
    %v1911 = vpop.permute.xlu0 %1910
    %v1913 = vmul.f32 %v1892, %v1911
    %1915 = vrot.lane.b32.xlu0 %v1913, 64
    %v1916 = vpop.permute.xlu0 %1915
    %v1918 = vadd.f32 %v1908, %v1916
    %v1919 = vtanh.pop %v1907
    %1921 = vrot.lane.b32.xlu0 %v1919, 64
    %v1922 = vpop.permute.xlu0 %1921
    %v1924 = vmul.f32 %v1882, %v1922
    %v1925 = vtanh.pop %v1918
    %1927 = vrot.lane.b32.xlu0 %v1925, 64
    %v1928 = vpop.permute.xlu0 %1927
    %v1930 = vmul.f32 %v1894, %v1928
    %1931 = vst.msk [vmem:[#allocation2 + $0xc] sm:$0x3] %vm604, %v1924
    %1933 = vrot.lane.b32.xlu0 %v1930, 64
    %v1934 = vpop.permute.xlu0 %1933
    %1936 = vst.msk [vmem:[#allocation2 + $0x2] sm:$0x3] %vm610, %v1934
    %v1937 = vsel %vm612, %v1924, %v1934
    %1938 = vmatprep.subr.mxu0 %v389
    %1939 = vmatpush1.msra.mxu0 %v388
    %1940 = vmatprep.subr.mxu0 %v385
    %1941 = vmatpush1.msra.mxu0 %v384
    %1942 = vmatprep.subr.mxu0 %v381
    %1943 = vmatpush1.msra.mxu0 %v380
    %1944 = vmatprep.subr.mxu0 %v377
    %1945 = vmatpush1.msra.mxu0 %v376
    %1946 = vmatprep.subr.mxu0 %v373
    %1947 = vmatpush1.msra.mxu0 %v372
    %1948 = vmatprep.subr.mxu0 %v369
    %1949 = vmatpush1.msra.mxu0 %v368
    %1950 = vmatprep.subr.mxu0 %v365
    %1951 = vmatpush1.msra.mxu0 %v364
    %1952 = vmatprep.subr.mxu0 %v361
    %1953 = vmatpush1.msra.mxu0 %v360
    %1954 = vmatprep.subr.mxu0 %v357
    %1955 = vmatpush1.msra.mxu0 %v356
    %1956 = vmatprep.subr.mxu0 %v353
    %1957 = vmatpush1.msra.mxu0 %v352
    %1958 = vmatprep.subr.mxu0 %v349
    %1959 = vmatpush1.msra.mxu0 %v348
    %1960 = vmatprep.subr.mxu0 %v345
    %1961 = vmatpush1.msra.mxu0 %v344
    %1962 = vmatprep.subr.mxu0 %v341
    %1963 = vmatpush1.msra.mxu0 %v340
    %1964 = vmatprep.subr.mxu0 %v337
    %1965 = vmatpush1.msra.mxu0 %v336
    %1966 = vmatprep.subr.mxu0 %v333
    %1967 = vmatpush1.msra.mxu0 %v332
    %1968 = vmatprep.subr.mxu0 %v329
    %1969 = vmatpush1.msra.mxu0 %v328
    %1970 = vmatprep.subr.mxu0 0.0
    %1971 = vmatpush2.msra.mxu0 0.0
    %1972 = vmatprep.subr.mxu0 0.0
    %1973 = vmatpush2.msra.mxu0 0.0
    %1974 = vmatprep.subr.mxu0 0.0
    %1975 = vmatpush2.msra.mxu0 0.0
    %1976 = vmatprep.subr.mxu0 0.0
    %1977 = vmatpush2.msra.mxu0 0.0
    %1978 = vmatprep.subr.mxu0 0.0
    %1979 = vmatpush2.msra.mxu0 0.0
    %1980 = vmatprep.subr.mxu0 0.0
    %1981 = vmatpush2.msra.mxu0 0.0
    %1982 = vmatprep.subr.mxu0 0.0
    %1983 = vmatpush2.msra.mxu0 0.0
    %1984 = vmatprep.subr.mxu0 0.0
    %1985 = vmatpush2.msra.mxu0 0.0
    %1986 = vmatprep.subr.mxu0 0.0
    %1987 = vmatpush2.msra.mxu0 0.0
    %1988 = vmatprep.subr.mxu0 0.0
    %1989 = vmatpush2.msra.mxu0 0.0
    %1990 = vmatprep.subr.mxu0 0.0
    %1991 = vmatpush2.msra.mxu0 0.0
    %1992 = vmatprep.subr.mxu0 0.0
    %1993 = vmatpush2.msra.mxu0 0.0
    %1994 = vmatprep.subr.mxu0 0.0
    %1995 = vmatpush2.msra.mxu0 0.0
    %1996 = vmatprep.subr.mxu0 0.0
    %1997 = vmatpush2.msra.mxu0 0.0
    %1998 = vmatprep.subr.mxu0 0.0
    %1999 = vmatpush2.msra.mxu0 0.0
    %2000 = vmatprep.subr.mxu0 0.0
    %2001 = vmatpush2.msra.mxu0 0.0
    %2002 = vmatprep.mubr.f32.mxu0 0.0
    %2003 = vmatmul.mubr.f32.gmra.mxu0 %v1937
    %v2004 = vpop.f32.mrf.mxu0
    %v2005 = vadd.f32 0.0, %v2004
    %v2006 = vpop.f32.mrf.mxu0
    %v2007 = vadd.f32 0.0, %v2006
    %2008 = vdwg.mxu0
    %2009 = vmatprep.subr.mxu0 %v391
    %2010 = vmatpush1.msra.mxu0 %v390
    %2011 = vmatprep.subr.mxu0 %v387
    %2012 = vmatpush1.msra.mxu0 %v386
    %2013 = vmatprep.subr.mxu0 %v383
    %2014 = vmatpush1.msra.mxu0 %v382
    %2015 = vmatprep.subr.mxu0 %v379
    %2016 = vmatpush1.msra.mxu0 %v378
    %2017 = vmatprep.subr.mxu0 %v375
    %2018 = vmatpush1.msra.mxu0 %v374
    %2019 = vmatprep.subr.mxu0 %v371
    %2020 = vmatpush1.msra.mxu0 %v370
    %2021 = vmatprep.subr.mxu0 %v367
    %2022 = vmatpush1.msra.mxu0 %v366
    %2023 = vmatprep.subr.mxu0 %v363
    %2024 = vmatpush1.msra.mxu0 %v362
    %2025 = vmatprep.subr.mxu0 %v359
    %2026 = vmatpush1.msra.mxu0 %v358
    %2027 = vmatprep.subr.mxu0 %v355
    %2028 = vmatpush1.msra.mxu0 %v354
    %2029 = vmatprep.subr.mxu0 %v351
    %2030 = vmatpush1.msra.mxu0 %v350
    %2031 = vmatprep.subr.mxu0 %v347
    %2032 = vmatpush1.msra.mxu0 %v346
    %2033 = vmatprep.subr.mxu0 %v343
    %2034 = vmatpush1.msra.mxu0 %v342
    %2035 = vmatprep.subr.mxu0 %v339
    %2036 = vmatpush1.msra.mxu0 %v338
    %2037 = vmatprep.subr.mxu0 %v335
    %2038 = vmatpush1.msra.mxu0 %v334
    %2039 = vmatprep.subr.mxu0 %v331
    %2040 = vmatpush1.msra.mxu0 %v330
    %2041 = vmatprep.subr.mxu0 0.0
    %2042 = vmatpush2.msra.mxu0 0.0
    %2043 = vmatprep.subr.mxu0 0.0
    %2044 = vmatpush2.msra.mxu0 0.0
    %2045 = vmatprep.subr.mxu0 0.0
    %2046 = vmatpush2.msra.mxu0 0.0
    %2047 = vmatprep.subr.mxu0 0.0
    %2048 = vmatpush2.msra.mxu0 0.0
    %2049 = vmatprep.subr.mxu0 0.0
    %2050 = vmatpush2.msra.mxu0 0.0
    %2051 = vmatprep.subr.mxu0 0.0
    %2052 = vmatpush2.msra.mxu0 0.0
    %2053 = vmatprep.subr.mxu0 0.0
    %2054 = vmatpush2.msra.mxu0 0.0
    %2055 = vmatprep.subr.mxu0 0.0
    %2056 = vmatpush2.msra.mxu0 0.0
    %2057 = vmatprep.subr.mxu0 0.0
    %2058 = vmatpush2.msra.mxu0 0.0
    %2059 = vmatprep.subr.mxu0 0.0
    %2060 = vmatpush2.msra.mxu0 0.0
    %2061 = vmatprep.subr.mxu0 0.0
    %2062 = vmatpush2.msra.mxu0 0.0
    %2063 = vmatprep.subr.mxu0 0.0
    %2064 = vmatpush2.msra.mxu0 0.0
    %2065 = vmatprep.subr.mxu0 0.0
    %2066 = vmatpush2.msra.mxu0 0.0
    %2067 = vmatprep.subr.mxu0 0.0
    %2068 = vmatpush2.msra.mxu0 0.0
    %2069 = vmatprep.subr.mxu0 0.0
    %2070 = vmatpush2.msra.mxu0 0.0
    %2071 = vmatprep.subr.mxu0 0.0
    %2072 = vmatpush2.msra.mxu0 0.0
    %2073 = vmatprep.mubr.f32.mxu0 0.0
    %2074 = vmatmul.mubr.f32.gmra.mxu0 %v1937
    %v2075 = vpop.f32.mrf.mxu0
    %v2076 = vadd.f32 0.0, %v2075
    %v2077 = vpop.f32.mrf.mxu0
    %v2078 = vadd.f32 0.0, %v2077
    %2079 = vdwg.mxu0
    %v2080 = vrot.slane %v247, 6
    %v2081 = vrot.slane %v249, 6
    %v2084 = vadd.f32 %v2005, %v2080
    %v2085 = vadd.f32 %v2007, %v2081
    %v2086 = vadd.f32 %v2076, %v318
    %v2087 = vadd.f32 %v2078, %v320
    %v2088 = vxor.u32 %v2084, 2147483648
    %v2089 = vxor.u32 %v2085, 2147483648
    %v2090 = vmul.f32 %v2088, 1.442695
    %v2091 = vpow.pop %v2090
    %v2092 = vmul.f32 %v2089, 1.442695
    %v2093 = vpow.pop %v2092
    %v2094 = vadd.f32 %v2091, 1.0
    %v2095 = vadd.f32 %v2093, 1.0
    %v2096 = vrcp.pop %v2094
    %v2097 = vmul.f32 1.0, %v2096
    %v2098 = vrcp.pop %v2095
    %v2099 = vmul.f32 1.0, %v2098
    %v2100 = vxor.u32 %v2086, 2147483648
    %v2101 = vxor.u32 %v2087, 2147483648
    %v2102 = vmul.f32 %v2100, 1.442695
    %v2103 = vpow.pop %v2102
    %v2104 = vmul.f32 %v2101, 1.442695
    %v2105 = vpow.pop %v2104
    %v2106 = vadd.f32 %v2103, 1.0
    %v2107 = vadd.f32 %v2105, 1.0
    %v2108 = vrcp.pop %v2106
    %v2109 = vmul.f32 1.0, %v2108
    %v2110 = vrcp.pop %v2107
    %v2111 = vmul.f32 1.0, %v2110
    %v2112 = vtanh.pop %v2085
    %v2113 = vtanh.pop %v2087
    %v2114 = vmul.f32 %v2097, %v1907
    %2116 = vrot.lane.b32.xlu0 %v2112, 64
    %v2117 = vpop.permute.xlu0 %2116
    %v2119 = vmul.f32 %v2097, %v2117
    %2121 = vrot.lane.b32.xlu0 %v2119, 64
    %v2122 = vpop.permute.xlu0 %2121
    %v2124 = vadd.f32 %v2114, %v2122
    %v2125 = vmul.f32 %v2109, %v1918
    %2127 = vrot.lane.b32.xlu0 %v2113, 64
    %v2128 = vpop.permute.xlu0 %2127
    %v2130 = vmul.f32 %v2109, %v2128
    %2132 = vrot.lane.b32.xlu0 %v2130, 64
    %v2133 = vpop.permute.xlu0 %2132
    %v2135 = vadd.f32 %v2125, %v2133
    %v2136 = vtanh.pop %v2124
    %2138 = vrot.lane.b32.xlu0 %v2136, 64
    %v2139 = vpop.permute.xlu0 %2138
    %v2141 = vmul.f32 %v2099, %v2139
    %v2142 = vtanh.pop %v2135
    %2144 = vrot.lane.b32.xlu0 %v2142, 64
    %v2145 = vpop.permute.xlu0 %2144
    %v2147 = vmul.f32 %v2111, %v2145
    %2148 = vst.msk [vmem:[#allocation2 + $0xe] sm:$0x3] %vm604, %v2141
    %2150 = vrot.lane.b32.xlu0 %v2147, 64
    %v2151 = vpop.permute.xlu0 %2150
    %2153 = vst.msk [vmem:[#allocation2] sm:$0x3] %vm610, %v2151
    %v2154 = vld [vmem:[#allocation2] sm:$0xff]
    %v2155 = vld [vmem:[#allocation2 + $0x8] sm:$0xff]
    %v2156 = vld [vmem:[#allocation6] sm:$0xff]
    %v2157 = vld [vmem:[#allocation6 + $0x8] sm:$0xff]
    %v2158 = vld [vmem:[#allocation6 + $0x10] sm:$0xff]
    %v2159 = vld [vmem:[#allocation6 + $0x18] sm:$0xff]
    %v2160 = vld [vmem:[#allocation6 + $0x20] sm:$0xff]
    %v2161 = vld [vmem:[#allocation6 + $0x28] sm:$0xff]
    %v2162 = vld [vmem:[#allocation6 + $0x30] sm:$0xff]
    %v2163 = vld [vmem:[#allocation6 + $0x38] sm:$0xff]
    %v2164 = vld [vmem:[#allocation6 + $0x40] sm:$0xff]
    %v2165 = vld [vmem:[#allocation6 + $0x48] sm:$0xff]
    %v2166 = vld [vmem:[#allocation6 + $0x50] sm:$0xff]
    %v2167 = vld [vmem:[#allocation6 + $0x58] sm:$0xff]
    %v2168 = vld [vmem:[#allocation6 + $0x60] sm:$0xff]
    %v2169 = vld [vmem:[#allocation6 + $0x68] sm:$0xff]
    %v2170 = vld [vmem:[#allocation6 + $0x70] sm:$0xff]
    %v2171 = vld [vmem:[#allocation6 + $0x78] sm:$0xff]
    %v2172 = vld [vmem:[#allocation6 + $0x80] sm:$0xff]
    %v2173 = vld [vmem:[#allocation6 + $0x88] sm:$0xff]
    %v2174 = vld [vmem:[#allocation6 + $0x90] sm:$0xff]
    %v2175 = vld [vmem:[#allocation6 + $0x98] sm:$0xff]
    %v2176 = vld [vmem:[#allocation6 + $0xa0] sm:$0xff]
    %v2177 = vld [vmem:[#allocation6 + $0xa8] sm:$0xff]
    %v2178 = vld [vmem:[#allocation6 + $0xb0] sm:$0xff]
    %v2179 = vld [vmem:[#allocation6 + $0xb8] sm:$0xff]
    %v2180 = vld [vmem:[#allocation6 + $0xc0] sm:$0xff]
    %v2181 = vld [vmem:[#allocation6 + $0xc8] sm:$0xff]
    %v2182 = vld [vmem:[#allocation6 + $0xd0] sm:$0xff]
    %v2183 = vld [vmem:[#allocation6 + $0xd8] sm:$0xff]
    %v2184 = vld [vmem:[#allocation6 + $0xe0] sm:$0xff]
    %v2185 = vld [vmem:[#allocation6 + $0xe8] sm:$0xff]
    %v2186 = vld [vmem:[#allocation6 + $0xf0] sm:$0xff]
    %v2187 = vld [vmem:[#allocation6 + $0xf8] sm:$0xff]
    %v2188 = vld [vmem:[#allocation6 + $0x100] sm:$0xff]
    %v2189 = vld [vmem:[#allocation6 + $0x108] sm:$0xff]
    %v2190 = vld [vmem:[#allocation6 + $0x110] sm:$0xff]
    %v2191 = vld [vmem:[#allocation6 + $0x118] sm:$0xff]
    %v2192 = vld [vmem:[#allocation6 + $0x120] sm:$0xff]
    %v2193 = vld [vmem:[#allocation6 + $0x128] sm:$0xff]
    %v2194 = vld [vmem:[#allocation6 + $0x130] sm:$0xff]
    %v2195 = vld [vmem:[#allocation6 + $0x138] sm:$0xff]
    %v2196 = vld [vmem:[#allocation6 + $0x140] sm:$0xff]
    %v2197 = vld [vmem:[#allocation6 + $0x148] sm:$0xff]
    %v2198 = vld [vmem:[#allocation6 + $0x150] sm:$0xff]
    %v2199 = vld [vmem:[#allocation6 + $0x158] sm:$0xff]
    %v2200 = vld [vmem:[#allocation6 + $0x160] sm:$0xff]
    %v2201 = vld [vmem:[#allocation6 + $0x168] sm:$0xff]
    %v2202 = vld [vmem:[#allocation6 + $0x170] sm:$0xff]
    %v2203 = vld [vmem:[#allocation6 + $0x178] sm:$0xff]
    %v2204 = vld [vmem:[#allocation6 + $0x180] sm:$0xff]
    %v2205 = vld [vmem:[#allocation6 + $0x188] sm:$0xff]
    %v2206 = vld [vmem:[#allocation6 + $0x190] sm:$0xff]
    %v2207 = vld [vmem:[#allocation6 + $0x198] sm:$0xff]
    %v2208 = vld [vmem:[#allocation6 + $0x1a0] sm:$0xff]
    %v2209 = vld [vmem:[#allocation6 + $0x1a8] sm:$0xff]
    %v2210 = vld [vmem:[#allocation6 + $0x1b0] sm:$0xff]
    %v2211 = vld [vmem:[#allocation6 + $0x1b8] sm:$0xff]
    %v2212 = vld [vmem:[#allocation6 + $0x1c0] sm:$0xff]
    %v2213 = vld [vmem:[#allocation6 + $0x1c8] sm:$0xff]
    %v2214 = vld [vmem:[#allocation6 + $0x1d0] sm:$0xff]
    %v2215 = vld [vmem:[#allocation6 + $0x1d8] sm:$0xff]
    %v2216 = vld [vmem:[#allocation6 + $0x1e0] sm:$0xff]
    %v2217 = vld [vmem:[#allocation6 + $0x1e8] sm:$0xff]
    %v2218 = vld [vmem:[#allocation6 + $0x1f0] sm:$0xff]
    %v2219 = vld [vmem:[#allocation6 + $0x1f8] sm:$0xff]
    %v2220 = vld [vmem:[%s6] sm:$0xf]
    %v2222 = vlaneseq
    %v2223 = vshrl.u32 %v2222, 7
    %v2224 = vsub.s32 0, %v2223
    %v2225 = vrot.slane %v2220, %v2224
    %v2226 = vlaneseq
    %v2227 = vshrl.u32 %v2226, 7
    %v2228 = vsub.s32 1, %v2227
    %v2229 = vrot.slane %v2220, %v2228
    %v2230 = vlaneseq
    %v2231 = vshrl.u32 %v2230, 7
    %v2232 = vsub.s32 2, %v2231
    %v2233 = vrot.slane %v2220, %v2232
    %v2234 = vlaneseq
    %v2235 = vshrl.u32 %v2234, 7
    %v2236 = vsub.s32 3, %v2235
    %v2237 = vrot.slane %v2220, %v2236
    %2242 = vmatprep.subr.mxu0 %v2217
    %2243 = vmatpush1.msra.mxu0 %v2216
    %2244 = vmatprep.subr.mxu0 %v2213
    %2245 = vmatpush1.msra.mxu0 %v2212
    %2246 = vmatprep.subr.mxu0 %v2209
    %2247 = vmatpush1.msra.mxu0 %v2208
    %2248 = vmatprep.subr.mxu0 %v2205
    %2249 = vmatpush1.msra.mxu0 %v2204
    %2250 = vmatprep.subr.mxu0 %v2201
    %2251 = vmatpush1.msra.mxu0 %v2200
    %2252 = vmatprep.subr.mxu0 %v2197
    %2253 = vmatpush1.msra.mxu0 %v2196
    %2254 = vmatprep.subr.mxu0 %v2193
    %2255 = vmatpush1.msra.mxu0 %v2192
    %2256 = vmatprep.subr.mxu0 %v2189
    %2257 = vmatpush1.msra.mxu0 %v2188
    %2258 = vmatprep.subr.mxu0 %v2185
    %2259 = vmatpush1.msra.mxu0 %v2184
    %2260 = vmatprep.subr.mxu0 %v2181
    %2261 = vmatpush1.msra.mxu0 %v2180
    %2262 = vmatprep.subr.mxu0 %v2177
    %2263 = vmatpush1.msra.mxu0 %v2176
    %2264 = vmatprep.subr.mxu0 %v2173
    %2265 = vmatpush1.msra.mxu0 %v2172
    %2266 = vmatprep.subr.mxu0 %v2169
    %2267 = vmatpush1.msra.mxu0 %v2168
    %2268 = vmatprep.subr.mxu0 %v2165
    %2269 = vmatpush1.msra.mxu0 %v2164
    %2270 = vmatprep.subr.mxu0 %v2161
    %2271 = vmatpush1.msra.mxu0 %v2160
    %2272 = vmatprep.subr.mxu0 %v2157
    %2273 = vmatpush1.msra.mxu0 %v2156
    %2274 = vmatprep.subr.mxu0 0.0
    %2275 = vmatpush2.msra.mxu0 0.0
    %2276 = vmatprep.subr.mxu0 0.0
    %2277 = vmatpush2.msra.mxu0 0.0
    %2278 = vmatprep.subr.mxu0 0.0
    %2279 = vmatpush2.msra.mxu0 0.0
    %2280 = vmatprep.subr.mxu0 0.0
    %2281 = vmatpush2.msra.mxu0 0.0
    %2282 = vmatprep.subr.mxu0 0.0
    %2283 = vmatpush2.msra.mxu0 0.0
    %2284 = vmatprep.subr.mxu0 0.0
    %2285 = vmatpush2.msra.mxu0 0.0
    %2286 = vmatprep.subr.mxu0 0.0
    %2287 = vmatpush2.msra.mxu0 0.0
    %2288 = vmatprep.subr.mxu0 0.0
    %2289 = vmatpush2.msra.mxu0 0.0
    %2290 = vmatprep.subr.mxu0 0.0
    %2291 = vmatpush2.msra.mxu0 0.0
    %2292 = vmatprep.subr.mxu0 0.0
    %2293 = vmatpush2.msra.mxu0 0.0
    %2294 = vmatprep.subr.mxu0 0.0
    %2295 = vmatpush2.msra.mxu0 0.0
    %2296 = vmatprep.subr.mxu0 0.0
    %2297 = vmatpush2.msra.mxu0 0.0
    %2298 = vmatprep.subr.mxu0 0.0
    %2299 = vmatpush2.msra.mxu0 0.0
    %2300 = vmatprep.subr.mxu0 0.0
    %2301 = vmatpush2.msra.mxu0 0.0
    %2302 = vmatprep.subr.mxu0 0.0
    %2303 = vmatpush2.msra.mxu0 0.0
    %2304 = vmatprep.subr.mxu0 0.0
    %2305 = vmatpush2.msra.mxu0 0.0
    %2306 = vmatprep.mubr.f32.mxu0 0.0
    %2307 = vmatmul.mubr.f32.gmra.mxu0 %v2154
    %v2308 = vpop.f32.mrf.mxu0
    %v2309 = vadd.f32 %v2225, %v2308
    %v2310 = vpop.f32.mrf.mxu0
    %v2311 = vadd.f32 %v2229, %v2310
    %2312 = vmatprep.mubr.f32.mxu0 0.0
    %2313 = vmatmul.mubr.f32.gmra.mxu0 %v2155
    %v2314 = vpop.f32.mrf.mxu0
    %v2315 = vadd.f32 %v2225, %v2314
    %v2316 = vpop.f32.mrf.mxu0
    %v2317 = vadd.f32 %v2229, %v2316
    %2318 = vdwg.mxu0
    %2319 = vmatprep.subr.mxu0 %v2219
    %2320 = vmatpush1.msra.mxu0 %v2218
    %2321 = vmatprep.subr.mxu0 %v2215
    %2322 = vmatpush1.msra.mxu0 %v2214
    %2323 = vmatprep.subr.mxu0 %v2211
    %2324 = vmatpush1.msra.mxu0 %v2210
    %2325 = vmatprep.subr.mxu0 %v2207
    %2326 = vmatpush1.msra.mxu0 %v2206
    %2327 = vmatprep.subr.mxu0 %v2203
    %2328 = vmatpush1.msra.mxu0 %v2202
    %2329 = vmatprep.subr.mxu0 %v2199
    %2330 = vmatpush1.msra.mxu0 %v2198
    %2331 = vmatprep.subr.mxu0 %v2195
    %2332 = vmatpush1.msra.mxu0 %v2194
    %2333 = vmatprep.subr.mxu0 %v2191
    %2334 = vmatpush1.msra.mxu0 %v2190
    %2335 = vmatprep.subr.mxu0 %v2187
    %2336 = vmatpush1.msra.mxu0 %v2186
    %2337 = vmatprep.subr.mxu0 %v2183
    %2338 = vmatpush1.msra.mxu0 %v2182
    %2339 = vmatprep.subr.mxu0 %v2179
    %2340 = vmatpush1.msra.mxu0 %v2178
    %2341 = vmatprep.subr.mxu0 %v2175
    %2342 = vmatpush1.msra.mxu0 %v2174
    %2343 = vmatprep.subr.mxu0 %v2171
    %2344 = vmatpush1.msra.mxu0 %v2170
    %2345 = vmatprep.subr.mxu0 %v2167
    %2346 = vmatpush1.msra.mxu0 %v2166
    %2347 = vmatprep.subr.mxu0 %v2163
    %2348 = vmatpush1.msra.mxu0 %v2162
    %2349 = vmatprep.subr.mxu0 %v2159
    %2350 = vmatpush1.msra.mxu0 %v2158
    %2351 = vmatprep.subr.mxu0 0.0
    %2352 = vmatpush2.msra.mxu0 0.0
    %2353 = vmatprep.subr.mxu0 0.0
    %2354 = vmatpush2.msra.mxu0 0.0
    %2355 = vmatprep.subr.mxu0 0.0
    %2356 = vmatpush2.msra.mxu0 0.0
    %2357 = vmatprep.subr.mxu0 0.0
    %2358 = vmatpush2.msra.mxu0 0.0
    %2359 = vmatprep.subr.mxu0 0.0
    %2360 = vmatpush2.msra.mxu0 0.0
    %2361 = vmatprep.subr.mxu0 0.0
    %2362 = vmatpush2.msra.mxu0 0.0
    %2363 = vmatprep.subr.mxu0 0.0
    %2364 = vmatpush2.msra.mxu0 0.0
    %2365 = vmatprep.subr.mxu0 0.0
    %2366 = vmatpush2.msra.mxu0 0.0
    %2367 = vmatprep.subr.mxu0 0.0
    %2368 = vmatpush2.msra.mxu0 0.0
    %2369 = vmatprep.subr.mxu0 0.0
    %2370 = vmatpush2.msra.mxu0 0.0
    %2371 = vmatprep.subr.mxu0 0.0
    %2372 = vmatpush2.msra.mxu0 0.0
    %2373 = vmatprep.subr.mxu0 0.0
    %2374 = vmatpush2.msra.mxu0 0.0
    %2375 = vmatprep.subr.mxu0 0.0
    %2376 = vmatpush2.msra.mxu0 0.0
    %2377 = vmatprep.subr.mxu0 0.0
    %2378 = vmatpush2.msra.mxu0 0.0
    %2379 = vmatprep.subr.mxu0 0.0
    %2380 = vmatpush2.msra.mxu0 0.0
    %2381 = vmatprep.subr.mxu0 0.0
    %2382 = vmatpush2.msra.mxu0 0.0
    %2383 = vmatprep.mubr.f32.mxu0 0.0
    %2384 = vmatmul.mubr.f32.gmra.mxu0 %v2154
    %v2385 = vpop.f32.mrf.mxu0
    %v2386 = vadd.f32 %v2233, %v2385
    %v2387 = vpop.f32.mrf.mxu0
    %v2388 = vadd.f32 %v2237, %v2387
    %2389 = vmatprep.mubr.f32.mxu0 0.0
    %2390 = vmatmul.mubr.f32.gmra.mxu0 %v2155
    %v2391 = vpop.f32.mrf.mxu0
    %v2392 = vadd.f32 %v2233, %v2391
    %v2393 = vpop.f32.mrf.mxu0
    %v2394 = vadd.f32 %v2237, %v2393
    %2395 = vdwg.mxu0
    %v2396 = vld [vmem:[#allocation8] sm:$0xff]
    %v2397 = vld [vmem:[#allocation8 + $0x8] sm:$0xff]
    %v2398 = vld [vmem:[#allocation8 + $0x10] sm:$0xff]
    %v2399 = vld [vmem:[#allocation8 + $0x18] sm:$0xff]
    %v2400 = vld [vmem:[#allocation8 + $0x20] sm:$0xff]
    %v2401 = vld [vmem:[#allocation8 + $0x28] sm:$0xff]
    %v2402 = vld [vmem:[#allocation8 + $0x30] sm:$0xff]
    %v2403 = vld [vmem:[#allocation8 + $0x38] sm:$0xff]
    %v2404 = vld [vmem:[#allocation8 + $0x40] sm:$0xff]
    %v2405 = vld [vmem:[#allocation8 + $0x48] sm:$0xff]
    %v2406 = vld [vmem:[#allocation8 + $0x50] sm:$0xff]
    %v2407 = vld [vmem:[#allocation8 + $0x58] sm:$0xff]
    %v2408 = vld [vmem:[#allocation8 + $0x60] sm:$0xff]
    %v2409 = vld [vmem:[#allocation8 + $0x68] sm:$0xff]
    %v2410 = vld [vmem:[#allocation8 + $0x70] sm:$0xff]
    %v2411 = vld [vmem:[#allocation8 + $0x78] sm:$0xff]
    %v2412 = vld [vmem:[#allocation8 + $0x80] sm:$0xff]
    %v2413 = vld [vmem:[#allocation8 + $0x88] sm:$0xff]
    %v2414 = vld [vmem:[#allocation8 + $0x90] sm:$0xff]
    %v2415 = vld [vmem:[#allocation8 + $0x98] sm:$0xff]
    %v2416 = vld [vmem:[#allocation8 + $0xa0] sm:$0xff]
    %v2417 = vld [vmem:[#allocation8 + $0xa8] sm:$0xff]
    %v2418 = vld [vmem:[#allocation8 + $0xb0] sm:$0xff]
    %v2419 = vld [vmem:[#allocation8 + $0xb8] sm:$0xff]
    %v2420 = vld [vmem:[#allocation8 + $0xc0] sm:$0xff]
    %v2421 = vld [vmem:[#allocation8 + $0xc8] sm:$0xff]
    %v2422 = vld [vmem:[#allocation8 + $0xd0] sm:$0xff]
    %v2423 = vld [vmem:[#allocation8 + $0xd8] sm:$0xff]
    %v2424 = vld [vmem:[#allocation8 + $0xe0] sm:$0xff]
    %v2425 = vld [vmem:[#allocation8 + $0xe8] sm:$0xff]
    %v2426 = vld [vmem:[#allocation8 + $0xf0] sm:$0xff]
    %v2427 = vld [vmem:[#allocation8 + $0xf8] sm:$0xff]
    %v2428 = vld [vmem:[#allocation8 + $0x100] sm:$0xff]
    %v2429 = vld [vmem:[#allocation8 + $0x108] sm:$0xff]
    %v2430 = vld [vmem:[#allocation8 + $0x110] sm:$0xff]
    %v2431 = vld [vmem:[#allocation8 + $0x118] sm:$0xff]
    %v2432 = vld [vmem:[#allocation8 + $0x120] sm:$0xff]
    %v2433 = vld [vmem:[#allocation8 + $0x128] sm:$0xff]
    %v2434 = vld [vmem:[#allocation8 + $0x130] sm:$0xff]
    %v2435 = vld [vmem:[#allocation8 + $0x138] sm:$0xff]
    %v2436 = vld [vmem:[#allocation8 + $0x140] sm:$0xff]
    %v2437 = vld [vmem:[#allocation8 + $0x148] sm:$0xff]
    %v2438 = vld [vmem:[#allocation8 + $0x150] sm:$0xff]
    %v2439 = vld [vmem:[#allocation8 + $0x158] sm:$0xff]
    %v2440 = vld [vmem:[#allocation8 + $0x160] sm:$0xff]
    %v2441 = vld [vmem:[#allocation8 + $0x168] sm:$0xff]
    %v2442 = vld [vmem:[#allocation8 + $0x170] sm:$0xff]
    %v2443 = vld [vmem:[#allocation8 + $0x178] sm:$0xff]
    %v2444 = vld [vmem:[#allocation8 + $0x180] sm:$0xff]
    %v2445 = vld [vmem:[#allocation8 + $0x188] sm:$0xff]
    %v2446 = vld [vmem:[#allocation8 + $0x190] sm:$0xff]
    %v2447 = vld [vmem:[#allocation8 + $0x198] sm:$0xff]
    %v2448 = vld [vmem:[#allocation8 + $0x1a0] sm:$0xff]
    %v2449 = vld [vmem:[#allocation8 + $0x1a8] sm:$0xff]
    %v2450 = vld [vmem:[#allocation8 + $0x1b0] sm:$0xff]
    %v2451 = vld [vmem:[#allocation8 + $0x1b8] sm:$0xff]
    %v2452 = vld [vmem:[#allocation8 + $0x1c0] sm:$0xff]
    %v2453 = vld [vmem:[#allocation8 + $0x1c8] sm:$0xff]
    %v2454 = vld [vmem:[#allocation8 + $0x1d0] sm:$0xff]
    %v2455 = vld [vmem:[#allocation8 + $0x1d8] sm:$0xff]
    %v2456 = vld [vmem:[#allocation8 + $0x1e0] sm:$0xff]
    %v2457 = vld [vmem:[#allocation8 + $0x1e8] sm:$0xff]
    %v2458 = vld [vmem:[#allocation8 + $0x1f0] sm:$0xff]
    %v2459 = vld [vmem:[#allocation8 + $0x1f8] sm:$0xff]
    %2460 = vmatprep.subr.mxu0 %v2457
    %2461 = vmatpush1.msra.mxu0 %v2456
    %2462 = vmatprep.subr.mxu0 %v2453
    %2463 = vmatpush1.msra.mxu0 %v2452
    %2464 = vmatprep.subr.mxu0 %v2449
    %2465 = vmatpush1.msra.mxu0 %v2448
    %2466 = vmatprep.subr.mxu0 %v2445
    %2467 = vmatpush1.msra.mxu0 %v2444
    %2468 = vmatprep.subr.mxu0 %v2441
    %2469 = vmatpush1.msra.mxu0 %v2440
    %2470 = vmatprep.subr.mxu0 %v2437
    %2471 = vmatpush1.msra.mxu0 %v2436
    %2472 = vmatprep.subr.mxu0 %v2433
    %2473 = vmatpush1.msra.mxu0 %v2432
    %2474 = vmatprep.subr.mxu0 %v2429
    %2475 = vmatpush1.msra.mxu0 %v2428
    %2476 = vmatprep.subr.mxu0 %v2425
    %2477 = vmatpush1.msra.mxu0 %v2424
    %2478 = vmatprep.subr.mxu0 %v2421
    %2479 = vmatpush1.msra.mxu0 %v2420
    %2480 = vmatprep.subr.mxu0 %v2417
    %2481 = vmatpush1.msra.mxu0 %v2416
    %2482 = vmatprep.subr.mxu0 %v2413
    %2483 = vmatpush1.msra.mxu0 %v2412
    %2484 = vmatprep.subr.mxu0 %v2409
    %2485 = vmatpush1.msra.mxu0 %v2408
    %2486 = vmatprep.subr.mxu0 %v2405
    %2487 = vmatpush1.msra.mxu0 %v2404
    %2488 = vmatprep.subr.mxu0 %v2401
    %2489 = vmatpush1.msra.mxu0 %v2400
    %2490 = vmatprep.subr.mxu0 %v2397
    %2491 = vmatpush1.msra.mxu0 %v2396
    %2492 = vmatprep.subr.mxu0 0.0
    %2493 = vmatpush2.msra.mxu0 0.0
    %2494 = vmatprep.subr.mxu0 0.0
    %2495 = vmatpush2.msra.mxu0 0.0
    %2496 = vmatprep.subr.mxu0 0.0
    %2497 = vmatpush2.msra.mxu0 0.0
    %2498 = vmatprep.subr.mxu0 0.0
    %2499 = vmatpush2.msra.mxu0 0.0
    %2500 = vmatprep.subr.mxu0 0.0
    %2501 = vmatpush2.msra.mxu0 0.0
    %2502 = vmatprep.subr.mxu0 0.0
    %2503 = vmatpush2.msra.mxu0 0.0
    %2504 = vmatprep.subr.mxu0 0.0
    %2505 = vmatpush2.msra.mxu0 0.0
    %2506 = vmatprep.subr.mxu0 0.0
    %2507 = vmatpush2.msra.mxu0 0.0
    %2508 = vmatprep.subr.mxu0 0.0
    %2509 = vmatpush2.msra.mxu0 0.0
    %2510 = vmatprep.subr.mxu0 0.0
    %2511 = vmatpush2.msra.mxu0 0.0
    %2512 = vmatprep.subr.mxu0 0.0
    %2513 = vmatpush2.msra.mxu0 0.0
    %2514 = vmatprep.subr.mxu0 0.0
    %2515 = vmatpush2.msra.mxu0 0.0
    %2516 = vmatprep.subr.mxu0 0.0
    %2517 = vmatpush2.msra.mxu0 0.0
    %2518 = vmatprep.subr.mxu0 0.0
    %2519 = vmatpush2.msra.mxu0 0.0
    %2520 = vmatprep.subr.mxu0 0.0
    %2521 = vmatpush2.msra.mxu0 0.0
    %2522 = vmatprep.subr.mxu0 0.0
    %2523 = vmatpush2.msra.mxu0 0.0
    %2524 = vmatprep.mubr.f32.mxu0 0.0
    %2525 = vmatmul.mubr.f32.gmra.mxu0 0.0
    %v2526 = vpop.f32.mrf.mxu0
    %v2527 = vadd.f32 0.0, %v2526
    %v2528 = vpop.f32.mrf.mxu0
    %v2529 = vadd.f32 0.0, %v2528
    %2530 = vdwg.mxu0
    %2531 = vmatprep.subr.mxu0 %v2459
    %2532 = vmatpush1.msra.mxu0 %v2458
    %2533 = vmatprep.subr.mxu0 %v2455
    %2534 = vmatpush1.msra.mxu0 %v2454
    %2535 = vmatprep.subr.mxu0 %v2451
    %2536 = vmatpush1.msra.mxu0 %v2450
    %2537 = vmatprep.subr.mxu0 %v2447
    %2538 = vmatpush1.msra.mxu0 %v2446
    %2539 = vmatprep.subr.mxu0 %v2443
    %2540 = vmatpush1.msra.mxu0 %v2442
    %2541 = vmatprep.subr.mxu0 %v2439
    %2542 = vmatpush1.msra.mxu0 %v2438
    %2543 = vmatprep.subr.mxu0 %v2435
    %2544 = vmatpush1.msra.mxu0 %v2434
    %2545 = vmatprep.subr.mxu0 %v2431
    %2546 = vmatpush1.msra.mxu0 %v2430
    %2547 = vmatprep.subr.mxu0 %v2427
    %2548 = vmatpush1.msra.mxu0 %v2426
    %2549 = vmatprep.subr.mxu0 %v2423
    %2550 = vmatpush1.msra.mxu0 %v2422
    %2551 = vmatprep.subr.mxu0 %v2419
    %2552 = vmatpush1.msra.mxu0 %v2418
    %2553 = vmatprep.subr.mxu0 %v2415
    %2554 = vmatpush1.msra.mxu0 %v2414
    %2555 = vmatprep.subr.mxu0 %v2411
    %2556 = vmatpush1.msra.mxu0 %v2410
    %2557 = vmatprep.subr.mxu0 %v2407
    %2558 = vmatpush1.msra.mxu0 %v2406
    %2559 = vmatprep.subr.mxu0 %v2403
    %2560 = vmatpush1.msra.mxu0 %v2402
    %2561 = vmatprep.subr.mxu0 %v2399
    %2562 = vmatpush1.msra.mxu0 %v2398
    %2563 = vmatprep.subr.mxu0 0.0
    %2564 = vmatpush2.msra.mxu0 0.0
    %2565 = vmatprep.subr.mxu0 0.0
    %2566 = vmatpush2.msra.mxu0 0.0
    %2567 = vmatprep.subr.mxu0 0.0
    %2568 = vmatpush2.msra.mxu0 0.0
    %2569 = vmatprep.subr.mxu0 0.0
    %2570 = vmatpush2.msra.mxu0 0.0
    %2571 = vmatprep.subr.mxu0 0.0
    %2572 = vmatpush2.msra.mxu0 0.0
    %2573 = vmatprep.subr.mxu0 0.0
    %2574 = vmatpush2.msra.mxu0 0.0
    %2575 = vmatprep.subr.mxu0 0.0
    %2576 = vmatpush2.msra.mxu0 0.0
    %2577 = vmatprep.subr.mxu0 0.0
    %2578 = vmatpush2.msra.mxu0 0.0
    %2579 = vmatprep.subr.mxu0 0.0
    %2580 = vmatpush2.msra.mxu0 0.0
    %2581 = vmatprep.subr.mxu0 0.0
    %2582 = vmatpush2.msra.mxu0 0.0
    %2583 = vmatprep.subr.mxu0 0.0
    %2584 = vmatpush2.msra.mxu0 0.0
    %2585 = vmatprep.subr.mxu0 0.0
    %2586 = vmatpush2.msra.mxu0 0.0
    %2587 = vmatprep.subr.mxu0 0.0
    %2588 = vmatpush2.msra.mxu0 0.0
    %2589 = vmatprep.subr.mxu0 0.0
    %2590 = vmatpush2.msra.mxu0 0.0
    %2591 = vmatprep.subr.mxu0 0.0
    %2592 = vmatpush2.msra.mxu0 0.0
    %2593 = vmatprep.subr.mxu0 0.0
    %2594 = vmatpush2.msra.mxu0 0.0
    %2595 = vmatprep.mubr.f32.mxu0 0.0
    %2596 = vmatmul.mubr.f32.gmra.mxu0 0.0
    %v2597 = vpop.f32.mrf.mxu0
    %v2598 = vadd.f32 0.0, %v2597
    %v2599 = vpop.f32.mrf.mxu0
    %v2600 = vadd.f32 0.0, %v2599
    %2601 = vdwg.mxu0
    %v2602 = vadd.f32 %v2527, %v2309
    %v2603 = vadd.f32 %v2529, %v2311
    %v2606 = vrot.slane %v2392, 6
    %v2607 = vrot.slane %v2394, 6
    %v2610 = vadd.f32 %v2598, %v2606
    %v2611 = vadd.f32 %v2600, %v2607
    %v2612 = vxor.u32 %v2602, 2147483648
    %v2613 = vxor.u32 %v2603, 2147483648
    %v2614 = vmul.f32 %v2612, 1.442695
    %v2615 = vpow.pop %v2614
    %v2616 = vmul.f32 %v2613, 1.442695
    %v2617 = vpow.pop %v2616
    %v2618 = vadd.f32 %v2615, 1.0
    %v2619 = vadd.f32 %v2617, 1.0
    %v2620 = vrcp.pop %v2618
    %v2621 = vmul.f32 1.0, %v2620
    %v2622 = vrcp.pop %v2619
    %v2623 = vmul.f32 1.0, %v2622
    %v2624 = vxor.u32 %v2610, 2147483648
    %v2625 = vxor.u32 %v2611, 2147483648
    %v2626 = vmul.f32 %v2624, 1.442695
    %v2627 = vpow.pop %v2626
    %v2628 = vmul.f32 %v2625, 1.442695
    %v2629 = vpow.pop %v2628
    %v2630 = vadd.f32 %v2627, 1.0
    %v2631 = vadd.f32 %v2629, 1.0
    %v2632 = vrcp.pop %v2630
    %v2633 = vmul.f32 1.0, %v2632
    %v2634 = vrcp.pop %v2631
    %v2635 = vmul.f32 1.0, %v2634
    %v2636 = vtanh.pop %v2603
    %v2637 = vtanh.pop %v2611
    %v2638 = vmul.f32 %v2621, 0.0
    %2640 = vrot.lane.b32.xlu0 %v2636, 64
    %v2641 = vpop.permute.xlu0 %2640
    %v2643 = vmul.f32 %v2621, %v2641
    %2645 = vrot.lane.b32.xlu0 %v2643, 64
    %v2646 = vpop.permute.xlu0 %2645
    %v2648 = vadd.f32 %v2638, %v2646
    %v2649 = vmul.f32 %v2633, 0.0
    %2651 = vrot.lane.b32.xlu0 %v2637, 64
    %v2652 = vpop.permute.xlu0 %2651
    %v2654 = vmul.f32 %v2633, %v2652
    %2656 = vrot.lane.b32.xlu0 %v2654, 64
    %v2657 = vpop.permute.xlu0 %2656
    %v2659 = vadd.f32 %v2649, %v2657
    %v2660 = vtanh.pop %v2648
    %2662 = vrot.lane.b32.xlu0 %v2660, 64
    %v2663 = vpop.permute.xlu0 %2662
    %v2665 = vmul.f32 %v2623, %v2663
    %v2666 = vtanh.pop %v2659
    %2668 = vrot.lane.b32.xlu0 %v2666, 64
    %v2669 = vpop.permute.xlu0 %2668
    %v2671 = vmul.f32 %v2635, %v2669
    %2672 = vst.msk [vmem:[#allocation2] sm:$0x3] %vm604, %v2665
    %2674 = vrot.lane.b32.xlu0 %v2671, 64
    %v2675 = vpop.permute.xlu0 %2674
    %2677 = vst.msk [vmem:[#allocation2 + $0xe] sm:$0x3] %vm610, %v2675
    %v2678 = vsel %vm612, %v2665, %v2675
    %2679 = vmatprep.subr.mxu0 %v2457
    %2680 = vmatpush1.msra.mxu0 %v2456
    %2681 = vmatprep.subr.mxu0 %v2453
    %2682 = vmatpush1.msra.mxu0 %v2452
    %2683 = vmatprep.subr.mxu0 %v2449
    %2684 = vmatpush1.msra.mxu0 %v2448
    %2685 = vmatprep.subr.mxu0 %v2445
    %2686 = vmatpush1.msra.mxu0 %v2444
    %2687 = vmatprep.subr.mxu0 %v2441
    %2688 = vmatpush1.msra.mxu0 %v2440
    %2689 = vmatprep.subr.mxu0 %v2437
    %2690 = vmatpush1.msra.mxu0 %v2436
    %2691 = vmatprep.subr.mxu0 %v2433
    %2692 = vmatpush1.msra.mxu0 %v2432
    %2693 = vmatprep.subr.mxu0 %v2429
    %2694 = vmatpush1.msra.mxu0 %v2428
    %2695 = vmatprep.subr.mxu0 %v2425
    %2696 = vmatpush1.msra.mxu0 %v2424
    %2697 = vmatprep.subr.mxu0 %v2421
    %2698 = vmatpush1.msra.mxu0 %v2420
    %2699 = vmatprep.subr.mxu0 %v2417
    %2700 = vmatpush1.msra.mxu0 %v2416
    %2701 = vmatprep.subr.mxu0 %v2413
    %2702 = vmatpush1.msra.mxu0 %v2412
    %2703 = vmatprep.subr.mxu0 %v2409
    %2704 = vmatpush1.msra.mxu0 %v2408
    %2705 = vmatprep.subr.mxu0 %v2405
    %2706 = vmatpush1.msra.mxu0 %v2404
    %2707 = vmatprep.subr.mxu0 %v2401
    %2708 = vmatpush1.msra.mxu0 %v2400
    %2709 = vmatprep.subr.mxu0 %v2397
    %2710 = vmatpush1.msra.mxu0 %v2396
    %2711 = vmatprep.subr.mxu0 0.0
    %2712 = vmatpush2.msra.mxu0 0.0
    %2713 = vmatprep.subr.mxu0 0.0
    %2714 = vmatpush2.msra.mxu0 0.0
    %2715 = vmatprep.subr.mxu0 0.0
    %2716 = vmatpush2.msra.mxu0 0.0
    %2717 = vmatprep.subr.mxu0 0.0
    %2718 = vmatpush2.msra.mxu0 0.0
    %2719 = vmatprep.subr.mxu0 0.0
    %2720 = vmatpush2.msra.mxu0 0.0
    %2721 = vmatprep.subr.mxu0 0.0
    %2722 = vmatpush2.msra.mxu0 0.0
    %2723 = vmatprep.subr.mxu0 0.0
    %2724 = vmatpush2.msra.mxu0 0.0
    %2725 = vmatprep.subr.mxu0 0.0
    %2726 = vmatpush2.msra.mxu0 0.0
    %2727 = vmatprep.subr.mxu0 0.0
    %2728 = vmatpush2.msra.mxu0 0.0
    %2729 = vmatprep.subr.mxu0 0.0
    %2730 = vmatpush2.msra.mxu0 0.0
    %2731 = vmatprep.subr.mxu0 0.0
    %2732 = vmatpush2.msra.mxu0 0.0
    %2733 = vmatprep.subr.mxu0 0.0
    %2734 = vmatpush2.msra.mxu0 0.0
    %2735 = vmatprep.subr.mxu0 0.0
    %2736 = vmatpush2.msra.mxu0 0.0
    %2737 = vmatprep.subr.mxu0 0.0
    %2738 = vmatpush2.msra.mxu0 0.0
    %2739 = vmatprep.subr.mxu0 0.0
    %2740 = vmatpush2.msra.mxu0 0.0
    %2741 = vmatprep.subr.mxu0 0.0
    %2742 = vmatpush2.msra.mxu0 0.0
    %2743 = vmatprep.mubr.f32.mxu0 0.0
    %2744 = vmatmul.mubr.f32.gmra.mxu0 %v2678
    %v2745 = vpop.f32.mrf.mxu0
    %v2746 = vadd.f32 0.0, %v2745
    %v2747 = vpop.f32.mrf.mxu0
    %v2748 = vadd.f32 0.0, %v2747
    %2749 = vdwg.mxu0
    %2750 = vmatprep.subr.mxu0 %v2459
    %2751 = vmatpush1.msra.mxu0 %v2458
    %2752 = vmatprep.subr.mxu0 %v2455
    %2753 = vmatpush1.msra.mxu0 %v2454
    %2754 = vmatprep.subr.mxu0 %v2451
    %2755 = vmatpush1.msra.mxu0 %v2450
    %2756 = vmatprep.subr.mxu0 %v2447
    %2757 = vmatpush1.msra.mxu0 %v2446
    %2758 = vmatprep.subr.mxu0 %v2443
    %2759 = vmatpush1.msra.mxu0 %v2442
    %2760 = vmatprep.subr.mxu0 %v2439
    %2761 = vmatpush1.msra.mxu0 %v2438
    %2762 = vmatprep.subr.mxu0 %v2435
    %2763 = vmatpush1.msra.mxu0 %v2434
    %2764 = vmatprep.subr.mxu0 %v2431
    %2765 = vmatpush1.msra.mxu0 %v2430
    %2766 = vmatprep.subr.mxu0 %v2427
    %2767 = vmatpush1.msra.mxu0 %v2426
    %2768 = vmatprep.subr.mxu0 %v2423
    %2769 = vmatpush1.msra.mxu0 %v2422
    %2770 = vmatprep.subr.mxu0 %v2419
    %2771 = vmatpush1.msra.mxu0 %v2418
    %2772 = vmatprep.subr.mxu0 %v2415
    %2773 = vmatpush1.msra.mxu0 %v2414
    %2774 = vmatprep.subr.mxu0 %v2411
    %2775 = vmatpush1.msra.mxu0 %v2410
    %2776 = vmatprep.subr.mxu0 %v2407
    %2777 = vmatpush1.msra.mxu0 %v2406
    %2778 = vmatprep.subr.mxu0 %v2403
    %2779 = vmatpush1.msra.mxu0 %v2402
    %2780 = vmatprep.subr.mxu0 %v2399
    %2781 = vmatpush1.msra.mxu0 %v2398
    %2782 = vmatprep.subr.mxu0 0.0
    %2783 = vmatpush2.msra.mxu0 0.0
    %2784 = vmatprep.subr.mxu0 0.0
    %2785 = vmatpush2.msra.mxu0 0.0
    %2786 = vmatprep.subr.mxu0 0.0
    %2787 = vmatpush2.msra.mxu0 0.0
    %2788 = vmatprep.subr.mxu0 0.0
    %2789 = vmatpush2.msra.mxu0 0.0
    %2790 = vmatprep.subr.mxu0 0.0
    %2791 = vmatpush2.msra.mxu0 0.0
    %2792 = vmatprep.subr.mxu0 0.0
    %2793 = vmatpush2.msra.mxu0 0.0
    %2794 = vmatprep.subr.mxu0 0.0
    %2795 = vmatpush2.msra.mxu0 0.0
    %2796 = vmatprep.subr.mxu0 0.0
    %2797 = vmatpush2.msra.mxu0 0.0
    %2798 = vmatprep.subr.mxu0 0.0
    %2799 = vmatpush2.msra.mxu0 0.0
    %2800 = vmatprep.subr.mxu0 0.0
    %2801 = vmatpush2.msra.mxu0 0.0
    %2802 = vmatprep.subr.mxu0 0.0
    %2803 = vmatpush2.msra.mxu0 0.0
    %2804 = vmatprep.subr.mxu0 0.0
    %2805 = vmatpush2.msra.mxu0 0.0
    %2806 = vmatprep.subr.mxu0 0.0
    %2807 = vmatpush2.msra.mxu0 0.0
    %2808 = vmatprep.subr.mxu0 0.0
    %2809 = vmatpush2.msra.mxu0 0.0
    %2810 = vmatprep.subr.mxu0 0.0
    %2811 = vmatpush2.msra.mxu0 0.0
    %2812 = vmatprep.subr.mxu0 0.0
    %2813 = vmatpush2.msra.mxu0 0.0
    %2814 = vmatprep.mubr.f32.mxu0 0.0
    %2815 = vmatmul.mubr.f32.gmra.mxu0 %v2678
    %v2816 = vpop.f32.mrf.mxu0
    %v2817 = vadd.f32 0.0, %v2816
    %v2818 = vpop.f32.mrf.mxu0
    %v2819 = vadd.f32 0.0, %v2818
    %2820 = vdwg.mxu0
    %v2823 = vrot.slane %v2309, 2
    %v2824 = vrot.slane %v2311, 2
    %v2827 = vadd.f32 %v2746, %v2823
    %v2828 = vadd.f32 %v2748, %v2824
    %v2829 = vrot.slane %v2392, 4
    %v2830 = vrot.slane %v2394, 4
    %v2833 = vadd.f32 %v2817, %v2829
    %v2834 = vadd.f32 %v2819, %v2830
    %v2835 = vxor.u32 %v2827, 2147483648
    %v2836 = vxor.u32 %v2828, 2147483648
    %v2837 = vmul.f32 %v2835, 1.442695
    %v2838 = vpow.pop %v2837
    %v2839 = vmul.f32 %v2836, 1.442695
    %v2840 = vpow.pop %v2839
    %v2841 = vadd.f32 %v2838, 1.0
    %v2842 = vadd.f32 %v2840, 1.0
    %v2843 = vrcp.pop %v2841
    %v2844 = vmul.f32 1.0, %v2843
    %v2845 = vrcp.pop %v2842
    %v2846 = vmul.f32 1.0, %v2845
    %v2847 = vxor.u32 %v2833, 2147483648
    %v2848 = vxor.u32 %v2834, 2147483648
    %v2849 = vmul.f32 %v2847, 1.442695
    %v2850 = vpow.pop %v2849
    %v2851 = vmul.f32 %v2848, 1.442695
    %v2852 = vpow.pop %v2851
    %v2853 = vadd.f32 %v2850, 1.0
    %v2854 = vadd.f32 %v2852, 1.0
    %v2855 = vrcp.pop %v2853
    %v2856 = vmul.f32 1.0, %v2855
    %v2857 = vrcp.pop %v2854
    %v2858 = vmul.f32 1.0, %v2857
    %v2859 = vtanh.pop %v2828
    %v2860 = vtanh.pop %v2834
    %v2861 = vmul.f32 %v2844, %v2648
    %2863 = vrot.lane.b32.xlu0 %v2859, 64
    %v2864 = vpop.permute.xlu0 %2863
    %v2866 = vmul.f32 %v2844, %v2864
    %2868 = vrot.lane.b32.xlu0 %v2866, 64
    %v2869 = vpop.permute.xlu0 %2868
    %v2871 = vadd.f32 %v2861, %v2869
    %v2872 = vmul.f32 %v2856, %v2659
    %2874 = vrot.lane.b32.xlu0 %v2860, 64
    %v2875 = vpop.permute.xlu0 %2874
    %v2877 = vmul.f32 %v2856, %v2875
    %2879 = vrot.lane.b32.xlu0 %v2877, 64
    %v2880 = vpop.permute.xlu0 %2879
    %v2882 = vadd.f32 %v2872, %v2880
    %v2883 = vtanh.pop %v2871
    %2885 = vrot.lane.b32.xlu0 %v2883, 64
    %v2886 = vpop.permute.xlu0 %2885
    %v2888 = vmul.f32 %v2846, %v2886
    %v2889 = vtanh.pop %v2882
    %2891 = vrot.lane.b32.xlu0 %v2889, 64
    %v2892 = vpop.permute.xlu0 %2891
    %v2894 = vmul.f32 %v2858, %v2892
    %2895 = vst.msk [vmem:[#allocation2 + $0x2] sm:$0x3] %vm604, %v2888
    %2897 = vrot.lane.b32.xlu0 %v2894, 64
    %v2898 = vpop.permute.xlu0 %2897
    %2900 = vst.msk [vmem:[#allocation2 + $0xc] sm:$0x3] %vm610, %v2898
    %v2901 = vsel %vm612, %v2888, %v2898
    %2902 = vmatprep.subr.mxu0 %v2457
    %2903 = vmatpush1.msra.mxu0 %v2456
    %2904 = vmatprep.subr.mxu0 %v2453
    %2905 = vmatpush1.msra.mxu0 %v2452
    %2906 = vmatprep.subr.mxu0 %v2449
    %2907 = vmatpush1.msra.mxu0 %v2448
    %2908 = vmatprep.subr.mxu0 %v2445
    %2909 = vmatpush1.msra.mxu0 %v2444
    %2910 = vmatprep.subr.mxu0 %v2441
    %2911 = vmatpush1.msra.mxu0 %v2440
    %2912 = vmatprep.subr.mxu0 %v2437
    %2913 = vmatpush1.msra.mxu0 %v2436
    %2914 = vmatprep.subr.mxu0 %v2433
    %2915 = vmatpush1.msra.mxu0 %v2432
    %2916 = vmatprep.subr.mxu0 %v2429
    %2917 = vmatpush1.msra.mxu0 %v2428
    %2918 = vmatprep.subr.mxu0 %v2425
    %2919 = vmatpush1.msra.mxu0 %v2424
    %2920 = vmatprep.subr.mxu0 %v2421
    %2921 = vmatpush1.msra.mxu0 %v2420
    %2922 = vmatprep.subr.mxu0 %v2417
    %2923 = vmatpush1.msra.mxu0 %v2416
    %2924 = vmatprep.subr.mxu0 %v2413
    %2925 = vmatpush1.msra.mxu0 %v2412
    %2926 = vmatprep.subr.mxu0 %v2409
    %2927 = vmatpush1.msra.mxu0 %v2408
    %2928 = vmatprep.subr.mxu0 %v2405
    %2929 = vmatpush1.msra.mxu0 %v2404
    %2930 = vmatprep.subr.mxu0 %v2401
    %2931 = vmatpush1.msra.mxu0 %v2400
    %2932 = vmatprep.subr.mxu0 %v2397
    %2933 = vmatpush1.msra.mxu0 %v2396
    %2934 = vmatprep.subr.mxu0 0.0
    %2935 = vmatpush2.msra.mxu0 0.0
    %2936 = vmatprep.subr.mxu0 0.0
    %2937 = vmatpush2.msra.mxu0 0.0
    %2938 = vmatprep.subr.mxu0 0.0
    %2939 = vmatpush2.msra.mxu0 0.0
    %2940 = vmatprep.subr.mxu0 0.0
    %2941 = vmatpush2.msra.mxu0 0.0
    %2942 = vmatprep.subr.mxu0 0.0
    %2943 = vmatpush2.msra.mxu0 0.0
    %2944 = vmatprep.subr.mxu0 0.0
    %2945 = vmatpush2.msra.mxu0 0.0
    %2946 = vmatprep.subr.mxu0 0.0
    %2947 = vmatpush2.msra.mxu0 0.0
    %2948 = vmatprep.subr.mxu0 0.0
    %2949 = vmatpush2.msra.mxu0 0.0
    %2950 = vmatprep.subr.mxu0 0.0
    %2951 = vmatpush2.msra.mxu0 0.0
    %2952 = vmatprep.subr.mxu0 0.0
    %2953 = vmatpush2.msra.mxu0 0.0
    %2954 = vmatprep.subr.mxu0 0.0
    %2955 = vmatpush2.msra.mxu0 0.0
    %2956 = vmatprep.subr.mxu0 0.0
    %2957 = vmatpush2.msra.mxu0 0.0
    %2958 = vmatprep.subr.mxu0 0.0
    %2959 = vmatpush2.msra.mxu0 0.0
    %2960 = vmatprep.subr.mxu0 0.0
    %2961 = vmatpush2.msra.mxu0 0.0
    %2962 = vmatprep.subr.mxu0 0.0
    %2963 = vmatpush2.msra.mxu0 0.0
    %2964 = vmatprep.subr.mxu0 0.0
    %2965 = vmatpush2.msra.mxu0 0.0
    %2966 = vmatprep.mubr.f32.mxu0 0.0
    %2967 = vmatmul.mubr.f32.gmra.mxu0 %v2901
    %v2968 = vpop.f32.mrf.mxu0
    %v2969 = vadd.f32 0.0, %v2968
    %v2970 = vpop.f32.mrf.mxu0
    %v2971 = vadd.f32 0.0, %v2970
    %2972 = vdwg.mxu0
    %2973 = vmatprep.subr.mxu0 %v2459
    %2974 = vmatpush1.msra.mxu0 %v2458
    %2975 = vmatprep.subr.mxu0 %v2455
    %2976 = vmatpush1.msra.mxu0 %v2454
    %2977 = vmatprep.subr.mxu0 %v2451
    %2978 = vmatpush1.msra.mxu0 %v2450
    %2979 = vmatprep.subr.mxu0 %v2447
    %2980 = vmatpush1.msra.mxu0 %v2446
    %2981 = vmatprep.subr.mxu0 %v2443
    %2982 = vmatpush1.msra.mxu0 %v2442
    %2983 = vmatprep.subr.mxu0 %v2439
    %2984 = vmatpush1.msra.mxu0 %v2438
    %2985 = vmatprep.subr.mxu0 %v2435
    %2986 = vmatpush1.msra.mxu0 %v2434
    %2987 = vmatprep.subr.mxu0 %v2431
    %2988 = vmatpush1.msra.mxu0 %v2430
    %2989 = vmatprep.subr.mxu0 %v2427
    %2990 = vmatpush1.msra.mxu0 %v2426
    %2991 = vmatprep.subr.mxu0 %v2423
    %2992 = vmatpush1.msra.mxu0 %v2422
    %2993 = vmatprep.subr.mxu0 %v2419
    %2994 = vmatpush1.msra.mxu0 %v2418
    %2995 = vmatprep.subr.mxu0 %v2415
    %2996 = vmatpush1.msra.mxu0 %v2414
    %2997 = vmatprep.subr.mxu0 %v2411
    %2998 = vmatpush1.msra.mxu0 %v2410
    %2999 = vmatprep.subr.mxu0 %v2407
    %3000 = vmatpush1.msra.mxu0 %v2406
    %3001 = vmatprep.subr.mxu0 %v2403
    %3002 = vmatpush1.msra.mxu0 %v2402
    %3003 = vmatprep.subr.mxu0 %v2399
    %3004 = vmatpush1.msra.mxu0 %v2398
    %3005 = vmatprep.subr.mxu0 0.0
    %3006 = vmatpush2.msra.mxu0 0.0
    %3007 = vmatprep.subr.mxu0 0.0
    %3008 = vmatpush2.msra.mxu0 0.0
    %3009 = vmatprep.subr.mxu0 0.0
    %3010 = vmatpush2.msra.mxu0 0.0
    %3011 = vmatprep.subr.mxu0 0.0
    %3012 = vmatpush2.msra.mxu0 0.0
    %3013 = vmatprep.subr.mxu0 0.0
    %3014 = vmatpush2.msra.mxu0 0.0
    %3015 = vmatprep.subr.mxu0 0.0
    %3016 = vmatpush2.msra.mxu0 0.0
    %3017 = vmatprep.subr.mxu0 0.0
    %3018 = vmatpush2.msra.mxu0 0.0
    %3019 = vmatprep.subr.mxu0 0.0
    %3020 = vmatpush2.msra.mxu0 0.0
    %3021 = vmatprep.subr.mxu0 0.0
    %3022 = vmatpush2.msra.mxu0 0.0
    %3023 = vmatprep.subr.mxu0 0.0
    %3024 = vmatpush2.msra.mxu0 0.0
    %3025 = vmatprep.subr.mxu0 0.0
    %3026 = vmatpush2.msra.mxu0 0.0
    %3027 = vmatprep.subr.mxu0 0.0
    %3028 = vmatpush2.msra.mxu0 0.0
    %3029 = vmatprep.subr.mxu0 0.0
    %3030 = vmatpush2.msra.mxu0 0.0
    %3031 = vmatprep.subr.mxu0 0.0
    %3032 = vmatpush2.msra.mxu0 0.0
    %3033 = vmatprep.subr.mxu0 0.0
    %3034 = vmatpush2.msra.mxu0 0.0
    %3035 = vmatprep.subr.mxu0 0.0
    %3036 = vmatpush2.msra.mxu0 0.0
    %3037 = vmatprep.mubr.f32.mxu0 0.0
    %3038 = vmatmul.mubr.f32.gmra.mxu0 %v2901
    %v3039 = vpop.f32.mrf.mxu0
    %v3040 = vadd.f32 0.0, %v3039
    %v3041 = vpop.f32.mrf.mxu0
    %v3042 = vadd.f32 0.0, %v3041
    %3043 = vdwg.mxu0
    %v3044 = vrot.slane %v2309, 4
    %v3045 = vrot.slane %v2311, 4
    %v3048 = vadd.f32 %v2969, %v3044
    %v3049 = vadd.f32 %v2971, %v3045
    %v3050 = vrot.slane %v2392, 2
    %v3051 = vrot.slane %v2394, 2
    %v3054 = vadd.f32 %v3040, %v3050
    %v3055 = vadd.f32 %v3042, %v3051
    %v3056 = vxor.u32 %v3048, 2147483648
    %v3057 = vxor.u32 %v3049, 2147483648
    %v3058 = vmul.f32 %v3056, 1.442695
    %v3059 = vpow.pop %v3058
    %v3060 = vmul.f32 %v3057, 1.442695
    %v3061 = vpow.pop %v3060
    %v3062 = vadd.f32 %v3059, 1.0
    %v3063 = vadd.f32 %v3061, 1.0
    %v3064 = vrcp.pop %v3062
    %v3065 = vmul.f32 1.0, %v3064
    %v3066 = vrcp.pop %v3063
    %v3067 = vmul.f32 1.0, %v3066
    %v3068 = vxor.u32 %v3054, 2147483648
    %v3069 = vxor.u32 %v3055, 2147483648
    %v3070 = vmul.f32 %v3068, 1.442695
    %v3071 = vpow.pop %v3070
    %v3072 = vmul.f32 %v3069, 1.442695
    %v3073 = vpow.pop %v3072
    %v3074 = vadd.f32 %v3071, 1.0
    %v3075 = vadd.f32 %v3073, 1.0
    %v3076 = vrcp.pop %v3074
    %v3077 = vmul.f32 1.0, %v3076
    %v3078 = vrcp.pop %v3075
    %v3079 = vmul.f32 1.0, %v3078
    %v3080 = vtanh.pop %v3049
    %v3081 = vtanh.pop %v3055
    %v3082 = vmul.f32 %v3065, %v2871
    %3084 = vrot.lane.b32.xlu0 %v3080, 64
    %v3085 = vpop.permute.xlu0 %3084
    %v3087 = vmul.f32 %v3065, %v3085
    %3089 = vrot.lane.b32.xlu0 %v3087, 64
    %v3090 = vpop.permute.xlu0 %3089
    %v3092 = vadd.f32 %v3082, %v3090
    %v3093 = vmul.f32 %v3077, %v2882
    %3095 = vrot.lane.b32.xlu0 %v3081, 64
    %v3096 = vpop.permute.xlu0 %3095
    %v3098 = vmul.f32 %v3077, %v3096
    %3100 = vrot.lane.b32.xlu0 %v3098, 64
    %v3101 = vpop.permute.xlu0 %3100
    %v3103 = vadd.f32 %v3093, %v3101
    %v3104 = vtanh.pop %v3092
    %3106 = vrot.lane.b32.xlu0 %v3104, 64
    %v3107 = vpop.permute.xlu0 %3106
    %v3109 = vmul.f32 %v3067, %v3107
    %v3110 = vtanh.pop %v3103
    %3112 = vrot.lane.b32.xlu0 %v3110, 64
    %v3113 = vpop.permute.xlu0 %3112
    %v3115 = vmul.f32 %v3079, %v3113
    %3116 = vst.msk [vmem:[#allocation2 + $0x4] sm:$0x3] %vm604, %v3109
    %3118 = vrot.lane.b32.xlu0 %v3115, 64
    %v3119 = vpop.permute.xlu0 %3118
    %3121 = vst.msk [vmem:[#allocation2 + $0xa] sm:$0x3] %vm610, %v3119
    %v3122 = vsel %vm612, %v3109, %v3119
    %3123 = vmatprep.subr.mxu0 %v2457
    %3124 = vmatpush1.msra.mxu0 %v2456
    %3125 = vmatprep.subr.mxu0 %v2453
    %3126 = vmatpush1.msra.mxu0 %v2452
    %3127 = vmatprep.subr.mxu0 %v2449
    %3128 = vmatpush1.msra.mxu0 %v2448
    %3129 = vmatprep.subr.mxu0 %v2445
    %3130 = vmatpush1.msra.mxu0 %v2444
    %3131 = vmatprep.subr.mxu0 %v2441
    %3132 = vmatpush1.msra.mxu0 %v2440
    %3133 = vmatprep.subr.mxu0 %v2437
    %3134 = vmatpush1.msra.mxu0 %v2436
    %3135 = vmatprep.subr.mxu0 %v2433
    %3136 = vmatpush1.msra.mxu0 %v2432
    %3137 = vmatprep.subr.mxu0 %v2429
    %3138 = vmatpush1.msra.mxu0 %v2428
    %3139 = vmatprep.subr.mxu0 %v2425
    %3140 = vmatpush1.msra.mxu0 %v2424
    %3141 = vmatprep.subr.mxu0 %v2421
    %3142 = vmatpush1.msra.mxu0 %v2420
    %3143 = vmatprep.subr.mxu0 %v2417
    %3144 = vmatpush1.msra.mxu0 %v2416
    %3145 = vmatprep.subr.mxu0 %v2413
    %3146 = vmatpush1.msra.mxu0 %v2412
    %3147 = vmatprep.subr.mxu0 %v2409
    %3148 = vmatpush1.msra.mxu0 %v2408
    %3149 = vmatprep.subr.mxu0 %v2405
    %3150 = vmatpush1.msra.mxu0 %v2404
    %3151 = vmatprep.subr.mxu0 %v2401
    %3152 = vmatpush1.msra.mxu0 %v2400
    %3153 = vmatprep.subr.mxu0 %v2397
    %3154 = vmatpush1.msra.mxu0 %v2396
    %3155 = vmatprep.subr.mxu0 0.0
    %3156 = vmatpush2.msra.mxu0 0.0
    %3157 = vmatprep.subr.mxu0 0.0
    %3158 = vmatpush2.msra.mxu0 0.0
    %3159 = vmatprep.subr.mxu0 0.0
    %3160 = vmatpush2.msra.mxu0 0.0
    %3161 = vmatprep.subr.mxu0 0.0
    %3162 = vmatpush2.msra.mxu0 0.0
    %3163 = vmatprep.subr.mxu0 0.0
    %3164 = vmatpush2.msra.mxu0 0.0
    %3165 = vmatprep.subr.mxu0 0.0
    %3166 = vmatpush2.msra.mxu0 0.0
    %3167 = vmatprep.subr.mxu0 0.0
    %3168 = vmatpush2.msra.mxu0 0.0
    %3169 = vmatprep.subr.mxu0 0.0
    %3170 = vmatpush2.msra.mxu0 0.0
    %3171 = vmatprep.subr.mxu0 0.0
    %3172 = vmatpush2.msra.mxu0 0.0
    %3173 = vmatprep.subr.mxu0 0.0
    %3174 = vmatpush2.msra.mxu0 0.0
    %3175 = vmatprep.subr.mxu0 0.0
    %3176 = vmatpush2.msra.mxu0 0.0
    %3177 = vmatprep.subr.mxu0 0.0
    %3178 = vmatpush2.msra.mxu0 0.0
    %3179 = vmatprep.subr.mxu0 0.0
    %3180 = vmatpush2.msra.mxu0 0.0
    %3181 = vmatprep.subr.mxu0 0.0
    %3182 = vmatpush2.msra.mxu0 0.0
    %3183 = vmatprep.subr.mxu0 0.0
    %3184 = vmatpush2.msra.mxu0 0.0
    %3185 = vmatprep.subr.mxu0 0.0
    %3186 = vmatpush2.msra.mxu0 0.0
    %3187 = vmatprep.mubr.f32.mxu0 0.0
    %3188 = vmatmul.mubr.f32.gmra.mxu0 %v3122
    %v3189 = vpop.f32.mrf.mxu0
    %v3190 = vadd.f32 0.0, %v3189
    %v3191 = vpop.f32.mrf.mxu0
    %v3192 = vadd.f32 0.0, %v3191
    %3193 = vdwg.mxu0
    %3194 = vmatprep.subr.mxu0 %v2459
    %3195 = vmatpush1.msra.mxu0 %v2458
    %3196 = vmatprep.subr.mxu0 %v2455
    %3197 = vmatpush1.msra.mxu0 %v2454
    %3198 = vmatprep.subr.mxu0 %v2451
    %3199 = vmatpush1.msra.mxu0 %v2450
    %3200 = vmatprep.subr.mxu0 %v2447
    %3201 = vmatpush1.msra.mxu0 %v2446
    %3202 = vmatprep.subr.mxu0 %v2443
    %3203 = vmatpush1.msra.mxu0 %v2442
    %3204 = vmatprep.subr.mxu0 %v2439
    %3205 = vmatpush1.msra.mxu0 %v2438
    %3206 = vmatprep.subr.mxu0 %v2435
    %3207 = vmatpush1.msra.mxu0 %v2434
    %3208 = vmatprep.subr.mxu0 %v2431
    %3209 = vmatpush1.msra.mxu0 %v2430
    %3210 = vmatprep.subr.mxu0 %v2427
    %3211 = vmatpush1.msra.mxu0 %v2426
    %3212 = vmatprep.subr.mxu0 %v2423
    %3213 = vmatpush1.msra.mxu0 %v2422
    %3214 = vmatprep.subr.mxu0 %v2419
    %3215 = vmatpush1.msra.mxu0 %v2418
    %3216 = vmatprep.subr.mxu0 %v2415
    %3217 = vmatpush1.msra.mxu0 %v2414
    %3218 = vmatprep.subr.mxu0 %v2411
    %3219 = vmatpush1.msra.mxu0 %v2410
    %3220 = vmatprep.subr.mxu0 %v2407
    %3221 = vmatpush1.msra.mxu0 %v2406
    %3222 = vmatprep.subr.mxu0 %v2403
    %3223 = vmatpush1.msra.mxu0 %v2402
    %3224 = vmatprep.subr.mxu0 %v2399
    %3225 = vmatpush1.msra.mxu0 %v2398
    %3226 = vmatprep.subr.mxu0 0.0
    %3227 = vmatpush2.msra.mxu0 0.0
    %3228 = vmatprep.subr.mxu0 0.0
    %3229 = vmatpush2.msra.mxu0 0.0
    %3230 = vmatprep.subr.mxu0 0.0
    %3231 = vmatpush2.msra.mxu0 0.0
    %3232 = vmatprep.subr.mxu0 0.0
    %3233 = vmatpush2.msra.mxu0 0.0
    %3234 = vmatprep.subr.mxu0 0.0
    %3235 = vmatpush2.msra.mxu0 0.0
    %3236 = vmatprep.subr.mxu0 0.0
    %3237 = vmatpush2.msra.mxu0 0.0
    %3238 = vmatprep.subr.mxu0 0.0
    %3239 = vmatpush2.msra.mxu0 0.0
    %3240 = vmatprep.subr.mxu0 0.0
    %3241 = vmatpush2.msra.mxu0 0.0
    %3242 = vmatprep.subr.mxu0 0.0
    %3243 = vmatpush2.msra.mxu0 0.0
    %3244 = vmatprep.subr.mxu0 0.0
    %3245 = vmatpush2.msra.mxu0 0.0
    %3246 = vmatprep.subr.mxu0 0.0
    %3247 = vmatpush2.msra.mxu0 0.0
    %3248 = vmatprep.subr.mxu0 0.0
    %3249 = vmatpush2.msra.mxu0 0.0
    %3250 = vmatprep.subr.mxu0 0.0
    %3251 = vmatpush2.msra.mxu0 0.0
    %3252 = vmatprep.subr.mxu0 0.0
    %3253 = vmatpush2.msra.mxu0 0.0
    %3254 = vmatprep.subr.mxu0 0.0
    %3255 = vmatpush2.msra.mxu0 0.0
    %3256 = vmatprep.subr.mxu0 0.0
    %3257 = vmatpush2.msra.mxu0 0.0
    %3258 = vmatprep.mubr.f32.mxu0 0.0
    %3259 = vmatmul.mubr.f32.gmra.mxu0 %v3122
    %v3260 = vpop.f32.mrf.mxu0
    %v3261 = vadd.f32 0.0, %v3260
    %v3262 = vpop.f32.mrf.mxu0
    %v3263 = vadd.f32 0.0, %v3262
    %3264 = vdwg.mxu0
    %v3265 = vrot.slane %v2309, 6
    %v3266 = vrot.slane %v2311, 6
    %v3269 = vadd.f32 %v3190, %v3265
    %v3270 = vadd.f32 %v3192, %v3266
    %v3271 = vadd.f32 %v3261, %v2392
    %v3272 = vadd.f32 %v3263, %v2394
    %v3273 = vxor.u32 %v3269, 2147483648
    %v3274 = vxor.u32 %v3270, 2147483648
    %v3275 = vmul.f32 %v3273, 1.442695
    %v3276 = vpow.pop %v3275
    %v3277 = vmul.f32 %v3274, 1.442695
    %v3278 = vpow.pop %v3277
    %v3279 = vadd.f32 %v3276, 1.0
    %v3280 = vadd.f32 %v3278, 1.0
    %v3281 = vrcp.pop %v3279
    %v3282 = vmul.f32 1.0, %v3281
    %v3283 = vrcp.pop %v3280
    %v3284 = vmul.f32 1.0, %v3283
    %v3285 = vxor.u32 %v3271, 2147483648
    %v3286 = vxor.u32 %v3272, 2147483648
    %v3287 = vmul.f32 %v3285, 1.442695
    %v3288 = vpow.pop %v3287
    %v3289 = vmul.f32 %v3286, 1.442695
    %v3290 = vpow.pop %v3289
    %v3291 = vadd.f32 %v3288, 1.0
    %v3292 = vadd.f32 %v3290, 1.0
    %v3293 = vrcp.pop %v3291
    %v3294 = vmul.f32 1.0, %v3293
    %v3295 = vrcp.pop %v3292
    %v3296 = vmul.f32 1.0, %v3295
    %v3297 = vtanh.pop %v3270
    %v3298 = vtanh.pop %v3272
    %v3299 = vmul.f32 %v3282, %v3092
    %3301 = vrot.lane.b32.xlu0 %v3297, 64
    %v3302 = vpop.permute.xlu0 %3301
    %v3304 = vmul.f32 %v3282, %v3302
    %3306 = vrot.lane.b32.xlu0 %v3304, 64
    %v3307 = vpop.permute.xlu0 %3306
    %v3309 = vadd.f32 %v3299, %v3307
    %v3310 = vmul.f32 %v3294, %v3103
    %3312 = vrot.lane.b32.xlu0 %v3298, 64
    %v3313 = vpop.permute.xlu0 %3312
    %v3315 = vmul.f32 %v3294, %v3313
    %3317 = vrot.lane.b32.xlu0 %v3315, 64
    %v3318 = vpop.permute.xlu0 %3317
    %v3320 = vadd.f32 %v3310, %v3318
    %v3321 = vtanh.pop %v3309
    %3323 = vrot.lane.b32.xlu0 %v3321, 64
    %v3324 = vpop.permute.xlu0 %3323
    %v3326 = vmul.f32 %v3284, %v3324
    %v3327 = vtanh.pop %v3320
    %3329 = vrot.lane.b32.xlu0 %v3327, 64
    %v3330 = vpop.permute.xlu0 %3329
    %v3332 = vmul.f32 %v3296, %v3330
    %3333 = vst.msk [vmem:[#allocation2 + $0x6] sm:$0x3] %vm604, %v3326
    %3335 = vrot.lane.b32.xlu0 %v3332, 64
    %v3336 = vpop.permute.xlu0 %3335
    %3338 = vst.msk [vmem:[#allocation2 + $0x8] sm:$0x3] %vm610, %v3336
    %v3339 = vsel %vm612, %v3326, %v3336
    %3340 = vmatprep.subr.mxu0 %v2457
    %3341 = vmatpush1.msra.mxu0 %v2456
    %3342 = vmatprep.subr.mxu0 %v2453
    %3343 = vmatpush1.msra.mxu0 %v2452
    %3344 = vmatprep.subr.mxu0 %v2449
    %3345 = vmatpush1.msra.mxu0 %v2448
    %3346 = vmatprep.subr.mxu0 %v2445
    %3347 = vmatpush1.msra.mxu0 %v2444
    %3348 = vmatprep.subr.mxu0 %v2441
    %3349 = vmatpush1.msra.mxu0 %v2440
    %3350 = vmatprep.subr.mxu0 %v2437
    %3351 = vmatpush1.msra.mxu0 %v2436
    %3352 = vmatprep.subr.mxu0 %v2433
    %3353 = vmatpush1.msra.mxu0 %v2432
    %3354 = vmatprep.subr.mxu0 %v2429
    %3355 = vmatpush1.msra.mxu0 %v2428
    %3356 = vmatprep.subr.mxu0 %v2425
    %3357 = vmatpush1.msra.mxu0 %v2424
    %3358 = vmatprep.subr.mxu0 %v2421
    %3359 = vmatpush1.msra.mxu0 %v2420
    %3360 = vmatprep.subr.mxu0 %v2417
    %3361 = vmatpush1.msra.mxu0 %v2416
    %3362 = vmatprep.subr.mxu0 %v2413
    %3363 = vmatpush1.msra.mxu0 %v2412
    %3364 = vmatprep.subr.mxu0 %v2409
    %3365 = vmatpush1.msra.mxu0 %v2408
    %3366 = vmatprep.subr.mxu0 %v2405
    %3367 = vmatpush1.msra.mxu0 %v2404
    %3368 = vmatprep.subr.mxu0 %v2401
    %3369 = vmatpush1.msra.mxu0 %v2400
    %3370 = vmatprep.subr.mxu0 %v2397
    %3371 = vmatpush1.msra.mxu0 %v2396
    %3372 = vmatprep.subr.mxu0 0.0
    %3373 = vmatpush2.msra.mxu0 0.0
    %3374 = vmatprep.subr.mxu0 0.0
    %3375 = vmatpush2.msra.mxu0 0.0
    %3376 = vmatprep.subr.mxu0 0.0
    %3377 = vmatpush2.msra.mxu0 0.0
    %3378 = vmatprep.subr.mxu0 0.0
    %3379 = vmatpush2.msra.mxu0 0.0
    %3380 = vmatprep.subr.mxu0 0.0
    %3381 = vmatpush2.msra.mxu0 0.0
    %3382 = vmatprep.subr.mxu0 0.0
    %3383 = vmatpush2.msra.mxu0 0.0
    %3384 = vmatprep.subr.mxu0 0.0
    %3385 = vmatpush2.msra.mxu0 0.0
    %3386 = vmatprep.subr.mxu0 0.0
    %3387 = vmatpush2.msra.mxu0 0.0
    %3388 = vmatprep.subr.mxu0 0.0
    %3389 = vmatpush2.msra.mxu0 0.0
    %3390 = vmatprep.subr.mxu0 0.0
    %3391 = vmatpush2.msra.mxu0 0.0
    %3392 = vmatprep.subr.mxu0 0.0
    %3393 = vmatpush2.msra.mxu0 0.0
    %3394 = vmatprep.subr.mxu0 0.0
    %3395 = vmatpush2.msra.mxu0 0.0
    %3396 = vmatprep.subr.mxu0 0.0
    %3397 = vmatpush2.msra.mxu0 0.0
    %3398 = vmatprep.subr.mxu0 0.0
    %3399 = vmatpush2.msra.mxu0 0.0
    %3400 = vmatprep.subr.mxu0 0.0
    %3401 = vmatpush2.msra.mxu0 0.0
    %3402 = vmatprep.subr.mxu0 0.0
    %3403 = vmatpush2.msra.mxu0 0.0
    %3404 = vmatprep.mubr.f32.mxu0 0.0
    %3405 = vmatmul.mubr.f32.gmra.mxu0 %v3339
    %v3406 = vpop.f32.mrf.mxu0
    %v3407 = vadd.f32 0.0, %v3406
    %v3408 = vpop.f32.mrf.mxu0
    %v3409 = vadd.f32 0.0, %v3408
    %3410 = vdwg.mxu0
    %3411 = vmatprep.subr.mxu0 %v2459
    %3412 = vmatpush1.msra.mxu0 %v2458
    %3413 = vmatprep.subr.mxu0 %v2455
    %3414 = vmatpush1.msra.mxu0 %v2454
    %3415 = vmatprep.subr.mxu0 %v2451
    %3416 = vmatpush1.msra.mxu0 %v2450
    %3417 = vmatprep.subr.mxu0 %v2447
    %3418 = vmatpush1.msra.mxu0 %v2446
    %3419 = vmatprep.subr.mxu0 %v2443
    %3420 = vmatpush1.msra.mxu0 %v2442
    %3421 = vmatprep.subr.mxu0 %v2439
    %3422 = vmatpush1.msra.mxu0 %v2438
    %3423 = vmatprep.subr.mxu0 %v2435
    %3424 = vmatpush1.msra.mxu0 %v2434
    %3425 = vmatprep.subr.mxu0 %v2431
    %3426 = vmatpush1.msra.mxu0 %v2430
    %3427 = vmatprep.subr.mxu0 %v2427
    %3428 = vmatpush1.msra.mxu0 %v2426
    %3429 = vmatprep.subr.mxu0 %v2423
    %3430 = vmatpush1.msra.mxu0 %v2422
    %3431 = vmatprep.subr.mxu0 %v2419
    %3432 = vmatpush1.msra.mxu0 %v2418
    %3433 = vmatprep.subr.mxu0 %v2415
    %3434 = vmatpush1.msra.mxu0 %v2414
    %3435 = vmatprep.subr.mxu0 %v2411
    %3436 = vmatpush1.msra.mxu0 %v2410
    %3437 = vmatprep.subr.mxu0 %v2407
    %3438 = vmatpush1.msra.mxu0 %v2406
    %3439 = vmatprep.subr.mxu0 %v2403
    %3440 = vmatpush1.msra.mxu0 %v2402
    %3441 = vmatprep.subr.mxu0 %v2399
    %3442 = vmatpush1.msra.mxu0 %v2398
    %3443 = vmatprep.subr.mxu0 0.0
    %3444 = vmatpush2.msra.mxu0 0.0
    %3445 = vmatprep.subr.mxu0 0.0
    %3446 = vmatpush2.msra.mxu0 0.0
    %3447 = vmatprep.subr.mxu0 0.0
    %3448 = vmatpush2.msra.mxu0 0.0
    %3449 = vmatprep.subr.mxu0 0.0
    %3450 = vmatpush2.msra.mxu0 0.0
    %3451 = vmatprep.subr.mxu0 0.0
    %3452 = vmatpush2.msra.mxu0 0.0
    %3453 = vmatprep.subr.mxu0 0.0
    %3454 = vmatpush2.msra.mxu0 0.0
    %3455 = vmatprep.subr.mxu0 0.0
    %3456 = vmatpush2.msra.mxu0 0.0
    %3457 = vmatprep.subr.mxu0 0.0
    %3458 = vmatpush2.msra.mxu0 0.0
    %3459 = vmatprep.subr.mxu0 0.0
    %3460 = vmatpush2.msra.mxu0 0.0
    %3461 = vmatprep.subr.mxu0 0.0
    %3462 = vmatpush2.msra.mxu0 0.0
    %3463 = vmatprep.subr.mxu0 0.0
    %3464 = vmatpush2.msra.mxu0 0.0
    %3465 = vmatprep.subr.mxu0 0.0
    %3466 = vmatpush2.msra.mxu0 0.0
    %3467 = vmatprep.subr.mxu0 0.0
    %3468 = vmatpush2.msra.mxu0 0.0
    %3469 = vmatprep.subr.mxu0 0.0
    %3470 = vmatpush2.msra.mxu0 0.0
    %3471 = vmatprep.subr.mxu0 0.0
    %3472 = vmatpush2.msra.mxu0 0.0
    %3473 = vmatprep.subr.mxu0 0.0
    %3474 = vmatpush2.msra.mxu0 0.0
    %3475 = vmatprep.mubr.f32.mxu0 0.0
    %3476 = vmatmul.mubr.f32.gmra.mxu0 %v3339
    %v3477 = vpop.f32.mrf.mxu0
    %v3478 = vadd.f32 0.0, %v3477
    %v3479 = vpop.f32.mrf.mxu0
    %v3480 = vadd.f32 0.0, %v3479
    %3481 = vdwg.mxu0
    %v3482 = vadd.f32 %v3407, %v2315
    %v3483 = vadd.f32 %v3409, %v2317
    %v3486 = vrot.slane %v2386, 6
    %v3487 = vrot.slane %v2388, 6
    %v3490 = vadd.f32 %v3478, %v3486
    %v3491 = vadd.f32 %v3480, %v3487
    %v3492 = vxor.u32 %v3482, 2147483648
    %v3493 = vxor.u32 %v3483, 2147483648
    %v3494 = vmul.f32 %v3492, 1.442695
    %v3495 = vpow.pop %v3494
    %v3496 = vmul.f32 %v3493, 1.442695
    %v3497 = vpow.pop %v3496
    %v3498 = vadd.f32 %v3495, 1.0
    %v3499 = vadd.f32 %v3497, 1.0
    %v3500 = vrcp.pop %v3498
    %v3501 = vmul.f32 1.0, %v3500
    %v3502 = vrcp.pop %v3499
    %v3503 = vmul.f32 1.0, %v3502
    %v3504 = vxor.u32 %v3490, 2147483648
    %v3505 = vxor.u32 %v3491, 2147483648
    %v3506 = vmul.f32 %v3504, 1.442695
    %v3507 = vpow.pop %v3506
    %v3508 = vmul.f32 %v3505, 1.442695
    %v3509 = vpow.pop %v3508
    %v3510 = vadd.f32 %v3507, 1.0
    %v3511 = vadd.f32 %v3509, 1.0
    %v3512 = vrcp.pop %v3510
    %v3513 = vmul.f32 1.0, %v3512
    %v3514 = vrcp.pop %v3511
    %v3515 = vmul.f32 1.0, %v3514
    %v3516 = vtanh.pop %v3483
    %v3517 = vtanh.pop %v3491
    %v3518 = vmul.f32 %v3501, %v3309
    %3520 = vrot.lane.b32.xlu0 %v3516, 64
    %v3521 = vpop.permute.xlu0 %3520
    %v3523 = vmul.f32 %v3501, %v3521
    %3525 = vrot.lane.b32.xlu0 %v3523, 64
    %v3526 = vpop.permute.xlu0 %3525
    %v3528 = vadd.f32 %v3518, %v3526
    %v3529 = vmul.f32 %v3513, %v3320
    %3531 = vrot.lane.b32.xlu0 %v3517, 64
    %v3532 = vpop.permute.xlu0 %3531
    %v3534 = vmul.f32 %v3513, %v3532
    %3536 = vrot.lane.b32.xlu0 %v3534, 64
    %v3537 = vpop.permute.xlu0 %3536
    %v3539 = vadd.f32 %v3529, %v3537
    %v3540 = vtanh.pop %v3528
    %3542 = vrot.lane.b32.xlu0 %v3540, 64
    %v3543 = vpop.permute.xlu0 %3542
    %v3545 = vmul.f32 %v3503, %v3543
    %v3546 = vtanh.pop %v3539
    %3548 = vrot.lane.b32.xlu0 %v3546, 64
    %v3549 = vpop.permute.xlu0 %3548
    %v3551 = vmul.f32 %v3515, %v3549
    %3552 = vst.msk [vmem:[#allocation2 + $0x8] sm:$0x3] %vm604, %v3545
    %3554 = vrot.lane.b32.xlu0 %v3551, 64
    %v3555 = vpop.permute.xlu0 %3554
    %3557 = vst.msk [vmem:[#allocation2 + $0x6] sm:$0x3] %vm610, %v3555
    %v3558 = vsel %vm612, %v3545, %v3555
    %3559 = vmatprep.subr.mxu0 %v2457
    %3560 = vmatpush1.msra.mxu0 %v2456
    %3561 = vmatprep.subr.mxu0 %v2453
    %3562 = vmatpush1.msra.mxu0 %v2452
    %3563 = vmatprep.subr.mxu0 %v2449
    %3564 = vmatpush1.msra.mxu0 %v2448
    %3565 = vmatprep.subr.mxu0 %v2445
    %3566 = vmatpush1.msra.mxu0 %v2444
    %3567 = vmatprep.subr.mxu0 %v2441
    %3568 = vmatpush1.msra.mxu0 %v2440
    %3569 = vmatprep.subr.mxu0 %v2437
    %3570 = vmatpush1.msra.mxu0 %v2436
    %3571 = vmatprep.subr.mxu0 %v2433
    %3572 = vmatpush1.msra.mxu0 %v2432
    %3573 = vmatprep.subr.mxu0 %v2429
    %3574 = vmatpush1.msra.mxu0 %v2428
    %3575 = vmatprep.subr.mxu0 %v2425
    %3576 = vmatpush1.msra.mxu0 %v2424
    %3577 = vmatprep.subr.mxu0 %v2421
    %3578 = vmatpush1.msra.mxu0 %v2420
    %3579 = vmatprep.subr.mxu0 %v2417
    %3580 = vmatpush1.msra.mxu0 %v2416
    %3581 = vmatprep.subr.mxu0 %v2413
    %3582 = vmatpush1.msra.mxu0 %v2412
    %3583 = vmatprep.subr.mxu0 %v2409
    %3584 = vmatpush1.msra.mxu0 %v2408
    %3585 = vmatprep.subr.mxu0 %v2405
    %3586 = vmatpush1.msra.mxu0 %v2404
    %3587 = vmatprep.subr.mxu0 %v2401
    %3588 = vmatpush1.msra.mxu0 %v2400
    %3589 = vmatprep.subr.mxu0 %v2397
    %3590 = vmatpush1.msra.mxu0 %v2396
    %3591 = vmatprep.subr.mxu0 0.0
    %3592 = vmatpush2.msra.mxu0 0.0
    %3593 = vmatprep.subr.mxu0 0.0
    %3594 = vmatpush2.msra.mxu0 0.0
    %3595 = vmatprep.subr.mxu0 0.0
    %3596 = vmatpush2.msra.mxu0 0.0
    %3597 = vmatprep.subr.mxu0 0.0
    %3598 = vmatpush2.msra.mxu0 0.0
    %3599 = vmatprep.subr.mxu0 0.0
    %3600 = vmatpush2.msra.mxu0 0.0
    %3601 = vmatprep.subr.mxu0 0.0
    %3602 = vmatpush2.msra.mxu0 0.0
    %3603 = vmatprep.subr.mxu0 0.0
    %3604 = vmatpush2.msra.mxu0 0.0
    %3605 = vmatprep.subr.mxu0 0.0
    %3606 = vmatpush2.msra.mxu0 0.0
    %3607 = vmatprep.subr.mxu0 0.0
    %3608 = vmatpush2.msra.mxu0 0.0
    %3609 = vmatprep.subr.mxu0 0.0
    %3610 = vmatpush2.msra.mxu0 0.0
    %3611 = vmatprep.subr.mxu0 0.0
    %3612 = vmatpush2.msra.mxu0 0.0
    %3613 = vmatprep.subr.mxu0 0.0
    %3614 = vmatpush2.msra.mxu0 0.0
    %3615 = vmatprep.subr.mxu0 0.0
    %3616 = vmatpush2.msra.mxu0 0.0
    %3617 = vmatprep.subr.mxu0 0.0
    %3618 = vmatpush2.msra.mxu0 0.0
    %3619 = vmatprep.subr.mxu0 0.0
    %3620 = vmatpush2.msra.mxu0 0.0
    %3621 = vmatprep.subr.mxu0 0.0
    %3622 = vmatpush2.msra.mxu0 0.0
    %3623 = vmatprep.mubr.f32.mxu0 0.0
    %3624 = vmatmul.mubr.f32.gmra.mxu0 %v3558
    %v3625 = vpop.f32.mrf.mxu0
    %v3626 = vadd.f32 0.0, %v3625
    %v3627 = vpop.f32.mrf.mxu0
    %v3628 = vadd.f32 0.0, %v3627
    %3629 = vdwg.mxu0
    %3630 = vmatprep.subr.mxu0 %v2459
    %3631 = vmatpush1.msra.mxu0 %v2458
    %3632 = vmatprep.subr.mxu0 %v2455
    %3633 = vmatpush1.msra.mxu0 %v2454
    %3634 = vmatprep.subr.mxu0 %v2451
    %3635 = vmatpush1.msra.mxu0 %v2450
    %3636 = vmatprep.subr.mxu0 %v2447
    %3637 = vmatpush1.msra.mxu0 %v2446
    %3638 = vmatprep.subr.mxu0 %v2443
    %3639 = vmatpush1.msra.mxu0 %v2442
    %3640 = vmatprep.subr.mxu0 %v2439
    %3641 = vmatpush1.msra.mxu0 %v2438
    %3642 = vmatprep.subr.mxu0 %v2435
    %3643 = vmatpush1.msra.mxu0 %v2434
    %3644 = vmatprep.subr.mxu0 %v2431
    %3645 = vmatpush1.msra.mxu0 %v2430
    %3646 = vmatprep.subr.mxu0 %v2427
    %3647 = vmatpush1.msra.mxu0 %v2426
    %3648 = vmatprep.subr.mxu0 %v2423
    %3649 = vmatpush1.msra.mxu0 %v2422
    %3650 = vmatprep.subr.mxu0 %v2419
    %3651 = vmatpush1.msra.mxu0 %v2418
    %3652 = vmatprep.subr.mxu0 %v2415
    %3653 = vmatpush1.msra.mxu0 %v2414
    %3654 = vmatprep.subr.mxu0 %v2411
    %3655 = vmatpush1.msra.mxu0 %v2410
    %3656 = vmatprep.subr.mxu0 %v2407
    %3657 = vmatpush1.msra.mxu0 %v2406
    %3658 = vmatprep.subr.mxu0 %v2403
    %3659 = vmatpush1.msra.mxu0 %v2402
    %3660 = vmatprep.subr.mxu0 %v2399
    %3661 = vmatpush1.msra.mxu0 %v2398
    %3662 = vmatprep.subr.mxu0 0.0
    %3663 = vmatpush2.msra.mxu0 0.0
    %3664 = vmatprep.subr.mxu0 0.0
    %3665 = vmatpush2.msra.mxu0 0.0
    %3666 = vmatprep.subr.mxu0 0.0
    %3667 = vmatpush2.msra.mxu0 0.0
    %3668 = vmatprep.subr.mxu0 0.0
    %3669 = vmatpush2.msra.mxu0 0.0
    %3670 = vmatprep.subr.mxu0 0.0
    %3671 = vmatpush2.msra.mxu0 0.0
    %3672 = vmatprep.subr.mxu0 0.0
    %3673 = vmatpush2.msra.mxu0 0.0
    %3674 = vmatprep.subr.mxu0 0.0
    %3675 = vmatpush2.msra.mxu0 0.0
    %3676 = vmatprep.subr.mxu0 0.0
    %3677 = vmatpush2.msra.mxu0 0.0
    %3678 = vmatprep.subr.mxu0 0.0
    %3679 = vmatpush2.msra.mxu0 0.0
    %3680 = vmatprep.subr.mxu0 0.0
    %3681 = vmatpush2.msra.mxu0 0.0
    %3682 = vmatprep.subr.mxu0 0.0
    %3683 = vmatpush2.msra.mxu0 0.0
    %3684 = vmatprep.subr.mxu0 0.0
    %3685 = vmatpush2.msra.mxu0 0.0
    %3686 = vmatprep.subr.mxu0 0.0
    %3687 = vmatpush2.msra.mxu0 0.0
    %3688 = vmatprep.subr.mxu0 0.0
    %3689 = vmatpush2.msra.mxu0 0.0
    %3690 = vmatprep.subr.mxu0 0.0
    %3691 = vmatpush2.msra.mxu0 0.0
    %3692 = vmatprep.subr.mxu0 0.0
    %3693 = vmatpush2.msra.mxu0 0.0
    %3694 = vmatprep.mubr.f32.mxu0 0.0
    %3695 = vmatmul.mubr.f32.gmra.mxu0 %v3558
    %v3696 = vpop.f32.mrf.mxu0
    %v3697 = vadd.f32 0.0, %v3696
    %v3698 = vpop.f32.mrf.mxu0
    %v3699 = vadd.f32 0.0, %v3698
    %3700 = vdwg.mxu0
    %v3703 = vrot.slane %v2315, 2
    %v3704 = vrot.slane %v2317, 2
    %v3707 = vadd.f32 %v3626, %v3703
    %v3708 = vadd.f32 %v3628, %v3704
    %v3709 = vrot.slane %v2386, 4
    %v3710 = vrot.slane %v2388, 4
    %v3713 = vadd.f32 %v3697, %v3709
    %v3714 = vadd.f32 %v3699, %v3710
    %v3715 = vxor.u32 %v3707, 2147483648
    %v3716 = vxor.u32 %v3708, 2147483648
    %v3717 = vmul.f32 %v3715, 1.442695
    %v3718 = vpow.pop %v3717
    %v3719 = vmul.f32 %v3716, 1.442695
    %v3720 = vpow.pop %v3719
    %v3721 = vadd.f32 %v3718, 1.0
    %v3722 = vadd.f32 %v3720, 1.0
    %v3723 = vrcp.pop %v3721
    %v3724 = vmul.f32 1.0, %v3723
    %v3725 = vrcp.pop %v3722
    %v3726 = vmul.f32 1.0, %v3725
    %v3727 = vxor.u32 %v3713, 2147483648
    %v3728 = vxor.u32 %v3714, 2147483648
    %v3729 = vmul.f32 %v3727, 1.442695
    %v3730 = vpow.pop %v3729
    %v3731 = vmul.f32 %v3728, 1.442695
    %v3732 = vpow.pop %v3731
    %v3733 = vadd.f32 %v3730, 1.0
    %v3734 = vadd.f32 %v3732, 1.0
    %v3735 = vrcp.pop %v3733
    %v3736 = vmul.f32 1.0, %v3735
    %v3737 = vrcp.pop %v3734
    %v3738 = vmul.f32 1.0, %v3737
    %v3739 = vtanh.pop %v3708
    %v3740 = vtanh.pop %v3714
    %v3741 = vmul.f32 %v3724, %v3528
    %3743 = vrot.lane.b32.xlu0 %v3739, 64
    %v3744 = vpop.permute.xlu0 %3743
    %v3746 = vmul.f32 %v3724, %v3744
    %3748 = vrot.lane.b32.xlu0 %v3746, 64
    %v3749 = vpop.permute.xlu0 %3748
    %v3751 = vadd.f32 %v3741, %v3749
    %v3752 = vmul.f32 %v3736, %v3539
    %3754 = vrot.lane.b32.xlu0 %v3740, 64
    %v3755 = vpop.permute.xlu0 %3754
    %v3757 = vmul.f32 %v3736, %v3755
    %3759 = vrot.lane.b32.xlu0 %v3757, 64
    %v3760 = vpop.permute.xlu0 %3759
    %v3762 = vadd.f32 %v3752, %v3760
    %v3763 = vtanh.pop %v3751
    %3765 = vrot.lane.b32.xlu0 %v3763, 64
    %v3766 = vpop.permute.xlu0 %3765
    %v3768 = vmul.f32 %v3726, %v3766
    %v3769 = vtanh.pop %v3762
    %3771 = vrot.lane.b32.xlu0 %v3769, 64
    %v3772 = vpop.permute.xlu0 %3771
    %v3774 = vmul.f32 %v3738, %v3772
    %3775 = vst.msk [vmem:[#allocation2 + $0xa] sm:$0x3] %vm604, %v3768
    %3777 = vrot.lane.b32.xlu0 %v3774, 64
    %v3778 = vpop.permute.xlu0 %3777
    %3780 = vst.msk [vmem:[#allocation2 + $0x4] sm:$0x3] %vm610, %v3778
    %v3781 = vsel %vm612, %v3768, %v3778
    %3782 = vmatprep.subr.mxu0 %v2457
    %3783 = vmatpush1.msra.mxu0 %v2456
    %3784 = vmatprep.subr.mxu0 %v2453
    %3785 = vmatpush1.msra.mxu0 %v2452
    %3786 = vmatprep.subr.mxu0 %v2449
    %3787 = vmatpush1.msra.mxu0 %v2448
    %3788 = vmatprep.subr.mxu0 %v2445
    %3789 = vmatpush1.msra.mxu0 %v2444
    %3790 = vmatprep.subr.mxu0 %v2441
    %3791 = vmatpush1.msra.mxu0 %v2440
    %3792 = vmatprep.subr.mxu0 %v2437
    %3793 = vmatpush1.msra.mxu0 %v2436
    %3794 = vmatprep.subr.mxu0 %v2433
    %3795 = vmatpush1.msra.mxu0 %v2432
    %3796 = vmatprep.subr.mxu0 %v2429
    %3797 = vmatpush1.msra.mxu0 %v2428
    %3798 = vmatprep.subr.mxu0 %v2425
    %3799 = vmatpush1.msra.mxu0 %v2424
    %3800 = vmatprep.subr.mxu0 %v2421
    %3801 = vmatpush1.msra.mxu0 %v2420
    %3802 = vmatprep.subr.mxu0 %v2417
    %3803 = vmatpush1.msra.mxu0 %v2416
    %3804 = vmatprep.subr.mxu0 %v2413
    %3805 = vmatpush1.msra.mxu0 %v2412
    %3806 = vmatprep.subr.mxu0 %v2409
    %3807 = vmatpush1.msra.mxu0 %v2408
    %3808 = vmatprep.subr.mxu0 %v2405
    %3809 = vmatpush1.msra.mxu0 %v2404
    %3810 = vmatprep.subr.mxu0 %v2401
    %3811 = vmatpush1.msra.mxu0 %v2400
    %3812 = vmatprep.subr.mxu0 %v2397
    %3813 = vmatpush1.msra.mxu0 %v2396
    %3814 = vmatprep.subr.mxu0 0.0
    %3815 = vmatpush2.msra.mxu0 0.0
    %3816 = vmatprep.subr.mxu0 0.0
    %3817 = vmatpush2.msra.mxu0 0.0
    %3818 = vmatprep.subr.mxu0 0.0
    %3819 = vmatpush2.msra.mxu0 0.0
    %3820 = vmatprep.subr.mxu0 0.0
    %3821 = vmatpush2.msra.mxu0 0.0
    %3822 = vmatprep.subr.mxu0 0.0
    %3823 = vmatpush2.msra.mxu0 0.0
    %3824 = vmatprep.subr.mxu0 0.0
    %3825 = vmatpush2.msra.mxu0 0.0
    %3826 = vmatprep.subr.mxu0 0.0
    %3827 = vmatpush2.msra.mxu0 0.0
    %3828 = vmatprep.subr.mxu0 0.0
    %3829 = vmatpush2.msra.mxu0 0.0
    %3830 = vmatprep.subr.mxu0 0.0
    %3831 = vmatpush2.msra.mxu0 0.0
    %3832 = vmatprep.subr.mxu0 0.0
    %3833 = vmatpush2.msra.mxu0 0.0
    %3834 = vmatprep.subr.mxu0 0.0
    %3835 = vmatpush2.msra.mxu0 0.0
    %3836 = vmatprep.subr.mxu0 0.0
    %3837 = vmatpush2.msra.mxu0 0.0
    %3838 = vmatprep.subr.mxu0 0.0
    %3839 = vmatpush2.msra.mxu0 0.0
    %3840 = vmatprep.subr.mxu0 0.0
    %3841 = vmatpush2.msra.mxu0 0.0
    %3842 = vmatprep.subr.mxu0 0.0
    %3843 = vmatpush2.msra.mxu0 0.0
    %3844 = vmatprep.subr.mxu0 0.0
    %3845 = vmatpush2.msra.mxu0 0.0
    %3846 = vmatprep.mubr.f32.mxu0 0.0
    %3847 = vmatmul.mubr.f32.gmra.mxu0 %v3781
    %v3848 = vpop.f32.mrf.mxu0
    %v3849 = vadd.f32 0.0, %v3848
    %v3850 = vpop.f32.mrf.mxu0
    %v3851 = vadd.f32 0.0, %v3850
    %3852 = vdwg.mxu0
    %3853 = vmatprep.subr.mxu0 %v2459
    %3854 = vmatpush1.msra.mxu0 %v2458
    %3855 = vmatprep.subr.mxu0 %v2455
    %3856 = vmatpush1.msra.mxu0 %v2454
    %3857 = vmatprep.subr.mxu0 %v2451
    %3858 = vmatpush1.msra.mxu0 %v2450
    %3859 = vmatprep.subr.mxu0 %v2447
    %3860 = vmatpush1.msra.mxu0 %v2446
    %3861 = vmatprep.subr.mxu0 %v2443
    %3862 = vmatpush1.msra.mxu0 %v2442
    %3863 = vmatprep.subr.mxu0 %v2439
    %3864 = vmatpush1.msra.mxu0 %v2438
    %3865 = vmatprep.subr.mxu0 %v2435
    %3866 = vmatpush1.msra.mxu0 %v2434
    %3867 = vmatprep.subr.mxu0 %v2431
    %3868 = vmatpush1.msra.mxu0 %v2430
    %3869 = vmatprep.subr.mxu0 %v2427
    %3870 = vmatpush1.msra.mxu0 %v2426
    %3871 = vmatprep.subr.mxu0 %v2423
    %3872 = vmatpush1.msra.mxu0 %v2422
    %3873 = vmatprep.subr.mxu0 %v2419
    %3874 = vmatpush1.msra.mxu0 %v2418
    %3875 = vmatprep.subr.mxu0 %v2415
    %3876 = vmatpush1.msra.mxu0 %v2414
    %3877 = vmatprep.subr.mxu0 %v2411
    %3878 = vmatpush1.msra.mxu0 %v2410
    %3879 = vmatprep.subr.mxu0 %v2407
    %3880 = vmatpush1.msra.mxu0 %v2406
    %3881 = vmatprep.subr.mxu0 %v2403
    %3882 = vmatpush1.msra.mxu0 %v2402
    %3883 = vmatprep.subr.mxu0 %v2399
    %3884 = vmatpush1.msra.mxu0 %v2398
    %3885 = vmatprep.subr.mxu0 0.0
    %3886 = vmatpush2.msra.mxu0 0.0
    %3887 = vmatprep.subr.mxu0 0.0
    %3888 = vmatpush2.msra.mxu0 0.0
    %3889 = vmatprep.subr.mxu0 0.0
    %3890 = vmatpush2.msra.mxu0 0.0
    %3891 = vmatprep.subr.mxu0 0.0
    %3892 = vmatpush2.msra.mxu0 0.0
    %3893 = vmatprep.subr.mxu0 0.0
    %3894 = vmatpush2.msra.mxu0 0.0
    %3895 = vmatprep.subr.mxu0 0.0
    %3896 = vmatpush2.msra.mxu0 0.0
    %3897 = vmatprep.subr.mxu0 0.0
    %3898 = vmatpush2.msra.mxu0 0.0
    %3899 = vmatprep.subr.mxu0 0.0
    %3900 = vmatpush2.msra.mxu0 0.0
    %3901 = vmatprep.subr.mxu0 0.0
    %3902 = vmatpush2.msra.mxu0 0.0
    %3903 = vmatprep.subr.mxu0 0.0
    %3904 = vmatpush2.msra.mxu0 0.0
    %3905 = vmatprep.subr.mxu0 0.0
    %3906 = vmatpush2.msra.mxu0 0.0
    %3907 = vmatprep.subr.mxu0 0.0
    %3908 = vmatpush2.msra.mxu0 0.0
    %3909 = vmatprep.subr.mxu0 0.0
    %3910 = vmatpush2.msra.mxu0 0.0
    %3911 = vmatprep.subr.mxu0 0.0
    %3912 = vmatpush2.msra.mxu0 0.0
    %3913 = vmatprep.subr.mxu0 0.0
    %3914 = vmatpush2.msra.mxu0 0.0
    %3915 = vmatprep.subr.mxu0 0.0
    %3916 = vmatpush2.msra.mxu0 0.0
    %3917 = vmatprep.mubr.f32.mxu0 0.0
    %3918 = vmatmul.mubr.f32.gmra.mxu0 %v3781
    %v3919 = vpop.f32.mrf.mxu0
    %v3920 = vadd.f32 0.0, %v3919
    %v3921 = vpop.f32.mrf.mxu0
    %v3922 = vadd.f32 0.0, %v3921
    %3923 = vdwg.mxu0
    %v3924 = vrot.slane %v2315, 4
    %v3925 = vrot.slane %v2317, 4
    %v3928 = vadd.f32 %v3849, %v3924
    %v3929 = vadd.f32 %v3851, %v3925
    %v3930 = vrot.slane %v2386, 2
    %v3931 = vrot.slane %v2388, 2
    %v3934 = vadd.f32 %v3920, %v3930
    %v3935 = vadd.f32 %v3922, %v3931
    %v3936 = vxor.u32 %v3928, 2147483648
    %v3937 = vxor.u32 %v3929, 2147483648
    %v3938 = vmul.f32 %v3936, 1.442695
    %v3939 = vpow.pop %v3938
    %v3940 = vmul.f32 %v3937, 1.442695
    %v3941 = vpow.pop %v3940
    %v3942 = vadd.f32 %v3939, 1.0
    %v3943 = vadd.f32 %v3941, 1.0
    %v3944 = vrcp.pop %v3942
    %v3945 = vmul.f32 1.0, %v3944
    %v3946 = vrcp.pop %v3943
    %v3947 = vmul.f32 1.0, %v3946
    %v3948 = vxor.u32 %v3934, 2147483648
    %v3949 = vxor.u32 %v3935, 2147483648
    %v3950 = vmul.f32 %v3948, 1.442695
    %v3951 = vpow.pop %v3950
    %v3952 = vmul.f32 %v3949, 1.442695
    %v3953 = vpow.pop %v3952
    %v3954 = vadd.f32 %v3951, 1.0
    %v3955 = vadd.f32 %v3953, 1.0
    %v3956 = vrcp.pop %v3954
    %v3957 = vmul.f32 1.0, %v3956
    %v3958 = vrcp.pop %v3955
    %v3959 = vmul.f32 1.0, %v3958
    %v3960 = vtanh.pop %v3929
    %v3961 = vtanh.pop %v3935
    %v3962 = vmul.f32 %v3945, %v3751
    %3964 = vrot.lane.b32.xlu0 %v3960, 64
    %v3965 = vpop.permute.xlu0 %3964
    %v3967 = vmul.f32 %v3945, %v3965
    %3969 = vrot.lane.b32.xlu0 %v3967, 64
    %v3970 = vpop.permute.xlu0 %3969
    %v3972 = vadd.f32 %v3962, %v3970
    %v3973 = vmul.f32 %v3957, %v3762
    %3975 = vrot.lane.b32.xlu0 %v3961, 64
    %v3976 = vpop.permute.xlu0 %3975
    %v3978 = vmul.f32 %v3957, %v3976
    %3980 = vrot.lane.b32.xlu0 %v3978, 64
    %v3981 = vpop.permute.xlu0 %3980
    %v3983 = vadd.f32 %v3973, %v3981
    %v3984 = vtanh.pop %v3972
    %3986 = vrot.lane.b32.xlu0 %v3984, 64
    %v3987 = vpop.permute.xlu0 %3986
    %v3989 = vmul.f32 %v3947, %v3987
    %v3990 = vtanh.pop %v3983
    %3992 = vrot.lane.b32.xlu0 %v3990, 64
    %v3993 = vpop.permute.xlu0 %3992
    %v3995 = vmul.f32 %v3959, %v3993
    %3996 = vst.msk [vmem:[#allocation2 + $0xc] sm:$0x3] %vm604, %v3989
    %3998 = vrot.lane.b32.xlu0 %v3995, 64
    %v3999 = vpop.permute.xlu0 %3998
    %4001 = vst.msk [vmem:[#allocation2 + $0x2] sm:$0x3] %vm610, %v3999
    %v4002 = vsel %vm612, %v3989, %v3999
    %4003 = vmatprep.subr.mxu0 %v2457
    %4004 = vmatpush1.msra.mxu0 %v2456
    %4005 = vmatprep.subr.mxu0 %v2453
    %4006 = vmatpush1.msra.mxu0 %v2452
    %4007 = vmatprep.subr.mxu0 %v2449
    %4008 = vmatpush1.msra.mxu0 %v2448
    %4009 = vmatprep.subr.mxu0 %v2445
    %4010 = vmatpush1.msra.mxu0 %v2444
    %4011 = vmatprep.subr.mxu0 %v2441
    %4012 = vmatpush1.msra.mxu0 %v2440
    %4013 = vmatprep.subr.mxu0 %v2437
    %4014 = vmatpush1.msra.mxu0 %v2436
    %4015 = vmatprep.subr.mxu0 %v2433
    %4016 = vmatpush1.msra.mxu0 %v2432
    %4017 = vmatprep.subr.mxu0 %v2429
    %4018 = vmatpush1.msra.mxu0 %v2428
    %4019 = vmatprep.subr.mxu0 %v2425
    %4020 = vmatpush1.msra.mxu0 %v2424
    %4021 = vmatprep.subr.mxu0 %v2421
    %4022 = vmatpush1.msra.mxu0 %v2420
    %4023 = vmatprep.subr.mxu0 %v2417
    %4024 = vmatpush1.msra.mxu0 %v2416
    %4025 = vmatprep.subr.mxu0 %v2413
    %4026 = vmatpush1.msra.mxu0 %v2412
    %4027 = vmatprep.subr.mxu0 %v2409
    %4028 = vmatpush1.msra.mxu0 %v2408
    %4029 = vmatprep.subr.mxu0 %v2405
    %4030 = vmatpush1.msra.mxu0 %v2404
    %4031 = vmatprep.subr.mxu0 %v2401
    %4032 = vmatpush1.msra.mxu0 %v2400
    %4033 = vmatprep.subr.mxu0 %v2397
    %4034 = vmatpush1.msra.mxu0 %v2396
    %4035 = vmatprep.subr.mxu0 0.0
    %4036 = vmatpush2.msra.mxu0 0.0
    %4037 = vmatprep.subr.mxu0 0.0
    %4038 = vmatpush2.msra.mxu0 0.0
    %4039 = vmatprep.subr.mxu0 0.0
    %4040 = vmatpush2.msra.mxu0 0.0
    %4041 = vmatprep.subr.mxu0 0.0
    %4042 = vmatpush2.msra.mxu0 0.0
    %4043 = vmatprep.subr.mxu0 0.0
    %4044 = vmatpush2.msra.mxu0 0.0
    %4045 = vmatprep.subr.mxu0 0.0
    %4046 = vmatpush2.msra.mxu0 0.0
    %4047 = vmatprep.subr.mxu0 0.0
    %4048 = vmatpush2.msra.mxu0 0.0
    %4049 = vmatprep.subr.mxu0 0.0
    %4050 = vmatpush2.msra.mxu0 0.0
    %4051 = vmatprep.subr.mxu0 0.0
    %4052 = vmatpush2.msra.mxu0 0.0
    %4053 = vmatprep.subr.mxu0 0.0
    %4054 = vmatpush2.msra.mxu0 0.0
    %4055 = vmatprep.subr.mxu0 0.0
    %4056 = vmatpush2.msra.mxu0 0.0
    %4057 = vmatprep.subr.mxu0 0.0
    %4058 = vmatpush2.msra.mxu0 0.0
    %4059 = vmatprep.subr.mxu0 0.0
    %4060 = vmatpush2.msra.mxu0 0.0
    %4061 = vmatprep.subr.mxu0 0.0
    %4062 = vmatpush2.msra.mxu0 0.0
    %4063 = vmatprep.subr.mxu0 0.0
    %4064 = vmatpush2.msra.mxu0 0.0
    %4065 = vmatprep.subr.mxu0 0.0
    %4066 = vmatpush2.msra.mxu0 0.0
    %4067 = vmatprep.mubr.f32.mxu0 0.0
    %4068 = vmatmul.mubr.f32.gmra.mxu0 %v4002
    %v4069 = vpop.f32.mrf.mxu0
    %v4070 = vadd.f32 0.0, %v4069
    %v4071 = vpop.f32.mrf.mxu0
    %v4072 = vadd.f32 0.0, %v4071
    %4073 = vdwg.mxu0
    %4074 = vmatprep.subr.mxu0 %v2459
    %4075 = vmatpush1.msra.mxu0 %v2458
    %4076 = vmatprep.subr.mxu0 %v2455
    %4077 = vmatpush1.msra.mxu0 %v2454
    %4078 = vmatprep.subr.mxu0 %v2451
    %4079 = vmatpush1.msra.mxu0 %v2450
    %4080 = vmatprep.subr.mxu0 %v2447
    %4081 = vmatpush1.msra.mxu0 %v2446
    %4082 = vmatprep.subr.mxu0 %v2443
    %4083 = vmatpush1.msra.mxu0 %v2442
    %4084 = vmatprep.subr.mxu0 %v2439
    %4085 = vmatpush1.msra.mxu0 %v2438
    %4086 = vmatprep.subr.mxu0 %v2435
    %4087 = vmatpush1.msra.mxu0 %v2434
    %4088 = vmatprep.subr.mxu0 %v2431
    %4089 = vmatpush1.msra.mxu0 %v2430
    %4090 = vmatprep.subr.mxu0 %v2427
    %4091 = vmatpush1.msra.mxu0 %v2426
    %4092 = vmatprep.subr.mxu0 %v2423
    %4093 = vmatpush1.msra.mxu0 %v2422
    %4094 = vmatprep.subr.mxu0 %v2419
    %4095 = vmatpush1.msra.mxu0 %v2418
    %4096 = vmatprep.subr.mxu0 %v2415
    %4097 = vmatpush1.msra.mxu0 %v2414
    %4098 = vmatprep.subr.mxu0 %v2411
    %4099 = vmatpush1.msra.mxu0 %v2410
    %4100 = vmatprep.subr.mxu0 %v2407
    %4101 = vmatpush1.msra.mxu0 %v2406
    %4102 = vmatprep.subr.mxu0 %v2403
    %4103 = vmatpush1.msra.mxu0 %v2402
    %4104 = vmatprep.subr.mxu0 %v2399
    %4105 = vmatpush1.msra.mxu0 %v2398
    %4106 = vmatprep.subr.mxu0 0.0
    %4107 = vmatpush2.msra.mxu0 0.0
    %4108 = vmatprep.subr.mxu0 0.0
    %4109 = vmatpush2.msra.mxu0 0.0
    %4110 = vmatprep.subr.mxu0 0.0
    %4111 = vmatpush2.msra.mxu0 0.0
    %4112 = vmatprep.subr.mxu0 0.0
    %4113 = vmatpush2.msra.mxu0 0.0
    %4114 = vmatprep.subr.mxu0 0.0
    %4115 = vmatpush2.msra.mxu0 0.0
    %4116 = vmatprep.subr.mxu0 0.0
    %4117 = vmatpush2.msra.mxu0 0.0
    %4118 = vmatprep.subr.mxu0 0.0
    %4119 = vmatpush2.msra.mxu0 0.0
    %4120 = vmatprep.subr.mxu0 0.0
    %4121 = vmatpush2.msra.mxu0 0.0
    %4122 = vmatprep.subr.mxu0 0.0
    %4123 = vmatpush2.msra.mxu0 0.0
    %4124 = vmatprep.subr.mxu0 0.0
    %4125 = vmatpush2.msra.mxu0 0.0
    %4126 = vmatprep.subr.mxu0 0.0
    %4127 = vmatpush2.msra.mxu0 0.0
    %4128 = vmatprep.subr.mxu0 0.0
    %4129 = vmatpush2.msra.mxu0 0.0
    %4130 = vmatprep.subr.mxu0 0.0
    %4131 = vmatpush2.msra.mxu0 0.0
    %4132 = vmatprep.subr.mxu0 0.0
    %4133 = vmatpush2.msra.mxu0 0.0
    %4134 = vmatprep.subr.mxu0 0.0
    %4135 = vmatpush2.msra.mxu0 0.0
    %4136 = vmatprep.subr.mxu0 0.0
    %4137 = vmatpush2.msra.mxu0 0.0
    %4138 = vmatprep.mubr.f32.mxu0 0.0
    %4139 = vmatmul.mubr.f32.gmra.mxu0 %v4002
    %v4140 = vpop.f32.mrf.mxu0
    %v4141 = vadd.f32 0.0, %v4140
    %v4142 = vpop.f32.mrf.mxu0
    %v4143 = vadd.f32 0.0, %v4142
    %4144 = vdwg.mxu0
    %v4145 = vrot.slane %v2315, 6
    %v4146 = vrot.slane %v2317, 6
    %v4149 = vadd.f32 %v4070, %v4145
    %v4150 = vadd.f32 %v4072, %v4146
    %v4151 = vadd.f32 %v4141, %v2386
    %v4152 = vadd.f32 %v4143, %v2388
    %v4153 = vxor.u32 %v4149, 2147483648
    %v4154 = vxor.u32 %v4150, 2147483648
    %v4155 = vmul.f32 %v4153, 1.442695
    %v4156 = vpow.pop %v4155
    %v4157 = vmul.f32 %v4154, 1.442695
    %v4158 = vpow.pop %v4157
    %v4159 = vadd.f32 %v4156, 1.0
    %v4160 = vadd.f32 %v4158, 1.0
    %v4161 = vrcp.pop %v4159
    %v4162 = vmul.f32 1.0, %v4161
    %v4163 = vrcp.pop %v4160
    %v4164 = vmul.f32 1.0, %v4163
    %v4165 = vxor.u32 %v4151, 2147483648
    %v4166 = vxor.u32 %v4152, 2147483648
    %v4167 = vmul.f32 %v4165, 1.442695
    %v4168 = vpow.pop %v4167
    %v4169 = vmul.f32 %v4166, 1.442695
    %v4170 = vpow.pop %v4169
    %v4171 = vadd.f32 %v4168, 1.0
    %v4172 = vadd.f32 %v4170, 1.0
    %v4173 = vrcp.pop %v4171
    %v4174 = vmul.f32 1.0, %v4173
    %v4175 = vrcp.pop %v4172
    %v4176 = vmul.f32 1.0, %v4175
    %v4177 = vtanh.pop %v4150
    %v4178 = vtanh.pop %v4152
    %v4179 = vmul.f32 %v4162, %v3972
    %4181 = vrot.lane.b32.xlu0 %v4177, 64
    %v4182 = vpop.permute.xlu0 %4181
    %v4184 = vmul.f32 %v4162, %v4182
    %4186 = vrot.lane.b32.xlu0 %v4184, 64
    %v4187 = vpop.permute.xlu0 %4186
    %v4189 = vadd.f32 %v4179, %v4187
    %v4190 = vmul.f32 %v4174, %v3983
    %4192 = vrot.lane.b32.xlu0 %v4178, 64
    %v4193 = vpop.permute.xlu0 %4192
    %v4195 = vmul.f32 %v4174, %v4193
    %4197 = vrot.lane.b32.xlu0 %v4195, 64
    %v4198 = vpop.permute.xlu0 %4197
    %v4200 = vadd.f32 %v4190, %v4198
    %v4201 = vtanh.pop %v4189
    %4203 = vrot.lane.b32.xlu0 %v4201, 64
    %v4204 = vpop.permute.xlu0 %4203
    %v4206 = vmul.f32 %v4164, %v4204
    %v4207 = vtanh.pop %v4200
    %4209 = vrot.lane.b32.xlu0 %v4207, 64
    %v4210 = vpop.permute.xlu0 %4209
    %v4212 = vmul.f32 %v4176, %v4210
    %4213 = vst.msk [vmem:[#allocation2 + $0xe] sm:$0x3] %vm604, %v4206
    %4215 = vrot.lane.b32.xlu0 %v4212, 64
    %v4216 = vpop.permute.xlu0 %4215
    %4218 = vst.msk [vmem:[#allocation2] sm:$0x3] %vm610, %v4216
    %v4219 = vld [vmem:[#allocation2] sm:$0xff]
    %v4220 = vld [vmem:[#allocation2 + $0x8] sm:$0xff]
    %v4221 = vld [vmem:[#allocation9] sm:$0xff]
    %v4222 = vld [vmem:[#allocation9 + $0x8] sm:$0xff]
    %v4223 = vld [vmem:[#allocation9 + $0x10] sm:$0xff]
    %v4224 = vld [vmem:[#allocation9 + $0x18] sm:$0xff]
    %v4225 = vld [vmem:[#allocation9 + $0x20] sm:$0xff]
    %v4226 = vld [vmem:[#allocation9 + $0x28] sm:$0xff]
    %v4227 = vld [vmem:[#allocation9 + $0x30] sm:$0xff]
    %v4228 = vld [vmem:[#allocation9 + $0x38] sm:$0xff]
    %v4229 = vld [vmem:[#allocation9 + $0x40] sm:$0xff]
    %v4230 = vld [vmem:[#allocation9 + $0x48] sm:$0xff]
    %v4231 = vld [vmem:[#allocation9 + $0x50] sm:$0xff]
    %v4232 = vld [vmem:[#allocation9 + $0x58] sm:$0xff]
    %v4233 = vld [vmem:[#allocation9 + $0x60] sm:$0xff]
    %v4234 = vld [vmem:[#allocation9 + $0x68] sm:$0xff]
    %v4235 = vld [vmem:[#allocation9 + $0x70] sm:$0xff]
    %v4236 = vld [vmem:[#allocation9 + $0x78] sm:$0xff]
    %v4237 = vld [vmem:[#allocation9 + $0x80] sm:$0xff]
    %v4238 = vld [vmem:[#allocation9 + $0x88] sm:$0xff]
    %v4239 = vld [vmem:[#allocation9 + $0x90] sm:$0xff]
    %v4240 = vld [vmem:[#allocation9 + $0x98] sm:$0xff]
    %v4241 = vld [vmem:[#allocation9 + $0xa0] sm:$0xff]
    %v4242 = vld [vmem:[#allocation9 + $0xa8] sm:$0xff]
    %v4243 = vld [vmem:[#allocation9 + $0xb0] sm:$0xff]
    %v4244 = vld [vmem:[#allocation9 + $0xb8] sm:$0xff]
    %v4245 = vld [vmem:[#allocation9 + $0xc0] sm:$0xff]
    %v4246 = vld [vmem:[#allocation9 + $0xc8] sm:$0xff]
    %v4247 = vld [vmem:[#allocation9 + $0xd0] sm:$0xff]
    %v4248 = vld [vmem:[#allocation9 + $0xd8] sm:$0xff]
    %v4249 = vld [vmem:[#allocation9 + $0xe0] sm:$0xff]
    %v4250 = vld [vmem:[#allocation9 + $0xe8] sm:$0xff]
    %v4251 = vld [vmem:[#allocation9 + $0xf0] sm:$0xff]
    %v4252 = vld [vmem:[#allocation9 + $0xf8] sm:$0xff]
    %v4253 = vld [vmem:[#allocation9 + $0x100] sm:$0xff]
    %v4254 = vld [vmem:[#allocation9 + $0x108] sm:$0xff]
    %v4255 = vld [vmem:[#allocation9 + $0x110] sm:$0xff]
    %v4256 = vld [vmem:[#allocation9 + $0x118] sm:$0xff]
    %v4257 = vld [vmem:[#allocation9 + $0x120] sm:$0xff]
    %v4258 = vld [vmem:[#allocation9 + $0x128] sm:$0xff]
    %v4259 = vld [vmem:[#allocation9 + $0x130] sm:$0xff]
    %v4260 = vld [vmem:[#allocation9 + $0x138] sm:$0xff]
    %v4261 = vld [vmem:[#allocation9 + $0x140] sm:$0xff]
    %v4262 = vld [vmem:[#allocation9 + $0x148] sm:$0xff]
    %v4263 = vld [vmem:[#allocation9 + $0x150] sm:$0xff]
    %v4264 = vld [vmem:[#allocation9 + $0x158] sm:$0xff]
    %v4265 = vld [vmem:[#allocation9 + $0x160] sm:$0xff]
    %v4266 = vld [vmem:[#allocation9 + $0x168] sm:$0xff]
    %v4267 = vld [vmem:[#allocation9 + $0x170] sm:$0xff]
    %v4268 = vld [vmem:[#allocation9 + $0x178] sm:$0xff]
    %v4269 = vld [vmem:[#allocation9 + $0x180] sm:$0xff]
    %v4270 = vld [vmem:[#allocation9 + $0x188] sm:$0xff]
    %v4271 = vld [vmem:[#allocation9 + $0x190] sm:$0xff]
    %v4272 = vld [vmem:[#allocation9 + $0x198] sm:$0xff]
    %v4273 = vld [vmem:[#allocation9 + $0x1a0] sm:$0xff]
    %v4274 = vld [vmem:[#allocation9 + $0x1a8] sm:$0xff]
    %v4275 = vld [vmem:[#allocation9 + $0x1b0] sm:$0xff]
    %v4276 = vld [vmem:[#allocation9 + $0x1b8] sm:$0xff]
    %v4277 = vld [vmem:[#allocation9 + $0x1c0] sm:$0xff]
    %v4278 = vld [vmem:[#allocation9 + $0x1c8] sm:$0xff]
    %v4279 = vld [vmem:[#allocation9 + $0x1d0] sm:$0xff]
    %v4280 = vld [vmem:[#allocation9 + $0x1d8] sm:$0xff]
    %v4281 = vld [vmem:[#allocation9 + $0x1e0] sm:$0xff]
    %v4282 = vld [vmem:[#allocation9 + $0x1e8] sm:$0xff]
    %v4283 = vld [vmem:[#allocation9 + $0x1f0] sm:$0xff]
    %v4284 = vld [vmem:[#allocation9 + $0x1f8] sm:$0xff]
    %v4285 = vld [vmem:[%s9] sm:$0xf]
    %v4287 = vlaneseq
    %v4288 = vshrl.u32 %v4287, 7
    %v4289 = vsub.s32 0, %v4288
    %v4290 = vrot.slane %v4285, %v4289
    %v4291 = vlaneseq
    %v4292 = vshrl.u32 %v4291, 7
    %v4293 = vsub.s32 1, %v4292
    %v4294 = vrot.slane %v4285, %v4293
    %v4295 = vlaneseq
    %v4296 = vshrl.u32 %v4295, 7
    %v4297 = vsub.s32 2, %v4296
    %v4298 = vrot.slane %v4285, %v4297
    %v4299 = vlaneseq
    %v4300 = vshrl.u32 %v4299, 7
    %v4301 = vsub.s32 3, %v4300
    %v4302 = vrot.slane %v4285, %v4301
    %4307 = vmatprep.subr.mxu0 %v4282
    %4308 = vmatpush1.msra.mxu0 %v4281
    %4309 = vmatprep.subr.mxu0 %v4278
    %4310 = vmatpush1.msra.mxu0 %v4277
    %4311 = vmatprep.subr.mxu0 %v4274
    %4312 = vmatpush1.msra.mxu0 %v4273
    %4313 = vmatprep.subr.mxu0 %v4270
    %4314 = vmatpush1.msra.mxu0 %v4269
    %4315 = vmatprep.subr.mxu0 %v4266
    %4316 = vmatpush1.msra.mxu0 %v4265
    %4317 = vmatprep.subr.mxu0 %v4262
    %4318 = vmatpush1.msra.mxu0 %v4261
    %4319 = vmatprep.subr.mxu0 %v4258
    %4320 = vmatpush1.msra.mxu0 %v4257
    %4321 = vmatprep.subr.mxu0 %v4254
    %4322 = vmatpush1.msra.mxu0 %v4253
    %4323 = vmatprep.subr.mxu0 %v4250
    %4324 = vmatpush1.msra.mxu0 %v4249
    %4325 = vmatprep.subr.mxu0 %v4246
    %4326 = vmatpush1.msra.mxu0 %v4245
    %4327 = vmatprep.subr.mxu0 %v4242
    %4328 = vmatpush1.msra.mxu0 %v4241
    %4329 = vmatprep.subr.mxu0 %v4238
    %4330 = vmatpush1.msra.mxu0 %v4237
    %4331 = vmatprep.subr.mxu0 %v4234
    %4332 = vmatpush1.msra.mxu0 %v4233
    %4333 = vmatprep.subr.mxu0 %v4230
    %4334 = vmatpush1.msra.mxu0 %v4229
    %4335 = vmatprep.subr.mxu0 %v4226
    %4336 = vmatpush1.msra.mxu0 %v4225
    %4337 = vmatprep.subr.mxu0 %v4222
    %4338 = vmatpush1.msra.mxu0 %v4221
    %4339 = vmatprep.subr.mxu0 0.0
    %4340 = vmatpush2.msra.mxu0 0.0
    %4341 = vmatprep.subr.mxu0 0.0
    %4342 = vmatpush2.msra.mxu0 0.0
    %4343 = vmatprep.subr.mxu0 0.0
    %4344 = vmatpush2.msra.mxu0 0.0
    %4345 = vmatprep.subr.mxu0 0.0
    %4346 = vmatpush2.msra.mxu0 0.0
    %4347 = vmatprep.subr.mxu0 0.0
    %4348 = vmatpush2.msra.mxu0 0.0
    %4349 = vmatprep.subr.mxu0 0.0
    %4350 = vmatpush2.msra.mxu0 0.0
    %4351 = vmatprep.subr.mxu0 0.0
    %4352 = vmatpush2.msra.mxu0 0.0
    %4353 = vmatprep.subr.mxu0 0.0
    %4354 = vmatpush2.msra.mxu0 0.0
    %4355 = vmatprep.subr.mxu0 0.0
    %4356 = vmatpush2.msra.mxu0 0.0
    %4357 = vmatprep.subr.mxu0 0.0
    %4358 = vmatpush2.msra.mxu0 0.0
    %4359 = vmatprep.subr.mxu0 0.0
    %4360 = vmatpush2.msra.mxu0 0.0
    %4361 = vmatprep.subr.mxu0 0.0
    %4362 = vmatpush2.msra.mxu0 0.0
    %4363 = vmatprep.subr.mxu0 0.0
    %4364 = vmatpush2.msra.mxu0 0.0
    %4365 = vmatprep.subr.mxu0 0.0
    %4366 = vmatpush2.msra.mxu0 0.0
    %4367 = vmatprep.subr.mxu0 0.0
    %4368 = vmatpush2.msra.mxu0 0.0
    %4369 = vmatprep.subr.mxu0 0.0
    %4370 = vmatpush2.msra.mxu0 0.0
    %4371 = vmatprep.mubr.f32.mxu0 0.0
    %4372 = vmatmul.mubr.f32.gmra.mxu0 %v4219
    %v4373 = vpop.f32.mrf.mxu0
    %v4374 = vadd.f32 %v4290, %v4373
    %v4375 = vpop.f32.mrf.mxu0
    %v4376 = vadd.f32 %v4294, %v4375
    %4377 = vmatprep.mubr.f32.mxu0 0.0
    %4378 = vmatmul.mubr.f32.gmra.mxu0 %v4220
    %v4379 = vpop.f32.mrf.mxu0
    %v4380 = vadd.f32 %v4290, %v4379
    %v4381 = vpop.f32.mrf.mxu0
    %v4382 = vadd.f32 %v4294, %v4381
    %4383 = vdwg.mxu0
    %4384 = vmatprep.subr.mxu0 %v4284
    %4385 = vmatpush1.msra.mxu0 %v4283
    %4386 = vmatprep.subr.mxu0 %v4280
    %4387 = vmatpush1.msra.mxu0 %v4279
    %4388 = vmatprep.subr.mxu0 %v4276
    %4389 = vmatpush1.msra.mxu0 %v4275
    %4390 = vmatprep.subr.mxu0 %v4272
    %4391 = vmatpush1.msra.mxu0 %v4271
    %4392 = vmatprep.subr.mxu0 %v4268
    %4393 = vmatpush1.msra.mxu0 %v4267
    %4394 = vmatprep.subr.mxu0 %v4264
    %4395 = vmatpush1.msra.mxu0 %v4263
    %4396 = vmatprep.subr.mxu0 %v4260
    %4397 = vmatpush1.msra.mxu0 %v4259
    %4398 = vmatprep.subr.mxu0 %v4256
    %4399 = vmatpush1.msra.mxu0 %v4255
    %4400 = vmatprep.subr.mxu0 %v4252
    %4401 = vmatpush1.msra.mxu0 %v4251
    %4402 = vmatprep.subr.mxu0 %v4248
    %4403 = vmatpush1.msra.mxu0 %v4247
    %4404 = vmatprep.subr.mxu0 %v4244
    %4405 = vmatpush1.msra.mxu0 %v4243
    %4406 = vmatprep.subr.mxu0 %v4240
    %4407 = vmatpush1.msra.mxu0 %v4239
    %4408 = vmatprep.subr.mxu0 %v4236
    %4409 = vmatpush1.msra.mxu0 %v4235
    %4410 = vmatprep.subr.mxu0 %v4232
    %4411 = vmatpush1.msra.mxu0 %v4231
    %4412 = vmatprep.subr.mxu0 %v4228
    %4413 = vmatpush1.msra.mxu0 %v4227
    %4414 = vmatprep.subr.mxu0 %v4224
    %4415 = vmatpush1.msra.mxu0 %v4223
    %4416 = vmatprep.subr.mxu0 0.0
    %4417 = vmatpush2.msra.mxu0 0.0
    %4418 = vmatprep.subr.mxu0 0.0
    %4419 = vmatpush2.msra.mxu0 0.0
    %4420 = vmatprep.subr.mxu0 0.0
    %4421 = vmatpush2.msra.mxu0 0.0
    %4422 = vmatprep.subr.mxu0 0.0
    %4423 = vmatpush2.msra.mxu0 0.0
    %4424 = vmatprep.subr.mxu0 0.0
    %4425 = vmatpush2.msra.mxu0 0.0
    %4426 = vmatprep.subr.mxu0 0.0
    %4427 = vmatpush2.msra.mxu0 0.0
    %4428 = vmatprep.subr.mxu0 0.0
    %4429 = vmatpush2.msra.mxu0 0.0
    %4430 = vmatprep.subr.mxu0 0.0
    %4431 = vmatpush2.msra.mxu0 0.0
    %4432 = vmatprep.subr.mxu0 0.0
    %4433 = vmatpush2.msra.mxu0 0.0
    %4434 = vmatprep.subr.mxu0 0.0
    %4435 = vmatpush2.msra.mxu0 0.0
    %4436 = vmatprep.subr.mxu0 0.0
    %4437 = vmatpush2.msra.mxu0 0.0
    %4438 = vmatprep.subr.mxu0 0.0
    %4439 = vmatpush2.msra.mxu0 0.0
    %4440 = vmatprep.subr.mxu0 0.0
    %4441 = vmatpush2.msra.mxu0 0.0
    %4442 = vmatprep.subr.mxu0 0.0
    %4443 = vmatpush2.msra.mxu0 0.0
    %4444 = vmatprep.subr.mxu0 0.0
    %4445 = vmatpush2.msra.mxu0 0.0
    %4446 = vmatprep.subr.mxu0 0.0
    %4447 = vmatpush2.msra.mxu0 0.0
    %4448 = vmatprep.mubr.f32.mxu0 0.0
    %4449 = vmatmul.mubr.f32.gmra.mxu0 %v4219
    %v4450 = vpop.f32.mrf.mxu0
    %v4451 = vadd.f32 %v4298, %v4450
    %v4452 = vpop.f32.mrf.mxu0
    %v4453 = vadd.f32 %v4302, %v4452
    %4454 = vmatprep.mubr.f32.mxu0 0.0
    %4455 = vmatmul.mubr.f32.gmra.mxu0 %v4220
    %v4456 = vpop.f32.mrf.mxu0
    %v4457 = vadd.f32 %v4298, %v4456
    %v4458 = vpop.f32.mrf.mxu0
    %v4459 = vadd.f32 %v4302, %v4458
    %4460 = vdwg.mxu0
    %v4461 = vld [vmem:[#allocation11] sm:$0xff]
    %v4462 = vld [vmem:[#allocation11 + $0x8] sm:$0xff]
    %v4463 = vld [vmem:[#allocation11 + $0x10] sm:$0xff]
    %v4464 = vld [vmem:[#allocation11 + $0x18] sm:$0xff]
    %v4465 = vld [vmem:[#allocation11 + $0x20] sm:$0xff]
    %v4466 = vld [vmem:[#allocation11 + $0x28] sm:$0xff]
    %v4467 = vld [vmem:[#allocation11 + $0x30] sm:$0xff]
    %v4468 = vld [vmem:[#allocation11 + $0x38] sm:$0xff]
    %v4469 = vld [vmem:[#allocation11 + $0x40] sm:$0xff]
    %v4470 = vld [vmem:[#allocation11 + $0x48] sm:$0xff]
    %v4471 = vld [vmem:[#allocation11 + $0x50] sm:$0xff]
    %v4472 = vld [vmem:[#allocation11 + $0x58] sm:$0xff]
    %v4473 = vld [vmem:[#allocation11 + $0x60] sm:$0xff]
    %v4474 = vld [vmem:[#allocation11 + $0x68] sm:$0xff]
    %v4475 = vld [vmem:[#allocation11 + $0x70] sm:$0xff]
    %v4476 = vld [vmem:[#allocation11 + $0x78] sm:$0xff]
    %v4477 = vld [vmem:[#allocation11 + $0x80] sm:$0xff]
    %v4478 = vld [vmem:[#allocation11 + $0x88] sm:$0xff]
    %v4479 = vld [vmem:[#allocation11 + $0x90] sm:$0xff]
    %v4480 = vld [vmem:[#allocation11 + $0x98] sm:$0xff]
    %v4481 = vld [vmem:[#allocation11 + $0xa0] sm:$0xff]
    %v4482 = vld [vmem:[#allocation11 + $0xa8] sm:$0xff]
    %v4483 = vld [vmem:[#allocation11 + $0xb0] sm:$0xff]
    %v4484 = vld [vmem:[#allocation11 + $0xb8] sm:$0xff]
    %v4485 = vld [vmem:[#allocation11 + $0xc0] sm:$0xff]
    %v4486 = vld [vmem:[#allocation11 + $0xc8] sm:$0xff]
    %v4487 = vld [vmem:[#allocation11 + $0xd0] sm:$0xff]
    %v4488 = vld [vmem:[#allocation11 + $0xd8] sm:$0xff]
    %v4489 = vld [vmem:[#allocation11 + $0xe0] sm:$0xff]
    %v4490 = vld [vmem:[#allocation11 + $0xe8] sm:$0xff]
    %v4491 = vld [vmem:[#allocation11 + $0xf0] sm:$0xff]
    %v4492 = vld [vmem:[#allocation11 + $0xf8] sm:$0xff]
    %v4493 = vld [vmem:[#allocation11 + $0x100] sm:$0xff]
    %v4494 = vld [vmem:[#allocation11 + $0x108] sm:$0xff]
    %v4495 = vld [vmem:[#allocation11 + $0x110] sm:$0xff]
    %v4496 = vld [vmem:[#allocation11 + $0x118] sm:$0xff]
    %v4497 = vld [vmem:[#allocation11 + $0x120] sm:$0xff]
    %v4498 = vld [vmem:[#allocation11 + $0x128] sm:$0xff]
    %v4499 = vld [vmem:[#allocation11 + $0x130] sm:$0xff]
    %v4500 = vld [vmem:[#allocation11 + $0x138] sm:$0xff]
    %v4501 = vld [vmem:[#allocation11 + $0x140] sm:$0xff]
    %v4502 = vld [vmem:[#allocation11 + $0x148] sm:$0xff]
    %v4503 = vld [vmem:[#allocation11 + $0x150] sm:$0xff]
    %v4504 = vld [vmem:[#allocation11 + $0x158] sm:$0xff]
    %v4505 = vld [vmem:[#allocation11 + $0x160] sm:$0xff]
    %v4506 = vld [vmem:[#allocation11 + $0x168] sm:$0xff]
    %v4507 = vld [vmem:[#allocation11 + $0x170] sm:$0xff]
    %v4508 = vld [vmem:[#allocation11 + $0x178] sm:$0xff]
    %v4509 = vld [vmem:[#allocation11 + $0x180] sm:$0xff]
    %v4510 = vld [vmem:[#allocation11 + $0x188] sm:$0xff]
    %v4511 = vld [vmem:[#allocation11 + $0x190] sm:$0xff]
    %v4512 = vld [vmem:[#allocation11 + $0x198] sm:$0xff]
    %v4513 = vld [vmem:[#allocation11 + $0x1a0] sm:$0xff]
    %v4514 = vld [vmem:[#allocation11 + $0x1a8] sm:$0xff]
    %v4515 = vld [vmem:[#allocation11 + $0x1b0] sm:$0xff]
    %v4516 = vld [vmem:[#allocation11 + $0x1b8] sm:$0xff]
    %v4517 = vld [vmem:[#allocation11 + $0x1c0] sm:$0xff]
    %v4518 = vld [vmem:[#allocation11 + $0x1c8] sm:$0xff]
    %v4519 = vld [vmem:[#allocation11 + $0x1d0] sm:$0xff]
    %v4520 = vld [vmem:[#allocation11 + $0x1d8] sm:$0xff]
    %v4521 = vld [vmem:[#allocation11 + $0x1e0] sm:$0xff]
    %v4522 = vld [vmem:[#allocation11 + $0x1e8] sm:$0xff]
    %v4523 = vld [vmem:[#allocation11 + $0x1f0] sm:$0xff]
    %v4524 = vld [vmem:[#allocation11 + $0x1f8] sm:$0xff]
    %4525 = vmatprep.subr.mxu0 %v4522
    %4526 = vmatpush1.msra.mxu0 %v4521
    %4527 = vmatprep.subr.mxu0 %v4518
    %4528 = vmatpush1.msra.mxu0 %v4517
    %4529 = vmatprep.subr.mxu0 %v4514
    %4530 = vmatpush1.msra.mxu0 %v4513
    %4531 = vmatprep.subr.mxu0 %v4510
    %4532 = vmatpush1.msra.mxu0 %v4509
    %4533 = vmatprep.subr.mxu0 %v4506
    %4534 = vmatpush1.msra.mxu0 %v4505
    %4535 = vmatprep.subr.mxu0 %v4502
    %4536 = vmatpush1.msra.mxu0 %v4501
    %4537 = vmatprep.subr.mxu0 %v4498
    %4538 = vmatpush1.msra.mxu0 %v4497
    %4539 = vmatprep.subr.mxu0 %v4494
    %4540 = vmatpush1.msra.mxu0 %v4493
    %4541 = vmatprep.subr.mxu0 %v4490
    %4542 = vmatpush1.msra.mxu0 %v4489
    %4543 = vmatprep.subr.mxu0 %v4486
    %4544 = vmatpush1.msra.mxu0 %v4485
    %4545 = vmatprep.subr.mxu0 %v4482
    %4546 = vmatpush1.msra.mxu0 %v4481
    %4547 = vmatprep.subr.mxu0 %v4478
    %4548 = vmatpush1.msra.mxu0 %v4477
    %4549 = vmatprep.subr.mxu0 %v4474
    %4550 = vmatpush1.msra.mxu0 %v4473
    %4551 = vmatprep.subr.mxu0 %v4470
    %4552 = vmatpush1.msra.mxu0 %v4469
    %4553 = vmatprep.subr.mxu0 %v4466
    %4554 = vmatpush1.msra.mxu0 %v4465
    %4555 = vmatprep.subr.mxu0 %v4462
    %4556 = vmatpush1.msra.mxu0 %v4461
    %4557 = vmatprep.subr.mxu0 0.0
    %4558 = vmatpush2.msra.mxu0 0.0
    %4559 = vmatprep.subr.mxu0 0.0
    %4560 = vmatpush2.msra.mxu0 0.0
    %4561 = vmatprep.subr.mxu0 0.0
    %4562 = vmatpush2.msra.mxu0 0.0
    %4563 = vmatprep.subr.mxu0 0.0
    %4564 = vmatpush2.msra.mxu0 0.0
    %4565 = vmatprep.subr.mxu0 0.0
    %4566 = vmatpush2.msra.mxu0 0.0
    %4567 = vmatprep.subr.mxu0 0.0
    %4568 = vmatpush2.msra.mxu0 0.0
    %4569 = vmatprep.subr.mxu0 0.0
    %4570 = vmatpush2.msra.mxu0 0.0
    %4571 = vmatprep.subr.mxu0 0.0
    %4572 = vmatpush2.msra.mxu0 0.0
    %4573 = vmatprep.subr.mxu0 0.0
    %4574 = vmatpush2.msra.mxu0 0.0
    %4575 = vmatprep.subr.mxu0 0.0
    %4576 = vmatpush2.msra.mxu0 0.0
    %4577 = vmatprep.subr.mxu0 0.0
    %4578 = vmatpush2.msra.mxu0 0.0
    %4579 = vmatprep.subr.mxu0 0.0
    %4580 = vmatpush2.msra.mxu0 0.0
    %4581 = vmatprep.subr.mxu0 0.0
    %4582 = vmatpush2.msra.mxu0 0.0
    %4583 = vmatprep.subr.mxu0 0.0
    %4584 = vmatpush2.msra.mxu0 0.0
    %4585 = vmatprep.subr.mxu0 0.0
    %4586 = vmatpush2.msra.mxu0 0.0
    %4587 = vmatprep.subr.mxu0 0.0
    %4588 = vmatpush2.msra.mxu0 0.0
    %4589 = vmatprep.mubr.f32.mxu0 0.0
    %4590 = vmatmul.mubr.f32.gmra.mxu0 0.0
    %v4591 = vpop.f32.mrf.mxu0
    %v4592 = vadd.f32 0.0, %v4591
    %v4593 = vpop.f32.mrf.mxu0
    %v4594 = vadd.f32 0.0, %v4593
    %4595 = vdwg.mxu0
    %4596 = vmatprep.subr.mxu0 %v4524
    %4597 = vmatpush1.msra.mxu0 %v4523
    %4598 = vmatprep.subr.mxu0 %v4520
    %4599 = vmatpush1.msra.mxu0 %v4519
    %4600 = vmatprep.subr.mxu0 %v4516
    %4601 = vmatpush1.msra.mxu0 %v4515
    %4602 = vmatprep.subr.mxu0 %v4512
    %4603 = vmatpush1.msra.mxu0 %v4511
    %4604 = vmatprep.subr.mxu0 %v4508
    %4605 = vmatpush1.msra.mxu0 %v4507
    %4606 = vmatprep.subr.mxu0 %v4504
    %4607 = vmatpush1.msra.mxu0 %v4503
    %4608 = vmatprep.subr.mxu0 %v4500
    %4609 = vmatpush1.msra.mxu0 %v4499
    %4610 = vmatprep.subr.mxu0 %v4496
    %4611 = vmatpush1.msra.mxu0 %v4495
    %4612 = vmatprep.subr.mxu0 %v4492
    %4613 = vmatpush1.msra.mxu0 %v4491
    %4614 = vmatprep.subr.mxu0 %v4488
    %4615 = vmatpush1.msra.mxu0 %v4487
    %4616 = vmatprep.subr.mxu0 %v4484
    %4617 = vmatpush1.msra.mxu0 %v4483
    %4618 = vmatprep.subr.mxu0 %v4480
    %4619 = vmatpush1.msra.mxu0 %v4479
    %4620 = vmatprep.subr.mxu0 %v4476
    %4621 = vmatpush1.msra.mxu0 %v4475
    %4622 = vmatprep.subr.mxu0 %v4472
    %4623 = vmatpush1.msra.mxu0 %v4471
    %4624 = vmatprep.subr.mxu0 %v4468
    %4625 = vmatpush1.msra.mxu0 %v4467
    %4626 = vmatprep.subr.mxu0 %v4464
    %4627 = vmatpush1.msra.mxu0 %v4463
    %4628 = vmatprep.subr.mxu0 0.0
    %4629 = vmatpush2.msra.mxu0 0.0
    %4630 = vmatprep.subr.mxu0 0.0
    %4631 = vmatpush2.msra.mxu0 0.0
    %4632 = vmatprep.subr.mxu0 0.0
    %4633 = vmatpush2.msra.mxu0 0.0
    %4634 = vmatprep.subr.mxu0 0.0
    %4635 = vmatpush2.msra.mxu0 0.0
    %4636 = vmatprep.subr.mxu0 0.0
    %4637 = vmatpush2.msra.mxu0 0.0
    %4638 = vmatprep.subr.mxu0 0.0
    %4639 = vmatpush2.msra.mxu0 0.0
    %4640 = vmatprep.subr.mxu0 0.0
    %4641 = vmatpush2.msra.mxu0 0.0
    %4642 = vmatprep.subr.mxu0 0.0
    %4643 = vmatpush2.msra.mxu0 0.0
    %4644 = vmatprep.subr.mxu0 0.0
    %4645 = vmatpush2.msra.mxu0 0.0
    %4646 = vmatprep.subr.mxu0 0.0
    %4647 = vmatpush2.msra.mxu0 0.0
    %4648 = vmatprep.subr.mxu0 0.0
    %4649 = vmatpush2.msra.mxu0 0.0
    %4650 = vmatprep.subr.mxu0 0.0
    %4651 = vmatpush2.msra.mxu0 0.0
    %4652 = vmatprep.subr.mxu0 0.0
    %4653 = vmatpush2.msra.mxu0 0.0
    %4654 = vmatprep.subr.mxu0 0.0
    %4655 = vmatpush2.msra.mxu0 0.0
    %4656 = vmatprep.subr.mxu0 0.0
    %4657 = vmatpush2.msra.mxu0 0.0
    %4658 = vmatprep.subr.mxu0 0.0
    %4659 = vmatpush2.msra.mxu0 0.0
    %4660 = vmatprep.mubr.f32.mxu0 0.0
    %4661 = vmatmul.mubr.f32.gmra.mxu0 0.0
    %v4662 = vpop.f32.mrf.mxu0
    %v4663 = vadd.f32 0.0, %v4662
    %v4664 = vpop.f32.mrf.mxu0
    %v4665 = vadd.f32 0.0, %v4664
    %4666 = vdwg.mxu0
    %v4667 = vadd.f32 %v4592, %v4374
    %v4668 = vadd.f32 %v4594, %v4376
    %v4671 = vrot.slane %v4457, 6
    %v4672 = vrot.slane %v4459, 6
    %v4675 = vadd.f32 %v4663, %v4671
    %v4676 = vadd.f32 %v4665, %v4672
    %v4677 = vxor.u32 %v4667, 2147483648
    %v4678 = vxor.u32 %v4668, 2147483648
    %v4679 = vmul.f32 %v4677, 1.442695
    %v4680 = vpow.pop %v4679
    %v4681 = vmul.f32 %v4678, 1.442695
    %v4682 = vpow.pop %v4681
    %v4683 = vadd.f32 %v4680, 1.0
    %v4684 = vadd.f32 %v4682, 1.0
    %v4685 = vrcp.pop %v4683
    %v4686 = vmul.f32 1.0, %v4685
    %v4687 = vrcp.pop %v4684
    %v4688 = vmul.f32 1.0, %v4687
    %v4689 = vxor.u32 %v4675, 2147483648
    %v4690 = vxor.u32 %v4676, 2147483648
    %v4691 = vmul.f32 %v4689, 1.442695
    %v4692 = vpow.pop %v4691
    %v4693 = vmul.f32 %v4690, 1.442695
    %v4694 = vpow.pop %v4693
    %v4695 = vadd.f32 %v4692, 1.0
    %v4696 = vadd.f32 %v4694, 1.0
    %v4697 = vrcp.pop %v4695
    %v4698 = vmul.f32 1.0, %v4697
    %v4699 = vrcp.pop %v4696
    %v4700 = vmul.f32 1.0, %v4699
    %v4701 = vtanh.pop %v4668
    %v4702 = vtanh.pop %v4676
    %v4703 = vmul.f32 %v4686, 0.0
    %4705 = vrot.lane.b32.xlu0 %v4701, 64
    %v4706 = vpop.permute.xlu0 %4705
    %v4708 = vmul.f32 %v4686, %v4706
    %4710 = vrot.lane.b32.xlu0 %v4708, 64
    %v4711 = vpop.permute.xlu0 %4710
    %v4713 = vadd.f32 %v4703, %v4711
    %v4714 = vmul.f32 %v4698, 0.0
    %4716 = vrot.lane.b32.xlu0 %v4702, 64
    %v4717 = vpop.permute.xlu0 %4716
    %v4719 = vmul.f32 %v4698, %v4717
    %4721 = vrot.lane.b32.xlu0 %v4719, 64
    %v4722 = vpop.permute.xlu0 %4721
    %v4724 = vadd.f32 %v4714, %v4722
    %v4725 = vtanh.pop %v4713
    %4727 = vrot.lane.b32.xlu0 %v4725, 64
    %v4728 = vpop.permute.xlu0 %4727
    %v4730 = vmul.f32 %v4688, %v4728
    %v4731 = vtanh.pop %v4724
    %4733 = vrot.lane.b32.xlu0 %v4731, 64
    %v4734 = vpop.permute.xlu0 %4733
    %v4736 = vmul.f32 %v4700, %v4734
    %4737 = vst.msk [vmem:[#allocation2] sm:$0x3] %vm604, %v4730
    %4739 = vrot.lane.b32.xlu0 %v4736, 64
    %v4740 = vpop.permute.xlu0 %4739
    %4742 = vst.msk [vmem:[#allocation2 + $0xe] sm:$0x3] %vm610, %v4740
    %v4743 = vsel %vm612, %v4730, %v4740
    %4744 = vmatprep.subr.mxu0 %v4522
    %4745 = vmatpush1.msra.mxu0 %v4521
    %4746 = vmatprep.subr.mxu0 %v4518
    %4747 = vmatpush1.msra.mxu0 %v4517
    %4748 = vmatprep.subr.mxu0 %v4514
    %4749 = vmatpush1.msra.mxu0 %v4513
    %4750 = vmatprep.subr.mxu0 %v4510
    %4751 = vmatpush1.msra.mxu0 %v4509
    %4752 = vmatprep.subr.mxu0 %v4506
    %4753 = vmatpush1.msra.mxu0 %v4505
    %4754 = vmatprep.subr.mxu0 %v4502
    %4755 = vmatpush1.msra.mxu0 %v4501
    %4756 = vmatprep.subr.mxu0 %v4498
    %4757 = vmatpush1.msra.mxu0 %v4497
    %4758 = vmatprep.subr.mxu0 %v4494
    %4759 = vmatpush1.msra.mxu0 %v4493
    %4760 = vmatprep.subr.mxu0 %v4490
    %4761 = vmatpush1.msra.mxu0 %v4489
    %4762 = vmatprep.subr.mxu0 %v4486
    %4763 = vmatpush1.msra.mxu0 %v4485
    %4764 = vmatprep.subr.mxu0 %v4482
    %4765 = vmatpush1.msra.mxu0 %v4481
    %4766 = vmatprep.subr.mxu0 %v4478
    %4767 = vmatpush1.msra.mxu0 %v4477
    %4768 = vmatprep.subr.mxu0 %v4474
    %4769 = vmatpush1.msra.mxu0 %v4473
    %4770 = vmatprep.subr.mxu0 %v4470
    %4771 = vmatpush1.msra.mxu0 %v4469
    %4772 = vmatprep.subr.mxu0 %v4466
    %4773 = vmatpush1.msra.mxu0 %v4465
    %4774 = vmatprep.subr.mxu0 %v4462
    %4775 = vmatpush1.msra.mxu0 %v4461
    %4776 = vmatprep.subr.mxu0 0.0
    %4777 = vmatpush2.msra.mxu0 0.0
    %4778 = vmatprep.subr.mxu0 0.0
    %4779 = vmatpush2.msra.mxu0 0.0
    %4780 = vmatprep.subr.mxu0 0.0
    %4781 = vmatpush2.msra.mxu0 0.0
    %4782 = vmatprep.subr.mxu0 0.0
    %4783 = vmatpush2.msra.mxu0 0.0
    %4784 = vmatprep.subr.mxu0 0.0
    %4785 = vmatpush2.msra.mxu0 0.0
    %4786 = vmatprep.subr.mxu0 0.0
    %4787 = vmatpush2.msra.mxu0 0.0
    %4788 = vmatprep.subr.mxu0 0.0
    %4789 = vmatpush2.msra.mxu0 0.0
    %4790 = vmatprep.subr.mxu0 0.0
    %4791 = vmatpush2.msra.mxu0 0.0
    %4792 = vmatprep.subr.mxu0 0.0
    %4793 = vmatpush2.msra.mxu0 0.0
    %4794 = vmatprep.subr.mxu0 0.0
    %4795 = vmatpush2.msra.mxu0 0.0
    %4796 = vmatprep.subr.mxu0 0.0
    %4797 = vmatpush2.msra.mxu0 0.0
    %4798 = vmatprep.subr.mxu0 0.0
    %4799 = vmatpush2.msra.mxu0 0.0
    %4800 = vmatprep.subr.mxu0 0.0
    %4801 = vmatpush2.msra.mxu0 0.0
    %4802 = vmatprep.subr.mxu0 0.0
    %4803 = vmatpush2.msra.mxu0 0.0
    %4804 = vmatprep.subr.mxu0 0.0
    %4805 = vmatpush2.msra.mxu0 0.0
    %4806 = vmatprep.subr.mxu0 0.0
    %4807 = vmatpush2.msra.mxu0 0.0
    %4808 = vmatprep.mubr.f32.mxu0 0.0
    %4809 = vmatmul.mubr.f32.gmra.mxu0 %v4743
    %v4810 = vpop.f32.mrf.mxu0
    %v4811 = vadd.f32 0.0, %v4810
    %v4812 = vpop.f32.mrf.mxu0
    %v4813 = vadd.f32 0.0, %v4812
    %4814 = vdwg.mxu0
    %4815 = vmatprep.subr.mxu0 %v4524
    %4816 = vmatpush1.msra.mxu0 %v4523
    %4817 = vmatprep.subr.mxu0 %v4520
    %4818 = vmatpush1.msra.mxu0 %v4519
    %4819 = vmatprep.subr.mxu0 %v4516
    %4820 = vmatpush1.msra.mxu0 %v4515
    %4821 = vmatprep.subr.mxu0 %v4512
    %4822 = vmatpush1.msra.mxu0 %v4511
    %4823 = vmatprep.subr.mxu0 %v4508
    %4824 = vmatpush1.msra.mxu0 %v4507
    %4825 = vmatprep.subr.mxu0 %v4504
    %4826 = vmatpush1.msra.mxu0 %v4503
    %4827 = vmatprep.subr.mxu0 %v4500
    %4828 = vmatpush1.msra.mxu0 %v4499
    %4829 = vmatprep.subr.mxu0 %v4496
    %4830 = vmatpush1.msra.mxu0 %v4495
    %4831 = vmatprep.subr.mxu0 %v4492
    %4832 = vmatpush1.msra.mxu0 %v4491
    %4833 = vmatprep.subr.mxu0 %v4488
    %4834 = vmatpush1.msra.mxu0 %v4487
    %4835 = vmatprep.subr.mxu0 %v4484
    %4836 = vmatpush1.msra.mxu0 %v4483
    %4837 = vmatprep.subr.mxu0 %v4480
    %4838 = vmatpush1.msra.mxu0 %v4479
    %4839 = vmatprep.subr.mxu0 %v4476
    %4840 = vmatpush1.msra.mxu0 %v4475
    %4841 = vmatprep.subr.mxu0 %v4472
    %4842 = vmatpush1.msra.mxu0 %v4471
    %4843 = vmatprep.subr.mxu0 %v4468
    %4844 = vmatpush1.msra.mxu0 %v4467
    %4845 = vmatprep.subr.mxu0 %v4464
    %4846 = vmatpush1.msra.mxu0 %v4463
    %4847 = vmatprep.subr.mxu0 0.0
    %4848 = vmatpush2.msra.mxu0 0.0
    %4849 = vmatprep.subr.mxu0 0.0
    %4850 = vmatpush2.msra.mxu0 0.0
    %4851 = vmatprep.subr.mxu0 0.0
    %4852 = vmatpush2.msra.mxu0 0.0
    %4853 = vmatprep.subr.mxu0 0.0
    %4854 = vmatpush2.msra.mxu0 0.0
    %4855 = vmatprep.subr.mxu0 0.0
    %4856 = vmatpush2.msra.mxu0 0.0
    %4857 = vmatprep.subr.mxu0 0.0
    %4858 = vmatpush2.msra.mxu0 0.0
    %4859 = vmatprep.subr.mxu0 0.0
    %4860 = vmatpush2.msra.mxu0 0.0
    %4861 = vmatprep.subr.mxu0 0.0
    %4862 = vmatpush2.msra.mxu0 0.0
    %4863 = vmatprep.subr.mxu0 0.0
    %4864 = vmatpush2.msra.mxu0 0.0
    %4865 = vmatprep.subr.mxu0 0.0
    %4866 = vmatpush2.msra.mxu0 0.0
    %4867 = vmatprep.subr.mxu0 0.0
    %4868 = vmatpush2.msra.mxu0 0.0
    %4869 = vmatprep.subr.mxu0 0.0
    %4870 = vmatpush2.msra.mxu0 0.0
    %4871 = vmatprep.subr.mxu0 0.0
    %4872 = vmatpush2.msra.mxu0 0.0
    %4873 = vmatprep.subr.mxu0 0.0
    %4874 = vmatpush2.msra.mxu0 0.0
    %4875 = vmatprep.subr.mxu0 0.0
    %4876 = vmatpush2.msra.mxu0 0.0
    %4877 = vmatprep.subr.mxu0 0.0
    %4878 = vmatpush2.msra.mxu0 0.0
    %4879 = vmatprep.mubr.f32.mxu0 0.0
    %4880 = vmatmul.mubr.f32.gmra.mxu0 %v4743
    %v4881 = vpop.f32.mrf.mxu0
    %v4882 = vadd.f32 0.0, %v4881
    %v4883 = vpop.f32.mrf.mxu0
    %v4884 = vadd.f32 0.0, %v4883
    %4885 = vdwg.mxu0
    %v4888 = vrot.slane %v4374, 2
    %v4889 = vrot.slane %v4376, 2
    %v4892 = vadd.f32 %v4811, %v4888
    %v4893 = vadd.f32 %v4813, %v4889
    %v4894 = vrot.slane %v4457, 4
    %v4895 = vrot.slane %v4459, 4
    %v4898 = vadd.f32 %v4882, %v4894
    %v4899 = vadd.f32 %v4884, %v4895
    %v4900 = vxor.u32 %v4892, 2147483648
    %v4901 = vxor.u32 %v4893, 2147483648
    %v4902 = vmul.f32 %v4900, 1.442695
    %v4903 = vpow.pop %v4902
    %v4904 = vmul.f32 %v4901, 1.442695
    %v4905 = vpow.pop %v4904
    %v4906 = vadd.f32 %v4903, 1.0
    %v4907 = vadd.f32 %v4905, 1.0
    %v4908 = vrcp.pop %v4906
    %v4909 = vmul.f32 1.0, %v4908
    %v4910 = vrcp.pop %v4907
    %v4911 = vmul.f32 1.0, %v4910
    %v4912 = vxor.u32 %v4898, 2147483648
    %v4913 = vxor.u32 %v4899, 2147483648
    %v4914 = vmul.f32 %v4912, 1.442695
    %v4915 = vpow.pop %v4914
    %v4916 = vmul.f32 %v4913, 1.442695
    %v4917 = vpow.pop %v4916
    %v4918 = vadd.f32 %v4915, 1.0
    %v4919 = vadd.f32 %v4917, 1.0
    %v4920 = vrcp.pop %v4918
    %v4921 = vmul.f32 1.0, %v4920
    %v4922 = vrcp.pop %v4919
    %v4923 = vmul.f32 1.0, %v4922
    %v4924 = vtanh.pop %v4893
    %v4925 = vtanh.pop %v4899
    %v4926 = vmul.f32 %v4909, %v4713
    %4928 = vrot.lane.b32.xlu0 %v4924, 64
    %v4929 = vpop.permute.xlu0 %4928
    %v4931 = vmul.f32 %v4909, %v4929
    %4933 = vrot.lane.b32.xlu0 %v4931, 64
    %v4934 = vpop.permute.xlu0 %4933
    %v4936 = vadd.f32 %v4926, %v4934
    %v4937 = vmul.f32 %v4921, %v4724
    %4939 = vrot.lane.b32.xlu0 %v4925, 64
    %v4940 = vpop.permute.xlu0 %4939
    %v4942 = vmul.f32 %v4921, %v4940
    %4944 = vrot.lane.b32.xlu0 %v4942, 64
    %v4945 = vpop.permute.xlu0 %4944
    %v4947 = vadd.f32 %v4937, %v4945
    %v4948 = vtanh.pop %v4936
    %4950 = vrot.lane.b32.xlu0 %v4948, 64
    %v4951 = vpop.permute.xlu0 %4950
    %v4953 = vmul.f32 %v4911, %v4951
    %v4954 = vtanh.pop %v4947
    %4956 = vrot.lane.b32.xlu0 %v4954, 64
    %v4957 = vpop.permute.xlu0 %4956
    %v4959 = vmul.f32 %v4923, %v4957
    %4960 = vst.msk [vmem:[#allocation2 + $0x2] sm:$0x3] %vm604, %v4953
    %4962 = vrot.lane.b32.xlu0 %v4959, 64
    %v4963 = vpop.permute.xlu0 %4962
    %4965 = vst.msk [vmem:[#allocation2 + $0xc] sm:$0x3] %vm610, %v4963
    %v4966 = vsel %vm612, %v4953, %v4963
    %4967 = vmatprep.subr.mxu0 %v4522
    %4968 = vmatpush1.msra.mxu0 %v4521
    %4969 = vmatprep.subr.mxu0 %v4518
    %4970 = vmatpush1.msra.mxu0 %v4517
    %4971 = vmatprep.subr.mxu0 %v4514
    %4972 = vmatpush1.msra.mxu0 %v4513
    %4973 = vmatprep.subr.mxu0 %v4510
    %4974 = vmatpush1.msra.mxu0 %v4509
    %4975 = vmatprep.subr.mxu0 %v4506
    %4976 = vmatpush1.msra.mxu0 %v4505
    %4977 = vmatprep.subr.mxu0 %v4502
    %4978 = vmatpush1.msra.mxu0 %v4501
    %4979 = vmatprep.subr.mxu0 %v4498
    %4980 = vmatpush1.msra.mxu0 %v4497
    %4981 = vmatprep.subr.mxu0 %v4494
    %4982 = vmatpush1.msra.mxu0 %v4493
    %4983 = vmatprep.subr.mxu0 %v4490
    %4984 = vmatpush1.msra.mxu0 %v4489
    %4985 = vmatprep.subr.mxu0 %v4486
    %4986 = vmatpush1.msra.mxu0 %v4485
    %4987 = vmatprep.subr.mxu0 %v4482
    %4988 = vmatpush1.msra.mxu0 %v4481
    %4989 = vmatprep.subr.mxu0 %v4478
    %4990 = vmatpush1.msra.mxu0 %v4477
    %4991 = vmatprep.subr.mxu0 %v4474
    %4992 = vmatpush1.msra.mxu0 %v4473
    %4993 = vmatprep.subr.mxu0 %v4470
    %4994 = vmatpush1.msra.mxu0 %v4469
    %4995 = vmatprep.subr.mxu0 %v4466
    %4996 = vmatpush1.msra.mxu0 %v4465
    %4997 = vmatprep.subr.mxu0 %v4462
    %4998 = vmatpush1.msra.mxu0 %v4461
    %4999 = vmatprep.subr.mxu0 0.0
    %5000 = vmatpush2.msra.mxu0 0.0
    %5001 = vmatprep.subr.mxu0 0.0
    %5002 = vmatpush2.msra.mxu0 0.0
    %5003 = vmatprep.subr.mxu0 0.0
    %5004 = vmatpush2.msra.mxu0 0.0
    %5005 = vmatprep.subr.mxu0 0.0
    %5006 = vmatpush2.msra.mxu0 0.0
    %5007 = vmatprep.subr.mxu0 0.0
    %5008 = vmatpush2.msra.mxu0 0.0
    %5009 = vmatprep.subr.mxu0 0.0
    %5010 = vmatpush2.msra.mxu0 0.0
    %5011 = vmatprep.subr.mxu0 0.0
    %5012 = vmatpush2.msra.mxu0 0.0
    %5013 = vmatprep.subr.mxu0 0.0
    %5014 = vmatpush2.msra.mxu0 0.0
    %5015 = vmatprep.subr.mxu0 0.0
    %5016 = vmatpush2.msra.mxu0 0.0
    %5017 = vmatprep.subr.mxu0 0.0
    %5018 = vmatpush2.msra.mxu0 0.0
    %5019 = vmatprep.subr.mxu0 0.0
    %5020 = vmatpush2.msra.mxu0 0.0
    %5021 = vmatprep.subr.mxu0 0.0
    %5022 = vmatpush2.msra.mxu0 0.0
    %5023 = vmatprep.subr.mxu0 0.0
    %5024 = vmatpush2.msra.mxu0 0.0
    %5025 = vmatprep.subr.mxu0 0.0
    %5026 = vmatpush2.msra.mxu0 0.0
    %5027 = vmatprep.subr.mxu0 0.0
    %5028 = vmatpush2.msra.mxu0 0.0
    %5029 = vmatprep.subr.mxu0 0.0
    %5030 = vmatpush2.msra.mxu0 0.0
    %5031 = vmatprep.mubr.f32.mxu0 0.0
    %5032 = vmatmul.mubr.f32.gmra.mxu0 %v4966
    %v5033 = vpop.f32.mrf.mxu0
    %v5034 = vadd.f32 0.0, %v5033
    %v5035 = vpop.f32.mrf.mxu0
    %v5036 = vadd.f32 0.0, %v5035
    %5037 = vdwg.mxu0
    %5038 = vmatprep.subr.mxu0 %v4524
    %5039 = vmatpush1.msra.mxu0 %v4523
    %5040 = vmatprep.subr.mxu0 %v4520
    %5041 = vmatpush1.msra.mxu0 %v4519
    %5042 = vmatprep.subr.mxu0 %v4516
    %5043 = vmatpush1.msra.mxu0 %v4515
    %5044 = vmatprep.subr.mxu0 %v4512
    %5045 = vmatpush1.msra.mxu0 %v4511
    %5046 = vmatprep.subr.mxu0 %v4508
    %5047 = vmatpush1.msra.mxu0 %v4507
    %5048 = vmatprep.subr.mxu0 %v4504
    %5049 = vmatpush1.msra.mxu0 %v4503
    %5050 = vmatprep.subr.mxu0 %v4500
    %5051 = vmatpush1.msra.mxu0 %v4499
    %5052 = vmatprep.subr.mxu0 %v4496
    %5053 = vmatpush1.msra.mxu0 %v4495
    %5054 = vmatprep.subr.mxu0 %v4492
    %5055 = vmatpush1.msra.mxu0 %v4491
    %5056 = vmatprep.subr.mxu0 %v4488
    %5057 = vmatpush1.msra.mxu0 %v4487
    %5058 = vmatprep.subr.mxu0 %v4484
    %5059 = vmatpush1.msra.mxu0 %v4483
    %5060 = vmatprep.subr.mxu0 %v4480
    %5061 = vmatpush1.msra.mxu0 %v4479
    %5062 = vmatprep.subr.mxu0 %v4476
    %5063 = vmatpush1.msra.mxu0 %v4475
    %5064 = vmatprep.subr.mxu0 %v4472
    %5065 = vmatpush1.msra.mxu0 %v4471
    %5066 = vmatprep.subr.mxu0 %v4468
    %5067 = vmatpush1.msra.mxu0 %v4467
    %5068 = vmatprep.subr.mxu0 %v4464
    %5069 = vmatpush1.msra.mxu0 %v4463
    %5070 = vmatprep.subr.mxu0 0.0
    %5071 = vmatpush2.msra.mxu0 0.0
    %5072 = vmatprep.subr.mxu0 0.0
    %5073 = vmatpush2.msra.mxu0 0.0
    %5074 = vmatprep.subr.mxu0 0.0
    %5075 = vmatpush2.msra.mxu0 0.0
    %5076 = vmatprep.subr.mxu0 0.0
    %5077 = vmatpush2.msra.mxu0 0.0
    %5078 = vmatprep.subr.mxu0 0.0
    %5079 = vmatpush2.msra.mxu0 0.0
    %5080 = vmatprep.subr.mxu0 0.0
    %5081 = vmatpush2.msra.mxu0 0.0
    %5082 = vmatprep.subr.mxu0 0.0
    %5083 = vmatpush2.msra.mxu0 0.0
    %5084 = vmatprep.subr.mxu0 0.0
    %5085 = vmatpush2.msra.mxu0 0.0
    %5086 = vmatprep.subr.mxu0 0.0
    %5087 = vmatpush2.msra.mxu0 0.0
    %5088 = vmatprep.subr.mxu0 0.0
    %5089 = vmatpush2.msra.mxu0 0.0
    %5090 = vmatprep.subr.mxu0 0.0
    %5091 = vmatpush2.msra.mxu0 0.0
    %5092 = vmatprep.subr.mxu0 0.0
    %5093 = vmatpush2.msra.mxu0 0.0
    %5094 = vmatprep.subr.mxu0 0.0
    %5095 = vmatpush2.msra.mxu0 0.0
    %5096 = vmatprep.subr.mxu0 0.0
    %5097 = vmatpush2.msra.mxu0 0.0
    %5098 = vmatprep.subr.mxu0 0.0
    %5099 = vmatpush2.msra.mxu0 0.0
    %5100 = vmatprep.subr.mxu0 0.0
    %5101 = vmatpush2.msra.mxu0 0.0
    %5102 = vmatprep.mubr.f32.mxu0 0.0
    %5103 = vmatmul.mubr.f32.gmra.mxu0 %v4966
    %v5104 = vpop.f32.mrf.mxu0
    %v5105 = vadd.f32 0.0, %v5104
    %v5106 = vpop.f32.mrf.mxu0
    %v5107 = vadd.f32 0.0, %v5106
    %5108 = vdwg.mxu0
    %v5109 = vrot.slane %v4374, 4
    %v5110 = vrot.slane %v4376, 4
    %v5113 = vadd.f32 %v5034, %v5109
    %v5114 = vadd.f32 %v5036, %v5110
    %v5115 = vrot.slane %v4457, 2
    %v5116 = vrot.slane %v4459, 2
    %v5119 = vadd.f32 %v5105, %v5115
    %v5120 = vadd.f32 %v5107, %v5116
    %v5121 = vxor.u32 %v5113, 2147483648
    %v5122 = vxor.u32 %v5114, 2147483648
    %v5123 = vmul.f32 %v5121, 1.442695
    %v5124 = vpow.pop %v5123
    %v5125 = vmul.f32 %v5122, 1.442695
    %v5126 = vpow.pop %v5125
    %v5127 = vadd.f32 %v5124, 1.0
    %v5128 = vadd.f32 %v5126, 1.0
    %v5129 = vrcp.pop %v5127
    %v5130 = vmul.f32 1.0, %v5129
    %v5131 = vrcp.pop %v5128
    %v5132 = vmul.f32 1.0, %v5131
    %v5133 = vxor.u32 %v5119, 2147483648
    %v5134 = vxor.u32 %v5120, 2147483648
    %v5135 = vmul.f32 %v5133, 1.442695
    %v5136 = vpow.pop %v5135
    %v5137 = vmul.f32 %v5134, 1.442695
    %v5138 = vpow.pop %v5137
    %v5139 = vadd.f32 %v5136, 1.0
    %v5140 = vadd.f32 %v5138, 1.0
    %v5141 = vrcp.pop %v5139
    %v5142 = vmul.f32 1.0, %v5141
    %v5143 = vrcp.pop %v5140
    %v5144 = vmul.f32 1.0, %v5143
    %v5145 = vtanh.pop %v5114
    %v5146 = vtanh.pop %v5120
    %v5147 = vmul.f32 %v5130, %v4936
    %5149 = vrot.lane.b32.xlu0 %v5145, 64
    %v5150 = vpop.permute.xlu0 %5149
    %v5152 = vmul.f32 %v5130, %v5150
    %5154 = vrot.lane.b32.xlu0 %v5152, 64
    %v5155 = vpop.permute.xlu0 %5154
    %v5157 = vadd.f32 %v5147, %v5155
    %v5158 = vmul.f32 %v5142, %v4947
    %5160 = vrot.lane.b32.xlu0 %v5146, 64
    %v5161 = vpop.permute.xlu0 %5160
    %v5163 = vmul.f32 %v5142, %v5161
    %5165 = vrot.lane.b32.xlu0 %v5163, 64
    %v5166 = vpop.permute.xlu0 %5165
    %v5168 = vadd.f32 %v5158, %v5166
    %v5169 = vtanh.pop %v5157
    %5171 = vrot.lane.b32.xlu0 %v5169, 64
    %v5172 = vpop.permute.xlu0 %5171
    %v5174 = vmul.f32 %v5132, %v5172
    %v5175 = vtanh.pop %v5168
    %5177 = vrot.lane.b32.xlu0 %v5175, 64
    %v5178 = vpop.permute.xlu0 %5177
    %v5180 = vmul.f32 %v5144, %v5178
    %5181 = vst.msk [vmem:[#allocation2 + $0x4] sm:$0x3] %vm604, %v5174
    %5183 = vrot.lane.b32.xlu0 %v5180, 64
    %v5184 = vpop.permute.xlu0 %5183
    %5186 = vst.msk [vmem:[#allocation2 + $0xa] sm:$0x3] %vm610, %v5184
    %v5187 = vsel %vm612, %v5174, %v5184
    %5188 = vmatprep.subr.mxu0 %v4522
    %5189 = vmatpush1.msra.mxu0 %v4521
    %5190 = vmatprep.subr.mxu0 %v4518
    %5191 = vmatpush1.msra.mxu0 %v4517
    %5192 = vmatprep.subr.mxu0 %v4514
    %5193 = vmatpush1.msra.mxu0 %v4513
    %5194 = vmatprep.subr.mxu0 %v4510
    %5195 = vmatpush1.msra.mxu0 %v4509
    %5196 = vmatprep.subr.mxu0 %v4506
    %5197 = vmatpush1.msra.mxu0 %v4505
    %5198 = vmatprep.subr.mxu0 %v4502
    %5199 = vmatpush1.msra.mxu0 %v4501
    %5200 = vmatprep.subr.mxu0 %v4498
    %5201 = vmatpush1.msra.mxu0 %v4497
    %5202 = vmatprep.subr.mxu0 %v4494
    %5203 = vmatpush1.msra.mxu0 %v4493
    %5204 = vmatprep.subr.mxu0 %v4490
    %5205 = vmatpush1.msra.mxu0 %v4489
    %5206 = vmatprep.subr.mxu0 %v4486
    %5207 = vmatpush1.msra.mxu0 %v4485
    %5208 = vmatprep.subr.mxu0 %v4482
    %5209 = vmatpush1.msra.mxu0 %v4481
    %5210 = vmatprep.subr.mxu0 %v4478
    %5211 = vmatpush1.msra.mxu0 %v4477
    %5212 = vmatprep.subr.mxu0 %v4474
    %5213 = vmatpush1.msra.mxu0 %v4473
    %5214 = vmatprep.subr.mxu0 %v4470
    %5215 = vmatpush1.msra.mxu0 %v4469
    %5216 = vmatprep.subr.mxu0 %v4466
    %5217 = vmatpush1.msra.mxu0 %v4465
    %5218 = vmatprep.subr.mxu0 %v4462
    %5219 = vmatpush1.msra.mxu0 %v4461
    %5220 = vmatprep.subr.mxu0 0.0
    %5221 = vmatpush2.msra.mxu0 0.0
    %5222 = vmatprep.subr.mxu0 0.0
    %5223 = vmatpush2.msra.mxu0 0.0
    %5224 = vmatprep.subr.mxu0 0.0
    %5225 = vmatpush2.msra.mxu0 0.0
    %5226 = vmatprep.subr.mxu0 0.0
    %5227 = vmatpush2.msra.mxu0 0.0
    %5228 = vmatprep.subr.mxu0 0.0
    %5229 = vmatpush2.msra.mxu0 0.0
    %5230 = vmatprep.subr.mxu0 0.0
    %5231 = vmatpush2.msra.mxu0 0.0
    %5232 = vmatprep.subr.mxu0 0.0
    %5233 = vmatpush2.msra.mxu0 0.0
    %5234 = vmatprep.subr.mxu0 0.0
    %5235 = vmatpush2.msra.mxu0 0.0
    %5236 = vmatprep.subr.mxu0 0.0
    %5237 = vmatpush2.msra.mxu0 0.0
    %5238 = vmatprep.subr.mxu0 0.0
    %5239 = vmatpush2.msra.mxu0 0.0
    %5240 = vmatprep.subr.mxu0 0.0
    %5241 = vmatpush2.msra.mxu0 0.0
    %5242 = vmatprep.subr.mxu0 0.0
    %5243 = vmatpush2.msra.mxu0 0.0
    %5244 = vmatprep.subr.mxu0 0.0
    %5245 = vmatpush2.msra.mxu0 0.0
    %5246 = vmatprep.subr.mxu0 0.0
    %5247 = vmatpush2.msra.mxu0 0.0
    %5248 = vmatprep.subr.mxu0 0.0
    %5249 = vmatpush2.msra.mxu0 0.0
    %5250 = vmatprep.subr.mxu0 0.0
    %5251 = vmatpush2.msra.mxu0 0.0
    %5252 = vmatprep.mubr.f32.mxu0 0.0
    %5253 = vmatmul.mubr.f32.gmra.mxu0 %v5187
    %v5254 = vpop.f32.mrf.mxu0
    %v5255 = vadd.f32 0.0, %v5254
    %v5256 = vpop.f32.mrf.mxu0
    %v5257 = vadd.f32 0.0, %v5256
    %5258 = vdwg.mxu0
    %5259 = vmatprep.subr.mxu0 %v4524
    %5260 = vmatpush1.msra.mxu0 %v4523
    %5261 = vmatprep.subr.mxu0 %v4520
    %5262 = vmatpush1.msra.mxu0 %v4519
    %5263 = vmatprep.subr.mxu0 %v4516
    %5264 = vmatpush1.msra.mxu0 %v4515
    %5265 = vmatprep.subr.mxu0 %v4512
    %5266 = vmatpush1.msra.mxu0 %v4511
    %5267 = vmatprep.subr.mxu0 %v4508
    %5268 = vmatpush1.msra.mxu0 %v4507
    %5269 = vmatprep.subr.mxu0 %v4504
    %5270 = vmatpush1.msra.mxu0 %v4503
    %5271 = vmatprep.subr.mxu0 %v4500
    %5272 = vmatpush1.msra.mxu0 %v4499
    %5273 = vmatprep.subr.mxu0 %v4496
    %5274 = vmatpush1.msra.mxu0 %v4495
    %5275 = vmatprep.subr.mxu0 %v4492
    %5276 = vmatpush1.msra.mxu0 %v4491
    %5277 = vmatprep.subr.mxu0 %v4488
    %5278 = vmatpush1.msra.mxu0 %v4487
    %5279 = vmatprep.subr.mxu0 %v4484
    %5280 = vmatpush1.msra.mxu0 %v4483
    %5281 = vmatprep.subr.mxu0 %v4480
    %5282 = vmatpush1.msra.mxu0 %v4479
    %5283 = vmatprep.subr.mxu0 %v4476
    %5284 = vmatpush1.msra.mxu0 %v4475
    %5285 = vmatprep.subr.mxu0 %v4472
    %5286 = vmatpush1.msra.mxu0 %v4471
    %5287 = vmatprep.subr.mxu0 %v4468
    %5288 = vmatpush1.msra.mxu0 %v4467
    %5289 = vmatprep.subr.mxu0 %v4464
    %5290 = vmatpush1.msra.mxu0 %v4463
    %5291 = vmatprep.subr.mxu0 0.0
    %5292 = vmatpush2.msra.mxu0 0.0
    %5293 = vmatprep.subr.mxu0 0.0
    %5294 = vmatpush2.msra.mxu0 0.0
    %5295 = vmatprep.subr.mxu0 0.0
    %5296 = vmatpush2.msra.mxu0 0.0
    %5297 = vmatprep.subr.mxu0 0.0
    %5298 = vmatpush2.msra.mxu0 0.0
    %5299 = vmatprep.subr.mxu0 0.0
    %5300 = vmatpush2.msra.mxu0 0.0
    %5301 = vmatprep.subr.mxu0 0.0
    %5302 = vmatpush2.msra.mxu0 0.0
    %5303 = vmatprep.subr.mxu0 0.0
    %5304 = vmatpush2.msra.mxu0 0.0
    %5305 = vmatprep.subr.mxu0 0.0
    %5306 = vmatpush2.msra.mxu0 0.0
    %5307 = vmatprep.subr.mxu0 0.0
    %5308 = vmatpush2.msra.mxu0 0.0
    %5309 = vmatprep.subr.mxu0 0.0
    %5310 = vmatpush2.msra.mxu0 0.0
    %5311 = vmatprep.subr.mxu0 0.0
    %5312 = vmatpush2.msra.mxu0 0.0
    %5313 = vmatprep.subr.mxu0 0.0
    %5314 = vmatpush2.msra.mxu0 0.0
    %5315 = vmatprep.subr.mxu0 0.0
    %5316 = vmatpush2.msra.mxu0 0.0
    %5317 = vmatprep.subr.mxu0 0.0
    %5318 = vmatpush2.msra.mxu0 0.0
    %5319 = vmatprep.subr.mxu0 0.0
    %5320 = vmatpush2.msra.mxu0 0.0
    %5321 = vmatprep.subr.mxu0 0.0
    %5322 = vmatpush2.msra.mxu0 0.0
    %5323 = vmatprep.mubr.f32.mxu0 0.0
    %5324 = vmatmul.mubr.f32.gmra.mxu0 %v5187
    %v5325 = vpop.f32.mrf.mxu0
    %v5326 = vadd.f32 0.0, %v5325
    %v5327 = vpop.f32.mrf.mxu0
    %v5328 = vadd.f32 0.0, %v5327
    %5329 = vdwg.mxu0
    %v5330 = vrot.slane %v4374, 6
    %v5331 = vrot.slane %v4376, 6
    %v5334 = vadd.f32 %v5255, %v5330
    %v5335 = vadd.f32 %v5257, %v5331
    %v5336 = vadd.f32 %v5326, %v4457
    %v5337 = vadd.f32 %v5328, %v4459
    %v5338 = vxor.u32 %v5334, 2147483648
    %v5339 = vxor.u32 %v5335, 2147483648
    %v5340 = vmul.f32 %v5338, 1.442695
    %v5341 = vpow.pop %v5340
    %v5342 = vmul.f32 %v5339, 1.442695
    %v5343 = vpow.pop %v5342
    %v5344 = vadd.f32 %v5341, 1.0
    %v5345 = vadd.f32 %v5343, 1.0
    %v5346 = vrcp.pop %v5344
    %v5347 = vmul.f32 1.0, %v5346
    %v5348 = vrcp.pop %v5345
    %v5349 = vmul.f32 1.0, %v5348
    %v5350 = vxor.u32 %v5336, 2147483648
    %v5351 = vxor.u32 %v5337, 2147483648
    %v5352 = vmul.f32 %v5350, 1.442695
    %v5353 = vpow.pop %v5352
    %v5354 = vmul.f32 %v5351, 1.442695
    %v5355 = vpow.pop %v5354
    %v5356 = vadd.f32 %v5353, 1.0
    %v5357 = vadd.f32 %v5355, 1.0
    %v5358 = vrcp.pop %v5356
    %v5359 = vmul.f32 1.0, %v5358
    %v5360 = vrcp.pop %v5357
    %v5361 = vmul.f32 1.0, %v5360
    %v5362 = vtanh.pop %v5335
    %v5363 = vtanh.pop %v5337
    %v5364 = vmul.f32 %v5347, %v5157
    %5366 = vrot.lane.b32.xlu0 %v5362, 64
    %v5367 = vpop.permute.xlu0 %5366
    %v5369 = vmul.f32 %v5347, %v5367
    %5371 = vrot.lane.b32.xlu0 %v5369, 64
    %v5372 = vpop.permute.xlu0 %5371
    %v5374 = vadd.f32 %v5364, %v5372
    %v5375 = vmul.f32 %v5359, %v5168
    %5377 = vrot.lane.b32.xlu0 %v5363, 64
    %v5378 = vpop.permute.xlu0 %5377
    %v5380 = vmul.f32 %v5359, %v5378
    %5382 = vrot.lane.b32.xlu0 %v5380, 64
    %v5383 = vpop.permute.xlu0 %5382
    %v5385 = vadd.f32 %v5375, %v5383
    %v5386 = vtanh.pop %v5374
    %5388 = vrot.lane.b32.xlu0 %v5386, 64
    %v5389 = vpop.permute.xlu0 %5388
    %v5391 = vmul.f32 %v5349, %v5389
    %v5392 = vtanh.pop %v5385
    %5394 = vrot.lane.b32.xlu0 %v5392, 64
    %v5395 = vpop.permute.xlu0 %5394
    %v5397 = vmul.f32 %v5361, %v5395
    %5398 = vst.msk [vmem:[#allocation2 + $0x6] sm:$0x3] %vm604, %v5391
    %5400 = vrot.lane.b32.xlu0 %v5397, 64
    %v5401 = vpop.permute.xlu0 %5400
    %5403 = vst.msk [vmem:[#allocation2 + $0x8] sm:$0x3] %vm610, %v5401
    %v5404 = vsel %vm612, %v5391, %v5401
    %5405 = vmatprep.subr.mxu0 %v4522
    %5406 = vmatpush1.msra.mxu0 %v4521
    %5407 = vmatprep.subr.mxu0 %v4518
    %5408 = vmatpush1.msra.mxu0 %v4517
    %5409 = vmatprep.subr.mxu0 %v4514
    %5410 = vmatpush1.msra.mxu0 %v4513
    %5411 = vmatprep.subr.mxu0 %v4510
    %5412 = vmatpush1.msra.mxu0 %v4509
    %5413 = vmatprep.subr.mxu0 %v4506
    %5414 = vmatpush1.msra.mxu0 %v4505
    %5415 = vmatprep.subr.mxu0 %v4502
    %5416 = vmatpush1.msra.mxu0 %v4501
    %5417 = vmatprep.subr.mxu0 %v4498
    %5418 = vmatpush1.msra.mxu0 %v4497
    %5419 = vmatprep.subr.mxu0 %v4494
    %5420 = vmatpush1.msra.mxu0 %v4493
    %5421 = vmatprep.subr.mxu0 %v4490
    %5422 = vmatpush1.msra.mxu0 %v4489
    %5423 = vmatprep.subr.mxu0 %v4486
    %5424 = vmatpush1.msra.mxu0 %v4485
    %5425 = vmatprep.subr.mxu0 %v4482
    %5426 = vmatpush1.msra.mxu0 %v4481
    %5427 = vmatprep.subr.mxu0 %v4478
    %5428 = vmatpush1.msra.mxu0 %v4477
    %5429 = vmatprep.subr.mxu0 %v4474
    %5430 = vmatpush1.msra.mxu0 %v4473
    %5431 = vmatprep.subr.mxu0 %v4470
    %5432 = vmatpush1.msra.mxu0 %v4469
    %5433 = vmatprep.subr.mxu0 %v4466
    %5434 = vmatpush1.msra.mxu0 %v4465
    %5435 = vmatprep.subr.mxu0 %v4462
    %5436 = vmatpush1.msra.mxu0 %v4461
    %5437 = vmatprep.subr.mxu0 0.0
    %5438 = vmatpush2.msra.mxu0 0.0
    %5439 = vmatprep.subr.mxu0 0.0
    %5440 = vmatpush2.msra.mxu0 0.0
    %5441 = vmatprep.subr.mxu0 0.0
    %5442 = vmatpush2.msra.mxu0 0.0
    %5443 = vmatprep.subr.mxu0 0.0
    %5444 = vmatpush2.msra.mxu0 0.0
    %5445 = vmatprep.subr.mxu0 0.0
    %5446 = vmatpush2.msra.mxu0 0.0
    %5447 = vmatprep.subr.mxu0 0.0
    %5448 = vmatpush2.msra.mxu0 0.0
    %5449 = vmatprep.subr.mxu0 0.0
    %5450 = vmatpush2.msra.mxu0 0.0
    %5451 = vmatprep.subr.mxu0 0.0
    %5452 = vmatpush2.msra.mxu0 0.0
    %5453 = vmatprep.subr.mxu0 0.0
    %5454 = vmatpush2.msra.mxu0 0.0
    %5455 = vmatprep.subr.mxu0 0.0
    %5456 = vmatpush2.msra.mxu0 0.0
    %5457 = vmatprep.subr.mxu0 0.0
    %5458 = vmatpush2.msra.mxu0 0.0
    %5459 = vmatprep.subr.mxu0 0.0
    %5460 = vmatpush2.msra.mxu0 0.0
    %5461 = vmatprep.subr.mxu0 0.0
    %5462 = vmatpush2.msra.mxu0 0.0
    %5463 = vmatprep.subr.mxu0 0.0
    %5464 = vmatpush2.msra.mxu0 0.0
    %5465 = vmatprep.subr.mxu0 0.0
    %5466 = vmatpush2.msra.mxu0 0.0
    %5467 = vmatprep.subr.mxu0 0.0
    %5468 = vmatpush2.msra.mxu0 0.0
    %5469 = vmatprep.mubr.f32.mxu0 0.0
    %5470 = vmatmul.mubr.f32.gmra.mxu0 %v5404
    %v5471 = vpop.f32.mrf.mxu0
    %v5472 = vadd.f32 0.0, %v5471
    %v5473 = vpop.f32.mrf.mxu0
    %v5474 = vadd.f32 0.0, %v5473
    %5475 = vdwg.mxu0
    %5476 = vmatprep.subr.mxu0 %v4524
    %5477 = vmatpush1.msra.mxu0 %v4523
    %5478 = vmatprep.subr.mxu0 %v4520
    %5479 = vmatpush1.msra.mxu0 %v4519
    %5480 = vmatprep.subr.mxu0 %v4516
    %5481 = vmatpush1.msra.mxu0 %v4515
    %5482 = vmatprep.subr.mxu0 %v4512
    %5483 = vmatpush1.msra.mxu0 %v4511
    %5484 = vmatprep.subr.mxu0 %v4508
    %5485 = vmatpush1.msra.mxu0 %v4507
    %5486 = vmatprep.subr.mxu0 %v4504
    %5487 = vmatpush1.msra.mxu0 %v4503
    %5488 = vmatprep.subr.mxu0 %v4500
    %5489 = vmatpush1.msra.mxu0 %v4499
    %5490 = vmatprep.subr.mxu0 %v4496
    %5491 = vmatpush1.msra.mxu0 %v4495
    %5492 = vmatprep.subr.mxu0 %v4492
    %5493 = vmatpush1.msra.mxu0 %v4491
    %5494 = vmatprep.subr.mxu0 %v4488
    %5495 = vmatpush1.msra.mxu0 %v4487
    %5496 = vmatprep.subr.mxu0 %v4484
    %5497 = vmatpush1.msra.mxu0 %v4483
    %5498 = vmatprep.subr.mxu0 %v4480
    %5499 = vmatpush1.msra.mxu0 %v4479
    %5500 = vmatprep.subr.mxu0 %v4476
    %5501 = vmatpush1.msra.mxu0 %v4475
    %5502 = vmatprep.subr.mxu0 %v4472
    %5503 = vmatpush1.msra.mxu0 %v4471
    %5504 = vmatprep.subr.mxu0 %v4468
    %5505 = vmatpush1.msra.mxu0 %v4467
    %5506 = vmatprep.subr.mxu0 %v4464
    %5507 = vmatpush1.msra.mxu0 %v4463
    %5508 = vmatprep.subr.mxu0 0.0
    %5509 = vmatpush2.msra.mxu0 0.0
    %5510 = vmatprep.subr.mxu0 0.0
    %5511 = vmatpush2.msra.mxu0 0.0
    %5512 = vmatprep.subr.mxu0 0.0
    %5513 = vmatpush2.msra.mxu0 0.0
    %5514 = vmatprep.subr.mxu0 0.0
    %5515 = vmatpush2.msra.mxu0 0.0
    %5516 = vmatprep.subr.mxu0 0.0
    %5517 = vmatpush2.msra.mxu0 0.0
    %5518 = vmatprep.subr.mxu0 0.0
    %5519 = vmatpush2.msra.mxu0 0.0
    %5520 = vmatprep.subr.mxu0 0.0
    %5521 = vmatpush2.msra.mxu0 0.0
    %5522 = vmatprep.subr.mxu0 0.0
    %5523 = vmatpush2.msra.mxu0 0.0
    %5524 = vmatprep.subr.mxu0 0.0
    %5525 = vmatpush2.msra.mxu0 0.0
    %5526 = vmatprep.subr.mxu0 0.0
    %5527 = vmatpush2.msra.mxu0 0.0
    %5528 = vmatprep.subr.mxu0 0.0
    %5529 = vmatpush2.msra.mxu0 0.0
    %5530 = vmatprep.subr.mxu0 0.0
    %5531 = vmatpush2.msra.mxu0 0.0
    %5532 = vmatprep.subr.mxu0 0.0
    %5533 = vmatpush2.msra.mxu0 0.0
    %5534 = vmatprep.subr.mxu0 0.0
    %5535 = vmatpush2.msra.mxu0 0.0
    %5536 = vmatprep.subr.mxu0 0.0
    %5537 = vmatpush2.msra.mxu0 0.0
    %5538 = vmatprep.subr.mxu0 0.0
    %5539 = vmatpush2.msra.mxu0 0.0
    %5540 = vmatprep.mubr.f32.mxu0 0.0
    %5541 = vmatmul.mubr.f32.gmra.mxu0 %v5404
    %v5542 = vpop.f32.mrf.mxu0
    %v5543 = vadd.f32 0.0, %v5542
    %v5544 = vpop.f32.mrf.mxu0
    %v5545 = vadd.f32 0.0, %v5544
    %5546 = vdwg.mxu0
    %v5547 = vadd.f32 %v5472, %v4380
    %v5548 = vadd.f32 %v5474, %v4382
    %v5551 = vrot.slane %v4451, 6
    %v5552 = vrot.slane %v4453, 6
    %v5555 = vadd.f32 %v5543, %v5551
    %v5556 = vadd.f32 %v5545, %v5552
    %v5557 = vxor.u32 %v5547, 2147483648
    %v5558 = vxor.u32 %v5548, 2147483648
    %v5559 = vmul.f32 %v5557, 1.442695
    %v5560 = vpow.pop %v5559
    %v5561 = vmul.f32 %v5558, 1.442695
    %v5562 = vpow.pop %v5561
    %v5563 = vadd.f32 %v5560, 1.0
    %v5564 = vadd.f32 %v5562, 1.0
    %v5565 = vrcp.pop %v5563
    %v5566 = vmul.f32 1.0, %v5565
    %v5567 = vrcp.pop %v5564
    %v5568 = vmul.f32 1.0, %v5567
    %v5569 = vxor.u32 %v5555, 2147483648
    %v5570 = vxor.u32 %v5556, 2147483648
    %v5571 = vmul.f32 %v5569, 1.442695
    %v5572 = vpow.pop %v5571
    %v5573 = vmul.f32 %v5570, 1.442695
    %v5574 = vpow.pop %v5573
    %v5575 = vadd.f32 %v5572, 1.0
    %v5576 = vadd.f32 %v5574, 1.0
    %v5577 = vrcp.pop %v5575
    %v5578 = vmul.f32 1.0, %v5577
    %v5579 = vrcp.pop %v5576
    %v5580 = vmul.f32 1.0, %v5579
    %v5581 = vtanh.pop %v5548
    %v5582 = vtanh.pop %v5556
    %v5583 = vmul.f32 %v5566, %v5374
    %5585 = vrot.lane.b32.xlu0 %v5581, 64
    %v5586 = vpop.permute.xlu0 %5585
    %v5588 = vmul.f32 %v5566, %v5586
    %5590 = vrot.lane.b32.xlu0 %v5588, 64
    %v5591 = vpop.permute.xlu0 %5590
    %v5593 = vadd.f32 %v5583, %v5591
    %v5594 = vmul.f32 %v5578, %v5385
    %5596 = vrot.lane.b32.xlu0 %v5582, 64
    %v5597 = vpop.permute.xlu0 %5596
    %v5599 = vmul.f32 %v5578, %v5597
    %5601 = vrot.lane.b32.xlu0 %v5599, 64
    %v5602 = vpop.permute.xlu0 %5601
    %v5604 = vadd.f32 %v5594, %v5602
    %v5605 = vtanh.pop %v5593
    %5607 = vrot.lane.b32.xlu0 %v5605, 64
    %v5608 = vpop.permute.xlu0 %5607
    %v5610 = vmul.f32 %v5568, %v5608
    %v5611 = vtanh.pop %v5604
    %5613 = vrot.lane.b32.xlu0 %v5611, 64
    %v5614 = vpop.permute.xlu0 %5613
    %v5616 = vmul.f32 %v5580, %v5614
    %5617 = vst.msk [vmem:[#allocation2 + $0x8] sm:$0x3] %vm604, %v5610
    %5619 = vrot.lane.b32.xlu0 %v5616, 64
    %v5620 = vpop.permute.xlu0 %5619
    %5622 = vst.msk [vmem:[#allocation2 + $0x6] sm:$0x3] %vm610, %v5620
    %v5623 = vsel %vm612, %v5610, %v5620
    %5624 = vmatprep.subr.mxu0 %v4522
    %5625 = vmatpush1.msra.mxu0 %v4521
    %5626 = vmatprep.subr.mxu0 %v4518
    %5627 = vmatpush1.msra.mxu0 %v4517
    %5628 = vmatprep.subr.mxu0 %v4514
    %5629 = vmatpush1.msra.mxu0 %v4513
    %5630 = vmatprep.subr.mxu0 %v4510
    %5631 = vmatpush1.msra.mxu0 %v4509
    %5632 = vmatprep.subr.mxu0 %v4506
    %5633 = vmatpush1.msra.mxu0 %v4505
    %5634 = vmatprep.subr.mxu0 %v4502
    %5635 = vmatpush1.msra.mxu0 %v4501
    %5636 = vmatprep.subr.mxu0 %v4498
    %5637 = vmatpush1.msra.mxu0 %v4497
    %5638 = vmatprep.subr.mxu0 %v4494
    %5639 = vmatpush1.msra.mxu0 %v4493
    %5640 = vmatprep.subr.mxu0 %v4490
    %5641 = vmatpush1.msra.mxu0 %v4489
    %5642 = vmatprep.subr.mxu0 %v4486
    %5643 = vmatpush1.msra.mxu0 %v4485
    %5644 = vmatprep.subr.mxu0 %v4482
    %5645 = vmatpush1.msra.mxu0 %v4481
    %5646 = vmatprep.subr.mxu0 %v4478
    %5647 = vmatpush1.msra.mxu0 %v4477
    %5648 = vmatprep.subr.mxu0 %v4474
    %5649 = vmatpush1.msra.mxu0 %v4473
    %5650 = vmatprep.subr.mxu0 %v4470
    %5651 = vmatpush1.msra.mxu0 %v4469
    %5652 = vmatprep.subr.mxu0 %v4466
    %5653 = vmatpush1.msra.mxu0 %v4465
    %5654 = vmatprep.subr.mxu0 %v4462
    %5655 = vmatpush1.msra.mxu0 %v4461
    %5656 = vmatprep.subr.mxu0 0.0
    %5657 = vmatpush2.msra.mxu0 0.0
    %5658 = vmatprep.subr.mxu0 0.0
    %5659 = vmatpush2.msra.mxu0 0.0
    %5660 = vmatprep.subr.mxu0 0.0
    %5661 = vmatpush2.msra.mxu0 0.0
    %5662 = vmatprep.subr.mxu0 0.0
    %5663 = vmatpush2.msra.mxu0 0.0
    %5664 = vmatprep.subr.mxu0 0.0
    %5665 = vmatpush2.msra.mxu0 0.0
    %5666 = vmatprep.subr.mxu0 0.0
    %5667 = vmatpush2.msra.mxu0 0.0
    %5668 = vmatprep.subr.mxu0 0.0
    %5669 = vmatpush2.msra.mxu0 0.0
    %5670 = vmatprep.subr.mxu0 0.0
    %5671 = vmatpush2.msra.mxu0 0.0
    %5672 = vmatprep.subr.mxu0 0.0
    %5673 = vmatpush2.msra.mxu0 0.0
    %5674 = vmatprep.subr.mxu0 0.0
    %5675 = vmatpush2.msra.mxu0 0.0
    %5676 = vmatprep.subr.mxu0 0.0
    %5677 = vmatpush2.msra.mxu0 0.0
    %5678 = vmatprep.subr.mxu0 0.0
    %5679 = vmatpush2.msra.mxu0 0.0
    %5680 = vmatprep.subr.mxu0 0.0
    %5681 = vmatpush2.msra.mxu0 0.0
    %5682 = vmatprep.subr.mxu0 0.0
    %5683 = vmatpush2.msra.mxu0 0.0
    %5684 = vmatprep.subr.mxu0 0.0
    %5685 = vmatpush2.msra.mxu0 0.0
    %5686 = vmatprep.subr.mxu0 0.0
    %5687 = vmatpush2.msra.mxu0 0.0
    %5688 = vmatprep.mubr.f32.mxu0 0.0
    %5689 = vmatmul.mubr.f32.gmra.mxu0 %v5623
    %v5690 = vpop.f32.mrf.mxu0
    %v5691 = vadd.f32 0.0, %v5690
    %v5692 = vpop.f32.mrf.mxu0
    %v5693 = vadd.f32 0.0, %v5692
    %5694 = vdwg.mxu0
    %5695 = vmatprep.subr.mxu0 %v4524
    %5696 = vmatpush1.msra.mxu0 %v4523
    %5697 = vmatprep.subr.mxu0 %v4520
    %5698 = vmatpush1.msra.mxu0 %v4519
    %5699 = vmatprep.subr.mxu0 %v4516
    %5700 = vmatpush1.msra.mxu0 %v4515
    %5701 = vmatprep.subr.mxu0 %v4512
    %5702 = vmatpush1.msra.mxu0 %v4511
    %5703 = vmatprep.subr.mxu0 %v4508
    %5704 = vmatpush1.msra.mxu0 %v4507
    %5705 = vmatprep.subr.mxu0 %v4504
    %5706 = vmatpush1.msra.mxu0 %v4503
    %5707 = vmatprep.subr.mxu0 %v4500
    %5708 = vmatpush1.msra.mxu0 %v4499
    %5709 = vmatprep.subr.mxu0 %v4496
    %5710 = vmatpush1.msra.mxu0 %v4495
    %5711 = vmatprep.subr.mxu0 %v4492
    %5712 = vmatpush1.msra.mxu0 %v4491
    %5713 = vmatprep.subr.mxu0 %v4488
    %5714 = vmatpush1.msra.mxu0 %v4487
    %5715 = vmatprep.subr.mxu0 %v4484
    %5716 = vmatpush1.msra.mxu0 %v4483
    %5717 = vmatprep.subr.mxu0 %v4480
    %5718 = vmatpush1.msra.mxu0 %v4479
    %5719 = vmatprep.subr.mxu0 %v4476
    %5720 = vmatpush1.msra.mxu0 %v4475
    %5721 = vmatprep.subr.mxu0 %v4472
    %5722 = vmatpush1.msra.mxu0 %v4471
    %5723 = vmatprep.subr.mxu0 %v4468
    %5724 = vmatpush1.msra.mxu0 %v4467
    %5725 = vmatprep.subr.mxu0 %v4464
    %5726 = vmatpush1.msra.mxu0 %v4463
    %5727 = vmatprep.subr.mxu0 0.0
    %5728 = vmatpush2.msra.mxu0 0.0
    %5729 = vmatprep.subr.mxu0 0.0
    %5730 = vmatpush2.msra.mxu0 0.0
    %5731 = vmatprep.subr.mxu0 0.0
    %5732 = vmatpush2.msra.mxu0 0.0
    %5733 = vmatprep.subr.mxu0 0.0
    %5734 = vmatpush2.msra.mxu0 0.0
    %5735 = vmatprep.subr.mxu0 0.0
    %5736 = vmatpush2.msra.mxu0 0.0
    %5737 = vmatprep.subr.mxu0 0.0
    %5738 = vmatpush2.msra.mxu0 0.0
    %5739 = vmatprep.subr.mxu0 0.0
    %5740 = vmatpush2.msra.mxu0 0.0
    %5741 = vmatprep.subr.mxu0 0.0
    %5742 = vmatpush2.msra.mxu0 0.0
    %5743 = vmatprep.subr.mxu0 0.0
    %5744 = vmatpush2.msra.mxu0 0.0
    %5745 = vmatprep.subr.mxu0 0.0
    %5746 = vmatpush2.msra.mxu0 0.0
    %5747 = vmatprep.subr.mxu0 0.0
    %5748 = vmatpush2.msra.mxu0 0.0
    %5749 = vmatprep.subr.mxu0 0.0
    %5750 = vmatpush2.msra.mxu0 0.0
    %5751 = vmatprep.subr.mxu0 0.0
    %5752 = vmatpush2.msra.mxu0 0.0
    %5753 = vmatprep.subr.mxu0 0.0
    %5754 = vmatpush2.msra.mxu0 0.0
    %5755 = vmatprep.subr.mxu0 0.0
    %5756 = vmatpush2.msra.mxu0 0.0
    %5757 = vmatprep.subr.mxu0 0.0
    %5758 = vmatpush2.msra.mxu0 0.0
    %5759 = vmatprep.mubr.f32.mxu0 0.0
    %5760 = vmatmul.mubr.f32.gmra.mxu0 %v5623
    %v5761 = vpop.f32.mrf.mxu0
    %v5762 = vadd.f32 0.0, %v5761
    %v5763 = vpop.f32.mrf.mxu0
    %v5764 = vadd.f32 0.0, %v5763
    %5765 = vdwg.mxu0
    %v5768 = vrot.slane %v4380, 2
    %v5769 = vrot.slane %v4382, 2
    %v5772 = vadd.f32 %v5691, %v5768
    %v5773 = vadd.f32 %v5693, %v5769
    %v5774 = vrot.slane %v4451, 4
    %v5775 = vrot.slane %v4453, 4
    %v5778 = vadd.f32 %v5762, %v5774
    %v5779 = vadd.f32 %v5764, %v5775
    %v5780 = vxor.u32 %v5772, 2147483648
    %v5781 = vxor.u32 %v5773, 2147483648
    %v5782 = vmul.f32 %v5780, 1.442695
    %v5783 = vpow.pop %v5782
    %v5784 = vmul.f32 %v5781, 1.442695
    %v5785 = vpow.pop %v5784
    %v5786 = vadd.f32 %v5783, 1.0
    %v5787 = vadd.f32 %v5785, 1.0
    %v5788 = vrcp.pop %v5786
    %v5789 = vmul.f32 1.0, %v5788
    %v5790 = vrcp.pop %v5787
    %v5791 = vmul.f32 1.0, %v5790
    %v5792 = vxor.u32 %v5778, 2147483648
    %v5793 = vxor.u32 %v5779, 2147483648
    %v5794 = vmul.f32 %v5792, 1.442695
    %v5795 = vpow.pop %v5794
    %v5796 = vmul.f32 %v5793, 1.442695
    %v5797 = vpow.pop %v5796
    %v5798 = vadd.f32 %v5795, 1.0
    %v5799 = vadd.f32 %v5797, 1.0
    %v5800 = vrcp.pop %v5798
    %v5801 = vmul.f32 1.0, %v5800
    %v5802 = vrcp.pop %v5799
    %v5803 = vmul.f32 1.0, %v5802
    %v5804 = vtanh.pop %v5773
    %v5805 = vtanh.pop %v5779
    %v5806 = vmul.f32 %v5789, %v5593
    %5808 = vrot.lane.b32.xlu0 %v5804, 64
    %v5809 = vpop.permute.xlu0 %5808
    %v5811 = vmul.f32 %v5789, %v5809
    %5813 = vrot.lane.b32.xlu0 %v5811, 64
    %v5814 = vpop.permute.xlu0 %5813
    %v5816 = vadd.f32 %v5806, %v5814
    %v5817 = vmul.f32 %v5801, %v5604
    %5819 = vrot.lane.b32.xlu0 %v5805, 64
    %v5820 = vpop.permute.xlu0 %5819
    %v5822 = vmul.f32 %v5801, %v5820
    %5824 = vrot.lane.b32.xlu0 %v5822, 64
    %v5825 = vpop.permute.xlu0 %5824
    %v5827 = vadd.f32 %v5817, %v5825
    %v5828 = vtanh.pop %v5816
    %5830 = vrot.lane.b32.xlu0 %v5828, 64
    %v5831 = vpop.permute.xlu0 %5830
    %v5833 = vmul.f32 %v5791, %v5831
    %v5834 = vtanh.pop %v5827
    %5836 = vrot.lane.b32.xlu0 %v5834, 64
    %v5837 = vpop.permute.xlu0 %5836
    %v5839 = vmul.f32 %v5803, %v5837
    %5840 = vst.msk [vmem:[#allocation2 + $0xa] sm:$0x3] %vm604, %v5833
    %5842 = vrot.lane.b32.xlu0 %v5839, 64
    %v5843 = vpop.permute.xlu0 %5842
    %5845 = vst.msk [vmem:[#allocation2 + $0x4] sm:$0x3] %vm610, %v5843
    %v5846 = vsel %vm612, %v5833, %v5843
    %5847 = vmatprep.subr.mxu0 %v4522
    %5848 = vmatpush1.msra.mxu0 %v4521
    %5849 = vmatprep.subr.mxu0 %v4518
    %5850 = vmatpush1.msra.mxu0 %v4517
    %5851 = vmatprep.subr.mxu0 %v4514
    %5852 = vmatpush1.msra.mxu0 %v4513
    %5853 = vmatprep.subr.mxu0 %v4510
    %5854 = vmatpush1.msra.mxu0 %v4509
    %5855 = vmatprep.subr.mxu0 %v4506
    %5856 = vmatpush1.msra.mxu0 %v4505
    %5857 = vmatprep.subr.mxu0 %v4502
    %5858 = vmatpush1.msra.mxu0 %v4501
    %5859 = vmatprep.subr.mxu0 %v4498
    %5860 = vmatpush1.msra.mxu0 %v4497
    %5861 = vmatprep.subr.mxu0 %v4494
    %5862 = vmatpush1.msra.mxu0 %v4493
    %5863 = vmatprep.subr.mxu0 %v4490
    %5864 = vmatpush1.msra.mxu0 %v4489
    %5865 = vmatprep.subr.mxu0 %v4486
    %5866 = vmatpush1.msra.mxu0 %v4485
    %5867 = vmatprep.subr.mxu0 %v4482
    %5868 = vmatpush1.msra.mxu0 %v4481
    %5869 = vmatprep.subr.mxu0 %v4478
    %5870 = vmatpush1.msra.mxu0 %v4477
    %5871 = vmatprep.subr.mxu0 %v4474
    %5872 = vmatpush1.msra.mxu0 %v4473
    %5873 = vmatprep.subr.mxu0 %v4470
    %5874 = vmatpush1.msra.mxu0 %v4469
    %5875 = vmatprep.subr.mxu0 %v4466
    %5876 = vmatpush1.msra.mxu0 %v4465
    %5877 = vmatprep.subr.mxu0 %v4462
    %5878 = vmatpush1.msra.mxu0 %v4461
    %5879 = vmatprep.subr.mxu0 0.0
    %5880 = vmatpush2.msra.mxu0 0.0
    %5881 = vmatprep.subr.mxu0 0.0
    %5882 = vmatpush2.msra.mxu0 0.0
    %5883 = vmatprep.subr.mxu0 0.0
    %5884 = vmatpush2.msra.mxu0 0.0
    %5885 = vmatprep.subr.mxu0 0.0
    %5886 = vmatpush2.msra.mxu0 0.0
    %5887 = vmatprep.subr.mxu0 0.0
    %5888 = vmatpush2.msra.mxu0 0.0
    %5889 = vmatprep.subr.mxu0 0.0
    %5890 = vmatpush2.msra.mxu0 0.0
    %5891 = vmatprep.subr.mxu0 0.0
    %5892 = vmatpush2.msra.mxu0 0.0
    %5893 = vmatprep.subr.mxu0 0.0
    %5894 = vmatpush2.msra.mxu0 0.0
    %5895 = vmatprep.subr.mxu0 0.0
    %5896 = vmatpush2.msra.mxu0 0.0
    %5897 = vmatprep.subr.mxu0 0.0
    %5898 = vmatpush2.msra.mxu0 0.0
    %5899 = vmatprep.subr.mxu0 0.0
    %5900 = vmatpush2.msra.mxu0 0.0
    %5901 = vmatprep.subr.mxu0 0.0
    %5902 = vmatpush2.msra.mxu0 0.0
    %5903 = vmatprep.subr.mxu0 0.0
    %5904 = vmatpush2.msra.mxu0 0.0
    %5905 = vmatprep.subr.mxu0 0.0
    %5906 = vmatpush2.msra.mxu0 0.0
    %5907 = vmatprep.subr.mxu0 0.0
    %5908 = vmatpush2.msra.mxu0 0.0
    %5909 = vmatprep.subr.mxu0 0.0
    %5910 = vmatpush2.msra.mxu0 0.0
    %5911 = vmatprep.mubr.f32.mxu0 0.0
    %5912 = vmatmul.mubr.f32.gmra.mxu0 %v5846
    %v5913 = vpop.f32.mrf.mxu0
    %v5914 = vadd.f32 0.0, %v5913
    %v5915 = vpop.f32.mrf.mxu0
    %v5916 = vadd.f32 0.0, %v5915
    %5917 = vdwg.mxu0
    %5918 = vmatprep.subr.mxu0 %v4524
    %5919 = vmatpush1.msra.mxu0 %v4523
    %5920 = vmatprep.subr.mxu0 %v4520
    %5921 = vmatpush1.msra.mxu0 %v4519
    %5922 = vmatprep.subr.mxu0 %v4516
    %5923 = vmatpush1.msra.mxu0 %v4515
    %5924 = vmatprep.subr.mxu0 %v4512
    %5925 = vmatpush1.msra.mxu0 %v4511
    %5926 = vmatprep.subr.mxu0 %v4508
    %5927 = vmatpush1.msra.mxu0 %v4507
    %5928 = vmatprep.subr.mxu0 %v4504
    %5929 = vmatpush1.msra.mxu0 %v4503
    %5930 = vmatprep.subr.mxu0 %v4500
    %5931 = vmatpush1.msra.mxu0 %v4499
    %5932 = vmatprep.subr.mxu0 %v4496
    %5933 = vmatpush1.msra.mxu0 %v4495
    %5934 = vmatprep.subr.mxu0 %v4492
    %5935 = vmatpush1.msra.mxu0 %v4491
    %5936 = vmatprep.subr.mxu0 %v4488
    %5937 = vmatpush1.msra.mxu0 %v4487
    %5938 = vmatprep.subr.mxu0 %v4484
    %5939 = vmatpush1.msra.mxu0 %v4483
    %5940 = vmatprep.subr.mxu0 %v4480
    %5941 = vmatpush1.msra.mxu0 %v4479
    %5942 = vmatprep.subr.mxu0 %v4476
    %5943 = vmatpush1.msra.mxu0 %v4475
    %5944 = vmatprep.subr.mxu0 %v4472
    %5945 = vmatpush1.msra.mxu0 %v4471
    %5946 = vmatprep.subr.mxu0 %v4468
    %5947 = vmatpush1.msra.mxu0 %v4467
    %5948 = vmatprep.subr.mxu0 %v4464
    %5949 = vmatpush1.msra.mxu0 %v4463
    %5950 = vmatprep.subr.mxu0 0.0
    %5951 = vmatpush2.msra.mxu0 0.0
    %5952 = vmatprep.subr.mxu0 0.0
    %5953 = vmatpush2.msra.mxu0 0.0
    %5954 = vmatprep.subr.mxu0 0.0
    %5955 = vmatpush2.msra.mxu0 0.0
    %5956 = vmatprep.subr.mxu0 0.0
    %5957 = vmatpush2.msra.mxu0 0.0
    %5958 = vmatprep.subr.mxu0 0.0
    %5959 = vmatpush2.msra.mxu0 0.0
    %5960 = vmatprep.subr.mxu0 0.0
    %5961 = vmatpush2.msra.mxu0 0.0
    %5962 = vmatprep.subr.mxu0 0.0
    %5963 = vmatpush2.msra.mxu0 0.0
    %5964 = vmatprep.subr.mxu0 0.0
    %5965 = vmatpush2.msra.mxu0 0.0
    %5966 = vmatprep.subr.mxu0 0.0
    %5967 = vmatpush2.msra.mxu0 0.0
    %5968 = vmatprep.subr.mxu0 0.0
    %5969 = vmatpush2.msra.mxu0 0.0
    %5970 = vmatprep.subr.mxu0 0.0
    %5971 = vmatpush2.msra.mxu0 0.0
    %5972 = vmatprep.subr.mxu0 0.0
    %5973 = vmatpush2.msra.mxu0 0.0
    %5974 = vmatprep.subr.mxu0 0.0
    %5975 = vmatpush2.msra.mxu0 0.0
    %5976 = vmatprep.subr.mxu0 0.0
    %5977 = vmatpush2.msra.mxu0 0.0
    %5978 = vmatprep.subr.mxu0 0.0
    %5979 = vmatpush2.msra.mxu0 0.0
    %5980 = vmatprep.subr.mxu0 0.0
    %5981 = vmatpush2.msra.mxu0 0.0
    %5982 = vmatprep.mubr.f32.mxu0 0.0
    %5983 = vmatmul.mubr.f32.gmra.mxu0 %v5846
    %v5984 = vpop.f32.mrf.mxu0
    %v5985 = vadd.f32 0.0, %v5984
    %v5986 = vpop.f32.mrf.mxu0
    %v5987 = vadd.f32 0.0, %v5986
    %5988 = vdwg.mxu0
    %v5989 = vrot.slane %v4380, 4
    %v5990 = vrot.slane %v4382, 4
    %v5993 = vadd.f32 %v5914, %v5989
    %v5994 = vadd.f32 %v5916, %v5990
    %v5995 = vrot.slane %v4451, 2
    %v5996 = vrot.slane %v4453, 2
    %v5999 = vadd.f32 %v5985, %v5995
    %v6000 = vadd.f32 %v5987, %v5996
    %v6001 = vxor.u32 %v5993, 2147483648
    %v6002 = vxor.u32 %v5994, 2147483648
    %v6003 = vmul.f32 %v6001, 1.442695
    %v6004 = vpow.pop %v6003
    %v6005 = vmul.f32 %v6002, 1.442695
    %v6006 = vpow.pop %v6005
    %v6007 = vadd.f32 %v6004, 1.0
    %v6008 = vadd.f32 %v6006, 1.0
    %v6009 = vrcp.pop %v6007
    %v6010 = vmul.f32 1.0, %v6009
    %v6011 = vrcp.pop %v6008
    %v6012 = vmul.f32 1.0, %v6011
    %v6013 = vxor.u32 %v5999, 2147483648
    %v6014 = vxor.u32 %v6000, 2147483648
    %v6015 = vmul.f32 %v6013, 1.442695
    %v6016 = vpow.pop %v6015
    %v6017 = vmul.f32 %v6014, 1.442695
    %v6018 = vpow.pop %v6017
    %v6019 = vadd.f32 %v6016, 1.0
    %v6020 = vadd.f32 %v6018, 1.0
    %v6021 = vrcp.pop %v6019
    %v6022 = vmul.f32 1.0, %v6021
    %v6023 = vrcp.pop %v6020
    %v6024 = vmul.f32 1.0, %v6023
    %v6025 = vtanh.pop %v5994
    %v6026 = vtanh.pop %v6000
    %v6027 = vmul.f32 %v6010, %v5816
    %6029 = vrot.lane.b32.xlu0 %v6025, 64
    %v6030 = vpop.permute.xlu0 %6029
    %v6032 = vmul.f32 %v6010, %v6030
    %6034 = vrot.lane.b32.xlu0 %v6032, 64
    %v6035 = vpop.permute.xlu0 %6034
    %v6037 = vadd.f32 %v6027, %v6035
    %v6038 = vmul.f32 %v6022, %v5827
    %6040 = vrot.lane.b32.xlu0 %v6026, 64
    %v6041 = vpop.permute.xlu0 %6040
    %v6043 = vmul.f32 %v6022, %v6041
    %6045 = vrot.lane.b32.xlu0 %v6043, 64
    %v6046 = vpop.permute.xlu0 %6045
    %v6048 = vadd.f32 %v6038, %v6046
    %v6049 = vtanh.pop %v6037
    %6051 = vrot.lane.b32.xlu0 %v6049, 64
    %v6052 = vpop.permute.xlu0 %6051
    %v6054 = vmul.f32 %v6012, %v6052
    %v6055 = vtanh.pop %v6048
    %6057 = vrot.lane.b32.xlu0 %v6055, 64
    %v6058 = vpop.permute.xlu0 %6057
    %v6060 = vmul.f32 %v6024, %v6058
    %6061 = vst.msk [vmem:[#allocation2 + $0xc] sm:$0x3] %vm604, %v6054
    %6063 = vrot.lane.b32.xlu0 %v6060, 64
    %v6064 = vpop.permute.xlu0 %6063
    %6066 = vst.msk [vmem:[#allocation2 + $0x2] sm:$0x3] %vm610, %v6064
    %v6067 = vsel %vm612, %v6054, %v6064
    %6068 = vmatprep.subr.mxu0 %v4522
    %6069 = vmatpush1.msra.mxu0 %v4521
    %6070 = vmatprep.subr.mxu0 %v4518
    %6071 = vmatpush1.msra.mxu0 %v4517
    %6072 = vmatprep.subr.mxu0 %v4514
    %6073 = vmatpush1.msra.mxu0 %v4513
    %6074 = vmatprep.subr.mxu0 %v4510
    %6075 = vmatpush1.msra.mxu0 %v4509
    %6076 = vmatprep.subr.mxu0 %v4506
    %6077 = vmatpush1.msra.mxu0 %v4505
    %6078 = vmatprep.subr.mxu0 %v4502
    %6079 = vmatpush1.msra.mxu0 %v4501
    %6080 = vmatprep.subr.mxu0 %v4498
    %6081 = vmatpush1.msra.mxu0 %v4497
    %6082 = vmatprep.subr.mxu0 %v4494
    %6083 = vmatpush1.msra.mxu0 %v4493
    %6084 = vmatprep.subr.mxu0 %v4490
    %6085 = vmatpush1.msra.mxu0 %v4489
    %6086 = vmatprep.subr.mxu0 %v4486
    %6087 = vmatpush1.msra.mxu0 %v4485
    %6088 = vmatprep.subr.mxu0 %v4482
    %6089 = vmatpush1.msra.mxu0 %v4481
    %6090 = vmatprep.subr.mxu0 %v4478
    %6091 = vmatpush1.msra.mxu0 %v4477
    %6092 = vmatprep.subr.mxu0 %v4474
    %6093 = vmatpush1.msra.mxu0 %v4473
    %6094 = vmatprep.subr.mxu0 %v4470
    %6095 = vmatpush1.msra.mxu0 %v4469
    %6096 = vmatprep.subr.mxu0 %v4466
    %6097 = vmatpush1.msra.mxu0 %v4465
    %6098 = vmatprep.subr.mxu0 %v4462
    %6099 = vmatpush1.msra.mxu0 %v4461
    %6100 = vmatprep.subr.mxu0 0.0
    %6101 = vmatpush2.msra.mxu0 0.0
    %6102 = vmatprep.subr.mxu0 0.0
    %6103 = vmatpush2.msra.mxu0 0.0
    %6104 = vmatprep.subr.mxu0 0.0
    %6105 = vmatpush2.msra.mxu0 0.0
    %6106 = vmatprep.subr.mxu0 0.0
    %6107 = vmatpush2.msra.mxu0 0.0
    %6108 = vmatprep.subr.mxu0 0.0
    %6109 = vmatpush2.msra.mxu0 0.0
    %6110 = vmatprep.subr.mxu0 0.0
    %6111 = vmatpush2.msra.mxu0 0.0
    %6112 = vmatprep.subr.mxu0 0.0
    %6113 = vmatpush2.msra.mxu0 0.0
    %6114 = vmatprep.subr.mxu0 0.0
    %6115 = vmatpush2.msra.mxu0 0.0
    %6116 = vmatprep.subr.mxu0 0.0
    %6117 = vmatpush2.msra.mxu0 0.0
    %6118 = vmatprep.subr.mxu0 0.0
    %6119 = vmatpush2.msra.mxu0 0.0
    %6120 = vmatprep.subr.mxu0 0.0
    %6121 = vmatpush2.msra.mxu0 0.0
    %6122 = vmatprep.subr.mxu0 0.0
    %6123 = vmatpush2.msra.mxu0 0.0
    %6124 = vmatprep.subr.mxu0 0.0
    %6125 = vmatpush2.msra.mxu0 0.0
    %6126 = vmatprep.subr.mxu0 0.0
    %6127 = vmatpush2.msra.mxu0 0.0
    %6128 = vmatprep.subr.mxu0 0.0
    %6129 = vmatpush2.msra.mxu0 0.0
    %6130 = vmatprep.subr.mxu0 0.0
    %6131 = vmatpush2.msra.mxu0 0.0
    %6132 = vmatprep.mubr.f32.mxu0 0.0
    %6133 = vmatmul.mubr.f32.gmra.mxu0 %v6067
    %v6134 = vpop.f32.mrf.mxu0
    %v6135 = vadd.f32 0.0, %v6134
    %v6136 = vpop.f32.mrf.mxu0
    %v6137 = vadd.f32 0.0, %v6136
    %6138 = vdwg.mxu0
    %6139 = vmatprep.subr.mxu0 %v4524
    %6140 = vmatpush1.msra.mxu0 %v4523
    %6141 = vmatprep.subr.mxu0 %v4520
    %6142 = vmatpush1.msra.mxu0 %v4519
    %6143 = vmatprep.subr.mxu0 %v4516
    %6144 = vmatpush1.msra.mxu0 %v4515
    %6145 = vmatprep.subr.mxu0 %v4512
    %6146 = vmatpush1.msra.mxu0 %v4511
    %6147 = vmatprep.subr.mxu0 %v4508
    %6148 = vmatpush1.msra.mxu0 %v4507
    %6149 = vmatprep.subr.mxu0 %v4504
    %6150 = vmatpush1.msra.mxu0 %v4503
    %6151 = vmatprep.subr.mxu0 %v4500
    %6152 = vmatpush1.msra.mxu0 %v4499
    %6153 = vmatprep.subr.mxu0 %v4496
    %6154 = vmatpush1.msra.mxu0 %v4495
    %6155 = vmatprep.subr.mxu0 %v4492
    %6156 = vmatpush1.msra.mxu0 %v4491
    %6157 = vmatprep.subr.mxu0 %v4488
    %6158 = vmatpush1.msra.mxu0 %v4487
    %6159 = vmatprep.subr.mxu0 %v4484
    %6160 = vmatpush1.msra.mxu0 %v4483
    %6161 = vmatprep.subr.mxu0 %v4480
    %6162 = vmatpush1.msra.mxu0 %v4479
    %6163 = vmatprep.subr.mxu0 %v4476
    %6164 = vmatpush1.msra.mxu0 %v4475
    %6165 = vmatprep.subr.mxu0 %v4472
    %6166 = vmatpush1.msra.mxu0 %v4471
    %6167 = vmatprep.subr.mxu0 %v4468
    %6168 = vmatpush1.msra.mxu0 %v4467
    %6169 = vmatprep.subr.mxu0 %v4464
    %6170 = vmatpush1.msra.mxu0 %v4463
    %6171 = vmatprep.subr.mxu0 0.0
    %6172 = vmatpush2.msra.mxu0 0.0
    %6173 = vmatprep.subr.mxu0 0.0
    %6174 = vmatpush2.msra.mxu0 0.0
    %6175 = vmatprep.subr.mxu0 0.0
    %6176 = vmatpush2.msra.mxu0 0.0
    %6177 = vmatprep.subr.mxu0 0.0
    %6178 = vmatpush2.msra.mxu0 0.0
    %6179 = vmatprep.subr.mxu0 0.0
    %6180 = vmatpush2.msra.mxu0 0.0
    %6181 = vmatprep.subr.mxu0 0.0
    %6182 = vmatpush2.msra.mxu0 0.0
    %6183 = vmatprep.subr.mxu0 0.0
    %6184 = vmatpush2.msra.mxu0 0.0
    %6185 = vmatprep.subr.mxu0 0.0
    %6186 = vmatpush2.msra.mxu0 0.0
    %6187 = vmatprep.subr.mxu0 0.0
    %6188 = vmatpush2.msra.mxu0 0.0
    %6189 = vmatprep.subr.mxu0 0.0
    %6190 = vmatpush2.msra.mxu0 0.0
    %6191 = vmatprep.subr.mxu0 0.0
    %6192 = vmatpush2.msra.mxu0 0.0
    %6193 = vmatprep.subr.mxu0 0.0
    %6194 = vmatpush2.msra.mxu0 0.0
    %6195 = vmatprep.subr.mxu0 0.0
    %6196 = vmatpush2.msra.mxu0 0.0
    %6197 = vmatprep.subr.mxu0 0.0
    %6198 = vmatpush2.msra.mxu0 0.0
    %6199 = vmatprep.subr.mxu0 0.0
    %6200 = vmatpush2.msra.mxu0 0.0
    %6201 = vmatprep.subr.mxu0 0.0
    %6202 = vmatpush2.msra.mxu0 0.0
    %6203 = vmatprep.mubr.f32.mxu0 0.0
    %6204 = vmatmul.mubr.f32.gmra.mxu0 %v6067
    %v6205 = vpop.f32.mrf.mxu0
    %v6206 = vadd.f32 0.0, %v6205
    %v6207 = vpop.f32.mrf.mxu0
    %v6208 = vadd.f32 0.0, %v6207
    %6209 = vdwg.mxu0
    %v6210 = vrot.slane %v4380, 6
    %v6211 = vrot.slane %v4382, 6
    %v6214 = vadd.f32 %v6135, %v6210
    %v6215 = vadd.f32 %v6137, %v6211
    %v6216 = vadd.f32 %v6206, %v4451
    %v6217 = vadd.f32 %v6208, %v4453
    %v6218 = vxor.u32 %v6214, 2147483648
    %v6219 = vxor.u32 %v6215, 2147483648
    %v6220 = vmul.f32 %v6218, 1.442695
    %v6221 = vpow.pop %v6220
    %v6222 = vmul.f32 %v6219, 1.442695
    %v6223 = vpow.pop %v6222
    %v6224 = vadd.f32 %v6221, 1.0
    %v6225 = vadd.f32 %v6223, 1.0
    %v6226 = vrcp.pop %v6224
    %v6227 = vmul.f32 1.0, %v6226
    %v6228 = vrcp.pop %v6225
    %v6229 = vmul.f32 1.0, %v6228
    %v6230 = vxor.u32 %v6216, 2147483648
    %v6231 = vxor.u32 %v6217, 2147483648
    %v6232 = vmul.f32 %v6230, 1.442695
    %v6233 = vpow.pop %v6232
    %v6234 = vmul.f32 %v6231, 1.442695
    %v6235 = vpow.pop %v6234
    %v6236 = vadd.f32 %v6233, 1.0
    %v6237 = vadd.f32 %v6235, 1.0
    %v6238 = vrcp.pop %v6236
    %v6239 = vmul.f32 1.0, %v6238
    %v6240 = vrcp.pop %v6237
    %v6241 = vmul.f32 1.0, %v6240
    %v6242 = vtanh.pop %v6215
    %v6243 = vtanh.pop %v6217
    %v6244 = vmul.f32 %v6227, %v6037
    %6246 = vrot.lane.b32.xlu0 %v6242, 64
    %v6247 = vpop.permute.xlu0 %6246
    %v6249 = vmul.f32 %v6227, %v6247
    %6251 = vrot.lane.b32.xlu0 %v6249, 64
    %v6252 = vpop.permute.xlu0 %6251
    %v6254 = vadd.f32 %v6244, %v6252
    %v6255 = vmul.f32 %v6239, %v6048
    %6257 = vrot.lane.b32.xlu0 %v6243, 64
    %v6258 = vpop.permute.xlu0 %6257
    %v6260 = vmul.f32 %v6239, %v6258
    %6262 = vrot.lane.b32.xlu0 %v6260, 64
    %v6263 = vpop.permute.xlu0 %6262
    %v6265 = vadd.f32 %v6255, %v6263
    %v6266 = vtanh.pop %v6254
    %6268 = vrot.lane.b32.xlu0 %v6266, 64
    %v6269 = vpop.permute.xlu0 %6268
    %v6271 = vmul.f32 %v6229, %v6269
    %v6272 = vtanh.pop %v6265
    %6274 = vrot.lane.b32.xlu0 %v6272, 64
    %v6275 = vpop.permute.xlu0 %6274
    %v6277 = vmul.f32 %v6241, %v6275
    %6278 = vst.msk [vmem:[#allocation2 + $0xe] sm:$0x3] %vm604, %v6271
    %6280 = vrot.lane.b32.xlu0 %v6277, 64
    %v6281 = vpop.permute.xlu0 %6280
    %6283 = vst.msk [vmem:[#allocation2] sm:$0x3] %vm610, %v6281
    %v6284 = vld [vmem:[#allocation2 + $0xe] sm:$0x3]
    %v6285 = vld [vmem:[%s10] sm:$0xff]
    %v6286 = vld [vmem:[%s10 + $0x8] sm:$0xff]
    %v6287 = vld [vmem:[%s10 + $0x10] sm:$0xff]
    %v6288 = vld [vmem:[%s10 + $0x18] sm:$0xff]
    %v6289 = vld [vmem:[%s10 + $0x20] sm:$0xff]
    %v6290 = vld [vmem:[%s10 + $0x28] sm:$0xff]
    %v6291 = vld [vmem:[%s10 + $0x30] sm:$0xff]
    %v6292 = vld [vmem:[%s10 + $0x38] sm:$0xff]
    %v6293 = vld [vmem:[%s10 + $0x40] sm:$0xff]
    %v6294 = vld [vmem:[%s10 + $0x48] sm:$0xff]
    %v6295 = vld [vmem:[%s10 + $0x50] sm:$0xff]
    %v6296 = vld [vmem:[%s10 + $0x58] sm:$0xff]
    %v6297 = vld [vmem:[%s10 + $0x60] sm:$0xff]
    %v6298 = vld [vmem:[%s10 + $0x68] sm:$0xff]
    %v6299 = vld [vmem:[%s10 + $0x70] sm:$0xff]
    %v6300 = vld [vmem:[%s10 + $0x78] sm:$0xff]
    %v6301 = vld [vmem:[%s11] sm:$0x1]
    %v6303 = vlaneseq
    %v6304 = vshrl.u32 %v6303, 7
    %v6305 = vsub.s32 0, %v6304
    %v6306 = vrot.slane %v6301, %v6305
    %6308 = vmatprep.subr.mxu0 0.0
    %6309 = vmatpush1.msra.mxu0 %v6300
    %6310 = vmatprep.subr.mxu0 0.0
    %6311 = vmatpush1.msra.mxu0 %v6299
    %6312 = vmatprep.subr.mxu0 0.0
    %6313 = vmatpush1.msra.mxu0 %v6298
    %6314 = vmatprep.subr.mxu0 0.0
    %6315 = vmatpush1.msra.mxu0 %v6297
    %6316 = vmatprep.subr.mxu0 0.0
    %6317 = vmatpush1.msra.mxu0 %v6296
    %6318 = vmatprep.subr.mxu0 0.0
    %6319 = vmatpush1.msra.mxu0 %v6295
    %6320 = vmatprep.subr.mxu0 0.0
    %6321 = vmatpush1.msra.mxu0 %v6294
    %6322 = vmatprep.subr.mxu0 0.0
    %6323 = vmatpush1.msra.mxu0 %v6293
    %6324 = vmatprep.subr.mxu0 0.0
    %6325 = vmatpush1.msra.mxu0 %v6292
    %6326 = vmatprep.subr.mxu0 0.0
    %6327 = vmatpush1.msra.mxu0 %v6291
    %6328 = vmatprep.subr.mxu0 0.0
    %6329 = vmatpush1.msra.mxu0 %v6290
    %6330 = vmatprep.subr.mxu0 0.0
    %6331 = vmatpush1.msra.mxu0 %v6289
    %6332 = vmatprep.subr.mxu0 0.0
    %6333 = vmatpush1.msra.mxu0 %v6288
    %6334 = vmatprep.subr.mxu0 0.0
    %6335 = vmatpush1.msra.mxu0 %v6287
    %6336 = vmatprep.subr.mxu0 0.0
    %6337 = vmatpush1.msra.mxu0 %v6286
    %6338 = vmatprep.subr.mxu0 0.0
    %6339 = vmatpush1.msra.mxu0 %v6285
    %6340 = vmatprep.subr.mxu0 0.0
    %6341 = vmatpush2.msra.mxu0 0.0
    %6342 = vmatprep.subr.mxu0 0.0
    %6343 = vmatpush2.msra.mxu0 0.0
    %6344 = vmatprep.subr.mxu0 0.0
    %6345 = vmatpush2.msra.mxu0 0.0
    %6346 = vmatprep.subr.mxu0 0.0
    %6347 = vmatpush2.msra.mxu0 0.0
    %6348 = vmatprep.subr.mxu0 0.0
    %6349 = vmatpush2.msra.mxu0 0.0
    %6350 = vmatprep.subr.mxu0 0.0
    %6351 = vmatpush2.msra.mxu0 0.0
    %6352 = vmatprep.subr.mxu0 0.0
    %6353 = vmatpush2.msra.mxu0 0.0
    %6354 = vmatprep.subr.mxu0 0.0
    %6355 = vmatpush2.msra.mxu0 0.0
    %6356 = vmatprep.subr.mxu0 0.0
    %6357 = vmatpush2.msra.mxu0 0.0
    %6358 = vmatprep.subr.mxu0 0.0
    %6359 = vmatpush2.msra.mxu0 0.0
    %6360 = vmatprep.subr.mxu0 0.0
    %6361 = vmatpush2.msra.mxu0 0.0
    %6362 = vmatprep.subr.mxu0 0.0
    %6363 = vmatpush2.msra.mxu0 0.0
    %6364 = vmatprep.subr.mxu0 0.0
    %6365 = vmatpush2.msra.mxu0 0.0
    %6366 = vmatprep.subr.mxu0 0.0
    %6367 = vmatpush2.msra.mxu0 0.0
    %6368 = vmatprep.subr.mxu0 0.0
    %6369 = vmatpush2.msra.mxu0 0.0
    %6370 = vmatprep.subr.mxu0 0.0
    %6371 = vmatpush2.msra.mxu0 0.0
    %6372 = vmatprep.mubr.f32.mxu0 0.0
    %6373 = vmatmul.mubr.f32.gmra.mxu0 %v6284
    %v6374 = vpop.f32.mrf.mxu0
    %v6375 = vadd.f32 %v6306, %v6374
    %v6376 = vpop.f32.mrf.mxu0
    %6377 = vdwg.mxu0
    %vm6378 = vcmask 156672
    %6379 = vst.msk [vmem:[#allocation12] sm:$0x3] %vm6378, %v6375
    // Predicated region
    $region70: #{rnn_forward.1} parent=1 // pred_check
      _
    $region71: #{rnn_forward.1} parent=1 // pred_check_branch
      %6381 = sbr.rel (0) target = $region73
    $region72: #{rnn_forward.1} parent=1 // pred_region
      %s6383 = ssub.s32 32, 32
      %6384 = vsyncadd [#allocation5], %s6383
      %s6386 = sshll.u32 [#allocation12], 4
      %s6387 = int_to_ptr.vmem [resolvable:$true] %s6386
      %6389 = dma.vmem_to_hbm [thread:$0]  %s6387, 32, %s12, [#allocation5]
    $region73: #{rnn_forward.1} parent=1 // pred_fallthru
      _
    // Predicated region
    $region74: #{rnn_forward.1} parent=1 // pred_check
      _
    $region75: #{rnn_forward.1} parent=1 // pred_check_branch
      %6391 = sbr.rel (0) target = $region77
    $region76: #{rnn_forward.1} parent=1 // pred_region
      %6392 = dma.done [#allocation5], 32
    $region77: #{rnn_forward.1} parent=1 // pred_fallthru
      _
    %6393 = vsyncpa [#allocation4], 1
    %6394 = vsyncpa [#allocation7], 1
    %6395 = vsyncpa [#allocation10], 1
    %6396 = vsyncpa [#allocation5], 1

</llo_original>
